<compile_context>
chip_gen: v7x
topology: tpu7x:2x2x1
jax: 0.10.0
libtpu: 0.0.40
codegen_flags: <defaults>
</compile_context>

<pallas_src>
from functools import partial

import numpy as np
import jax
import jax.numpy as jnp
from jax.experimental import pallas as pl
from jax.experimental.pallas import tpu as pltpu


# ----------------------------------------------------------------------------
# Math helpers (shared by kernels and reference)
# ----------------------------------------------------------------------------
_GELU_C = np.float32(np.sqrt(2.0 / np.pi))


def _gelu_tanh(x):
    return 0.5 * x * (1.0 + jnp.tanh(_GELU_C * (x + 0.044715 * x * x * x)))


def _layernorm(x, g, b, eps):
    mu = jnp.mean(x, axis=-1, keepdims=True)
    xc = x - mu
    var = jnp.mean(xc * xc, axis=-1, keepdims=True)
    return xc * jax.lax.rsqrt(var + eps) * g + b


def _layer_math(x, g1, b1, wq, wk, wv, bq, bk, bv, wo, bo, g2, b2,
                w1, bb1, w2, bb2, *, B, L, D, H, Dh, eps):
    """One pre-norm EncoderLayer on an (B*L, D) f32 activation.

    Weights arrive head-major ((H, D, Dh) / (H, Dh, D)): per-head access is a
    leading-axis index (no lane slicing) and head outputs are folded into the
    output projection by accumulation (no lane-dim concatenate).
    """
    bf16 = jnp.bfloat16
    f32 = jnp.float32
    scale = np.float32(1.0 / np.sqrt(Dh))

    # ---- pre-norm multi-head self-attention --------------------------------
    xn = _layernorm(x, g1, b1, eps).astype(bf16)                    # (B*L, D)
    attn = jnp.zeros((B * L, D), f32)
    for h in range(H):                                              # static head unroll
        qh = (jnp.dot(xn, wq[h], preferred_element_type=f32) + bq[h]).reshape(B, L, Dh)
        kh = (jnp.dot(xn, wk[h], preferred_element_type=f32) + bk[h]).reshape(B, L, Dh)
        vh = (jnp.dot(xn, wv[h], preferred_element_type=f32) + bv[h]).reshape(B, L, Dh)
        s = jnp.einsum("bld,bmd->blm", qh.astype(bf16), kh.astype(bf16),
                       preferred_element_type=f32) * scale
        s = s - jnp.max(s, axis=-1, keepdims=True)
        p = jnp.exp(s)
        p = p * pl.reciprocal(jnp.sum(p, axis=-1, keepdims=True), approx=True)
        oh = jnp.einsum("blm,bmd->bld", p.astype(bf16), vh.astype(bf16),
                        preferred_element_type=f32).reshape(B * L, Dh)
        attn = attn + jnp.dot(oh.astype(bf16), wo[h], preferred_element_type=f32)
    x = x + attn + bo

    # ---- pre-norm MLP (4x, GELU) --------------------------------------------
    xn2 = _layernorm(x, g2, b2, eps).astype(bf16)
    mid = _gelu_tanh(jnp.dot(xn2, w1, preferred_element_type=f32) + bb1)
    x = x + jnp.dot(mid.astype(bf16), w2, preferred_element_type=f32) + bb2
    return x


# ----------------------------------------------------------------------------
# Kernel A: everything resident in VMEM, single invocation (small widths)
# ----------------------------------------------------------------------------
def _resident_kernel(z_ref, pos_ref,
                     g1_ref, b1_ref, wq_ref, wk_ref, wv_ref,
                     bq_ref, bk_ref, bv_ref, wo_ref, bo_ref,
                     g2_ref, b2_ref, w1_ref, bb1_ref, w2_ref, bb2_ref,
                     o_ref, *, num_layers, num_heads, eps):
    B, L, D = z_ref.shape
    H = num_heads
    Dh = D // H
    x = (z_ref[...].astype(jnp.float32)
         + pos_ref[...].astype(jnp.float32)).reshape(B * L, D)
    for i in range(num_layers):          # all weights already in VMEM; static unroll
        x = _layer_math(x, g1_ref[i], b1_ref[i],
                        wq_ref[i], wk_ref[i], wv_ref[i],
                        bq_ref[i], bk_ref[i], bv_ref[i],
                        wo_ref[i], bo_ref[i], g2_ref[i], b2_ref[i],
                        w1_ref[i], bb1_ref[i], w2_ref[i], bb2_ref[i],
                        B=B, L=L, D=D, H=H, Dh=Dh, eps=eps)
    o_ref[...] = x.astype(o_ref.dtype)   # single final store/cast


# ----------------------------------------------------------------------------
# Kernel B: weights streamed over a (num_layers,) "arbitrary" grid axis
# ----------------------------------------------------------------------------
def _streamed_kernel(z_ref, pos_ref,
                     g1_ref, b1_ref, wq_ref, wk_ref, wv_ref,
                     bq_ref, bk_ref, bv_ref, wo_ref, bo_ref,
                     g2_ref, b2_ref, w1_ref, bb1_ref, w2_ref, bb2_ref,
                     o_ref, h_ref, *, num_heads, eps):
    layer = pl.program_id(0)
    B, L, D = z_ref.shape
    H = num_heads
    Dh = D // H

    @pl.when(layer == 0)
    def _():
        h_ref[...] = (z_ref[...].astype(jnp.float32)
                      + pos_ref[...].astype(jnp.float32)).reshape(B * L, D)

    x = _layer_math(h_ref[...], g1_ref[0], b1_ref[0],
                    wq_ref[0], wk_ref[0], wv_ref[0],
                    bq_ref[0], bk_ref[0], bv_ref[0],
                    wo_ref[0], bo_ref[0], g2_ref[0], b2_ref[0],
                    w1_ref[0], bb1_ref[0], w2_ref[0], bb2_ref[0],
                    B=B, L=L, D=D, H=H, Dh=Dh, eps=eps)
    h_ref[...] = x                        # f32 carry stays in VMEM scratch

    @pl.when(layer == pl.num_programs(0) - 1)
    def _():
        o_ref[...] = x.astype(o_ref.dtype)   # gated: cast + store only once


# ----------------------------------------------------------------------------
# Host-side parameter packing (head-major, bf16 weights)
# ----------------------------------------------------------------------------
def _stack_layers(layers, num_heads):
    D = layers[0]["wo"].shape[0]
    H = num_heads
    Dh = D // H

    def st(fn, dtype=None):
        a = jnp.stack([fn(l) for l in layers], axis=0)
        return a.astype(dtype) if dtype is not None else a

    g1 = st(lambda l: l["g1"])
    b1 = st(lambda l: l["b1"])
    wq = st(lambda l: l["wqkv"][:, :D].reshape(D, H, Dh).transpose(1, 0, 2), jnp.bfloat16)
    wk = st(lambda l: l["wqkv"][:, D:2 * D].reshape(D, H, Dh).transpose(1, 0, 2), jnp.bfloat16)
    wv = st(lambda l: l["wqkv"][:, 2 * D:].reshape(D, H, Dh).transpose(1, 0, 2), jnp.bfloat16)
    bq = st(lambda l: l["bqkv"][0, :D].reshape(H, 1, Dh))
    bk = st(lambda l: l["bqkv"][0, D:2 * D].reshape(H, 1, Dh))
    bv = st(lambda l: l["bqkv"][0, 2 * D:].reshape(H, 1, Dh))
    wo = st(lambda l: l["wo"].reshape(H, Dh, D), jnp.bfloat16)
    bo = st(lambda l: l["bo"])
    g2 = st(lambda l: l["g2"])
    b2 = st(lambda l: l["b2"])
    w1 = st(lambda l: l["w1"], jnp.bfloat16)
    bb1 = st(lambda l: l["bb1"])
    w2 = st(lambda l: l["w2"], jnp.bfloat16)
    bb2 = st(lambda l: l["bb2"])
    return (g1, b1, wq, wk, wv, bq, bk, bv, wo, bo, g2, b2, w1, bb1, w2, bb2)


def _vmem_limit_bytes(block_param_bytes, act_bytes):
    # double-buffered weight blocks + resident activations/intermediates + headroom
    need = 2 * block_param_bytes + 4 * act_bytes + (8 << 20)
    return int(min(max(need, 32 << 20), 100 << 20))


# ----------------------------------------------------------------------------
# Pallas wrapper
# ----------------------------------------------------------------------------
def one_d_decoder_forward(z, params, *, num_heads, eps, force_streamed=False):
    # forward(): the `query` buffer is empty -> the padding branch is dead code.
    B, L, D = z.shape
    assert D % num_heads == 0
    layers = params["layers"]
    n_layers = len(layers)
    pos = params["pos"][:L, :]

    stacked = _stack_layers(layers, num_heads)
    H, Dh = num_heads, D // num_heads

    param_bytes = sum(int(a.size) * a.dtype.itemsize for a in stacked)
    act_bytes = B * L * D * 4 * 8          # h + GELU mid + attention intermediates (f32)
    io_bytes = 2 * B * L * D * 4 + L * D * 4

    cost = pl.CostEstimate(
        flops=int(n_layers * 2 * B * L * D * (12 * D + 2 * L)),
        transcendentals=int(n_layers * B * L * (L * num_heads + 4 * D + 2)),
        bytes_accessed=int(param_bytes + io_bytes))

    operands = (z, pos) + stacked
    out_shape = jax.ShapeDtypeStruct((B * L, D), z.dtype)

    use_resident = (not force_streamed) and (param_bytes + act_bytes < (48 << 20))

    if use_resident:
        # Review #9: at small widths the per-layer grid is pure overhead; keep all
        # weights in VMEM and loop over layers inside one invocation.
        out = pl.pallas_call(
            partial(_resident_kernel, num_layers=n_layers,
                    num_heads=num_heads, eps=eps),
            out_shape=out_shape,
            compiler_params=pltpu.CompilerParams(
                vmem_limit_bytes=_vmem_limit_bytes(param_bytes, act_bytes)),
            cost_estimate=cost,
        )(*operands)
    else:
        # Streamed path: per-layer weights double-buffered across the layer grid;
        # f32 activation resident in VMEM scratch; output write gated on last layer.
        def layer_spec(shape):
            nd = len(shape)
            return pl.BlockSpec((1,) + shape, lambda l, _nd=nd: (l,) + (0,) * _nd)

        in_specs = [
            pl.BlockSpec((B, L, D), lambda l: (0, 0, 0)),        # z (fetched once)
            pl.BlockSpec((L, D), lambda l: (0, 0)),              # positional encodings
            layer_spec((1, D)), layer_spec((1, D)),              # ln1 gamma/beta
            layer_spec((H, D, Dh)), layer_spec((H, D, Dh)), layer_spec((H, D, Dh)),
            layer_spec((H, 1, Dh)), layer_spec((H, 1, Dh)), layer_spec((H, 1, Dh)),
            layer_spec((H, Dh, D)), layer_spec((1, D)),          # Wo, bo
            layer_spec((1, D)), layer_spec((1, D)),              # ln2 gamma/beta
            layer_spec((D, 4 * D)), layer_spec((1, 4 * D)),      # W1, b1
            layer_spec((4 * D, D)), layer_spec((1, D)),          # W2, b2
        ]
        per_layer_bytes = param_bytes // max(n_layers, 1)
        # TODO(synk): for D >~ 1024 on v7x, chunk W1/W2 over the 4D hidden dim and
        # add a parallel batch grid axis for the second TensorCore.
        out = pl.pallas_call(
            partial(_streamed_kernel, num_heads=num_heads, eps=eps),
            out_shape=out_shape,
            grid=(n_layers,),
            in_specs=in_specs,
            out_specs=pl.BlockSpec((B * L, D), lambda l: (0, 0)),
            scratch_shapes=[pltpu.VMEM((B * L, D), jnp.float32)],
            compiler_params=pltpu.CompilerParams(
                dimension_semantics=("arbitrary",),
                vmem_limit_bytes=_vmem_limit_bytes(per_layer_bytes, act_bytes)),
            cost_estimate=cost,
        )(*operands)

    # (B*L, D) -> (B, L, D) is a pure-metadata reshape on the HBM result.
    return out.reshape(B, L, D)


# ----------------------------------------------------------------------------
# Deterministic synthetic parameters (mirrors __init__)
# ----------------------------------------------------------------------------
def init_params(key, num_latents, width, num_layers):
    keys = jax.random.split(key, 1 + num_layers)

    # positional_encodings = init_sort(F.normalize(normal(num_latents, width)))
    pe = jax.random.normal(keys[0], (num_latents, width), jnp.float32)
    pe = pe / jnp.maximum(jnp.linalg.norm(pe, axis=-1, keepdims=True), 1e-12)
    dist = jnp.linalg.norm(pe - pe[:1], axis=-1)      # cdist(x, x[:1]).squeeze()
    pe = pe[jnp.argsort(dist)]

    # tfixup-style depth scaling applied to linear weights (synthetic stand-in).
    scale = 0.67 * num_layers ** (-0.25)

    def lin(k, fan_in, fan_out):
        return (jax.random.normal(k, (fan_in, fan_out), jnp.float32)
                * (scale / np.sqrt(fan_in)))

    layers = []
    for i in range(num_layers):
        k = jax.random.split(keys[1 + i], 4)
        layers.append(dict(
            g1=jnp.ones((1, width), jnp.float32),
            b1=jnp.zeros((1, width), jnp.float32),
            wqkv=lin(k[0], width, 3 * width),
            bqkv=jnp.zeros((1, 3 * width), jnp.float32),
            wo=lin(k[1], width, width),
            bo=jnp.zeros((1, width), jnp.float32),
            g2=jnp.ones((1, width), jnp.float32),
            b2=jnp.zeros((1, width), jnp.float32),
            w1=lin(k[2], width, 4 * width),
            bb1=jnp.zeros((1, 4 * width), jnp.float32),
            w2=lin(k[3], 4 * width, width),
            bb2=jnp.zeros((1, width), jnp.float32),
        ))
    return dict(pos=pe, layers=layers)


# ----------------------------------------------------------------------------
# Pure-JAX reference (same math: bf16 MXU operands, f32 accumulation/elementwise)
# ----------------------------------------------------------------------------
def ref_forward(z, params, *, num_heads, eps):
    B, L, D = z.shape
    H = num_heads
    Dh = D // H
    scale = np.float32(1.0 / np.sqrt(Dh))
    bf16 = jnp.bfloat16
    f32 = jnp.float32
    x = (z.astype(f32) + params["pos"][:L][None]).reshape(B * L, D)
    for p in params["layers"]:
        xn = _layernorm(x, p["g1"], p["b1"], eps).astype(bf16)
        qkv = jnp.dot(xn, p["wqkv"].astype(bf16),
                      preferred_element_type=f32) + p["bqkv"]
        q = qkv[:, :D].reshape(B, L, D)
        k = qkv[:, D:2 * D].reshape(B, L, D)
        v = qkv[:, 2 * D:].reshape(B, L, D)
        heads = []
        for hh in range(H):
            sl = slice(hh * Dh, (hh + 1) * Dh)
            s = jnp.einsum("bld,bmd->blm", q[..., sl].astype(bf16),
                           k[..., sl].astype(bf16),
                           preferred_element_type=f32) * scale
            s = s - s.max(-1, keepdims=True)
            pm = jnp.exp(s)
            pm = pm / pm.sum(-1, keepdims=True)
            heads.append(jnp.einsum("blm,bmd->bld", pm.astype(bf16),
                                    v[..., sl].astype(bf16),
                                    preferred_element_type=f32))
        attn = jnp.concatenate(heads, -1).reshape(B * L, D)
        attn = jnp.dot(attn.astype(bf16), p["wo"].astype(bf16),
                       preferred_element_type=f32) + p["bo"]
        x = x + attn
        xn2 = _layernorm(x, p["g2"], p["b2"], eps).astype(bf16)
        mid = _gelu_tanh(jnp.dot(xn2, p["w1"].astype(bf16),
                                 preferred_element_type=f32) + p["bb1"])
        x = x + jnp.dot(mid.astype(bf16), p["w2"].astype(bf16),
                        preferred_element_type=f32) + p["bb2"]
    return x.reshape(B, L, D)


# ----------------------------------------------------------------------------
if __name__ == "__main__":
    NUM_LATENTS = 16
    WIDTH = 64
    NUM_HEADS = 4
    NUM_LAYERS = 2
    EPS = 1e-6
    BATCH = 2

    key = jax.random.PRNGKey(0)
    kp, kz = jax.random.split(key)
    params = init_params(kp, NUM_LATENTS, WIDTH, NUM_LAYERS)
    z = jax.random.normal(kz, (BATCH, NUM_LATENTS, WIDTH), jnp.float32)

    ref = jax.block_until_ready(
        ref_forward(z, params, num_heads=NUM_HEADS, eps=EPS))

    # Resident path (selected automatically at these small shapes).
    out = jax.block_until_ready(
        one_d_decoder_forward(z, params, num_heads=NUM_HEADS, eps=EPS))
    assert out.shape == (BATCH, NUM_LATENTS, WIDTH)
    assert jnp.allclose(out, ref, rtol=1e-2, atol=1e-2), (
        float(jnp.max(jnp.abs(out - ref))))

    # Streamed (per-layer weight pipelining) path, exercised explicitly.
    out_s = jax.block_until_ready(
        one_d_decoder_forward(z, params, num_heads=NUM_HEADS, eps=EPS,
                              force_streamed=True))
    assert jnp.allclose(out_s, ref, rtol=1e-2, atol=1e-2), (
        float(jnp.max(jnp.abs(out_s - ref))))

    print("KERNEL_OK")
</pallas_src>

<mosaic_0001>
module attributes {stable_mosaic.version = 11 : i64} {
  func.func @_resident_kernel(%arg0: memref<2x16x64xf32, #tpu.memory_space<vmem>>, %arg1: memref<16x64xf32, #tpu.memory_space<vmem>>, %arg2: memref<2x1x64xf32, #tpu.memory_space<vmem>>, %arg3: memref<2x1x64xf32, #tpu.memory_space<vmem>>, %arg4: memref<2x4x64x16xbf16, #tpu.memory_space<vmem>>, %arg5: memref<2x4x64x16xbf16, #tpu.memory_space<vmem>>, %arg6: memref<2x4x64x16xbf16, #tpu.memory_space<vmem>>, %arg7: memref<2x4x1x16xf32, #tpu.memory_space<vmem>>, %arg8: memref<2x4x1x16xf32, #tpu.memory_space<vmem>>, %arg9: memref<2x4x1x16xf32, #tpu.memory_space<vmem>>, %arg10: memref<2x4x16x64xbf16, #tpu.memory_space<vmem>>, %arg11: memref<2x1x64xf32, #tpu.memory_space<vmem>>, %arg12: memref<2x1x64xf32, #tpu.memory_space<vmem>>, %arg13: memref<2x1x64xf32, #tpu.memory_space<vmem>>, %arg14: memref<2x64x256xbf16, #tpu.memory_space<vmem>>, %arg15: memref<2x1x256xf32, #tpu.memory_space<vmem>>, %arg16: memref<2x256x64xbf16, #tpu.memory_space<vmem>>, %arg17: memref<2x1x64xf32, #tpu.memory_space<vmem>>, %arg18: memref<32x64xf32, #tpu.memory_space<vmem>>) attributes {dimension_semantics = [], scalar_prefetch = 0 : i64, scratch_operands = 0 : i64, tpu.core_type = #tpu.core_type<tc>} {
    %c0 = arith.constant 0 : index
    %c0_0 = arith.constant 0 : index
    %c0_1 = arith.constant 0 : index
    %0 = vector.load %arg0[%c0, %c0_0, %c0_1] : memref<2x16x64xf32, #tpu.memory_space<vmem>>, vector<2x16x64xf32>
    %c0_2 = arith.constant 0 : index
    %c0_3 = arith.constant 0 : index
    %1 = vector.load %arg1[%c0_2, %c0_3] : memref<16x64xf32, #tpu.memory_space<vmem>>, vector<16x64xf32>
    %2 = vector.shape_cast %1 : vector<16x64xf32> to vector<1x16x64xf32>
    %3 = vector.broadcast %2 : vector<1x16x64xf32> to vector<2x16x64xf32>
    %4 = arith.addf %0, %3 : vector<2x16x64xf32>
    %5 = vector.shape_cast %4 : vector<2x16x64xf32> to vector<32x64xf32>
    %c0_4 = arith.constant 0 : index
    %c0_5 = arith.constant 0 : index
    %c0_6 = arith.constant 0 : index
    %6 = vector.load %arg2[%c0_4, %c0_5, %c0_6] : memref<2x1x64xf32, #tpu.memory_space<vmem>>, vector<1x1x64xf32>
    %7 = vector.shape_cast %6 : vector<1x1x64xf32> to vector<1x64xf32>
    %c0_7 = arith.constant 0 : index
    %c0_8 = arith.constant 0 : index
    %c0_9 = arith.constant 0 : index
    %8 = vector.load %arg3[%c0_7, %c0_8, %c0_9] : memref<2x1x64xf32, #tpu.memory_space<vmem>>, vector<1x1x64xf32>
    %9 = vector.shape_cast %8 : vector<1x1x64xf32> to vector<1x64xf32>
    %c0_10 = arith.constant 0 : index
    %c0_11 = arith.constant 0 : index
    %c0_12 = arith.constant 0 : index
    %c0_13 = arith.constant 0 : index
    %10 = vector.load %arg4[%c0_10, %c0_11, %c0_12, %c0_13] : memref<2x4x64x16xbf16, #tpu.memory_space<vmem>>, vector<1x4x64x16xbf16>
    %11 = vector.shape_cast %10 : vector<1x4x64x16xbf16> to vector<4x64x16xbf16>
    %c0_14 = arith.constant 0 : index
    %c0_15 = arith.constant 0 : index
    %c0_16 = arith.constant 0 : index
    %c0_17 = arith.constant 0 : index
    %12 = vector.load %arg5[%c0_14, %c0_15, %c0_16, %c0_17] : memref<2x4x64x16xbf16, #tpu.memory_space<vmem>>, vector<1x4x64x16xbf16>
    %13 = vector.shape_cast %12 : vector<1x4x64x16xbf16> to vector<4x64x16xbf16>
    %c0_18 = arith.constant 0 : index
    %c0_19 = arith.constant 0 : index
    %c0_20 = arith.constant 0 : index
    %c0_21 = arith.constant 0 : index
    %14 = vector.load %arg6[%c0_18, %c0_19, %c0_20, %c0_21] : memref<2x4x64x16xbf16, #tpu.memory_space<vmem>>, vector<1x4x64x16xbf16>
    %15 = vector.shape_cast %14 : vector<1x4x64x16xbf16> to vector<4x64x16xbf16>
    %c0_22 = arith.constant 0 : index
    %c0_23 = arith.constant 0 : index
    %c0_24 = arith.constant 0 : index
    %c0_25 = arith.constant 0 : index
    %16 = vector.load %arg7[%c0_22, %c0_23, %c0_24, %c0_25] : memref<2x4x1x16xf32, #tpu.memory_space<vmem>>, vector<1x4x1x16xf32>
    %17 = vector.shape_cast %16 : vector<1x4x1x16xf32> to vector<4x1x16xf32>
    %c0_26 = arith.constant 0 : index
    %c0_27 = arith.constant 0 : index
    %c0_28 = arith.constant 0 : index
    %c0_29 = arith.constant 0 : index
    %18 = vector.load %arg8[%c0_26, %c0_27, %c0_28, %c0_29] : memref<2x4x1x16xf32, #tpu.memory_space<vmem>>, vector<1x4x1x16xf32>
    %19 = vector.shape_cast %18 : vector<1x4x1x16xf32> to vector<4x1x16xf32>
    %c0_30 = arith.constant 0 : index
    %c0_31 = arith.constant 0 : index
    %c0_32 = arith.constant 0 : index
    %c0_33 = arith.constant 0 : index
    %20 = vector.load %arg9[%c0_30, %c0_31, %c0_32, %c0_33] : memref<2x4x1x16xf32, #tpu.memory_space<vmem>>, vector<1x4x1x16xf32>
    %21 = vector.shape_cast %20 : vector<1x4x1x16xf32> to vector<4x1x16xf32>
    %c0_34 = arith.constant 0 : index
    %c0_35 = arith.constant 0 : index
    %c0_36 = arith.constant 0 : index
    %c0_37 = arith.constant 0 : index
    %22 = vector.load %arg10[%c0_34, %c0_35, %c0_36, %c0_37] : memref<2x4x16x64xbf16, #tpu.memory_space<vmem>>, vector<1x4x16x64xbf16>
    %23 = vector.shape_cast %22 : vector<1x4x16x64xbf16> to vector<4x16x64xbf16>
    %c0_38 = arith.constant 0 : index
    %c0_39 = arith.constant 0 : index
    %c0_40 = arith.constant 0 : index
    %24 = vector.load %arg11[%c0_38, %c0_39, %c0_40] : memref<2x1x64xf32, #tpu.memory_space<vmem>>, vector<1x1x64xf32>
    %25 = vector.shape_cast %24 : vector<1x1x64xf32> to vector<1x64xf32>
    %c0_41 = arith.constant 0 : index
    %c0_42 = arith.constant 0 : index
    %c0_43 = arith.constant 0 : index
    %26 = vector.load %arg12[%c0_41, %c0_42, %c0_43] : memref<2x1x64xf32, #tpu.memory_space<vmem>>, vector<1x1x64xf32>
    %27 = vector.shape_cast %26 : vector<1x1x64xf32> to vector<1x64xf32>
    %c0_44 = arith.constant 0 : index
    %c0_45 = arith.constant 0 : index
    %c0_46 = arith.constant 0 : index
    %28 = vector.load %arg13[%c0_44, %c0_45, %c0_46] : memref<2x1x64xf32, #tpu.memory_space<vmem>>, vector<1x1x64xf32>
    %29 = vector.shape_cast %28 : vector<1x1x64xf32> to vector<1x64xf32>
    %c0_47 = arith.constant 0 : index
    %c0_48 = arith.constant 0 : index
    %c0_49 = arith.constant 0 : index
    %30 = vector.load %arg14[%c0_47, %c0_48, %c0_49] : memref<2x64x256xbf16, #tpu.memory_space<vmem>>, vector<1x64x256xbf16>
    %31 = vector.shape_cast %30 : vector<1x64x256xbf16> to vector<64x256xbf16>
    %c0_50 = arith.constant 0 : index
    %c0_51 = arith.constant 0 : index
    %c0_52 = arith.constant 0 : index
    %32 = vector.load %arg15[%c0_50, %c0_51, %c0_52] : memref<2x1x256xf32, #tpu.memory_space<vmem>>, vector<1x1x256xf32>
    %33 = vector.shape_cast %32 : vector<1x1x256xf32> to vector<1x256xf32>
    %c0_53 = arith.constant 0 : index
    %c0_54 = arith.constant 0 : index
    %c0_55 = arith.constant 0 : index
    %34 = vector.load %arg16[%c0_53, %c0_54, %c0_55] : memref<2x256x64xbf16, #tpu.memory_space<vmem>>, vector<1x256x64xbf16>
    %35 = vector.shape_cast %34 : vector<1x256x64xbf16> to vector<256x64xbf16>
    %c0_56 = arith.constant 0 : index
    %c0_57 = arith.constant 0 : index
    %c0_58 = arith.constant 0 : index
    %36 = vector.load %arg17[%c0_56, %c0_57, %c0_58] : memref<2x1x64xf32, #tpu.memory_space<vmem>>, vector<1x1x64xf32>
    %37 = vector.shape_cast %36 : vector<1x1x64xf32> to vector<1x64xf32>
    %cst = arith.constant dense<0.000000e+00> : vector<32xf32>
    %38 = vector.multi_reduction <add>, %5, %cst [1] : vector<32x64xf32> to vector<32xf32>
    %39 = vector.shape_cast %38 : vector<32xf32> to vector<32x1xf32>
    %cst_59 = arith.constant 6.400000e+01 : f32
    %40 = vector.broadcast %cst_59 : f32 to vector<32x1xf32>
    %41 = arith.divf %39, %40 : vector<32x1xf32>
    %42 = vector.broadcast %41 : vector<32x1xf32> to vector<32x64xf32>
    %43 = arith.subf %5, %42 : vector<32x64xf32>
    %44 = arith.mulf %43, %43 : vector<32x64xf32>
    %cst_60 = arith.constant dense<0.000000e+00> : vector<32xf32>
    %45 = vector.multi_reduction <add>, %44, %cst_60 [1] : vector<32x64xf32> to vector<32xf32>
    %46 = vector.shape_cast %45 : vector<32xf32> to vector<32x1xf32>
    %cst_61 = arith.constant 6.400000e+01 : f32
    %47 = vector.broadcast %cst_61 : f32 to vector<32x1xf32>
    %48 = arith.divf %46, %47 : vector<32x1xf32>
    %cst_62 = arith.constant 9.99999997E-7 : f32
    %49 = vector.broadcast %cst_62 : f32 to vector<32x1xf32>
    %50 = arith.addf %48, %49 : vector<32x1xf32>
    %51 = math.rsqrt %50 : vector<32x1xf32>
    %52 = vector.broadcast %51 : vector<32x1xf32> to vector<32x64xf32>
    %53 = arith.mulf %43, %52 : vector<32x64xf32>
    %54 = vector.broadcast %7 : vector<1x64xf32> to vector<32x64xf32>
    %55 = arith.mulf %53, %54 : vector<32x64xf32>
    %56 = vector.broadcast %9 : vector<1x64xf32> to vector<32x64xf32>
    %57 = arith.addf %55, %56 : vector<32x64xf32>
    %58 = arith.truncf %57 : vector<32x64xf32> to vector<32x64xbf16>
    %cst_63 = arith.constant 0.000000e+00 : f32
    %59 = vector.broadcast %cst_63 : f32 to vector<32x64xf32>
    %60 = vector.extract_strided_slice %11 {offsets = [0, 0, 0], sizes = [1, 64, 16], strides = [1, 1, 1]} : vector<4x64x16xbf16> to vector<1x64x16xbf16>
    %61 = vector.shape_cast %60 : vector<1x64x16xbf16> to vector<64x16xbf16>
    %cst_64 = arith.constant dense<0.000000e+00> : vector<32x16xf32>
    %62 = tpu.matmul %58, %61, %cst_64 {dimension_numbers = #tpu.dot_dimension_numbers<[1], [0], [0], [1], [0, 0, 1, 1], [], []>} : vector<32x64xbf16>, vector<64x16xbf16>, vector<32x16xf32> -> vector<32x16xf32>
    %63 = vector.extract_strided_slice %17 {offsets = [0, 0, 0], sizes = [1, 1, 16], strides = [1, 1, 1]} : vector<4x1x16xf32> to vector<1x1x16xf32>
    %64 = vector.shape_cast %63 : vector<1x1x16xf32> to vector<1x16xf32>
    %65 = vector.broadcast %64 : vector<1x16xf32> to vector<32x16xf32>
    %66 = arith.addf %62, %65 : vector<32x16xf32>
    %67 = vector.shape_cast %66 : vector<32x16xf32> to vector<2x16x16xf32>
    %68 = vector.extract_strided_slice %13 {offsets = [0, 0, 0], sizes = [1, 64, 16], strides = [1, 1, 1]} : vector<4x64x16xbf16> to vector<1x64x16xbf16>
    %69 = vector.shape_cast %68 : vector<1x64x16xbf16> to vector<64x16xbf16>
    %cst_65 = arith.constant dense<0.000000e+00> : vector<32x16xf32>
    %70 = tpu.matmul %58, %69, %cst_65 {dimension_numbers = #tpu.dot_dimension_numbers<[1], [0], [0], [1], [0, 0, 1, 1], [], []>} : vector<32x64xbf16>, vector<64x16xbf16>, vector<32x16xf32> -> vector<32x16xf32>
    %71 = vector.extract_strided_slice %19 {offsets = [0, 0, 0], sizes = [1, 1, 16], strides = [1, 1, 1]} : vector<4x1x16xf32> to vector<1x1x16xf32>
    %72 = vector.shape_cast %71 : vector<1x1x16xf32> to vector<1x16xf32>
    %73 = vector.broadcast %72 : vector<1x16xf32> to vector<32x16xf32>
    %74 = arith.addf %70, %73 : vector<32x16xf32>
    %75 = vector.shape_cast %74 : vector<32x16xf32> to vector<2x16x16xf32>
    %76 = vector.extract_strided_slice %15 {offsets = [0, 0, 0], sizes = [1, 64, 16], strides = [1, 1, 1]} : vector<4x64x16xbf16> to vector<1x64x16xbf16>
    %77 = vector.shape_cast %76 : vector<1x64x16xbf16> to vector<64x16xbf16>
    %cst_66 = arith.constant dense<0.000000e+00> : vector<32x16xf32>
    %78 = tpu.matmul %58, %77, %cst_66 {dimension_numbers = #tpu.dot_dimension_numbers<[1], [0], [0], [1], [0, 0, 1, 1], [], []>} : vector<32x64xbf16>, vector<64x16xbf16>, vector<32x16xf32> -> vector<32x16xf32>
    %79 = vector.extract_strided_slice %21 {offsets = [0, 0, 0], sizes = [1, 1, 16], strides = [1, 1, 1]} : vector<4x1x16xf32> to vector<1x1x16xf32>
    %80 = vector.shape_cast %79 : vector<1x1x16xf32> to vector<1x16xf32>
    %81 = vector.broadcast %80 : vector<1x16xf32> to vector<32x16xf32>
    %82 = arith.addf %78, %81 : vector<32x16xf32>
    %83 = vector.shape_cast %82 : vector<32x16xf32> to vector<2x16x16xf32>
    %84 = arith.truncf %67 : vector<2x16x16xf32> to vector<2x16x16xbf16>
    %85 = arith.truncf %75 : vector<2x16x16xf32> to vector<2x16x16xbf16>
    "tpu.trace_start"() <{level = 10 : i32, message = "bld,bmd->blm"}> : () -> ()
    %cst_67 = arith.constant dense<0.000000e+00> : vector<2x16x16xf32>
    %86 = tpu.matmul %84, %85, %cst_67 {dimension_numbers = #tpu.dot_dimension_numbers<[2], [2], [1], [1], [0, 0, 0, 1, 1, 1], [0], [0]>} : vector<2x16x16xbf16>, vector<2x16x16xbf16>, vector<2x16x16xf32> -> vector<2x16x16xf32>
    "tpu.trace_stop"() : () -> ()
    %cst_68 = arith.constant 2.500000e-01 : f32
    %87 = vector.broadcast %cst_68 : f32 to vector<2x16x16xf32>
    %88 = arith.mulf %86, %87 : vector<2x16x16xf32>
    %cst_69 = arith.constant dense<0xFF800000> : vector<2x16xf32>
    %89 = vector.multi_reduction <maximumf>, %88, %cst_69 [2] : vector<2x16x16xf32> to vector<2x16xf32>
    %90 = vector.shape_cast %89 : vector<2x16xf32> to vector<2x16x1xf32>
    %91 = vector.broadcast %90 : vector<2x16x1xf32> to vector<2x16x16xf32>
    %92 = arith.subf %88, %91 : vector<2x16x16xf32>
    %93 = math.exp %92 : vector<2x16x16xf32>
    %cst_70 = arith.constant dense<0.000000e+00> : vector<2x16xf32>
    %94 = vector.multi_reduction <add>, %93, %cst_70 [2] : vector<2x16x16xf32> to vector<2x16xf32>
    %95 = vector.shape_cast %94 : vector<2x16xf32> to vector<2x16x1xf32>
    %96 = tpu.reciprocal %95 {approx = true} : vector<2x16x1xf32> -> vector<2x16x1xf32>
    %97 = vector.broadcast %96 : vector<2x16x1xf32> to vector<2x16x16xf32>
    %98 = arith.mulf %93, %97 : vector<2x16x16xf32>
    %99 = arith.truncf %98 : vector<2x16x16xf32> to vector<2x16x16xbf16>
    %100 = arith.truncf %83 : vector<2x16x16xf32> to vector<2x16x16xbf16>
    "tpu.trace_start"() <{level = 10 : i32, message = "blm,bmd->bld"}> : () -> ()
    %cst_71 = arith.constant dense<0.000000e+00> : vector<2x16x16xf32>
    %101 = tpu.matmul %99, %100, %cst_71 {dimension_numbers = #tpu.dot_dimension_numbers<[2], [1], [1], [2], [0, 0, 0, 1, 1, 2], [0], [0]>} : vector<2x16x16xbf16>, vector<2x16x16xbf16>, vector<2x16x16xf32> -> vector<2x16x16xf32>
    "tpu.trace_stop"() : () -> ()
    %102 = vector.shape_cast %101 : vector<2x16x16xf32> to vector<32x16xf32>
    %103 = arith.truncf %102 : vector<32x16xf32> to vector<32x16xbf16>
    %104 = vector.extract_strided_slice %23 {offsets = [0, 0, 0], sizes = [1, 16, 64], strides = [1, 1, 1]} : vector<4x16x64xbf16> to vector<1x16x64xbf16>
    %105 = vector.shape_cast %104 : vector<1x16x64xbf16> to vector<16x64xbf16>
    %cst_72 = arith.constant dense<0.000000e+00> : vector<32x64xf32>
    %106 = tpu.matmul %103, %105, %cst_72 {dimension_numbers = #tpu.dot_dimension_numbers<[1], [0], [0], [1], [0, 0, 1, 1], [], []>} : vector<32x16xbf16>, vector<16x64xbf16>, vector<32x64xf32> -> vector<32x64xf32>
    %107 = arith.addf %59, %106 : vector<32x64xf32>
    %108 = vector.extract_strided_slice %11 {offsets = [1, 0, 0], sizes = [1, 64, 16], strides = [1, 1, 1]} : vector<4x64x16xbf16> to vector<1x64x16xbf16>
    %109 = vector.shape_cast %108 : vector<1x64x16xbf16> to vector<64x16xbf16>
    %cst_73 = arith.constant dense<0.000000e+00> : vector<32x16xf32>
    %110 = tpu.matmul %58, %109, %cst_73 {dimension_numbers = #tpu.dot_dimension_numbers<[1], [0], [0], [1], [0, 0, 1, 1], [], []>} : vector<32x64xbf16>, vector<64x16xbf16>, vector<32x16xf32> -> vector<32x16xf32>
    %111 = vector.extract_strided_slice %17 {offsets = [1, 0, 0], sizes = [1, 1, 16], strides = [1, 1, 1]} : vector<4x1x16xf32> to vector<1x1x16xf32>
    %112 = vector.shape_cast %111 : vector<1x1x16xf32> to vector<1x16xf32>
    %113 = vector.broadcast %112 : vector<1x16xf32> to vector<32x16xf32>
    %114 = arith.addf %110, %113 : vector<32x16xf32>
    %115 = vector.shape_cast %114 : vector<32x16xf32> to vector<2x16x16xf32>
    %116 = vector.extract_strided_slice %13 {offsets = [1, 0, 0], sizes = [1, 64, 16], strides = [1, 1, 1]} : vector<4x64x16xbf16> to vector<1x64x16xbf16>
    %117 = vector.shape_cast %116 : vector<1x64x16xbf16> to vector<64x16xbf16>
    %cst_74 = arith.constant dense<0.000000e+00> : vector<32x16xf32>
    %118 = tpu.matmul %58, %117, %cst_74 {dimension_numbers = #tpu.dot_dimension_numbers<[1], [0], [0], [1], [0, 0, 1, 1], [], []>} : vector<32x64xbf16>, vector<64x16xbf16>, vector<32x16xf32> -> vector<32x16xf32>
    %119 = vector.extract_strided_slice %19 {offsets = [1, 0, 0], sizes = [1, 1, 16], strides = [1, 1, 1]} : vector<4x1x16xf32> to vector<1x1x16xf32>
    %120 = vector.shape_cast %119 : vector<1x1x16xf32> to vector<1x16xf32>
    %121 = vector.broadcast %120 : vector<1x16xf32> to vector<32x16xf32>
    %122 = arith.addf %118, %121 : vector<32x16xf32>
    %123 = vector.shape_cast %122 : vector<32x16xf32> to vector<2x16x16xf32>
    %124 = vector.extract_strided_slice %15 {offsets = [1, 0, 0], sizes = [1, 64, 16], strides = [1, 1, 1]} : vector<4x64x16xbf16> to vector<1x64x16xbf16>
    %125 = vector.shape_cast %124 : vector<1x64x16xbf16> to vector<64x16xbf16>
    %cst_75 = arith.constant dense<0.000000e+00> : vector<32x16xf32>
    %126 = tpu.matmul %58, %125, %cst_75 {dimension_numbers = #tpu.dot_dimension_numbers<[1], [0], [0], [1], [0, 0, 1, 1], [], []>} : vector<32x64xbf16>, vector<64x16xbf16>, vector<32x16xf32> -> vector<32x16xf32>
    %127 = vector.extract_strided_slice %21 {offsets = [1, 0, 0], sizes = [1, 1, 16], strides = [1, 1, 1]} : vector<4x1x16xf32> to vector<1x1x16xf32>
    %128 = vector.shape_cast %127 : vector<1x1x16xf32> to vector<1x16xf32>
    %129 = vector.broadcast %128 : vector<1x16xf32> to vector<32x16xf32>
    %130 = arith.addf %126, %129 : vector<32x16xf32>
    %131 = vector.shape_cast %130 : vector<32x16xf32> to vector<2x16x16xf32>
    %132 = arith.truncf %115 : vector<2x16x16xf32> to vector<2x16x16xbf16>
    %133 = arith.truncf %123 : vector<2x16x16xf32> to vector<2x16x16xbf16>
    "tpu.trace_start"() <{level = 10 : i32, message = "bld,bmd->blm"}> : () -> ()
    %cst_76 = arith.constant dense<0.000000e+00> : vector<2x16x16xf32>
    %134 = tpu.matmul %132, %133, %cst_76 {dimension_numbers = #tpu.dot_dimension_numbers<[2], [2], [1], [1], [0, 0, 0, 1, 1, 1], [0], [0]>} : vector<2x16x16xbf16>, vector<2x16x16xbf16>, vector<2x16x16xf32> -> vector<2x16x16xf32>
    "tpu.trace_stop"() : () -> ()
    %cst_77 = arith.constant 2.500000e-01 : f32
    %135 = vector.broadcast %cst_77 : f32 to vector<2x16x16xf32>
    %136 = arith.mulf %134, %135 : vector<2x16x16xf32>
    %cst_78 = arith.constant dense<0xFF800000> : vector<2x16xf32>
    %137 = vector.multi_reduction <maximumf>, %136, %cst_78 [2] : vector<2x16x16xf32> to vector<2x16xf32>
    %138 = vector.shape_cast %137 : vector<2x16xf32> to vector<2x16x1xf32>
    %139 = vector.broadcast %138 : vector<2x16x1xf32> to vector<2x16x16xf32>
    %140 = arith.subf %136, %139 : vector<2x16x16xf32>
    %141 = math.exp %140 : vector<2x16x16xf32>
    %cst_79 = arith.constant dense<0.000000e+00> : vector<2x16xf32>
    %142 = vector.multi_reduction <add>, %141, %cst_79 [2] : vector<2x16x16xf32> to vector<2x16xf32>
    %143 = vector.shape_cast %142 : vector<2x16xf32> to vector<2x16x1xf32>
    %144 = tpu.reciprocal %143 {approx = true} : vector<2x16x1xf32> -> vector<2x16x1xf32>
    %145 = vector.broadcast %144 : vector<2x16x1xf32> to vector<2x16x16xf32>
    %146 = arith.mulf %141, %145 : vector<2x16x16xf32>
    %147 = arith.truncf %146 : vector<2x16x16xf32> to vector<2x16x16xbf16>
    %148 = arith.truncf %131 : vector<2x16x16xf32> to vector<2x16x16xbf16>
    "tpu.trace_start"() <{level = 10 : i32, message = "blm,bmd->bld"}> : () -> ()
    %cst_80 = arith.constant dense<0.000000e+00> : vector<2x16x16xf32>
    %149 = tpu.matmul %147, %148, %cst_80 {dimension_numbers = #tpu.dot_dimension_numbers<[2], [1], [1], [2], [0, 0, 0, 1, 1, 2], [0], [0]>} : vector<2x16x16xbf16>, vector<2x16x16xbf16>, vector<2x16x16xf32> -> vector<2x16x16xf32>
    "tpu.trace_stop"() : () -> ()
    %150 = vector.shape_cast %149 : vector<2x16x16xf32> to vector<32x16xf32>
    %151 = arith.truncf %150 : vector<32x16xf32> to vector<32x16xbf16>
    %152 = vector.extract_strided_slice %23 {offsets = [1, 0, 0], sizes = [1, 16, 64], strides = [1, 1, 1]} : vector<4x16x64xbf16> to vector<1x16x64xbf16>
    %153 = vector.shape_cast %152 : vector<1x16x64xbf16> to vector<16x64xbf16>
    %cst_81 = arith.constant dense<0.000000e+00> : vector<32x64xf32>
    %154 = tpu.matmul %151, %153, %cst_81 {dimension_numbers = #tpu.dot_dimension_numbers<[1], [0], [0], [1], [0, 0, 1, 1], [], []>} : vector<32x16xbf16>, vector<16x64xbf16>, vector<32x64xf32> -> vector<32x64xf32>
    %155 = arith.addf %107, %154 : vector<32x64xf32>
    %156 = vector.extract_strided_slice %11 {offsets = [2, 0, 0], sizes = [1, 64, 16], strides = [1, 1, 1]} : vector<4x64x16xbf16> to vector<1x64x16xbf16>
    %157 = vector.shape_cast %156 : vector<1x64x16xbf16> to vector<64x16xbf16>
    %cst_82 = arith.constant dense<0.000000e+00> : vector<32x16xf32>
    %158 = tpu.matmul %58, %157, %cst_82 {dimension_numbers = #tpu.dot_dimension_numbers<[1], [0], [0], [1], [0, 0, 1, 1], [], []>} : vector<32x64xbf16>, vector<64x16xbf16>, vector<32x16xf32> -> vector<32x16xf32>
    %159 = vector.extract_strided_slice %17 {offsets = [2, 0, 0], sizes = [1, 1, 16], strides = [1, 1, 1]} : vector<4x1x16xf32> to vector<1x1x16xf32>
    %160 = vector.shape_cast %159 : vector<1x1x16xf32> to vector<1x16xf32>
    %161 = vector.broadcast %160 : vector<1x16xf32> to vector<32x16xf32>
    %162 = arith.addf %158, %161 : vector<32x16xf32>
    %163 = vector.shape_cast %162 : vector<32x16xf32> to vector<2x16x16xf32>
    %164 = vector.extract_strided_slice %13 {offsets = [2, 0, 0], sizes = [1, 64, 16], strides = [1, 1, 1]} : vector<4x64x16xbf16> to vector<1x64x16xbf16>
    %165 = vector.shape_cast %164 : vector<1x64x16xbf16> to vector<64x16xbf16>
    %cst_83 = arith.constant dense<0.000000e+00> : vector<32x16xf32>
    %166 = tpu.matmul %58, %165, %cst_83 {dimension_numbers = #tpu.dot_dimension_numbers<[1], [0], [0], [1], [0, 0, 1, 1], [], []>} : vector<32x64xbf16>, vector<64x16xbf16>, vector<32x16xf32> -> vector<32x16xf32>
    %167 = vector.extract_strided_slice %19 {offsets = [2, 0, 0], sizes = [1, 1, 16], strides = [1, 1, 1]} : vector<4x1x16xf32> to vector<1x1x16xf32>
    %168 = vector.shape_cast %167 : vector<1x1x16xf32> to vector<1x16xf32>
    %169 = vector.broadcast %168 : vector<1x16xf32> to vector<32x16xf32>
    %170 = arith.addf %166, %169 : vector<32x16xf32>
    %171 = vector.shape_cast %170 : vector<32x16xf32> to vector<2x16x16xf32>
    %172 = vector.extract_strided_slice %15 {offsets = [2, 0, 0], sizes = [1, 64, 16], strides = [1, 1, 1]} : vector<4x64x16xbf16> to vector<1x64x16xbf16>
    %173 = vector.shape_cast %172 : vector<1x64x16xbf16> to vector<64x16xbf16>
    %cst_84 = arith.constant dense<0.000000e+00> : vector<32x16xf32>
    %174 = tpu.matmul %58, %173, %cst_84 {dimension_numbers = #tpu.dot_dimension_numbers<[1], [0], [0], [1], [0, 0, 1, 1], [], []>} : vector<32x64xbf16>, vector<64x16xbf16>, vector<32x16xf32> -> vector<32x16xf32>
    %175 = vector.extract_strided_slice %21 {offsets = [2, 0, 0], sizes = [1, 1, 16], strides = [1, 1, 1]} : vector<4x1x16xf32> to vector<1x1x16xf32>
    %176 = vector.shape_cast %175 : vector<1x1x16xf32> to vector<1x16xf32>
    %177 = vector.broadcast %176 : vector<1x16xf32> to vector<32x16xf32>
    %178 = arith.addf %174, %177 : vector<32x16xf32>
    %179 = vector.shape_cast %178 : vector<32x16xf32> to vector<2x16x16xf32>
    %180 = arith.truncf %163 : vector<2x16x16xf32> to vector<2x16x16xbf16>
    %181 = arith.truncf %171 : vector<2x16x16xf32> to vector<2x16x16xbf16>
    "tpu.trace_start"() <{level = 10 : i32, message = "bld,bmd->blm"}> : () -> ()
    %cst_85 = arith.constant dense<0.000000e+00> : vector<2x16x16xf32>
    %182 = tpu.matmul %180, %181, %cst_85 {dimension_numbers = #tpu.dot_dimension_numbers<[2], [2], [1], [1], [0, 0, 0, 1, 1, 1], [0], [0]>} : vector<2x16x16xbf16>, vector<2x16x16xbf16>, vector<2x16x16xf32> -> vector<2x16x16xf32>
    "tpu.trace_stop"() : () -> ()
    %cst_86 = arith.constant 2.500000e-01 : f32
    %183 = vector.broadcast %cst_86 : f32 to vector<2x16x16xf32>
    %184 = arith.mulf %182, %183 : vector<2x16x16xf32>
    %cst_87 = arith.constant dense<0xFF800000> : vector<2x16xf32>
    %185 = vector.multi_reduction <maximumf>, %184, %cst_87 [2] : vector<2x16x16xf32> to vector<2x16xf32>
    %186 = vector.shape_cast %185 : vector<2x16xf32> to vector<2x16x1xf32>
    %187 = vector.broadcast %186 : vector<2x16x1xf32> to vector<2x16x16xf32>
    %188 = arith.subf %184, %187 : vector<2x16x16xf32>
    %189 = math.exp %188 : vector<2x16x16xf32>
    %cst_88 = arith.constant dense<0.000000e+00> : vector<2x16xf32>
    %190 = vector.multi_reduction <add>, %189, %cst_88 [2] : vector<2x16x16xf32> to vector<2x16xf32>
    %191 = vector.shape_cast %190 : vector<2x16xf32> to vector<2x16x1xf32>
    %192 = tpu.reciprocal %191 {approx = true} : vector<2x16x1xf32> -> vector<2x16x1xf32>
    %193 = vector.broadcast %192 : vector<2x16x1xf32> to vector<2x16x16xf32>
    %194 = arith.mulf %189, %193 : vector<2x16x16xf32>
    %195 = arith.truncf %194 : vector<2x16x16xf32> to vector<2x16x16xbf16>
    %196 = arith.truncf %179 : vector<2x16x16xf32> to vector<2x16x16xbf16>
    "tpu.trace_start"() <{level = 10 : i32, message = "blm,bmd->bld"}> : () -> ()
    %cst_89 = arith.constant dense<0.000000e+00> : vector<2x16x16xf32>
    %197 = tpu.matmul %195, %196, %cst_89 {dimension_numbers = #tpu.dot_dimension_numbers<[2], [1], [1], [2], [0, 0, 0, 1, 1, 2], [0], [0]>} : vector<2x16x16xbf16>, vector<2x16x16xbf16>, vector<2x16x16xf32> -> vector<2x16x16xf32>
    "tpu.trace_stop"() : () -> ()
    %198 = vector.shape_cast %197 : vector<2x16x16xf32> to vector<32x16xf32>
    %199 = arith.truncf %198 : vector<32x16xf32> to vector<32x16xbf16>
    %200 = vector.extract_strided_slice %23 {offsets = [2, 0, 0], sizes = [1, 16, 64], strides = [1, 1, 1]} : vector<4x16x64xbf16> to vector<1x16x64xbf16>
    %201 = vector.shape_cast %200 : vector<1x16x64xbf16> to vector<16x64xbf16>
    %cst_90 = arith.constant dense<0.000000e+00> : vector<32x64xf32>
    %202 = tpu.matmul %199, %201, %cst_90 {dimension_numbers = #tpu.dot_dimension_numbers<[1], [0], [0], [1], [0, 0, 1, 1], [], []>} : vector<32x16xbf16>, vector<16x64xbf16>, vector<32x64xf32> -> vector<32x64xf32>
    %203 = arith.addf %155, %202 : vector<32x64xf32>
    %204 = vector.extract_strided_slice %11 {offsets = [3, 0, 0], sizes = [1, 64, 16], strides = [1, 1, 1]} : vector<4x64x16xbf16> to vector<1x64x16xbf16>
    %205 = vector.shape_cast %204 : vector<1x64x16xbf16> to vector<64x16xbf16>
    %cst_91 = arith.constant dense<0.000000e+00> : vector<32x16xf32>
    %206 = tpu.matmul %58, %205, %cst_91 {dimension_numbers = #tpu.dot_dimension_numbers<[1], [0], [0], [1], [0, 0, 1, 1], [], []>} : vector<32x64xbf16>, vector<64x16xbf16>, vector<32x16xf32> -> vector<32x16xf32>
    %207 = vector.extract_strided_slice %17 {offsets = [3, 0, 0], sizes = [1, 1, 16], strides = [1, 1, 1]} : vector<4x1x16xf32> to vector<1x1x16xf32>
    %208 = vector.shape_cast %207 : vector<1x1x16xf32> to vector<1x16xf32>
    %209 = vector.broadcast %208 : vector<1x16xf32> to vector<32x16xf32>
    %210 = arith.addf %206, %209 : vector<32x16xf32>
    %211 = vector.shape_cast %210 : vector<32x16xf32> to vector<2x16x16xf32>
    %212 = vector.extract_strided_slice %13 {offsets = [3, 0, 0], sizes = [1, 64, 16], strides = [1, 1, 1]} : vector<4x64x16xbf16> to vector<1x64x16xbf16>
    %213 = vector.shape_cast %212 : vector<1x64x16xbf16> to vector<64x16xbf16>
    %cst_92 = arith.constant dense<0.000000e+00> : vector<32x16xf32>
    %214 = tpu.matmul %58, %213, %cst_92 {dimension_numbers = #tpu.dot_dimension_numbers<[1], [0], [0], [1], [0, 0, 1, 1], [], []>} : vector<32x64xbf16>, vector<64x16xbf16>, vector<32x16xf32> -> vector<32x16xf32>
    %215 = vector.extract_strided_slice %19 {offsets = [3, 0, 0], sizes = [1, 1, 16], strides = [1, 1, 1]} : vector<4x1x16xf32> to vector<1x1x16xf32>
    %216 = vector.shape_cast %215 : vector<1x1x16xf32> to vector<1x16xf32>
    %217 = vector.broadcast %216 : vector<1x16xf32> to vector<32x16xf32>
    %218 = arith.addf %214, %217 : vector<32x16xf32>
    %219 = vector.shape_cast %218 : vector<32x16xf32> to vector<2x16x16xf32>
    %220 = vector.extract_strided_slice %15 {offsets = [3, 0, 0], sizes = [1, 64, 16], strides = [1, 1, 1]} : vector<4x64x16xbf16> to vector<1x64x16xbf16>
    %221 = vector.shape_cast %220 : vector<1x64x16xbf16> to vector<64x16xbf16>
    %cst_93 = arith.constant dense<0.000000e+00> : vector<32x16xf32>
    %222 = tpu.matmul %58, %221, %cst_93 {dimension_numbers = #tpu.dot_dimension_numbers<[1], [0], [0], [1], [0, 0, 1, 1], [], []>} : vector<32x64xbf16>, vector<64x16xbf16>, vector<32x16xf32> -> vector<32x16xf32>
    %223 = vector.extract_strided_slice %21 {offsets = [3, 0, 0], sizes = [1, 1, 16], strides = [1, 1, 1]} : vector<4x1x16xf32> to vector<1x1x16xf32>
    %224 = vector.shape_cast %223 : vector<1x1x16xf32> to vector<1x16xf32>
    %225 = vector.broadcast %224 : vector<1x16xf32> to vector<32x16xf32>
    %226 = arith.addf %222, %225 : vector<32x16xf32>
    %227 = vector.shape_cast %226 : vector<32x16xf32> to vector<2x16x16xf32>
    %228 = arith.truncf %211 : vector<2x16x16xf32> to vector<2x16x16xbf16>
    %229 = arith.truncf %219 : vector<2x16x16xf32> to vector<2x16x16xbf16>
    "tpu.trace_start"() <{level = 10 : i32, message = "bld,bmd->blm"}> : () -> ()
    %cst_94 = arith.constant dense<0.000000e+00> : vector<2x16x16xf32>
    %230 = tpu.matmul %228, %229, %cst_94 {dimension_numbers = #tpu.dot_dimension_numbers<[2], [2], [1], [1], [0, 0, 0, 1, 1, 1], [0], [0]>} : vector<2x16x16xbf16>, vector<2x16x16xbf16>, vector<2x16x16xf32> -> vector<2x16x16xf32>
    "tpu.trace_stop"() : () -> ()
    %cst_95 = arith.constant 2.500000e-01 : f32
    %231 = vector.broadcast %cst_95 : f32 to vector<2x16x16xf32>
    %232 = arith.mulf %230, %231 : vector<2x16x16xf32>
    %cst_96 = arith.constant dense<0xFF800000> : vector<2x16xf32>
    %233 = vector.multi_reduction <maximumf>, %232, %cst_96 [2] : vector<2x16x16xf32> to vector<2x16xf32>
    %234 = vector.shape_cast %233 : vector<2x16xf32> to vector<2x16x1xf32>
    %235 = vector.broadcast %234 : vector<2x16x1xf32> to vector<2x16x16xf32>
    %236 = arith.subf %232, %235 : vector<2x16x16xf32>
    %237 = math.exp %236 : vector<2x16x16xf32>
    %cst_97 = arith.constant dense<0.000000e+00> : vector<2x16xf32>
    %238 = vector.multi_reduction <add>, %237, %cst_97 [2] : vector<2x16x16xf32> to vector<2x16xf32>
    %239 = vector.shape_cast %238 : vector<2x16xf32> to vector<2x16x1xf32>
    %240 = tpu.reciprocal %239 {approx = true} : vector<2x16x1xf32> -> vector<2x16x1xf32>
    %241 = vector.broadcast %240 : vector<2x16x1xf32> to vector<2x16x16xf32>
    %242 = arith.mulf %237, %241 : vector<2x16x16xf32>
    %243 = arith.truncf %242 : vector<2x16x16xf32> to vector<2x16x16xbf16>
    %244 = arith.truncf %227 : vector<2x16x16xf32> to vector<2x16x16xbf16>
    "tpu.trace_start"() <{level = 10 : i32, message = "blm,bmd->bld"}> : () -> ()
    %cst_98 = arith.constant dense<0.000000e+00> : vector<2x16x16xf32>
    %245 = tpu.matmul %243, %244, %cst_98 {dimension_numbers = #tpu.dot_dimension_numbers<[2], [1], [1], [2], [0, 0, 0, 1, 1, 2], [0], [0]>} : vector<2x16x16xbf16>, vector<2x16x16xbf16>, vector<2x16x16xf32> -> vector<2x16x16xf32>
    "tpu.trace_stop"() : () -> ()
    %246 = vector.shape_cast %245 : vector<2x16x16xf32> to vector<32x16xf32>
    %247 = arith.truncf %246 : vector<32x16xf32> to vector<32x16xbf16>
    %248 = vector.extract_strided_slice %23 {offsets = [3, 0, 0], sizes = [1, 16, 64], strides = [1, 1, 1]} : vector<4x16x64xbf16> to vector<1x16x64xbf16>
    %249 = vector.shape_cast %248 : vector<1x16x64xbf16> to vector<16x64xbf16>
    %cst_99 = arith.constant dense<0.000000e+00> : vector<32x64xf32>
    %250 = tpu.matmul %247, %249, %cst_99 {dimension_numbers = #tpu.dot_dimension_numbers<[1], [0], [0], [1], [0, 0, 1, 1], [], []>} : vector<32x16xbf16>, vector<16x64xbf16>, vector<32x64xf32> -> vector<32x64xf32>
    %251 = arith.addf %203, %250 : vector<32x64xf32>
    %252 = arith.addf %5, %251 : vector<32x64xf32>
    %253 = vector.broadcast %25 : vector<1x64xf32> to vector<32x64xf32>
    %254 = arith.addf %252, %253 : vector<32x64xf32>
    %cst_100 = arith.constant dense<0.000000e+00> : vector<32xf32>
    %255 = vector.multi_reduction <add>, %254, %cst_100 [1] : vector<32x64xf32> to vector<32xf32>
    %256 = vector.shape_cast %255 : vector<32xf32> to vector<32x1xf32>
    %cst_101 = arith.constant 6.400000e+01 : f32
    %257 = vector.broadcast %cst_101 : f32 to vector<32x1xf32>
    %258 = arith.divf %256, %257 : vector<32x1xf32>
    %259 = vector.broadcast %258 : vector<32x1xf32> to vector<32x64xf32>
    %260 = arith.subf %254, %259 : vector<32x64xf32>
    %261 = arith.mulf %260, %260 : vector<32x64xf32>
    %cst_102 = arith.constant dense<0.000000e+00> : vector<32xf32>
    %262 = vector.multi_reduction <add>, %261, %cst_102 [1] : vector<32x64xf32> to vector<32xf32>
    %263 = vector.shape_cast %262 : vector<32xf32> to vector<32x1xf32>
    %cst_103 = arith.constant 6.400000e+01 : f32
    %264 = vector.broadcast %cst_103 : f32 to vector<32x1xf32>
    %265 = arith.divf %263, %264 : vector<32x1xf32>
    %cst_104 = arith.constant 9.99999997E-7 : f32
    %266 = vector.broadcast %cst_104 : f32 to vector<32x1xf32>
    %267 = arith.addf %265, %266 : vector<32x1xf32>
    %268 = math.rsqrt %267 : vector<32x1xf32>
    %269 = vector.broadcast %268 : vector<32x1xf32> to vector<32x64xf32>
    %270 = arith.mulf %260, %269 : vector<32x64xf32>
    %271 = vector.broadcast %27 : vector<1x64xf32> to vector<32x64xf32>
    %272 = arith.mulf %270, %271 : vector<32x64xf32>
    %273 = vector.broadcast %29 : vector<1x64xf32> to vector<32x64xf32>
    %274 = arith.addf %272, %273 : vector<32x64xf32>
    %275 = arith.truncf %274 : vector<32x64xf32> to vector<32x64xbf16>
    %cst_105 = arith.constant dense<0.000000e+00> : vector<32x256xf32>
    %276 = tpu.matmul %275, %31, %cst_105 {dimension_numbers = #tpu.dot_dimension_numbers<[1], [0], [0], [1], [0, 0, 1, 1], [], []>} : vector<32x64xbf16>, vector<64x256xbf16>, vector<32x256xf32> -> vector<32x256xf32>
    %277 = vector.broadcast %33 : vector<1x256xf32> to vector<32x256xf32>
    %278 = arith.addf %276, %277 : vector<32x256xf32>
    %cst_106 = arith.constant 5.000000e-01 : f32
    %279 = vector.broadcast %cst_106 : f32 to vector<32x256xf32>
    %280 = arith.mulf %279, %278 : vector<32x256xf32>
    %cst_107 = arith.constant 4.471500e-02 : f32
    %281 = vector.broadcast %cst_107 : f32 to vector<32x256xf32>
    %282 = arith.mulf %281, %278 : vector<32x256xf32>
    %283 = arith.mulf %282, %278 : vector<32x256xf32>
    %284 = arith.mulf %283, %278 : vector<32x256xf32>
    %285 = arith.addf %278, %284 : vector<32x256xf32>
    %cst_108 = arith.constant 0.797884583 : f32
    %286 = vector.broadcast %cst_108 : f32 to vector<32x256xf32>
    %287 = arith.mulf %286, %285 : vector<32x256xf32>
    %288 = math.tanh %287 : vector<32x256xf32>
    %cst_109 = arith.constant 1.000000e+00 : f32
    %289 = vector.broadcast %cst_109 : f32 to vector<32x256xf32>
    %290 = arith.addf %289, %288 : vector<32x256xf32>
    %291 = arith.mulf %280, %290 : vector<32x256xf32>
    %292 = arith.truncf %291 : vector<32x256xf32> to vector<32x256xbf16>
    %cst_110 = arith.constant dense<0.000000e+00> : vector<32x64xf32>
    %293 = tpu.matmul %292, %35, %cst_110 {dimension_numbers = #tpu.dot_dimension_numbers<[1], [0], [0], [1], [0, 0, 1, 1], [], []>} : vector<32x256xbf16>, vector<256x64xbf16>, vector<32x64xf32> -> vector<32x64xf32>
    %294 = arith.addf %254, %293 : vector<32x64xf32>
    %295 = vector.broadcast %37 : vector<1x64xf32> to vector<32x64xf32>
    %296 = arith.addf %294, %295 : vector<32x64xf32>
    %c1 = arith.constant 1 : index
    %c0_111 = arith.constant 0 : index
    %c0_112 = arith.constant 0 : index
    %297 = vector.load %arg2[%c1, %c0_111, %c0_112] : memref<2x1x64xf32, #tpu.memory_space<vmem>>, vector<1x1x64xf32>
    %298 = vector.shape_cast %297 : vector<1x1x64xf32> to vector<1x64xf32>
    %c1_113 = arith.constant 1 : index
    %c0_114 = arith.constant 0 : index
    %c0_115 = arith.constant 0 : index
    %299 = vector.load %arg3[%c1_113, %c0_114, %c0_115] : memref<2x1x64xf32, #tpu.memory_space<vmem>>, vector<1x1x64xf32>
    %300 = vector.shape_cast %299 : vector<1x1x64xf32> to vector<1x64xf32>
    %c1_116 = arith.constant 1 : index
    %c0_117 = arith.constant 0 : index
    %c0_118 = arith.constant 0 : index
    %c0_119 = arith.constant 0 : index
    %301 = vector.load %arg4[%c1_116, %c0_117, %c0_118, %c0_119] : memref<2x4x64x16xbf16, #tpu.memory_space<vmem>>, vector<1x4x64x16xbf16>
    %302 = vector.shape_cast %301 : vector<1x4x64x16xbf16> to vector<4x64x16xbf16>
    %c1_120 = arith.constant 1 : index
    %c0_121 = arith.constant 0 : index
    %c0_122 = arith.constant 0 : index
    %c0_123 = arith.constant 0 : index
    %303 = vector.load %arg5[%c1_120, %c0_121, %c0_122, %c0_123] : memref<2x4x64x16xbf16, #tpu.memory_space<vmem>>, vector<1x4x64x16xbf16>
    %304 = vector.shape_cast %303 : vector<1x4x64x16xbf16> to vector<4x64x16xbf16>
    %c1_124 = arith.constant 1 : index
    %c0_125 = arith.constant 0 : index
    %c0_126 = arith.constant 0 : index
    %c0_127 = arith.constant 0 : index
    %305 = vector.load %arg6[%c1_124, %c0_125, %c0_126, %c0_127] : memref<2x4x64x16xbf16, #tpu.memory_space<vmem>>, vector<1x4x64x16xbf16>
    %306 = vector.shape_cast %305 : vector<1x4x64x16xbf16> to vector<4x64x16xbf16>
    %c1_128 = arith.constant 1 : index
    %c0_129 = arith.constant 0 : index
    %c0_130 = arith.constant 0 : index
    %c0_131 = arith.constant 0 : index
    %307 = vector.load %arg7[%c1_128, %c0_129, %c0_130, %c0_131] : memref<2x4x1x16xf32, #tpu.memory_space<vmem>>, vector<1x4x1x16xf32>
    %308 = vector.shape_cast %307 : vector<1x4x1x16xf32> to vector<4x1x16xf32>
    %c1_132 = arith.constant 1 : index
    %c0_133 = arith.constant 0 : index
    %c0_134 = arith.constant 0 : index
    %c0_135 = arith.constant 0 : index
    %309 = vector.load %arg8[%c1_132, %c0_133, %c0_134, %c0_135] : memref<2x4x1x16xf32, #tpu.memory_space<vmem>>, vector<1x4x1x16xf32>
    %310 = vector.shape_cast %309 : vector<1x4x1x16xf32> to vector<4x1x16xf32>
    %c1_136 = arith.constant 1 : index
    %c0_137 = arith.constant 0 : index
    %c0_138 = arith.constant 0 : index
    %c0_139 = arith.constant 0 : index
    %311 = vector.load %arg9[%c1_136, %c0_137, %c0_138, %c0_139] : memref<2x4x1x16xf32, #tpu.memory_space<vmem>>, vector<1x4x1x16xf32>
    %312 = vector.shape_cast %311 : vector<1x4x1x16xf32> to vector<4x1x16xf32>
    %c1_140 = arith.constant 1 : index
    %c0_141 = arith.constant 0 : index
    %c0_142 = arith.constant 0 : index
    %c0_143 = arith.constant 0 : index
    %313 = vector.load %arg10[%c1_140, %c0_141, %c0_142, %c0_143] : memref<2x4x16x64xbf16, #tpu.memory_space<vmem>>, vector<1x4x16x64xbf16>
    %314 = vector.shape_cast %313 : vector<1x4x16x64xbf16> to vector<4x16x64xbf16>
    %c1_144 = arith.constant 1 : index
    %c0_145 = arith.constant 0 : index
    %c0_146 = arith.constant 0 : index
    %315 = vector.load %arg11[%c1_144, %c0_145, %c0_146] : memref<2x1x64xf32, #tpu.memory_space<vmem>>, vector<1x1x64xf32>
    %316 = vector.shape_cast %315 : vector<1x1x64xf32> to vector<1x64xf32>
    %c1_147 = arith.constant 1 : index
    %c0_148 = arith.constant 0 : index
    %c0_149 = arith.constant 0 : index
    %317 = vector.load %arg12[%c1_147, %c0_148, %c0_149] : memref<2x1x64xf32, #tpu.memory_space<vmem>>, vector<1x1x64xf32>
    %318 = vector.shape_cast %317 : vector<1x1x64xf32> to vector<1x64xf32>
    %c1_150 = arith.constant 1 : index
    %c0_151 = arith.constant 0 : index
    %c0_152 = arith.constant 0 : index
    %319 = vector.load %arg13[%c1_150, %c0_151, %c0_152] : memref<2x1x64xf32, #tpu.memory_space<vmem>>, vector<1x1x64xf32>
    %320 = vector.shape_cast %319 : vector<1x1x64xf32> to vector<1x64xf32>
    %c1_153 = arith.constant 1 : index
    %c0_154 = arith.constant 0 : index
    %c0_155 = arith.constant 0 : index
    %321 = vector.load %arg14[%c1_153, %c0_154, %c0_155] : memref<2x64x256xbf16, #tpu.memory_space<vmem>>, vector<1x64x256xbf16>
    %322 = vector.shape_cast %321 : vector<1x64x256xbf16> to vector<64x256xbf16>
    %c1_156 = arith.constant 1 : index
    %c0_157 = arith.constant 0 : index
    %c0_158 = arith.constant 0 : index
    %323 = vector.load %arg15[%c1_156, %c0_157, %c0_158] : memref<2x1x256xf32, #tpu.memory_space<vmem>>, vector<1x1x256xf32>
    %324 = vector.shape_cast %323 : vector<1x1x256xf32> to vector<1x256xf32>
    %c1_159 = arith.constant 1 : index
    %c0_160 = arith.constant 0 : index
    %c0_161 = arith.constant 0 : index
    %325 = vector.load %arg16[%c1_159, %c0_160, %c0_161] : memref<2x256x64xbf16, #tpu.memory_space<vmem>>, vector<1x256x64xbf16>
    %326 = vector.shape_cast %325 : vector<1x256x64xbf16> to vector<256x64xbf16>
    %c1_162 = arith.constant 1 : index
    %c0_163 = arith.constant 0 : index
    %c0_164 = arith.constant 0 : index
    %327 = vector.load %arg17[%c1_162, %c0_163, %c0_164] : memref<2x1x64xf32, #tpu.memory_space<vmem>>, vector<1x1x64xf32>
    %328 = vector.shape_cast %327 : vector<1x1x64xf32> to vector<1x64xf32>
    %cst_165 = arith.constant dense<0.000000e+00> : vector<32xf32>
    %329 = vector.multi_reduction <add>, %296, %cst_165 [1] : vector<32x64xf32> to vector<32xf32>
    %330 = vector.shape_cast %329 : vector<32xf32> to vector<32x1xf32>
    %cst_166 = arith.constant 6.400000e+01 : f32
    %331 = vector.broadcast %cst_166 : f32 to vector<32x1xf32>
    %332 = arith.divf %330, %331 : vector<32x1xf32>
    %333 = vector.broadcast %332 : vector<32x1xf32> to vector<32x64xf32>
    %334 = arith.subf %296, %333 : vector<32x64xf32>
    %335 = arith.mulf %334, %334 : vector<32x64xf32>
    %cst_167 = arith.constant dense<0.000000e+00> : vector<32xf32>
    %336 = vector.multi_reduction <add>, %335, %cst_167 [1] : vector<32x64xf32> to vector<32xf32>
    %337 = vector.shape_cast %336 : vector<32xf32> to vector<32x1xf32>
    %cst_168 = arith.constant 6.400000e+01 : f32
    %338 = vector.broadcast %cst_168 : f32 to vector<32x1xf32>
    %339 = arith.divf %337, %338 : vector<32x1xf32>
    %cst_169 = arith.constant 9.99999997E-7 : f32
    %340 = vector.broadcast %cst_169 : f32 to vector<32x1xf32>
    %341 = arith.addf %339, %340 : vector<32x1xf32>
    %342 = math.rsqrt %341 : vector<32x1xf32>
    %343 = vector.broadcast %342 : vector<32x1xf32> to vector<32x64xf32>
    %344 = arith.mulf %334, %343 : vector<32x64xf32>
    %345 = vector.broadcast %298 : vector<1x64xf32> to vector<32x64xf32>
    %346 = arith.mulf %344, %345 : vector<32x64xf32>
    %347 = vector.broadcast %300 : vector<1x64xf32> to vector<32x64xf32>
    %348 = arith.addf %346, %347 : vector<32x64xf32>
    %349 = arith.truncf %348 : vector<32x64xf32> to vector<32x64xbf16>
    %cst_170 = arith.constant 0.000000e+00 : f32
    %350 = vector.broadcast %cst_170 : f32 to vector<32x64xf32>
    %351 = vector.extract_strided_slice %302 {offsets = [0, 0, 0], sizes = [1, 64, 16], strides = [1, 1, 1]} : vector<4x64x16xbf16> to vector<1x64x16xbf16>
    %352 = vector.shape_cast %351 : vector<1x64x16xbf16> to vector<64x16xbf16>
    %cst_171 = arith.constant dense<0.000000e+00> : vector<32x16xf32>
    %353 = tpu.matmul %349, %352, %cst_171 {dimension_numbers = #tpu.dot_dimension_numbers<[1], [0], [0], [1], [0, 0, 1, 1], [], []>} : vector<32x64xbf16>, vector<64x16xbf16>, vector<32x16xf32> -> vector<32x16xf32>
    %354 = vector.extract_strided_slice %308 {offsets = [0, 0, 0], sizes = [1, 1, 16], strides = [1, 1, 1]} : vector<4x1x16xf32> to vector<1x1x16xf32>
    %355 = vector.shape_cast %354 : vector<1x1x16xf32> to vector<1x16xf32>
    %356 = vector.broadcast %355 : vector<1x16xf32> to vector<32x16xf32>
    %357 = arith.addf %353, %356 : vector<32x16xf32>
    %358 = vector.shape_cast %357 : vector<32x16xf32> to vector<2x16x16xf32>
    %359 = vector.extract_strided_slice %304 {offsets = [0, 0, 0], sizes = [1, 64, 16], strides = [1, 1, 1]} : vector<4x64x16xbf16> to vector<1x64x16xbf16>
    %360 = vector.shape_cast %359 : vector<1x64x16xbf16> to vector<64x16xbf16>
    %cst_172 = arith.constant dense<0.000000e+00> : vector<32x16xf32>
    %361 = tpu.matmul %349, %360, %cst_172 {dimension_numbers = #tpu.dot_dimension_numbers<[1], [0], [0], [1], [0, 0, 1, 1], [], []>} : vector<32x64xbf16>, vector<64x16xbf16>, vector<32x16xf32> -> vector<32x16xf32>
    %362 = vector.extract_strided_slice %310 {offsets = [0, 0, 0], sizes = [1, 1, 16], strides = [1, 1, 1]} : vector<4x1x16xf32> to vector<1x1x16xf32>
    %363 = vector.shape_cast %362 : vector<1x1x16xf32> to vector<1x16xf32>
    %364 = vector.broadcast %363 : vector<1x16xf32> to vector<32x16xf32>
    %365 = arith.addf %361, %364 : vector<32x16xf32>
    %366 = vector.shape_cast %365 : vector<32x16xf32> to vector<2x16x16xf32>
    %367 = vector.extract_strided_slice %306 {offsets = [0, 0, 0], sizes = [1, 64, 16], strides = [1, 1, 1]} : vector<4x64x16xbf16> to vector<1x64x16xbf16>
    %368 = vector.shape_cast %367 : vector<1x64x16xbf16> to vector<64x16xbf16>
    %cst_173 = arith.constant dense<0.000000e+00> : vector<32x16xf32>
    %369 = tpu.matmul %349, %368, %cst_173 {dimension_numbers = #tpu.dot_dimension_numbers<[1], [0], [0], [1], [0, 0, 1, 1], [], []>} : vector<32x64xbf16>, vector<64x16xbf16>, vector<32x16xf32> -> vector<32x16xf32>
    %370 = vector.extract_strided_slice %312 {offsets = [0, 0, 0], sizes = [1, 1, 16], strides = [1, 1, 1]} : vector<4x1x16xf32> to vector<1x1x16xf32>
    %371 = vector.shape_cast %370 : vector<1x1x16xf32> to vector<1x16xf32>
    %372 = vector.broadcast %371 : vector<1x16xf32> to vector<32x16xf32>
    %373 = arith.addf %369, %372 : vector<32x16xf32>
    %374 = vector.shape_cast %373 : vector<32x16xf32> to vector<2x16x16xf32>
    %375 = arith.truncf %358 : vector<2x16x16xf32> to vector<2x16x16xbf16>
    %376 = arith.truncf %366 : vector<2x16x16xf32> to vector<2x16x16xbf16>
    "tpu.trace_start"() <{level = 10 : i32, message = "bld,bmd->blm"}> : () -> ()
    %cst_174 = arith.constant dense<0.000000e+00> : vector<2x16x16xf32>
    %377 = tpu.matmul %375, %376, %cst_174 {dimension_numbers = #tpu.dot_dimension_numbers<[2], [2], [1], [1], [0, 0, 0, 1, 1, 1], [0], [0]>} : vector<2x16x16xbf16>, vector<2x16x16xbf16>, vector<2x16x16xf32> -> vector<2x16x16xf32>
    "tpu.trace_stop"() : () -> ()
    %cst_175 = arith.constant 2.500000e-01 : f32
    %378 = vector.broadcast %cst_175 : f32 to vector<2x16x16xf32>
    %379 = arith.mulf %377, %378 : vector<2x16x16xf32>
    %cst_176 = arith.constant dense<0xFF800000> : vector<2x16xf32>
    %380 = vector.multi_reduction <maximumf>, %379, %cst_176 [2] : vector<2x16x16xf32> to vector<2x16xf32>
    %381 = vector.shape_cast %380 : vector<2x16xf32> to vector<2x16x1xf32>
    %382 = vector.broadcast %381 : vector<2x16x1xf32> to vector<2x16x16xf32>
    %383 = arith.subf %379, %382 : vector<2x16x16xf32>
    %384 = math.exp %383 : vector<2x16x16xf32>
    %cst_177 = arith.constant dense<0.000000e+00> : vector<2x16xf32>
    %385 = vector.multi_reduction <add>, %384, %cst_177 [2] : vector<2x16x16xf32> to vector<2x16xf32>
    %386 = vector.shape_cast %385 : vector<2x16xf32> to vector<2x16x1xf32>
    %387 = tpu.reciprocal %386 {approx = true} : vector<2x16x1xf32> -> vector<2x16x1xf32>
    %388 = vector.broadcast %387 : vector<2x16x1xf32> to vector<2x16x16xf32>
    %389 = arith.mulf %384, %388 : vector<2x16x16xf32>
    %390 = arith.truncf %389 : vector<2x16x16xf32> to vector<2x16x16xbf16>
    %391 = arith.truncf %374 : vector<2x16x16xf32> to vector<2x16x16xbf16>
    "tpu.trace_start"() <{level = 10 : i32, message = "blm,bmd->bld"}> : () -> ()
    %cst_178 = arith.constant dense<0.000000e+00> : vector<2x16x16xf32>
    %392 = tpu.matmul %390, %391, %cst_178 {dimension_numbers = #tpu.dot_dimension_numbers<[2], [1], [1], [2], [0, 0, 0, 1, 1, 2], [0], [0]>} : vector<2x16x16xbf16>, vector<2x16x16xbf16>, vector<2x16x16xf32> -> vector<2x16x16xf32>
    "tpu.trace_stop"() : () -> ()
    %393 = vector.shape_cast %392 : vector<2x16x16xf32> to vector<32x16xf32>
    %394 = arith.truncf %393 : vector<32x16xf32> to vector<32x16xbf16>
    %395 = vector.extract_strided_slice %314 {offsets = [0, 0, 0], sizes = [1, 16, 64], strides = [1, 1, 1]} : vector<4x16x64xbf16> to vector<1x16x64xbf16>
    %396 = vector.shape_cast %395 : vector<1x16x64xbf16> to vector<16x64xbf16>
    %cst_179 = arith.constant dense<0.000000e+00> : vector<32x64xf32>
    %397 = tpu.matmul %394, %396, %cst_179 {dimension_numbers = #tpu.dot_dimension_numbers<[1], [0], [0], [1], [0, 0, 1, 1], [], []>} : vector<32x16xbf16>, vector<16x64xbf16>, vector<32x64xf32> -> vector<32x64xf32>
    %398 = arith.addf %350, %397 : vector<32x64xf32>
    %399 = vector.extract_strided_slice %302 {offsets = [1, 0, 0], sizes = [1, 64, 16], strides = [1, 1, 1]} : vector<4x64x16xbf16> to vector<1x64x16xbf16>
    %400 = vector.shape_cast %399 : vector<1x64x16xbf16> to vector<64x16xbf16>
    %cst_180 = arith.constant dense<0.000000e+00> : vector<32x16xf32>
    %401 = tpu.matmul %349, %400, %cst_180 {dimension_numbers = #tpu.dot_dimension_numbers<[1], [0], [0], [1], [0, 0, 1, 1], [], []>} : vector<32x64xbf16>, vector<64x16xbf16>, vector<32x16xf32> -> vector<32x16xf32>
    %402 = vector.extract_strided_slice %308 {offsets = [1, 0, 0], sizes = [1, 1, 16], strides = [1, 1, 1]} : vector<4x1x16xf32> to vector<1x1x16xf32>
    %403 = vector.shape_cast %402 : vector<1x1x16xf32> to vector<1x16xf32>
    %404 = vector.broadcast %403 : vector<1x16xf32> to vector<32x16xf32>
    %405 = arith.addf %401, %404 : vector<32x16xf32>
    %406 = vector.shape_cast %405 : vector<32x16xf32> to vector<2x16x16xf32>
    %407 = vector.extract_strided_slice %304 {offsets = [1, 0, 0], sizes = [1, 64, 16], strides = [1, 1, 1]} : vector<4x64x16xbf16> to vector<1x64x16xbf16>
    %408 = vector.shape_cast %407 : vector<1x64x16xbf16> to vector<64x16xbf16>
    %cst_181 = arith.constant dense<0.000000e+00> : vector<32x16xf32>
    %409 = tpu.matmul %349, %408, %cst_181 {dimension_numbers = #tpu.dot_dimension_numbers<[1], [0], [0], [1], [0, 0, 1, 1], [], []>} : vector<32x64xbf16>, vector<64x16xbf16>, vector<32x16xf32> -> vector<32x16xf32>
    %410 = vector.extract_strided_slice %310 {offsets = [1, 0, 0], sizes = [1, 1, 16], strides = [1, 1, 1]} : vector<4x1x16xf32> to vector<1x1x16xf32>
    %411 = vector.shape_cast %410 : vector<1x1x16xf32> to vector<1x16xf32>
    %412 = vector.broadcast %411 : vector<1x16xf32> to vector<32x16xf32>
    %413 = arith.addf %409, %412 : vector<32x16xf32>
    %414 = vector.shape_cast %413 : vector<32x16xf32> to vector<2x16x16xf32>
    %415 = vector.extract_strided_slice %306 {offsets = [1, 0, 0], sizes = [1, 64, 16], strides = [1, 1, 1]} : vector<4x64x16xbf16> to vector<1x64x16xbf16>
    %416 = vector.shape_cast %415 : vector<1x64x16xbf16> to vector<64x16xbf16>
    %cst_182 = arith.constant dense<0.000000e+00> : vector<32x16xf32>
    %417 = tpu.matmul %349, %416, %cst_182 {dimension_numbers = #tpu.dot_dimension_numbers<[1], [0], [0], [1], [0, 0, 1, 1], [], []>} : vector<32x64xbf16>, vector<64x16xbf16>, vector<32x16xf32> -> vector<32x16xf32>
    %418 = vector.extract_strided_slice %312 {offsets = [1, 0, 0], sizes = [1, 1, 16], strides = [1, 1, 1]} : vector<4x1x16xf32> to vector<1x1x16xf32>
    %419 = vector.shape_cast %418 : vector<1x1x16xf32> to vector<1x16xf32>
    %420 = vector.broadcast %419 : vector<1x16xf32> to vector<32x16xf32>
    %421 = arith.addf %417, %420 : vector<32x16xf32>
    %422 = vector.shape_cast %421 : vector<32x16xf32> to vector<2x16x16xf32>
    %423 = arith.truncf %406 : vector<2x16x16xf32> to vector<2x16x16xbf16>
    %424 = arith.truncf %414 : vector<2x16x16xf32> to vector<2x16x16xbf16>
    "tpu.trace_start"() <{level = 10 : i32, message = "bld,bmd->blm"}> : () -> ()
    %cst_183 = arith.constant dense<0.000000e+00> : vector<2x16x16xf32>
    %425 = tpu.matmul %423, %424, %cst_183 {dimension_numbers = #tpu.dot_dimension_numbers<[2], [2], [1], [1], [0, 0, 0, 1, 1, 1], [0], [0]>} : vector<2x16x16xbf16>, vector<2x16x16xbf16>, vector<2x16x16xf32> -> vector<2x16x16xf32>
    "tpu.trace_stop"() : () -> ()
    %cst_184 = arith.constant 2.500000e-01 : f32
    %426 = vector.broadcast %cst_184 : f32 to vector<2x16x16xf32>
    %427 = arith.mulf %425, %426 : vector<2x16x16xf32>
    %cst_185 = arith.constant dense<0xFF800000> : vector<2x16xf32>
    %428 = vector.multi_reduction <maximumf>, %427, %cst_185 [2] : vector<2x16x16xf32> to vector<2x16xf32>
    %429 = vector.shape_cast %428 : vector<2x16xf32> to vector<2x16x1xf32>
    %430 = vector.broadcast %429 : vector<2x16x1xf32> to vector<2x16x16xf32>
    %431 = arith.subf %427, %430 : vector<2x16x16xf32>
    %432 = math.exp %431 : vector<2x16x16xf32>
    %cst_186 = arith.constant dense<0.000000e+00> : vector<2x16xf32>
    %433 = vector.multi_reduction <add>, %432, %cst_186 [2] : vector<2x16x16xf32> to vector<2x16xf32>
    %434 = vector.shape_cast %433 : vector<2x16xf32> to vector<2x16x1xf32>
    %435 = tpu.reciprocal %434 {approx = true} : vector<2x16x1xf32> -> vector<2x16x1xf32>
    %436 = vector.broadcast %435 : vector<2x16x1xf32> to vector<2x16x16xf32>
    %437 = arith.mulf %432, %436 : vector<2x16x16xf32>
    %438 = arith.truncf %437 : vector<2x16x16xf32> to vector<2x16x16xbf16>
    %439 = arith.truncf %422 : vector<2x16x16xf32> to vector<2x16x16xbf16>
    "tpu.trace_start"() <{level = 10 : i32, message = "blm,bmd->bld"}> : () -> ()
    %cst_187 = arith.constant dense<0.000000e+00> : vector<2x16x16xf32>
    %440 = tpu.matmul %438, %439, %cst_187 {dimension_numbers = #tpu.dot_dimension_numbers<[2], [1], [1], [2], [0, 0, 0, 1, 1, 2], [0], [0]>} : vector<2x16x16xbf16>, vector<2x16x16xbf16>, vector<2x16x16xf32> -> vector<2x16x16xf32>
    "tpu.trace_stop"() : () -> ()
    %441 = vector.shape_cast %440 : vector<2x16x16xf32> to vector<32x16xf32>
    %442 = arith.truncf %441 : vector<32x16xf32> to vector<32x16xbf16>
    %443 = vector.extract_strided_slice %314 {offsets = [1, 0, 0], sizes = [1, 16, 64], strides = [1, 1, 1]} : vector<4x16x64xbf16> to vector<1x16x64xbf16>
    %444 = vector.shape_cast %443 : vector<1x16x64xbf16> to vector<16x64xbf16>
    %cst_188 = arith.constant dense<0.000000e+00> : vector<32x64xf32>
    %445 = tpu.matmul %442, %444, %cst_188 {dimension_numbers = #tpu.dot_dimension_numbers<[1], [0], [0], [1], [0, 0, 1, 1], [], []>} : vector<32x16xbf16>, vector<16x64xbf16>, vector<32x64xf32> -> vector<32x64xf32>
    %446 = arith.addf %398, %445 : vector<32x64xf32>
    %447 = vector.extract_strided_slice %302 {offsets = [2, 0, 0], sizes = [1, 64, 16], strides = [1, 1, 1]} : vector<4x64x16xbf16> to vector<1x64x16xbf16>
    %448 = vector.shape_cast %447 : vector<1x64x16xbf16> to vector<64x16xbf16>
    %cst_189 = arith.constant dense<0.000000e+00> : vector<32x16xf32>
    %449 = tpu.matmul %349, %448, %cst_189 {dimension_numbers = #tpu.dot_dimension_numbers<[1], [0], [0], [1], [0, 0, 1, 1], [], []>} : vector<32x64xbf16>, vector<64x16xbf16>, vector<32x16xf32> -> vector<32x16xf32>
    %450 = vector.extract_strided_slice %308 {offsets = [2, 0, 0], sizes = [1, 1, 16], strides = [1, 1, 1]} : vector<4x1x16xf32> to vector<1x1x16xf32>
    %451 = vector.shape_cast %450 : vector<1x1x16xf32> to vector<1x16xf32>
    %452 = vector.broadcast %451 : vector<1x16xf32> to vector<32x16xf32>
    %453 = arith.addf %449, %452 : vector<32x16xf32>
    %454 = vector.shape_cast %453 : vector<32x16xf32> to vector<2x16x16xf32>
    %455 = vector.extract_strided_slice %304 {offsets = [2, 0, 0], sizes = [1, 64, 16], strides = [1, 1, 1]} : vector<4x64x16xbf16> to vector<1x64x16xbf16>
    %456 = vector.shape_cast %455 : vector<1x64x16xbf16> to vector<64x16xbf16>
    %cst_190 = arith.constant dense<0.000000e+00> : vector<32x16xf32>
    %457 = tpu.matmul %349, %456, %cst_190 {dimension_numbers = #tpu.dot_dimension_numbers<[1], [0], [0], [1], [0, 0, 1, 1], [], []>} : vector<32x64xbf16>, vector<64x16xbf16>, vector<32x16xf32> -> vector<32x16xf32>
    %458 = vector.extract_strided_slice %310 {offsets = [2, 0, 0], sizes = [1, 1, 16], strides = [1, 1, 1]} : vector<4x1x16xf32> to vector<1x1x16xf32>
    %459 = vector.shape_cast %458 : vector<1x1x16xf32> to vector<1x16xf32>
    %460 = vector.broadcast %459 : vector<1x16xf32> to vector<32x16xf32>
    %461 = arith.addf %457, %460 : vector<32x16xf32>
    %462 = vector.shape_cast %461 : vector<32x16xf32> to vector<2x16x16xf32>
    %463 = vector.extract_strided_slice %306 {offsets = [2, 0, 0], sizes = [1, 64, 16], strides = [1, 1, 1]} : vector<4x64x16xbf16> to vector<1x64x16xbf16>
    %464 = vector.shape_cast %463 : vector<1x64x16xbf16> to vector<64x16xbf16>
    %cst_191 = arith.constant dense<0.000000e+00> : vector<32x16xf32>
    %465 = tpu.matmul %349, %464, %cst_191 {dimension_numbers = #tpu.dot_dimension_numbers<[1], [0], [0], [1], [0, 0, 1, 1], [], []>} : vector<32x64xbf16>, vector<64x16xbf16>, vector<32x16xf32> -> vector<32x16xf32>
    %466 = vector.extract_strided_slice %312 {offsets = [2, 0, 0], sizes = [1, 1, 16], strides = [1, 1, 1]} : vector<4x1x16xf32> to vector<1x1x16xf32>
    %467 = vector.shape_cast %466 : vector<1x1x16xf32> to vector<1x16xf32>
    %468 = vector.broadcast %467 : vector<1x16xf32> to vector<32x16xf32>
    %469 = arith.addf %465, %468 : vector<32x16xf32>
    %470 = vector.shape_cast %469 : vector<32x16xf32> to vector<2x16x16xf32>
    %471 = arith.truncf %454 : vector<2x16x16xf32> to vector<2x16x16xbf16>
    %472 = arith.truncf %462 : vector<2x16x16xf32> to vector<2x16x16xbf16>
    "tpu.trace_start"() <{level = 10 : i32, message = "bld,bmd->blm"}> : () -> ()
    %cst_192 = arith.constant dense<0.000000e+00> : vector<2x16x16xf32>
    %473 = tpu.matmul %471, %472, %cst_192 {dimension_numbers = #tpu.dot_dimension_numbers<[2], [2], [1], [1], [0, 0, 0, 1, 1, 1], [0], [0]>} : vector<2x16x16xbf16>, vector<2x16x16xbf16>, vector<2x16x16xf32> -> vector<2x16x16xf32>
    "tpu.trace_stop"() : () -> ()
    %cst_193 = arith.constant 2.500000e-01 : f32
    %474 = vector.broadcast %cst_193 : f32 to vector<2x16x16xf32>
    %475 = arith.mulf %473, %474 : vector<2x16x16xf32>
    %cst_194 = arith.constant dense<0xFF800000> : vector<2x16xf32>
    %476 = vector.multi_reduction <maximumf>, %475, %cst_194 [2] : vector<2x16x16xf32> to vector<2x16xf32>
    %477 = vector.shape_cast %476 : vector<2x16xf32> to vector<2x16x1xf32>
    %478 = vector.broadcast %477 : vector<2x16x1xf32> to vector<2x16x16xf32>
    %479 = arith.subf %475, %478 : vector<2x16x16xf32>
    %480 = math.exp %479 : vector<2x16x16xf32>
    %cst_195 = arith.constant dense<0.000000e+00> : vector<2x16xf32>
    %481 = vector.multi_reduction <add>, %480, %cst_195 [2] : vector<2x16x16xf32> to vector<2x16xf32>
    %482 = vector.shape_cast %481 : vector<2x16xf32> to vector<2x16x1xf32>
    %483 = tpu.reciprocal %482 {approx = true} : vector<2x16x1xf32> -> vector<2x16x1xf32>
    %484 = vector.broadcast %483 : vector<2x16x1xf32> to vector<2x16x16xf32>
    %485 = arith.mulf %480, %484 : vector<2x16x16xf32>
    %486 = arith.truncf %485 : vector<2x16x16xf32> to vector<2x16x16xbf16>
    %487 = arith.truncf %470 : vector<2x16x16xf32> to vector<2x16x16xbf16>
    "tpu.trace_start"() <{level = 10 : i32, message = "blm,bmd->bld"}> : () -> ()
    %cst_196 = arith.constant dense<0.000000e+00> : vector<2x16x16xf32>
    %488 = tpu.matmul %486, %487, %cst_196 {dimension_numbers = #tpu.dot_dimension_numbers<[2], [1], [1], [2], [0, 0, 0, 1, 1, 2], [0], [0]>} : vector<2x16x16xbf16>, vector<2x16x16xbf16>, vector<2x16x16xf32> -> vector<2x16x16xf32>
    "tpu.trace_stop"() : () -> ()
    %489 = vector.shape_cast %488 : vector<2x16x16xf32> to vector<32x16xf32>
    %490 = arith.truncf %489 : vector<32x16xf32> to vector<32x16xbf16>
    %491 = vector.extract_strided_slice %314 {offsets = [2, 0, 0], sizes = [1, 16, 64], strides = [1, 1, 1]} : vector<4x16x64xbf16> to vector<1x16x64xbf16>
    %492 = vector.shape_cast %491 : vector<1x16x64xbf16> to vector<16x64xbf16>
    %cst_197 = arith.constant dense<0.000000e+00> : vector<32x64xf32>
    %493 = tpu.matmul %490, %492, %cst_197 {dimension_numbers = #tpu.dot_dimension_numbers<[1], [0], [0], [1], [0, 0, 1, 1], [], []>} : vector<32x16xbf16>, vector<16x64xbf16>, vector<32x64xf32> -> vector<32x64xf32>
    %494 = arith.addf %446, %493 : vector<32x64xf32>
    %495 = vector.extract_strided_slice %302 {offsets = [3, 0, 0], sizes = [1, 64, 16], strides = [1, 1, 1]} : vector<4x64x16xbf16> to vector<1x64x16xbf16>
    %496 = vector.shape_cast %495 : vector<1x64x16xbf16> to vector<64x16xbf16>
    %cst_198 = arith.constant dense<0.000000e+00> : vector<32x16xf32>
    %497 = tpu.matmul %349, %496, %cst_198 {dimension_numbers = #tpu.dot_dimension_numbers<[1], [0], [0], [1], [0, 0, 1, 1], [], []>} : vector<32x64xbf16>, vector<64x16xbf16>, vector<32x16xf32> -> vector<32x16xf32>
    %498 = vector.extract_strided_slice %308 {offsets = [3, 0, 0], sizes = [1, 1, 16], strides = [1, 1, 1]} : vector<4x1x16xf32> to vector<1x1x16xf32>
    %499 = vector.shape_cast %498 : vector<1x1x16xf32> to vector<1x16xf32>
    %500 = vector.broadcast %499 : vector<1x16xf32> to vector<32x16xf32>
    %501 = arith.addf %497, %500 : vector<32x16xf32>
    %502 = vector.shape_cast %501 : vector<32x16xf32> to vector<2x16x16xf32>
    %503 = vector.extract_strided_slice %304 {offsets = [3, 0, 0], sizes = [1, 64, 16], strides = [1, 1, 1]} : vector<4x64x16xbf16> to vector<1x64x16xbf16>
    %504 = vector.shape_cast %503 : vector<1x64x16xbf16> to vector<64x16xbf16>
    %cst_199 = arith.constant dense<0.000000e+00> : vector<32x16xf32>
    %505 = tpu.matmul %349, %504, %cst_199 {dimension_numbers = #tpu.dot_dimension_numbers<[1], [0], [0], [1], [0, 0, 1, 1], [], []>} : vector<32x64xbf16>, vector<64x16xbf16>, vector<32x16xf32> -> vector<32x16xf32>
    %506 = vector.extract_strided_slice %310 {offsets = [3, 0, 0], sizes = [1, 1, 16], strides = [1, 1, 1]} : vector<4x1x16xf32> to vector<1x1x16xf32>
    %507 = vector.shape_cast %506 : vector<1x1x16xf32> to vector<1x16xf32>
    %508 = vector.broadcast %507 : vector<1x16xf32> to vector<32x16xf32>
    %509 = arith.addf %505, %508 : vector<32x16xf32>
    %510 = vector.shape_cast %509 : vector<32x16xf32> to vector<2x16x16xf32>
    %511 = vector.extract_strided_slice %306 {offsets = [3, 0, 0], sizes = [1, 64, 16], strides = [1, 1, 1]} : vector<4x64x16xbf16> to vector<1x64x16xbf16>
    %512 = vector.shape_cast %511 : vector<1x64x16xbf16> to vector<64x16xbf16>
    %cst_200 = arith.constant dense<0.000000e+00> : vector<32x16xf32>
    %513 = tpu.matmul %349, %512, %cst_200 {dimension_numbers = #tpu.dot_dimension_numbers<[1], [0], [0], [1], [0, 0, 1, 1], [], []>} : vector<32x64xbf16>, vector<64x16xbf16>, vector<32x16xf32> -> vector<32x16xf32>
    %514 = vector.extract_strided_slice %312 {offsets = [3, 0, 0], sizes = [1, 1, 16], strides = [1, 1, 1]} : vector<4x1x16xf32> to vector<1x1x16xf32>
    %515 = vector.shape_cast %514 : vector<1x1x16xf32> to vector<1x16xf32>
    %516 = vector.broadcast %515 : vector<1x16xf32> to vector<32x16xf32>
    %517 = arith.addf %513, %516 : vector<32x16xf32>
    %518 = vector.shape_cast %517 : vector<32x16xf32> to vector<2x16x16xf32>
    %519 = arith.truncf %502 : vector<2x16x16xf32> to vector<2x16x16xbf16>
    %520 = arith.truncf %510 : vector<2x16x16xf32> to vector<2x16x16xbf16>
    "tpu.trace_start"() <{level = 10 : i32, message = "bld,bmd->blm"}> : () -> ()
    %cst_201 = arith.constant dense<0.000000e+00> : vector<2x16x16xf32>
    %521 = tpu.matmul %519, %520, %cst_201 {dimension_numbers = #tpu.dot_dimension_numbers<[2], [2], [1], [1], [0, 0, 0, 1, 1, 1], [0], [0]>} : vector<2x16x16xbf16>, vector<2x16x16xbf16>, vector<2x16x16xf32> -> vector<2x16x16xf32>
    "tpu.trace_stop"() : () -> ()
    %cst_202 = arith.constant 2.500000e-01 : f32
    %522 = vector.broadcast %cst_202 : f32 to vector<2x16x16xf32>
    %523 = arith.mulf %521, %522 : vector<2x16x16xf32>
    %cst_203 = arith.constant dense<0xFF800000> : vector<2x16xf32>
    %524 = vector.multi_reduction <maximumf>, %523, %cst_203 [2] : vector<2x16x16xf32> to vector<2x16xf32>
    %525 = vector.shape_cast %524 : vector<2x16xf32> to vector<2x16x1xf32>
    %526 = vector.broadcast %525 : vector<2x16x1xf32> to vector<2x16x16xf32>
    %527 = arith.subf %523, %526 : vector<2x16x16xf32>
    %528 = math.exp %527 : vector<2x16x16xf32>
    %cst_204 = arith.constant dense<0.000000e+00> : vector<2x16xf32>
    %529 = vector.multi_reduction <add>, %528, %cst_204 [2] : vector<2x16x16xf32> to vector<2x16xf32>
    %530 = vector.shape_cast %529 : vector<2x16xf32> to vector<2x16x1xf32>
    %531 = tpu.reciprocal %530 {approx = true} : vector<2x16x1xf32> -> vector<2x16x1xf32>
    %532 = vector.broadcast %531 : vector<2x16x1xf32> to vector<2x16x16xf32>
    %533 = arith.mulf %528, %532 : vector<2x16x16xf32>
    %534 = arith.truncf %533 : vector<2x16x16xf32> to vector<2x16x16xbf16>
    %535 = arith.truncf %518 : vector<2x16x16xf32> to vector<2x16x16xbf16>
    "tpu.trace_start"() <{level = 10 : i32, message = "blm,bmd->bld"}> : () -> ()
    %cst_205 = arith.constant dense<0.000000e+00> : vector<2x16x16xf32>
    %536 = tpu.matmul %534, %535, %cst_205 {dimension_numbers = #tpu.dot_dimension_numbers<[2], [1], [1], [2], [0, 0, 0, 1, 1, 2], [0], [0]>} : vector<2x16x16xbf16>, vector<2x16x16xbf16>, vector<2x16x16xf32> -> vector<2x16x16xf32>
    "tpu.trace_stop"() : () -> ()
    %537 = vector.shape_cast %536 : vector<2x16x16xf32> to vector<32x16xf32>
    %538 = arith.truncf %537 : vector<32x16xf32> to vector<32x16xbf16>
    %539 = vector.extract_strided_slice %314 {offsets = [3, 0, 0], sizes = [1, 16, 64], strides = [1, 1, 1]} : vector<4x16x64xbf16> to vector<1x16x64xbf16>
    %540 = vector.shape_cast %539 : vector<1x16x64xbf16> to vector<16x64xbf16>
    %cst_206 = arith.constant dense<0.000000e+00> : vector<32x64xf32>
    %541 = tpu.matmul %538, %540, %cst_206 {dimension_numbers = #tpu.dot_dimension_numbers<[1], [0], [0], [1], [0, 0, 1, 1], [], []>} : vector<32x16xbf16>, vector<16x64xbf16>, vector<32x64xf32> -> vector<32x64xf32>
    %542 = arith.addf %494, %541 : vector<32x64xf32>
    %543 = arith.addf %296, %542 : vector<32x64xf32>
    %544 = vector.broadcast %316 : vector<1x64xf32> to vector<32x64xf32>
    %545 = arith.addf %543, %544 : vector<32x64xf32>
    %cst_207 = arith.constant dense<0.000000e+00> : vector<32xf32>
    %546 = vector.multi_reduction <add>, %545, %cst_207 [1] : vector<32x64xf32> to vector<32xf32>
    %547 = vector.shape_cast %546 : vector<32xf32> to vector<32x1xf32>
    %cst_208 = arith.constant 6.400000e+01 : f32
    %548 = vector.broadcast %cst_208 : f32 to vector<32x1xf32>
    %549 = arith.divf %547, %548 : vector<32x1xf32>
    %550 = vector.broadcast %549 : vector<32x1xf32> to vector<32x64xf32>
    %551 = arith.subf %545, %550 : vector<32x64xf32>
    %552 = arith.mulf %551, %551 : vector<32x64xf32>
    %cst_209 = arith.constant dense<0.000000e+00> : vector<32xf32>
    %553 = vector.multi_reduction <add>, %552, %cst_209 [1] : vector<32x64xf32> to vector<32xf32>
    %554 = vector.shape_cast %553 : vector<32xf32> to vector<32x1xf32>
    %cst_210 = arith.constant 6.400000e+01 : f32
    %555 = vector.broadcast %cst_210 : f32 to vector<32x1xf32>
    %556 = arith.divf %554, %555 : vector<32x1xf32>
    %cst_211 = arith.constant 9.99999997E-7 : f32
    %557 = vector.broadcast %cst_211 : f32 to vector<32x1xf32>
    %558 = arith.addf %556, %557 : vector<32x1xf32>
    %559 = math.rsqrt %558 : vector<32x1xf32>
    %560 = vector.broadcast %559 : vector<32x1xf32> to vector<32x64xf32>
    %561 = arith.mulf %551, %560 : vector<32x64xf32>
    %562 = vector.broadcast %318 : vector<1x64xf32> to vector<32x64xf32>
    %563 = arith.mulf %561, %562 : vector<32x64xf32>
    %564 = vector.broadcast %320 : vector<1x64xf32> to vector<32x64xf32>
    %565 = arith.addf %563, %564 : vector<32x64xf32>
    %566 = arith.truncf %565 : vector<32x64xf32> to vector<32x64xbf16>
    %cst_212 = arith.constant dense<0.000000e+00> : vector<32x256xf32>
    %567 = tpu.matmul %566, %322, %cst_212 {dimension_numbers = #tpu.dot_dimension_numbers<[1], [0], [0], [1], [0, 0, 1, 1], [], []>} : vector<32x64xbf16>, vector<64x256xbf16>, vector<32x256xf32> -> vector<32x256xf32>
    %568 = vector.broadcast %324 : vector<1x256xf32> to vector<32x256xf32>
    %569 = arith.addf %567, %568 : vector<32x256xf32>
    %cst_213 = arith.constant 5.000000e-01 : f32
    %570 = vector.broadcast %cst_213 : f32 to vector<32x256xf32>
    %571 = arith.mulf %570, %569 : vector<32x256xf32>
    %cst_214 = arith.constant 4.471500e-02 : f32
    %572 = vector.broadcast %cst_214 : f32 to vector<32x256xf32>
    %573 = arith.mulf %572, %569 : vector<32x256xf32>
    %574 = arith.mulf %573, %569 : vector<32x256xf32>
    %575 = arith.mulf %574, %569 : vector<32x256xf32>
    %576 = arith.addf %569, %575 : vector<32x256xf32>
    %cst_215 = arith.constant 0.797884583 : f32
    %577 = vector.broadcast %cst_215 : f32 to vector<32x256xf32>
    %578 = arith.mulf %577, %576 : vector<32x256xf32>
    %579 = math.tanh %578 : vector<32x256xf32>
    %cst_216 = arith.constant 1.000000e+00 : f32
    %580 = vector.broadcast %cst_216 : f32 to vector<32x256xf32>
    %581 = arith.addf %580, %579 : vector<32x256xf32>
    %582 = arith.mulf %571, %581 : vector<32x256xf32>
    %583 = arith.truncf %582 : vector<32x256xf32> to vector<32x256xbf16>
    %cst_217 = arith.constant dense<0.000000e+00> : vector<32x64xf32>
    %584 = tpu.matmul %583, %326, %cst_217 {dimension_numbers = #tpu.dot_dimension_numbers<[1], [0], [0], [1], [0, 0, 1, 1], [], []>} : vector<32x256xbf16>, vector<256x64xbf16>, vector<32x64xf32> -> vector<32x64xf32>
    %585 = arith.addf %545, %584 : vector<32x64xf32>
    %586 = vector.broadcast %328 : vector<1x64xf32> to vector<32x64xf32>
    %587 = arith.addf %585, %586 : vector<32x64xf32>
    %c0_218 = arith.constant 0 : index
    %c0_219 = arith.constant 0 : index
    %588 = vector.load %arg18[%c0_218, %c0_219] : memref<32x64xf32, #tpu.memory_space<vmem>>, vector<32x64xf32>
    tpu.vector_store %arg18[%c0_218, %c0_219], %587 {strides = array<i32>} : memref<32x64xf32, #tpu.memory_space<vmem>>, vector<32x64xf32>,
    return
  }
}

</mosaic_0001>

<llo_original>
// kernel: tpu_custom_call.1
$region0: #{tpu_custom_call.1}
  #allocation0 [shape = 'u32[]', space=smem, size = 0x4, offset = 0x4, fixed_abs, tag = 'smem constant byte address 0x4 - core index']
  #allocation1 [shape = 'u32[144,128]{1,0:T(1,128)}', space=vmem, size = 0x12000, scoped, tag = 'internal scratch']
  %s0 = inlined_call_operand.vmem [shape: f32[2,16,64], index: 0, kind: input, shape index: {}]
  %s1 = inlined_call_operand.vmem [shape: f32[16,64], index: 1, kind: input, shape index: {}]
  %s2 = inlined_call_operand.vmem [shape: f32[2,1,64], index: 2, kind: input, shape index: {}]
  %s3 = inlined_call_operand.vmem [shape: f32[2,1,64], index: 3, kind: input, shape index: {}]
  %s4 = inlined_call_operand.vmem [shape: bf16[2,4,64,16], index: 4, kind: input, shape index: {}]
  %s5 = inlined_call_operand.vmem [shape: bf16[2,4,64,16], index: 5, kind: input, shape index: {}]
  %s6 = inlined_call_operand.vmem [shape: bf16[2,4,64,16], index: 6, kind: input, shape index: {}]
  %s7 = inlined_call_operand.vmem [shape: f32[2,4,1,16], index: 7, kind: input, shape index: {}]
  %s8 = inlined_call_operand.vmem [shape: f32[2,4,1,16], index: 8, kind: input, shape index: {}]
  %s9 = inlined_call_operand.vmem [shape: f32[2,4,1,16], index: 9, kind: input, shape index: {}]
  %s10 = inlined_call_operand.vmem [shape: bf16[2,4,16,64], index: 10, kind: input, shape index: {}]
  %s11 = inlined_call_operand.vmem [shape: f32[2,1,64], index: 11, kind: input, shape index: {}]
  %s12 = inlined_call_operand.vmem [shape: f32[2,1,64], index: 12, kind: input, shape index: {}]
  %s13 = inlined_call_operand.vmem [shape: f32[2,1,64], index: 13, kind: input, shape index: {}]
  %s14 = inlined_call_operand.vmem [shape: bf16[2,64,256], index: 14, kind: input, shape index: {}]
  %s15 = inlined_call_operand.vmem [shape: f32[2,1,256], index: 15, kind: input, shape index: {}]
  %s16 = inlined_call_operand.vmem [shape: bf16[2,256,64], index: 16, kind: input, shape index: {}]
  %s17 = inlined_call_operand.vmem [shape: f32[2,1,64], index: 17, kind: input, shape index: {}]
  %s18 = inlined_call_operand.hbm [shape: f32[32,64], index: 18, kind: output, shape index: {}]
  %s19 = sld [smem:[#allocation0]]
  $region82: #{tpu_custom_call.1} parent=0
    _
  %s21 = ssub.s32 1, %s19
  %s22 = scalar_select 0, %s21, %s19
  $region1: #{tpu_custom_call.1} parent=0
    #allocation2 [shape = 'u8[16384]{0}', space=vmem, size = 0x4000, scoped, tag = 'output window, operand 0, single buffered']
    #allocation3 [shape = 's32[1]{0}', space=sflag, size = 0x4, scoped, tag = 'scoped memory for tpu_custom_call.1']
    %23 = vsyncpa [#allocation3], 0
    // Predicated region
    $region2: #{tpu_custom_call.1} parent=1 // pred_check
      _
    $region3: #{tpu_custom_call.1} parent=1 // pred_check_branch
      %25 = sbr.rel (0) target = $region5
    $region4: #{tpu_custom_call.1} parent=1 // pred_region
      _
    $region5: #{tpu_custom_call.1} parent=1 // pred_fallthru
      _
    // Predicated region
    $region6: #{tpu_custom_call.1} parent=1 // pred_check
      _
    $region7: #{tpu_custom_call.1} parent=1 // pred_check_branch
      %27 = sbr.rel (0) target = $region9
    $region8: #{tpu_custom_call.1} parent=1 // pred_region
      _
    $region9: #{tpu_custom_call.1} parent=1 // pred_fallthru
      _
    // Predicated region
    $region10: #{tpu_custom_call.1} parent=1 // pred_check
      _
    $region11: #{tpu_custom_call.1} parent=1 // pred_check_branch
      %29 = sbr.rel (0) target = $region13
    $region12: #{tpu_custom_call.1} parent=1 // pred_region
      _
    $region13: #{tpu_custom_call.1} parent=1 // pred_fallthru
      _
    // Predicated region
    $region14: #{tpu_custom_call.1} parent=1 // pred_check
      _
    $region15: #{tpu_custom_call.1} parent=1 // pred_check_branch
      %31 = sbr.rel (0) target = $region17
    $region16: #{tpu_custom_call.1} parent=1 // pred_region
      _
    $region17: #{tpu_custom_call.1} parent=1 // pred_fallthru
      _
    // Predicated region
    $region18: #{tpu_custom_call.1} parent=1 // pred_check
      _
    $region19: #{tpu_custom_call.1} parent=1 // pred_check_branch
      %33 = sbr.rel (0) target = $region21
    $region20: #{tpu_custom_call.1} parent=1 // pred_region
      _
    $region21: #{tpu_custom_call.1} parent=1 // pred_fallthru
      _
    // Predicated region
    $region22: #{tpu_custom_call.1} parent=1 // pred_check
      _
    $region23: #{tpu_custom_call.1} parent=1 // pred_check_branch
      %35 = sbr.rel (0) target = $region25
    $region24: #{tpu_custom_call.1} parent=1 // pred_region
      _
    $region25: #{tpu_custom_call.1} parent=1 // pred_fallthru
      _
    // Predicated region
    $region26: #{tpu_custom_call.1} parent=1 // pred_check
      _
    $region27: #{tpu_custom_call.1} parent=1 // pred_check_branch
      %37 = sbr.rel (0) target = $region29
    $region28: #{tpu_custom_call.1} parent=1 // pred_region
      _
    $region29: #{tpu_custom_call.1} parent=1 // pred_fallthru
      _
    // Predicated region
    $region30: #{tpu_custom_call.1} parent=1 // pred_check
      _
    $region31: #{tpu_custom_call.1} parent=1 // pred_check_branch
      %39 = sbr.rel (0) target = $region33
    $region32: #{tpu_custom_call.1} parent=1 // pred_region
      _
    $region33: #{tpu_custom_call.1} parent=1 // pred_fallthru
      _
    // Predicated region
    $region34: #{tpu_custom_call.1} parent=1 // pred_check
      _
    $region35: #{tpu_custom_call.1} parent=1 // pred_check_branch
      %41 = sbr.rel (0) target = $region37
    $region36: #{tpu_custom_call.1} parent=1 // pred_region
      _
    $region37: #{tpu_custom_call.1} parent=1 // pred_fallthru
      _
    // Predicated region
    $region38: #{tpu_custom_call.1} parent=1 // pred_check
      _
    $region39: #{tpu_custom_call.1} parent=1 // pred_check_branch
      %43 = sbr.rel (0) target = $region41
    $region40: #{tpu_custom_call.1} parent=1 // pred_region
      _
    $region41: #{tpu_custom_call.1} parent=1 // pred_fallthru
      _
    // Predicated region
    $region42: #{tpu_custom_call.1} parent=1 // pred_check
      _
    $region43: #{tpu_custom_call.1} parent=1 // pred_check_branch
      %45 = sbr.rel (0) target = $region45
    $region44: #{tpu_custom_call.1} parent=1 // pred_region
      _
    $region45: #{tpu_custom_call.1} parent=1 // pred_fallthru
      _
    // Predicated region
    $region46: #{tpu_custom_call.1} parent=1 // pred_check
      _
    $region47: #{tpu_custom_call.1} parent=1 // pred_check_branch
      %47 = sbr.rel (0) target = $region49
    $region48: #{tpu_custom_call.1} parent=1 // pred_region
      _
    $region49: #{tpu_custom_call.1} parent=1 // pred_fallthru
      _
    // Predicated region
    $region50: #{tpu_custom_call.1} parent=1 // pred_check
      _
    $region51: #{tpu_custom_call.1} parent=1 // pred_check_branch
      %49 = sbr.rel (0) target = $region53
    $region52: #{tpu_custom_call.1} parent=1 // pred_region
      _
    $region53: #{tpu_custom_call.1} parent=1 // pred_fallthru
      _
    // Predicated region
    $region54: #{tpu_custom_call.1} parent=1 // pred_check
      _
    $region55: #{tpu_custom_call.1} parent=1 // pred_check_branch
      %51 = sbr.rel (0) target = $region57
    $region56: #{tpu_custom_call.1} parent=1 // pred_region
      _
    $region57: #{tpu_custom_call.1} parent=1 // pred_fallthru
      _
    // Predicated region
    $region58: #{tpu_custom_call.1} parent=1 // pred_check
      _
    $region59: #{tpu_custom_call.1} parent=1 // pred_check_branch
      %53 = sbr.rel (0) target = $region61
    $region60: #{tpu_custom_call.1} parent=1 // pred_region
      _
    $region61: #{tpu_custom_call.1} parent=1 // pred_fallthru
      _
    // Predicated region
    $region62: #{tpu_custom_call.1} parent=1 // pred_check
      _
    $region63: #{tpu_custom_call.1} parent=1 // pred_check_branch
      %55 = sbr.rel (0) target = $region65
    $region64: #{tpu_custom_call.1} parent=1 // pred_region
      _
    $region65: #{tpu_custom_call.1} parent=1 // pred_fallthru
      _
    // Predicated region
    $region66: #{tpu_custom_call.1} parent=1 // pred_check
      _
    $region67: #{tpu_custom_call.1} parent=1 // pred_check_branch
      %57 = sbr.rel (0) target = $region69
    $region68: #{tpu_custom_call.1} parent=1 // pred_region
      _
    $region69: #{tpu_custom_call.1} parent=1 // pred_fallthru
      _
    // Predicated region
    $region70: #{tpu_custom_call.1} parent=1 // pred_check
      _
    $region71: #{tpu_custom_call.1} parent=1 // pred_check_branch
      %59 = sbr.rel (0) target = $region73
    $region72: #{tpu_custom_call.1} parent=1 // pred_region
      _
    $region73: #{tpu_custom_call.1} parent=1 // pred_fallthru
      _
    %v61 = vld [vmem:[%s0] sm:$0xff]
    %v62 = vld [vmem:[%s0 + $0x8] sm:$0xff]
    %v63 = vld [vmem:[%s0 + $0x10] sm:$0xff]
    %v64 = vld [vmem:[%s0 + $0x18] sm:$0xff]
    %v65 = vld [vmem:[%s1] sm:$0xff]
    %v66 = vld [vmem:[%s1 + $0x8] sm:$0xff]
    %v67 = vadd.f32 %v61, %v65
    %v68 = vadd.f32 %v62, %v66
    %v69 = vadd.f32 %v63, %v65
    %v70 = vadd.f32 %v64, %v66
    %v71 = vld [vmem:[%s2] sm:$0x1]
    %v72 = vld [vmem:[%s3] sm:$0x1]
    %v73 = vld [vmem:[%s4] sm:$0xf]
    %v74 = vld [vmem:[%s4 + $0x4] sm:$0xf]
    %v75 = vld [vmem:[%s4 + $0x8] sm:$0xf]
    %v76 = vld [vmem:[%s4 + $0xc] sm:$0xf]
    %v77 = vld [vmem:[%s4 + $0x10] sm:$0xf]
    %v78 = vld [vmem:[%s4 + $0x14] sm:$0xf]
    %v79 = vld [vmem:[%s4 + $0x18] sm:$0xf]
    %v80 = vld [vmem:[%s4 + $0x1c] sm:$0xf]
    %v81 = vld [vmem:[%s4 + $0x20] sm:$0xf]
    %v82 = vld [vmem:[%s4 + $0x24] sm:$0xf]
    %v83 = vld [vmem:[%s4 + $0x28] sm:$0xf]
    %v84 = vld [vmem:[%s4 + $0x2c] sm:$0xf]
    %v85 = vld [vmem:[%s4 + $0x30] sm:$0xf]
    %v86 = vld [vmem:[%s4 + $0x34] sm:$0xf]
    %v87 = vld [vmem:[%s4 + $0x38] sm:$0xf]
    %v88 = vld [vmem:[%s4 + $0x3c] sm:$0xf]
    %v89 = vld [vmem:[%s4 + $0x40] sm:$0xf]
    %v90 = vld [vmem:[%s4 + $0x44] sm:$0xf]
    %v91 = vld [vmem:[%s4 + $0x48] sm:$0xf]
    %v92 = vld [vmem:[%s4 + $0x4c] sm:$0xf]
    %v93 = vld [vmem:[%s4 + $0x50] sm:$0xf]
    %v94 = vld [vmem:[%s4 + $0x54] sm:$0xf]
    %v95 = vld [vmem:[%s4 + $0x58] sm:$0xf]
    %v96 = vld [vmem:[%s4 + $0x5c] sm:$0xf]
    %v97 = vld [vmem:[%s4 + $0x60] sm:$0xf]
    %v98 = vld [vmem:[%s4 + $0x64] sm:$0xf]
    %v99 = vld [vmem:[%s4 + $0x68] sm:$0xf]
    %v100 = vld [vmem:[%s4 + $0x6c] sm:$0xf]
    %v101 = vld [vmem:[%s4 + $0x70] sm:$0xf]
    %v102 = vld [vmem:[%s4 + $0x74] sm:$0xf]
    %v103 = vld [vmem:[%s4 + $0x78] sm:$0xf]
    %v104 = vld [vmem:[%s4 + $0x7c] sm:$0xf]
    %v105 = vld [vmem:[%s5] sm:$0xf]
    %v106 = vld [vmem:[%s5 + $0x4] sm:$0xf]
    %v107 = vld [vmem:[%s5 + $0x8] sm:$0xf]
    %v108 = vld [vmem:[%s5 + $0xc] sm:$0xf]
    %v109 = vld [vmem:[%s5 + $0x10] sm:$0xf]
    %v110 = vld [vmem:[%s5 + $0x14] sm:$0xf]
    %v111 = vld [vmem:[%s5 + $0x18] sm:$0xf]
    %v112 = vld [vmem:[%s5 + $0x1c] sm:$0xf]
    %v113 = vld [vmem:[%s5 + $0x20] sm:$0xf]
    %v114 = vld [vmem:[%s5 + $0x24] sm:$0xf]
    %v115 = vld [vmem:[%s5 + $0x28] sm:$0xf]
    %v116 = vld [vmem:[%s5 + $0x2c] sm:$0xf]
    %v117 = vld [vmem:[%s5 + $0x30] sm:$0xf]
    %v118 = vld [vmem:[%s5 + $0x34] sm:$0xf]
    %v119 = vld [vmem:[%s5 + $0x38] sm:$0xf]
    %v120 = vld [vmem:[%s5 + $0x3c] sm:$0xf]
    %v121 = vld [vmem:[%s5 + $0x40] sm:$0xf]
    %v122 = vld [vmem:[%s5 + $0x44] sm:$0xf]
    %v123 = vld [vmem:[%s5 + $0x48] sm:$0xf]
    %v124 = vld [vmem:[%s5 + $0x4c] sm:$0xf]
    %v125 = vld [vmem:[%s5 + $0x50] sm:$0xf]
    %v126 = vld [vmem:[%s5 + $0x54] sm:$0xf]
    %v127 = vld [vmem:[%s5 + $0x58] sm:$0xf]
    %v128 = vld [vmem:[%s5 + $0x5c] sm:$0xf]
    %v129 = vld [vmem:[%s5 + $0x60] sm:$0xf]
    %v130 = vld [vmem:[%s5 + $0x64] sm:$0xf]
    %v131 = vld [vmem:[%s5 + $0x68] sm:$0xf]
    %v132 = vld [vmem:[%s5 + $0x6c] sm:$0xf]
    %v133 = vld [vmem:[%s5 + $0x70] sm:$0xf]
    %v134 = vld [vmem:[%s5 + $0x74] sm:$0xf]
    %v135 = vld [vmem:[%s5 + $0x78] sm:$0xf]
    %v136 = vld [vmem:[%s5 + $0x7c] sm:$0xf]
    %v137 = vld [vmem:[%s6] sm:$0xf]
    %v138 = vld [vmem:[%s6 + $0x4] sm:$0xf]
    %v139 = vld [vmem:[%s6 + $0x8] sm:$0xf]
    %v140 = vld [vmem:[%s6 + $0xc] sm:$0xf]
    %v141 = vld [vmem:[%s6 + $0x10] sm:$0xf]
    %v142 = vld [vmem:[%s6 + $0x14] sm:$0xf]
    %v143 = vld [vmem:[%s6 + $0x18] sm:$0xf]
    %v144 = vld [vmem:[%s6 + $0x1c] sm:$0xf]
    %v145 = vld [vmem:[%s6 + $0x20] sm:$0xf]
    %v146 = vld [vmem:[%s6 + $0x24] sm:$0xf]
    %v147 = vld [vmem:[%s6 + $0x28] sm:$0xf]
    %v148 = vld [vmem:[%s6 + $0x2c] sm:$0xf]
    %v149 = vld [vmem:[%s6 + $0x30] sm:$0xf]
    %v150 = vld [vmem:[%s6 + $0x34] sm:$0xf]
    %v151 = vld [vmem:[%s6 + $0x38] sm:$0xf]
    %v152 = vld [vmem:[%s6 + $0x3c] sm:$0xf]
    %v153 = vld [vmem:[%s6 + $0x40] sm:$0xf]
    %v154 = vld [vmem:[%s6 + $0x44] sm:$0xf]
    %v155 = vld [vmem:[%s6 + $0x48] sm:$0xf]
    %v156 = vld [vmem:[%s6 + $0x4c] sm:$0xf]
    %v157 = vld [vmem:[%s6 + $0x50] sm:$0xf]
    %v158 = vld [vmem:[%s6 + $0x54] sm:$0xf]
    %v159 = vld [vmem:[%s6 + $0x58] sm:$0xf]
    %v160 = vld [vmem:[%s6 + $0x5c] sm:$0xf]
    %v161 = vld [vmem:[%s6 + $0x60] sm:$0xf]
    %v162 = vld [vmem:[%s6 + $0x64] sm:$0xf]
    %v163 = vld [vmem:[%s6 + $0x68] sm:$0xf]
    %v164 = vld [vmem:[%s6 + $0x6c] sm:$0xf]
    %v165 = vld [vmem:[%s6 + $0x70] sm:$0xf]
    %v166 = vld [vmem:[%s6 + $0x74] sm:$0xf]
    %v167 = vld [vmem:[%s6 + $0x78] sm:$0xf]
    %v168 = vld [vmem:[%s6 + $0x7c] sm:$0xf]
    %v169 = vld [vmem:[%s7] sm:$0x1]
    %v170 = vld [vmem:[%s7 + $0x1] sm:$0x1]
    %v171 = vld [vmem:[%s7 + $0x2] sm:$0x1]
    %v172 = vld [vmem:[%s7 + $0x3] sm:$0x1]
    %v173 = vld [vmem:[%s8] sm:$0x1]
    %v174 = vld [vmem:[%s8 + $0x1] sm:$0x1]
    %v175 = vld [vmem:[%s8 + $0x2] sm:$0x1]
    %v176 = vld [vmem:[%s8 + $0x3] sm:$0x1]
    %v177 = vld [vmem:[%s9] sm:$0x1]
    %v178 = vld [vmem:[%s9 + $0x1] sm:$0x1]
    %v179 = vld [vmem:[%s9 + $0x2] sm:$0x1]
    %v180 = vld [vmem:[%s9 + $0x3] sm:$0x1]
    %v181 = vld [vmem:[%s10] sm:$0xf]
    %v182 = vld [vmem:[%s10 + $0x4] sm:$0xf]
    %v183 = vld [vmem:[%s10 + $0x8] sm:$0xf]
    %v184 = vld [vmem:[%s10 + $0xc] sm:$0xf]
    %v185 = vld [vmem:[%s10 + $0x10] sm:$0xf]
    %v186 = vld [vmem:[%s10 + $0x14] sm:$0xf]
    %v187 = vld [vmem:[%s10 + $0x18] sm:$0xf]
    %v188 = vld [vmem:[%s10 + $0x1c] sm:$0xf]
    %v189 = vld [vmem:[%s11] sm:$0x1]
    %v190 = vld [vmem:[%s12] sm:$0x1]
    %v191 = vld [vmem:[%s13] sm:$0x1]
    %v192 = vld [vmem:[%s14] sm:$0xff]
    %v193 = vld [vmem:[%s14 + $0x8] sm:$0xff]
    %v194 = vld [vmem:[%s14 + $0x10] sm:$0xff]
    %v195 = vld [vmem:[%s14 + $0x18] sm:$0xff]
    %v196 = vld [vmem:[%s14 + $0x20] sm:$0xff]
    %v197 = vld [vmem:[%s14 + $0x28] sm:$0xff]
    %v198 = vld [vmem:[%s14 + $0x30] sm:$0xff]
    %v199 = vld [vmem:[%s14 + $0x38] sm:$0xff]
    %v200 = vld [vmem:[%s15] sm:$0x3]
    %v201 = vld [vmem:[%s16] sm:$0xf]
    %v202 = vld [vmem:[%s16 + $0x4] sm:$0xf]
    %v203 = vld [vmem:[%s16 + $0x8] sm:$0xf]
    %v204 = vld [vmem:[%s16 + $0xc] sm:$0xf]
    %v205 = vld [vmem:[%s16 + $0x10] sm:$0xf]
    %v206 = vld [vmem:[%s16 + $0x14] sm:$0xf]
    %v207 = vld [vmem:[%s16 + $0x18] sm:$0xf]
    %v208 = vld [vmem:[%s16 + $0x1c] sm:$0xf]
    %v209 = vld [vmem:[%s16 + $0x20] sm:$0xf]
    %v210 = vld [vmem:[%s16 + $0x24] sm:$0xf]
    %v211 = vld [vmem:[%s16 + $0x28] sm:$0xf]
    %v212 = vld [vmem:[%s16 + $0x2c] sm:$0xf]
    %v213 = vld [vmem:[%s16 + $0x30] sm:$0xf]
    %v214 = vld [vmem:[%s16 + $0x34] sm:$0xf]
    %v215 = vld [vmem:[%s16 + $0x38] sm:$0xf]
    %v216 = vld [vmem:[%s16 + $0x3c] sm:$0xf]
    %v217 = vld [vmem:[%s16 + $0x40] sm:$0xf]
    %v218 = vld [vmem:[%s16 + $0x44] sm:$0xf]
    %v219 = vld [vmem:[%s16 + $0x48] sm:$0xf]
    %v220 = vld [vmem:[%s16 + $0x4c] sm:$0xf]
    %v221 = vld [vmem:[%s16 + $0x50] sm:$0xf]
    %v222 = vld [vmem:[%s16 + $0x54] sm:$0xf]
    %v223 = vld [vmem:[%s16 + $0x58] sm:$0xf]
    %v224 = vld [vmem:[%s16 + $0x5c] sm:$0xf]
    %v225 = vld [vmem:[%s16 + $0x60] sm:$0xf]
    %v226 = vld [vmem:[%s16 + $0x64] sm:$0xf]
    %v227 = vld [vmem:[%s16 + $0x68] sm:$0xf]
    %v228 = vld [vmem:[%s16 + $0x6c] sm:$0xf]
    %v229 = vld [vmem:[%s16 + $0x70] sm:$0xf]
    %v230 = vld [vmem:[%s16 + $0x74] sm:$0xf]
    %v231 = vld [vmem:[%s16 + $0x78] sm:$0xf]
    %v232 = vld [vmem:[%s16 + $0x7c] sm:$0xf]
    %v233 = vld [vmem:[%s17] sm:$0x1]
    %vm234 = vcmask 523264
    %v235 = vsel %vm234, %v67, 0.0
    %236 = vadd.xlane.f32.xlu0 %v235
    %v237 = vpop.xlane.xlu0 %236
    %v238 = vsel %vm234, %v68, 0.0
    %239 = vadd.xlane.f32.xlu0 %v238
    %v240 = vpop.xlane.xlu0 %239
    %v241 = vsel %vm234, %v69, 0.0
    %242 = vadd.xlane.f32.xlu0 %v241
    %v243 = vpop.xlane.xlu0 %242
    %v244 = vsel %vm234, %v70, 0.0
    %245 = vadd.xlane.f32.xlu0 %v244
    %v246 = vpop.xlane.xlu0 %245
    %v247 = vrcp.pop 64.0
    %v248 = vmul.f32 %v237, %v247
    %v249 = vmul.f32 %v240, %v247
    %v250 = vmul.f32 %v243, %v247
    %v251 = vmul.f32 %v246, %v247
    %v252 = vsub.f32 %v67, %v248
    %v253 = vsub.f32 %v68, %v249
    %v254 = vsub.f32 %v69, %v250
    %v255 = vsub.f32 %v70, %v251
    %v256 = vmul.f32 %v252, %v252
    %v257 = vmul.f32 %v253, %v253
    %v258 = vmul.f32 %v254, %v254
    %v259 = vmul.f32 %v255, %v255
    %v260 = vsel %vm234, %v256, 0.0
    %261 = vadd.xlane.f32.xlu0 %v260
    %v262 = vpop.xlane.xlu0 %261
    %v263 = vsel %vm234, %v257, 0.0
    %264 = vadd.xlane.f32.xlu0 %v263
    %v265 = vpop.xlane.xlu0 %264
    %v266 = vsel %vm234, %v258, 0.0
    %267 = vadd.xlane.f32.xlu0 %v266
    %v268 = vpop.xlane.xlu0 %267
    %v269 = vsel %vm234, %v259, 0.0
    %270 = vadd.xlane.f32.xlu0 %v269
    %v271 = vpop.xlane.xlu0 %270
    %v272 = vmul.f32 %v262, %v247
    %v273 = vmul.f32 %v265, %v247
    %v274 = vmul.f32 %v268, %v247
    %v275 = vmul.f32 %v271, %v247
    %v276 = vadd.f32 %v272, 1e-06
    %v277 = vadd.f32 %v273, 1e-06
    %v278 = vadd.f32 %v274, 1e-06
    %v279 = vadd.f32 %v275, 1e-06
    %v280 = vrsqrt.pop %v276
    %v281 = vrsqrt.pop %v277
    %v282 = vrsqrt.pop %v278
    %v283 = vrsqrt.pop %v279
    %v284 = vmul.f32 %v252, %v280
    %v285 = vmul.f32 %v253, %v281
    %v286 = vmul.f32 %v254, %v282
    %v287 = vmul.f32 %v255, %v283
    %v289 = vlaneseq
    %v290 = vshrl.u32 %v289, 7
    %v291 = vsub.s32 0, %v290
    %v292 = vrot.slane %v71, %v291
    %v294 = vmul.f32 %v284, %v292
    %v295 = vmul.f32 %v285, %v292
    %v296 = vmul.f32 %v286, %v292
    %v297 = vmul.f32 %v287, %v292
    %v299 = vlaneseq
    %v300 = vshrl.u32 %v299, 7
    %v301 = vsub.s32 0, %v300
    %v302 = vrot.slane %v72, %v301
    %v304 = vadd.f32 %v294, %v302
    %v305 = vadd.f32 %v295, %v302
    %v306 = vadd.f32 %v296, %v302
    %v307 = vadd.f32 %v297, %v302
    %v308 = vpack.c.bf16 %v305, %v304
    %v309 = vpack.c.bf16 %v307, %v306
    %v311 = vlaneseq
    %v312 = vshrl.u32 %v311, 7
    %v313 = vsub.s32 0, %v312
    %v314 = vrot.slane %v169, %v313
    %v324 = vunpack.c.l.b16 %v73
    %v325 = vunpack.c.l.b16 %v74
    %v326 = vunpack.c.l.b16 %v75
    %v327 = vunpack.c.l.b16 %v76
    %v328 = vunpack.c.l.b16 %v77
    %v329 = vunpack.c.l.b16 %v78
    %v330 = vunpack.c.l.b16 %v79
    %v331 = vunpack.c.l.b16 %v80
    %v332 = vpack.c.b16 %v325, %v324
    %v333 = vpack.c.b16 %v327, %v326
    %v334 = vpack.c.b16 %v329, %v328
    %v335 = vpack.c.b16 %v331, %v330
    %v341 = vsel %vm234, %v308, 0
    %v344 = vsel %vm234, %v309, 0
    %346 = vmatprep.subr.bf16.mxu0 0
    %347 = vmatpush1.bf16.msra.mxu0 %v332
    %348 = vmatprep.subr.bf16.mxu0 0
    %349 = vmatpush1.bf16.msra.mxu0 %v333
    %350 = vmatprep.subr.bf16.mxu0 0
    %351 = vmatpush1.bf16.msra.mxu0 %v334
    %352 = vmatprep.subr.bf16.mxu0 0
    %353 = vmatpush1.bf16.msra.mxu0 %v335
    %354 = vmatprep.subr.bf16.mxu0 0
    %355 = vmatpush1.bf16.msra.mxu0 0
    %356 = vmatprep.subr.bf16.mxu0 0
    %357 = vmatpush1.bf16.msra.mxu0 0
    %358 = vmatprep.subr.bf16.mxu0 0
    %359 = vmatpush1.bf16.msra.mxu0 0
    %360 = vmatprep.subr.bf16.mxu0 0
    %361 = vmatpush1.bf16.msra.mxu0 0
    %362 = vmatprep.subr.bf16.mxu0 0
    %363 = vmatpush1.bf16.msra.mxu0 0
    %364 = vmatprep.subr.bf16.mxu0 0
    %365 = vmatpush1.bf16.msra.mxu0 0
    %366 = vmatprep.subr.bf16.mxu0 0
    %367 = vmatpush1.bf16.msra.mxu0 0
    %368 = vmatprep.subr.bf16.mxu0 0
    %369 = vmatpush1.bf16.msra.mxu0 0
    %370 = vmatprep.subr.bf16.mxu0 0
    %371 = vmatpush1.bf16.msra.mxu0 0
    %372 = vmatprep.subr.bf16.mxu0 0
    %373 = vmatpush1.bf16.msra.mxu0 0
    %374 = vmatprep.subr.bf16.mxu0 0
    %375 = vmatpush1.bf16.msra.mxu0 0
    %376 = vmatprep.subr.bf16.mxu0 0
    %377 = vmatpush1.bf16.msra.mxu0 0
    %378 = vmatprep.mubr.bf16.mxu0 0
    %379 = vmatmul.mubr.bf16.gmra.mrb[0].mxu0 %v341
    %v380 = vpop.f32.mrb[0].mxu0
    %v381 = vadd.f32 %v314, %v380
    %v382 = vpop.f32.mrb[0].mxu0
    %v383 = vpop.f32.mrb[0].mxu0
    %v384 = vadd.f32 %v314, %v383
    %v385 = vpop.f32.mrb[0].mxu0
    %386 = vmatprep.mubr.bf16.mxu0 0
    %387 = vmatmul.mubr.bf16.gmra.mrb[0].mxu0 %v344
    %v388 = vpop.f32.mrb[0].mxu0
    %v389 = vadd.f32 %v314, %v388
    %v390 = vpop.f32.mrb[0].mxu0
    %v391 = vpop.f32.mrb[0].mxu0
    %v392 = vadd.f32 %v314, %v391
    %v393 = vpop.f32.mrb[0].mxu0
    %394 = vdwg.mxu0
    %v396 = vlaneseq
    %v397 = vshrl.u32 %v396, 7
    %v398 = vsub.s32 0, %v397
    %v399 = vrot.slane %v173, %v398
    %v409 = vunpack.c.l.b16 %v105
    %v410 = vunpack.c.l.b16 %v106
    %v411 = vunpack.c.l.b16 %v107
    %v412 = vunpack.c.l.b16 %v108
    %v413 = vunpack.c.l.b16 %v109
    %v414 = vunpack.c.l.b16 %v110
    %v415 = vunpack.c.l.b16 %v111
    %v416 = vunpack.c.l.b16 %v112
    %v417 = vpack.c.b16 %v410, %v409
    %v418 = vpack.c.b16 %v412, %v411
    %v419 = vpack.c.b16 %v414, %v413
    %v420 = vpack.c.b16 %v416, %v415
    %425 = vmatprep.subr.bf16.mxu0 0
    %426 = vmatpush1.bf16.msra.mxu0 %v417
    %427 = vmatprep.subr.bf16.mxu0 0
    %428 = vmatpush1.bf16.msra.mxu0 %v418
    %429 = vmatprep.subr.bf16.mxu0 0
    %430 = vmatpush1.bf16.msra.mxu0 %v419
    %431 = vmatprep.subr.bf16.mxu0 0
    %432 = vmatpush1.bf16.msra.mxu0 %v420
    %433 = vmatprep.subr.bf16.mxu0 0
    %434 = vmatpush1.bf16.msra.mxu0 0
    %435 = vmatprep.subr.bf16.mxu0 0
    %436 = vmatpush1.bf16.msra.mxu0 0
    %437 = vmatprep.subr.bf16.mxu0 0
    %438 = vmatpush1.bf16.msra.mxu0 0
    %439 = vmatprep.subr.bf16.mxu0 0
    %440 = vmatpush1.bf16.msra.mxu0 0
    %441 = vmatprep.subr.bf16.mxu0 0
    %442 = vmatpush1.bf16.msra.mxu0 0
    %443 = vmatprep.subr.bf16.mxu0 0
    %444 = vmatpush1.bf16.msra.mxu0 0
    %445 = vmatprep.subr.bf16.mxu0 0
    %446 = vmatpush1.bf16.msra.mxu0 0
    %447 = vmatprep.subr.bf16.mxu0 0
    %448 = vmatpush1.bf16.msra.mxu0 0
    %449 = vmatprep.subr.bf16.mxu0 0
    %450 = vmatpush1.bf16.msra.mxu0 0
    %451 = vmatprep.subr.bf16.mxu0 0
    %452 = vmatpush1.bf16.msra.mxu0 0
    %453 = vmatprep.subr.bf16.mxu0 0
    %454 = vmatpush1.bf16.msra.mxu0 0
    %455 = vmatprep.subr.bf16.mxu0 0
    %456 = vmatpush1.bf16.msra.mxu0 0
    %457 = vmatprep.mubr.bf16.mxu0 0
    %458 = vmatmul.mubr.bf16.gmra.mrb[0].mxu0 %v341
    %v459 = vpop.f32.mrb[0].mxu0
    %v460 = vadd.f32 %v399, %v459
    %v461 = vpop.f32.mrb[0].mxu0
    %v462 = vpop.f32.mrb[0].mxu0
    %v463 = vadd.f32 %v399, %v462
    %v464 = vpop.f32.mrb[0].mxu0
    %465 = vmatprep.mubr.bf16.mxu0 0
    %466 = vmatmul.mubr.bf16.gmra.mrb[0].mxu0 %v344
    %v467 = vpop.f32.mrb[0].mxu0
    %v468 = vadd.f32 %v399, %v467
    %v469 = vpop.f32.mrb[0].mxu0
    %v470 = vpop.f32.mrb[0].mxu0
    %v471 = vadd.f32 %v399, %v470
    %v472 = vpop.f32.mrb[0].mxu0
    %473 = vdwg.mxu0
    %v475 = vlaneseq
    %v476 = vshrl.u32 %v475, 7
    %v477 = vsub.s32 0, %v476
    %v478 = vrot.slane %v177, %v477
    %v488 = vunpack.c.l.b16 %v137
    %v489 = vunpack.c.l.b16 %v138
    %v490 = vunpack.c.l.b16 %v139
    %v491 = vunpack.c.l.b16 %v140
    %v492 = vunpack.c.l.b16 %v141
    %v493 = vunpack.c.l.b16 %v142
    %v494 = vunpack.c.l.b16 %v143
    %v495 = vunpack.c.l.b16 %v144
    %v496 = vpack.c.b16 %v489, %v488
    %v497 = vpack.c.b16 %v491, %v490
    %v498 = vpack.c.b16 %v493, %v492
    %v499 = vpack.c.b16 %v495, %v494
    %504 = vmatprep.subr.bf16.mxu0 0
    %505 = vmatpush1.bf16.msra.mxu0 %v496
    %506 = vmatprep.subr.bf16.mxu0 0
    %507 = vmatpush1.bf16.msra.mxu0 %v497
    %508 = vmatprep.subr.bf16.mxu0 0
    %509 = vmatpush1.bf16.msra.mxu0 %v498
    %510 = vmatprep.subr.bf16.mxu0 0
    %511 = vmatpush1.bf16.msra.mxu0 %v499
    %512 = vmatprep.subr.bf16.mxu0 0
    %513 = vmatpush1.bf16.msra.mxu0 0
    %514 = vmatprep.subr.bf16.mxu0 0
    %515 = vmatpush1.bf16.msra.mxu0 0
    %516 = vmatprep.subr.bf16.mxu0 0
    %517 = vmatpush1.bf16.msra.mxu0 0
    %518 = vmatprep.subr.bf16.mxu0 0
    %519 = vmatpush1.bf16.msra.mxu0 0
    %520 = vmatprep.subr.bf16.mxu0 0
    %521 = vmatpush1.bf16.msra.mxu0 0
    %522 = vmatprep.subr.bf16.mxu0 0
    %523 = vmatpush1.bf16.msra.mxu0 0
    %524 = vmatprep.subr.bf16.mxu0 0
    %525 = vmatpush1.bf16.msra.mxu0 0
    %526 = vmatprep.subr.bf16.mxu0 0
    %527 = vmatpush1.bf16.msra.mxu0 0
    %528 = vmatprep.subr.bf16.mxu0 0
    %529 = vmatpush1.bf16.msra.mxu0 0
    %530 = vmatprep.subr.bf16.mxu0 0
    %531 = vmatpush1.bf16.msra.mxu0 0
    %532 = vmatprep.subr.bf16.mxu0 0
    %533 = vmatpush1.bf16.msra.mxu0 0
    %534 = vmatprep.subr.bf16.mxu0 0
    %535 = vmatpush1.bf16.msra.mxu0 0
    %536 = vmatprep.mubr.bf16.mxu0 0
    %537 = vmatmul.mubr.bf16.gmra.mrb[0].mxu0 %v341
    %v538 = vpop.f32.mrb[0].mxu0
    %v539 = vadd.f32 %v478, %v538
    %v540 = vpop.f32.mrb[0].mxu0
    %v541 = vpop.f32.mrb[0].mxu0
    %v542 = vadd.f32 %v478, %v541
    %v543 = vpop.f32.mrb[0].mxu0
    %544 = vmatprep.mubr.bf16.mxu0 0
    %545 = vmatmul.mubr.bf16.gmra.mrb[0].mxu0 %v344
    %v546 = vpop.f32.mrb[0].mxu0
    %v547 = vadd.f32 %v478, %v546
    %v548 = vpop.f32.mrb[0].mxu0
    %v549 = vpop.f32.mrb[0].mxu0
    %v550 = vadd.f32 %v478, %v549
    %v551 = vpop.f32.mrb[0].mxu0
    %552 = vdwg.mxu0
    %v553 = vpack.c.bf16 %v384, %v381
    %v554 = vpack.c.bf16 %v392, %v389
    %v555 = vpack.c.bf16 %v463, %v460
    %v556 = vpack.c.bf16 %v471, %v468
    %vm557 = vcmask 130048
    %v559 = vsel %vm557, %v553, 0
    %v562 = vsel %vm557, %v555, 0
    %564 = vmatprep.subr.bf16.mxu0 0
    %565 = vmatpush1.bf16.xpose.msra.mxu0 %v562
    %566 = vmatprep.subr.bf16.mxu0 0
    %567 = vmatpush1.bf16.xpose.msra.mxu0 0
    %568 = vmatprep.subr.bf16.mxu0 0
    %569 = vmatpush1.bf16.xpose.msra.mxu0 0
    %570 = vmatprep.subr.bf16.mxu0 0
    %571 = vmatpush1.bf16.xpose.msra.mxu0 0
    %572 = vmatprep.subr.bf16.mxu0 0
    %573 = vmatpush1.bf16.xpose.msra.mxu0 0
    %574 = vmatprep.subr.bf16.mxu0 0
    %575 = vmatpush1.bf16.xpose.msra.mxu0 0
    %576 = vmatprep.subr.bf16.mxu0 0
    %577 = vmatpush1.bf16.xpose.msra.mxu0 0
    %578 = vmatprep.subr.bf16.mxu0 0
    %579 = vmatpush1.bf16.xpose.msra.mxu0 0
    %580 = vmatprep.subr.bf16.mxu0 0
    %581 = vmatpush1.bf16.xpose.msra.mxu0 0
    %582 = vmatprep.subr.bf16.mxu0 0
    %583 = vmatpush1.bf16.xpose.msra.mxu0 0
    %584 = vmatprep.subr.bf16.mxu0 0
    %585 = vmatpush1.bf16.xpose.msra.mxu0 0
    %586 = vmatprep.subr.bf16.mxu0 0
    %587 = vmatpush1.bf16.xpose.msra.mxu0 0
    %588 = vmatprep.subr.bf16.mxu0 0
    %589 = vmatpush1.bf16.xpose.msra.mxu0 0
    %590 = vmatprep.subr.bf16.mxu0 0
    %591 = vmatpush1.bf16.xpose.msra.mxu0 0
    %592 = vmatprep.subr.bf16.mxu0 0
    %593 = vmatpush1.bf16.xpose.msra.mxu0 0
    %594 = vmatprep.subr.bf16.mxu0 0
    %595 = vmatpush1.bf16.xpose.msra.mxu0 0
    %596 = vmatprep.mubr.bf16.mxu0 0
    %597 = vmatmul.mubr.bf16.gmra.mrb[0].mxu0 %v559
    %v598 = vpop.f32.mrb[0].mxu0
    %v599 = vadd.f32 0.0, %v598
    %v600 = vpop.f32.mrb[0].mxu0
    %v601 = vpop.f32.mrb[0].mxu0
    %v602 = vadd.f32 0.0, %v601
    %v603 = vpop.f32.mrb[0].mxu0
    %604 = vdwg.mxu0
    %v606 = vsel %vm557, %v554, 0
    %v609 = vsel %vm557, %v556, 0
    %611 = vmatprep.subr.bf16.mxu0 0
    %612 = vmatpush1.bf16.xpose.msra.mxu0 %v609
    %613 = vmatprep.subr.bf16.mxu0 0
    %614 = vmatpush1.bf16.xpose.msra.mxu0 0
    %615 = vmatprep.subr.bf16.mxu0 0
    %616 = vmatpush1.bf16.xpose.msra.mxu0 0
    %617 = vmatprep.subr.bf16.mxu0 0
    %618 = vmatpush1.bf16.xpose.msra.mxu0 0
    %619 = vmatprep.subr.bf16.mxu0 0
    %620 = vmatpush1.bf16.xpose.msra.mxu0 0
    %621 = vmatprep.subr.bf16.mxu0 0
    %622 = vmatpush1.bf16.xpose.msra.mxu0 0
    %623 = vmatprep.subr.bf16.mxu0 0
    %624 = vmatpush1.bf16.xpose.msra.mxu0 0
    %625 = vmatprep.subr.bf16.mxu0 0
    %626 = vmatpush1.bf16.xpose.msra.mxu0 0
    %627 = vmatprep.subr.bf16.mxu0 0
    %628 = vmatpush1.bf16.xpose.msra.mxu0 0
    %629 = vmatprep.subr.bf16.mxu0 0
    %630 = vmatpush1.bf16.xpose.msra.mxu0 0
    %631 = vmatprep.subr.bf16.mxu0 0
    %632 = vmatpush1.bf16.xpose.msra.mxu0 0
    %633 = vmatprep.subr.bf16.mxu0 0
    %634 = vmatpush1.bf16.xpose.msra.mxu0 0
    %635 = vmatprep.subr.bf16.mxu0 0
    %636 = vmatpush1.bf16.xpose.msra.mxu0 0
    %637 = vmatprep.subr.bf16.mxu0 0
    %638 = vmatpush1.bf16.xpose.msra.mxu0 0
    %639 = vmatprep.subr.bf16.mxu0 0
    %640 = vmatpush1.bf16.xpose.msra.mxu0 0
    %641 = vmatprep.subr.bf16.mxu0 0
    %642 = vmatpush1.bf16.xpose.msra.mxu0 0
    %643 = vmatprep.mubr.bf16.mxu0 0
    %644 = vmatmul.mubr.bf16.gmra.mrb[0].mxu0 %v606
    %v645 = vpop.f32.mrb[0].mxu0
    %v646 = vadd.f32 0.0, %v645
    %v647 = vpop.f32.mrb[0].mxu0
    %v648 = vpop.f32.mrb[0].mxu0
    %v649 = vadd.f32 0.0, %v648
    %v650 = vpop.f32.mrb[0].mxu0
    %651 = vdwg.mxu0
    %v652 = vmul.f32 %v599, 0.25
    %v653 = vmul.f32 %v602, 0.25
    %v654 = vmul.f32 %v646, 0.25
    %v655 = vmul.f32 %v649, 0.25
    %v656 = vsel %vm557, %v652, -inf
    %657 = vmax.xlane.f32.xlu0 %v656
    %v658 = vpop.xlane.xlu0 %657
    %v659 = vsel %vm557, %v653, -inf
    %660 = vmax.xlane.f32.xlu0 %v659
    %v661 = vpop.xlane.xlu0 %660
    %v662 = vsel %vm557, %v654, -inf
    %663 = vmax.xlane.f32.xlu0 %v662
    %v664 = vpop.xlane.xlu0 %663
    %v665 = vsel %vm557, %v655, -inf
    %666 = vmax.xlane.f32.xlu0 %v665
    %v667 = vpop.xlane.xlu0 %666
    %v668 = vsub.f32 %v652, %v658
    %v669 = vsub.f32 %v653, %v661
    %v670 = vsub.f32 %v654, %v664
    %v671 = vsub.f32 %v655, %v667
    %v672 = vmul.f32 %v668, 1.442695
    %v673 = vpow.pop %v672
    %v674 = vmul.f32 %v669, 1.442695
    %v675 = vpow.pop %v674
    %v676 = vmul.f32 %v670, 1.442695
    %v677 = vpow.pop %v676
    %v678 = vmul.f32 %v671, 1.442695
    %v679 = vpow.pop %v678
    %v680 = vsel %vm557, %v673, 0.0
    %681 = vadd.xlane.f32.xlu0 %v680
    %v682 = vpop.xlane.xlu0 %681
    %v683 = vsel %vm557, %v675, 0.0
    %684 = vadd.xlane.f32.xlu0 %v683
    %v685 = vpop.xlane.xlu0 %684
    %v686 = vsel %vm557, %v677, 0.0
    %687 = vadd.xlane.f32.xlu0 %v686
    %v688 = vpop.xlane.xlu0 %687
    %v689 = vsel %vm557, %v679, 0.0
    %690 = vadd.xlane.f32.xlu0 %v689
    %v691 = vpop.xlane.xlu0 %690
    %v692 = vrcp.pop %v682
    %v693 = vrcp.pop %v685
    %v694 = vrcp.pop %v688
    %v695 = vrcp.pop %v691
    %v696 = vmul.f32 %v673, %v692
    %v697 = vmul.f32 %v675, %v693
    %v698 = vmul.f32 %v677, %v694
    %v699 = vmul.f32 %v679, %v695
    %v700 = vpack.c.bf16 %v697, %v696
    %v701 = vpack.c.bf16 %v699, %v698
    %v702 = vpack.c.bf16 %v542, %v539
    %v703 = vpack.c.bf16 %v550, %v547
    %v705 = vsel %vm557, %v700, 0
    %707 = vmatprep.subr.bf16.mxu0 0
    %708 = vmatpush1.bf16.msra.mxu0 %v702
    %709 = vmatprep.subr.bf16.mxu0 0
    %710 = vmatpush1.bf16.msra.mxu0 0
    %711 = vmatprep.subr.bf16.mxu0 0
    %712 = vmatpush1.bf16.msra.mxu0 0
    %713 = vmatprep.subr.bf16.mxu0 0
    %714 = vmatpush1.bf16.msra.mxu0 0
    %715 = vmatprep.subr.bf16.mxu0 0
    %716 = vmatpush1.bf16.msra.mxu0 0
    %717 = vmatprep.subr.bf16.mxu0 0
    %718 = vmatpush1.bf16.msra.mxu0 0
    %719 = vmatprep.subr.bf16.mxu0 0
    %720 = vmatpush1.bf16.msra.mxu0 0
    %721 = vmatprep.subr.bf16.mxu0 0
    %722 = vmatpush1.bf16.msra.mxu0 0
    %723 = vmatprep.subr.bf16.mxu0 0
    %724 = vmatpush1.bf16.msra.mxu0 0
    %725 = vmatprep.subr.bf16.mxu0 0
    %726 = vmatpush1.bf16.msra.mxu0 0
    %727 = vmatprep.subr.bf16.mxu0 0
    %728 = vmatpush1.bf16.msra.mxu0 0
    %729 = vmatprep.subr.bf16.mxu0 0
    %730 = vmatpush1.bf16.msra.mxu0 0
    %731 = vmatprep.subr.bf16.mxu0 0
    %732 = vmatpush1.bf16.msra.mxu0 0
    %733 = vmatprep.subr.bf16.mxu0 0
    %734 = vmatpush1.bf16.msra.mxu0 0
    %735 = vmatprep.subr.bf16.mxu0 0
    %736 = vmatpush1.bf16.msra.mxu0 0
    %737 = vmatprep.subr.bf16.mxu0 0
    %738 = vmatpush1.bf16.msra.mxu0 0
    %739 = vmatprep.mubr.bf16.mxu0 0
    %740 = vmatmul.mubr.bf16.gmra.mrb[0].mxu0 %v705
    %v741 = vpop.f32.mrb[0].mxu0
    %v742 = vadd.f32 0.0, %v741
    %v743 = vpop.f32.mrb[0].mxu0
    %v744 = vpop.f32.mrb[0].mxu0
    %v745 = vadd.f32 0.0, %v744
    %v746 = vpop.f32.mrb[0].mxu0
    %747 = vdwg.mxu0
    %v749 = vsel %vm557, %v701, 0
    %751 = vmatprep.subr.bf16.mxu0 0
    %752 = vmatpush1.bf16.msra.mxu0 %v703
    %753 = vmatprep.subr.bf16.mxu0 0
    %754 = vmatpush1.bf16.msra.mxu0 0
    %755 = vmatprep.subr.bf16.mxu0 0
    %756 = vmatpush1.bf16.msra.mxu0 0
    %757 = vmatprep.subr.bf16.mxu0 0
    %758 = vmatpush1.bf16.msra.mxu0 0
    %759 = vmatprep.subr.bf16.mxu0 0
    %760 = vmatpush1.bf16.msra.mxu0 0
    %761 = vmatprep.subr.bf16.mxu0 0
    %762 = vmatpush1.bf16.msra.mxu0 0
    %763 = vmatprep.subr.bf16.mxu0 0
    %764 = vmatpush1.bf16.msra.mxu0 0
    %765 = vmatprep.subr.bf16.mxu0 0
    %766 = vmatpush1.bf16.msra.mxu0 0
    %767 = vmatprep.subr.bf16.mxu0 0
    %768 = vmatpush1.bf16.msra.mxu0 0
    %769 = vmatprep.subr.bf16.mxu0 0
    %770 = vmatpush1.bf16.msra.mxu0 0
    %771 = vmatprep.subr.bf16.mxu0 0
    %772 = vmatpush1.bf16.msra.mxu0 0
    %773 = vmatprep.subr.bf16.mxu0 0
    %774 = vmatpush1.bf16.msra.mxu0 0
    %775 = vmatprep.subr.bf16.mxu0 0
    %776 = vmatpush1.bf16.msra.mxu0 0
    %777 = vmatprep.subr.bf16.mxu0 0
    %778 = vmatpush1.bf16.msra.mxu0 0
    %779 = vmatprep.subr.bf16.mxu0 0
    %780 = vmatpush1.bf16.msra.mxu0 0
    %781 = vmatprep.subr.bf16.mxu0 0
    %782 = vmatpush1.bf16.msra.mxu0 0
    %783 = vmatprep.mubr.bf16.mxu0 0
    %784 = vmatmul.mubr.bf16.gmra.mrb[0].mxu0 %v749
    %v785 = vpop.f32.mrb[0].mxu0
    %v786 = vadd.f32 0.0, %v785
    %v787 = vpop.f32.mrb[0].mxu0
    %v788 = vpop.f32.mrb[0].mxu0
    %v789 = vadd.f32 0.0, %v788
    %v790 = vpop.f32.mrb[0].mxu0
    %791 = vdwg.mxu0
    %v792 = vpack.c.bf16 %v745, %v742
    %v793 = vpack.c.bf16 %v789, %v786
    %v795 = vlaneseq
    %v796 = vshrl.u32 %v795, 7
    %v797 = vsub.s32 0, %v796
    %v798 = vrot.slane %v170, %v797
    %v808 = vunpack.c.l.b16 %v81
    %v809 = vunpack.c.l.b16 %v82
    %v810 = vunpack.c.l.b16 %v83
    %v811 = vunpack.c.l.b16 %v84
    %v812 = vunpack.c.l.b16 %v85
    %v813 = vunpack.c.l.b16 %v86
    %v814 = vunpack.c.l.b16 %v87
    %v815 = vunpack.c.l.b16 %v88
    %v816 = vpack.c.b16 %v809, %v808
    %v817 = vpack.c.b16 %v811, %v810
    %v818 = vpack.c.b16 %v813, %v812
    %v819 = vpack.c.b16 %v815, %v814
    %824 = vmatprep.subr.bf16.mxu0 0
    %825 = vmatpush1.bf16.msra.mxu0 %v816
    %826 = vmatprep.subr.bf16.mxu0 0
    %827 = vmatpush1.bf16.msra.mxu0 %v817
    %828 = vmatprep.subr.bf16.mxu0 0
    %829 = vmatpush1.bf16.msra.mxu0 %v818
    %830 = vmatprep.subr.bf16.mxu0 0
    %831 = vmatpush1.bf16.msra.mxu0 %v819
    %832 = vmatprep.subr.bf16.mxu0 0
    %833 = vmatpush1.bf16.msra.mxu0 0
    %834 = vmatprep.subr.bf16.mxu0 0
    %835 = vmatpush1.bf16.msra.mxu0 0
    %836 = vmatprep.subr.bf16.mxu0 0
    %837 = vmatpush1.bf16.msra.mxu0 0
    %838 = vmatprep.subr.bf16.mxu0 0
    %839 = vmatpush1.bf16.msra.mxu0 0
    %840 = vmatprep.subr.bf16.mxu0 0
    %841 = vmatpush1.bf16.msra.mxu0 0
    %842 = vmatprep.subr.bf16.mxu0 0
    %843 = vmatpush1.bf16.msra.mxu0 0
    %844 = vmatprep.subr.bf16.mxu0 0
    %845 = vmatpush1.bf16.msra.mxu0 0
    %846 = vmatprep.subr.bf16.mxu0 0
    %847 = vmatpush1.bf16.msra.mxu0 0
    %848 = vmatprep.subr.bf16.mxu0 0
    %849 = vmatpush1.bf16.msra.mxu0 0
    %850 = vmatprep.subr.bf16.mxu0 0
    %851 = vmatpush1.bf16.msra.mxu0 0
    %852 = vmatprep.subr.bf16.mxu0 0
    %853 = vmatpush1.bf16.msra.mxu0 0
    %854 = vmatprep.subr.bf16.mxu0 0
    %855 = vmatpush1.bf16.msra.mxu0 0
    %856 = vmatprep.mubr.bf16.mxu0 0
    %857 = vmatmul.mubr.bf16.gmra.mrb[0].mxu0 %v341
    %v858 = vpop.f32.mrb[0].mxu0
    %v859 = vadd.f32 %v798, %v858
    %v860 = vpop.f32.mrb[0].mxu0
    %v861 = vpop.f32.mrb[0].mxu0
    %v862 = vadd.f32 %v798, %v861
    %v863 = vpop.f32.mrb[0].mxu0
    %864 = vmatprep.mubr.bf16.mxu0 0
    %865 = vmatmul.mubr.bf16.gmra.mrb[0].mxu0 %v344
    %v866 = vpop.f32.mrb[0].mxu0
    %v867 = vadd.f32 %v798, %v866
    %v868 = vpop.f32.mrb[0].mxu0
    %v869 = vpop.f32.mrb[0].mxu0
    %v870 = vadd.f32 %v798, %v869
    %v871 = vpop.f32.mrb[0].mxu0
    %872 = vdwg.mxu0
    %v874 = vlaneseq
    %v875 = vshrl.u32 %v874, 7
    %v876 = vsub.s32 0, %v875
    %v877 = vrot.slane %v174, %v876
    %v887 = vunpack.c.l.b16 %v113
    %v888 = vunpack.c.l.b16 %v114
    %v889 = vunpack.c.l.b16 %v115
    %v890 = vunpack.c.l.b16 %v116
    %v891 = vunpack.c.l.b16 %v117
    %v892 = vunpack.c.l.b16 %v118
    %v893 = vunpack.c.l.b16 %v119
    %v894 = vunpack.c.l.b16 %v120
    %v895 = vpack.c.b16 %v888, %v887
    %v896 = vpack.c.b16 %v890, %v889
    %v897 = vpack.c.b16 %v892, %v891
    %v898 = vpack.c.b16 %v894, %v893
    %903 = vmatprep.subr.bf16.mxu0 0
    %904 = vmatpush1.bf16.msra.mxu0 %v895
    %905 = vmatprep.subr.bf16.mxu0 0
    %906 = vmatpush1.bf16.msra.mxu0 %v896
    %907 = vmatprep.subr.bf16.mxu0 0
    %908 = vmatpush1.bf16.msra.mxu0 %v897
    %909 = vmatprep.subr.bf16.mxu0 0
    %910 = vmatpush1.bf16.msra.mxu0 %v898
    %911 = vmatprep.subr.bf16.mxu0 0
    %912 = vmatpush1.bf16.msra.mxu0 0
    %913 = vmatprep.subr.bf16.mxu0 0
    %914 = vmatpush1.bf16.msra.mxu0 0
    %915 = vmatprep.subr.bf16.mxu0 0
    %916 = vmatpush1.bf16.msra.mxu0 0
    %917 = vmatprep.subr.bf16.mxu0 0
    %918 = vmatpush1.bf16.msra.mxu0 0
    %919 = vmatprep.subr.bf16.mxu0 0
    %920 = vmatpush1.bf16.msra.mxu0 0
    %921 = vmatprep.subr.bf16.mxu0 0
    %922 = vmatpush1.bf16.msra.mxu0 0
    %923 = vmatprep.subr.bf16.mxu0 0
    %924 = vmatpush1.bf16.msra.mxu0 0
    %925 = vmatprep.subr.bf16.mxu0 0
    %926 = vmatpush1.bf16.msra.mxu0 0
    %927 = vmatprep.subr.bf16.mxu0 0
    %928 = vmatpush1.bf16.msra.mxu0 0
    %929 = vmatprep.subr.bf16.mxu0 0
    %930 = vmatpush1.bf16.msra.mxu0 0
    %931 = vmatprep.subr.bf16.mxu0 0
    %932 = vmatpush1.bf16.msra.mxu0 0
    %933 = vmatprep.subr.bf16.mxu0 0
    %934 = vmatpush1.bf16.msra.mxu0 0
    %935 = vmatprep.mubr.bf16.mxu0 0
    %936 = vmatmul.mubr.bf16.gmra.mrb[0].mxu0 %v341
    %v937 = vpop.f32.mrb[0].mxu0
    %v938 = vadd.f32 %v877, %v937
    %v939 = vpop.f32.mrb[0].mxu0
    %v940 = vpop.f32.mrb[0].mxu0
    %v941 = vadd.f32 %v877, %v940
    %v942 = vpop.f32.mrb[0].mxu0
    %943 = vmatprep.mubr.bf16.mxu0 0
    %944 = vmatmul.mubr.bf16.gmra.mrb[0].mxu0 %v344
    %v945 = vpop.f32.mrb[0].mxu0
    %v946 = vadd.f32 %v877, %v945
    %v947 = vpop.f32.mrb[0].mxu0
    %v948 = vpop.f32.mrb[0].mxu0
    %v949 = vadd.f32 %v877, %v948
    %v950 = vpop.f32.mrb[0].mxu0
    %951 = vdwg.mxu0
    %v953 = vlaneseq
    %v954 = vshrl.u32 %v953, 7
    %v955 = vsub.s32 0, %v954
    %v956 = vrot.slane %v178, %v955
    %v966 = vunpack.c.l.b16 %v145
    %v967 = vunpack.c.l.b16 %v146
    %v968 = vunpack.c.l.b16 %v147
    %v969 = vunpack.c.l.b16 %v148
    %v970 = vunpack.c.l.b16 %v149
    %v971 = vunpack.c.l.b16 %v150
    %v972 = vunpack.c.l.b16 %v151
    %v973 = vunpack.c.l.b16 %v152
    %v974 = vpack.c.b16 %v967, %v966
    %v975 = vpack.c.b16 %v969, %v968
    %v976 = vpack.c.b16 %v971, %v970
    %v977 = vpack.c.b16 %v973, %v972
    %982 = vmatprep.subr.bf16.mxu0 0
    %983 = vmatpush1.bf16.msra.mxu0 %v974
    %984 = vmatprep.subr.bf16.mxu0 0
    %985 = vmatpush1.bf16.msra.mxu0 %v975
    %986 = vmatprep.subr.bf16.mxu0 0
    %987 = vmatpush1.bf16.msra.mxu0 %v976
    %988 = vmatprep.subr.bf16.mxu0 0
    %989 = vmatpush1.bf16.msra.mxu0 %v977
    %990 = vmatprep.subr.bf16.mxu0 0
    %991 = vmatpush1.bf16.msra.mxu0 0
    %992 = vmatprep.subr.bf16.mxu0 0
    %993 = vmatpush1.bf16.msra.mxu0 0
    %994 = vmatprep.subr.bf16.mxu0 0
    %995 = vmatpush1.bf16.msra.mxu0 0
    %996 = vmatprep.subr.bf16.mxu0 0
    %997 = vmatpush1.bf16.msra.mxu0 0
    %998 = vmatprep.subr.bf16.mxu0 0
    %999 = vmatpush1.bf16.msra.mxu0 0
    %1000 = vmatprep.subr.bf16.mxu0 0
    %1001 = vmatpush1.bf16.msra.mxu0 0
    %1002 = vmatprep.subr.bf16.mxu0 0
    %1003 = vmatpush1.bf16.msra.mxu0 0
    %1004 = vmatprep.subr.bf16.mxu0 0
    %1005 = vmatpush1.bf16.msra.mxu0 0
    %1006 = vmatprep.subr.bf16.mxu0 0
    %1007 = vmatpush1.bf16.msra.mxu0 0
    %1008 = vmatprep.subr.bf16.mxu0 0
    %1009 = vmatpush1.bf16.msra.mxu0 0
    %1010 = vmatprep.subr.bf16.mxu0 0
    %1011 = vmatpush1.bf16.msra.mxu0 0
    %1012 = vmatprep.subr.bf16.mxu0 0
    %1013 = vmatpush1.bf16.msra.mxu0 0
    %1014 = vmatprep.mubr.bf16.mxu0 0
    %1015 = vmatmul.mubr.bf16.gmra.mrb[0].mxu0 %v341
    %v1016 = vpop.f32.mrb[0].mxu0
    %v1017 = vadd.f32 %v956, %v1016
    %v1018 = vpop.f32.mrb[0].mxu0
    %v1019 = vpop.f32.mrb[0].mxu0
    %v1020 = vadd.f32 %v956, %v1019
    %v1021 = vpop.f32.mrb[0].mxu0
    %1022 = vmatprep.mubr.bf16.mxu0 0
    %1023 = vmatmul.mubr.bf16.gmra.mrb[0].mxu0 %v344
    %v1024 = vpop.f32.mrb[0].mxu0
    %v1025 = vadd.f32 %v956, %v1024
    %v1026 = vpop.f32.mrb[0].mxu0
    %v1027 = vpop.f32.mrb[0].mxu0
    %v1028 = vadd.f32 %v956, %v1027
    %v1029 = vpop.f32.mrb[0].mxu0
    %1030 = vdwg.mxu0
    %v1031 = vpack.c.bf16 %v862, %v859
    %v1032 = vpack.c.bf16 %v870, %v867
    %v1033 = vpack.c.bf16 %v941, %v938
    %v1034 = vpack.c.bf16 %v949, %v946
    %v1036 = vsel %vm557, %v1031, 0
    %v1039 = vsel %vm557, %v1033, 0
    %1041 = vmatprep.subr.bf16.mxu0 0
    %1042 = vmatpush1.bf16.xpose.msra.mxu0 %v1039
    %1043 = vmatprep.subr.bf16.mxu0 0
    %1044 = vmatpush1.bf16.xpose.msra.mxu0 0
    %1045 = vmatprep.subr.bf16.mxu0 0
    %1046 = vmatpush1.bf16.xpose.msra.mxu0 0
    %1047 = vmatprep.subr.bf16.mxu0 0
    %1048 = vmatpush1.bf16.xpose.msra.mxu0 0
    %1049 = vmatprep.subr.bf16.mxu0 0
    %1050 = vmatpush1.bf16.xpose.msra.mxu0 0
    %1051 = vmatprep.subr.bf16.mxu0 0
    %1052 = vmatpush1.bf16.xpose.msra.mxu0 0
    %1053 = vmatprep.subr.bf16.mxu0 0
    %1054 = vmatpush1.bf16.xpose.msra.mxu0 0
    %1055 = vmatprep.subr.bf16.mxu0 0
    %1056 = vmatpush1.bf16.xpose.msra.mxu0 0
    %1057 = vmatprep.subr.bf16.mxu0 0
    %1058 = vmatpush1.bf16.xpose.msra.mxu0 0
    %1059 = vmatprep.subr.bf16.mxu0 0
    %1060 = vmatpush1.bf16.xpose.msra.mxu0 0
    %1061 = vmatprep.subr.bf16.mxu0 0
    %1062 = vmatpush1.bf16.xpose.msra.mxu0 0
    %1063 = vmatprep.subr.bf16.mxu0 0
    %1064 = vmatpush1.bf16.xpose.msra.mxu0 0
    %1065 = vmatprep.subr.bf16.mxu0 0
    %1066 = vmatpush1.bf16.xpose.msra.mxu0 0
    %1067 = vmatprep.subr.bf16.mxu0 0
    %1068 = vmatpush1.bf16.xpose.msra.mxu0 0
    %1069 = vmatprep.subr.bf16.mxu0 0
    %1070 = vmatpush1.bf16.xpose.msra.mxu0 0
    %1071 = vmatprep.subr.bf16.mxu0 0
    %1072 = vmatpush1.bf16.xpose.msra.mxu0 0
    %1073 = vmatprep.mubr.bf16.mxu0 0
    %1074 = vmatmul.mubr.bf16.gmra.mrb[0].mxu0 %v1036
    %v1075 = vpop.f32.mrb[0].mxu0
    %v1076 = vadd.f32 0.0, %v1075
    %v1077 = vpop.f32.mrb[0].mxu0
    %v1078 = vpop.f32.mrb[0].mxu0
    %v1079 = vadd.f32 0.0, %v1078
    %v1080 = vpop.f32.mrb[0].mxu0
    %1081 = vdwg.mxu0
    %v1083 = vsel %vm557, %v1032, 0
    %v1086 = vsel %vm557, %v1034, 0
    %1088 = vmatprep.subr.bf16.mxu0 0
    %1089 = vmatpush1.bf16.xpose.msra.mxu0 %v1086
    %1090 = vmatprep.subr.bf16.mxu0 0
    %1091 = vmatpush1.bf16.xpose.msra.mxu0 0
    %1092 = vmatprep.subr.bf16.mxu0 0
    %1093 = vmatpush1.bf16.xpose.msra.mxu0 0
    %1094 = vmatprep.subr.bf16.mxu0 0
    %1095 = vmatpush1.bf16.xpose.msra.mxu0 0
    %1096 = vmatprep.subr.bf16.mxu0 0
    %1097 = vmatpush1.bf16.xpose.msra.mxu0 0
    %1098 = vmatprep.subr.bf16.mxu0 0
    %1099 = vmatpush1.bf16.xpose.msra.mxu0 0
    %1100 = vmatprep.subr.bf16.mxu0 0
    %1101 = vmatpush1.bf16.xpose.msra.mxu0 0
    %1102 = vmatprep.subr.bf16.mxu0 0
    %1103 = vmatpush1.bf16.xpose.msra.mxu0 0
    %1104 = vmatprep.subr.bf16.mxu0 0
    %1105 = vmatpush1.bf16.xpose.msra.mxu0 0
    %1106 = vmatprep.subr.bf16.mxu0 0
    %1107 = vmatpush1.bf16.xpose.msra.mxu0 0
    %1108 = vmatprep.subr.bf16.mxu0 0
    %1109 = vmatpush1.bf16.xpose.msra.mxu0 0
    %1110 = vmatprep.subr.bf16.mxu0 0
    %1111 = vmatpush1.bf16.xpose.msra.mxu0 0
    %1112 = vmatprep.subr.bf16.mxu0 0
    %1113 = vmatpush1.bf16.xpose.msra.mxu0 0
    %1114 = vmatprep.subr.bf16.mxu0 0
    %1115 = vmatpush1.bf16.xpose.msra.mxu0 0
    %1116 = vmatprep.subr.bf16.mxu0 0
    %1117 = vmatpush1.bf16.xpose.msra.mxu0 0
    %1118 = vmatprep.subr.bf16.mxu0 0
    %1119 = vmatpush1.bf16.xpose.msra.mxu0 0
    %1120 = vmatprep.mubr.bf16.mxu0 0
    %1121 = vmatmul.mubr.bf16.gmra.mrb[0].mxu0 %v1083
    %v1122 = vpop.f32.mrb[0].mxu0
    %v1123 = vadd.f32 0.0, %v1122
    %v1124 = vpop.f32.mrb[0].mxu0
    %v1125 = vpop.f32.mrb[0].mxu0
    %v1126 = vadd.f32 0.0, %v1125
    %v1127 = vpop.f32.mrb[0].mxu0
    %1128 = vdwg.mxu0
    %v1129 = vmul.f32 %v1076, 0.25
    %v1130 = vmul.f32 %v1079, 0.25
    %v1131 = vmul.f32 %v1123, 0.25
    %v1132 = vmul.f32 %v1126, 0.25
    %v1133 = vsel %vm557, %v1129, -inf
    %1134 = vmax.xlane.f32.xlu0 %v1133
    %v1135 = vpop.xlane.xlu0 %1134
    %v1136 = vsel %vm557, %v1130, -inf
    %1137 = vmax.xlane.f32.xlu0 %v1136
    %v1138 = vpop.xlane.xlu0 %1137
    %v1139 = vsel %vm557, %v1131, -inf
    %1140 = vmax.xlane.f32.xlu0 %v1139
    %v1141 = vpop.xlane.xlu0 %1140
    %v1142 = vsel %vm557, %v1132, -inf
    %1143 = vmax.xlane.f32.xlu0 %v1142
    %v1144 = vpop.xlane.xlu0 %1143
    %v1145 = vsub.f32 %v1129, %v1135
    %v1146 = vsub.f32 %v1130, %v1138
    %v1147 = vsub.f32 %v1131, %v1141
    %v1148 = vsub.f32 %v1132, %v1144
    %v1149 = vmul.f32 %v1145, 1.442695
    %v1150 = vpow.pop %v1149
    %v1151 = vmul.f32 %v1146, 1.442695
    %v1152 = vpow.pop %v1151
    %v1153 = vmul.f32 %v1147, 1.442695
    %v1154 = vpow.pop %v1153
    %v1155 = vmul.f32 %v1148, 1.442695
    %v1156 = vpow.pop %v1155
    %v1157 = vsel %vm557, %v1150, 0.0
    %1158 = vadd.xlane.f32.xlu0 %v1157
    %v1159 = vpop.xlane.xlu0 %1158
    %v1160 = vsel %vm557, %v1152, 0.0
    %1161 = vadd.xlane.f32.xlu0 %v1160
    %v1162 = vpop.xlane.xlu0 %1161
    %v1163 = vsel %vm557, %v1154, 0.0
    %1164 = vadd.xlane.f32.xlu0 %v1163
    %v1165 = vpop.xlane.xlu0 %1164
    %v1166 = vsel %vm557, %v1156, 0.0
    %1167 = vadd.xlane.f32.xlu0 %v1166
    %v1168 = vpop.xlane.xlu0 %1167
    %v1169 = vrcp.pop %v1159
    %v1170 = vrcp.pop %v1162
    %v1171 = vrcp.pop %v1165
    %v1172 = vrcp.pop %v1168
    %v1173 = vmul.f32 %v1150, %v1169
    %v1174 = vmul.f32 %v1152, %v1170
    %v1175 = vmul.f32 %v1154, %v1171
    %v1176 = vmul.f32 %v1156, %v1172
    %v1177 = vpack.c.bf16 %v1174, %v1173
    %v1178 = vpack.c.bf16 %v1176, %v1175
    %v1179 = vpack.c.bf16 %v1020, %v1017
    %v1180 = vpack.c.bf16 %v1028, %v1025
    %v1182 = vsel %vm557, %v1177, 0
    %1184 = vmatprep.subr.bf16.mxu0 0
    %1185 = vmatpush1.bf16.msra.mxu0 %v1179
    %1186 = vmatprep.subr.bf16.mxu0 0
    %1187 = vmatpush1.bf16.msra.mxu0 0
    %1188 = vmatprep.subr.bf16.mxu0 0
    %1189 = vmatpush1.bf16.msra.mxu0 0
    %1190 = vmatprep.subr.bf16.mxu0 0
    %1191 = vmatpush1.bf16.msra.mxu0 0
    %1192 = vmatprep.subr.bf16.mxu0 0
    %1193 = vmatpush1.bf16.msra.mxu0 0
    %1194 = vmatprep.subr.bf16.mxu0 0
    %1195 = vmatpush1.bf16.msra.mxu0 0
    %1196 = vmatprep.subr.bf16.mxu0 0
    %1197 = vmatpush1.bf16.msra.mxu0 0
    %1198 = vmatprep.subr.bf16.mxu0 0
    %1199 = vmatpush1.bf16.msra.mxu0 0
    %1200 = vmatprep.subr.bf16.mxu0 0
    %1201 = vmatpush1.bf16.msra.mxu0 0
    %1202 = vmatprep.subr.bf16.mxu0 0
    %1203 = vmatpush1.bf16.msra.mxu0 0
    %1204 = vmatprep.subr.bf16.mxu0 0
    %1205 = vmatpush1.bf16.msra.mxu0 0
    %1206 = vmatprep.subr.bf16.mxu0 0
    %1207 = vmatpush1.bf16.msra.mxu0 0
    %1208 = vmatprep.subr.bf16.mxu0 0
    %1209 = vmatpush1.bf16.msra.mxu0 0
    %1210 = vmatprep.subr.bf16.mxu0 0
    %1211 = vmatpush1.bf16.msra.mxu0 0
    %1212 = vmatprep.subr.bf16.mxu0 0
    %1213 = vmatpush1.bf16.msra.mxu0 0
    %1214 = vmatprep.subr.bf16.mxu0 0
    %1215 = vmatpush1.bf16.msra.mxu0 0
    %1216 = vmatprep.mubr.bf16.mxu0 0
    %1217 = vmatmul.mubr.bf16.gmra.mrb[0].mxu0 %v1182
    %v1218 = vpop.f32.mrb[0].mxu0
    %v1219 = vadd.f32 0.0, %v1218
    %v1220 = vpop.f32.mrb[0].mxu0
    %v1221 = vpop.f32.mrb[0].mxu0
    %v1222 = vadd.f32 0.0, %v1221
    %v1223 = vpop.f32.mrb[0].mxu0
    %1224 = vdwg.mxu0
    %v1226 = vsel %vm557, %v1178, 0
    %1228 = vmatprep.subr.bf16.mxu0 0
    %1229 = vmatpush1.bf16.msra.mxu0 %v1180
    %1230 = vmatprep.subr.bf16.mxu0 0
    %1231 = vmatpush1.bf16.msra.mxu0 0
    %1232 = vmatprep.subr.bf16.mxu0 0
    %1233 = vmatpush1.bf16.msra.mxu0 0
    %1234 = vmatprep.subr.bf16.mxu0 0
    %1235 = vmatpush1.bf16.msra.mxu0 0
    %1236 = vmatprep.subr.bf16.mxu0 0
    %1237 = vmatpush1.bf16.msra.mxu0 0
    %1238 = vmatprep.subr.bf16.mxu0 0
    %1239 = vmatpush1.bf16.msra.mxu0 0
    %1240 = vmatprep.subr.bf16.mxu0 0
    %1241 = vmatpush1.bf16.msra.mxu0 0
    %1242 = vmatprep.subr.bf16.mxu0 0
    %1243 = vmatpush1.bf16.msra.mxu0 0
    %1244 = vmatprep.subr.bf16.mxu0 0
    %1245 = vmatpush1.bf16.msra.mxu0 0
    %1246 = vmatprep.subr.bf16.mxu0 0
    %1247 = vmatpush1.bf16.msra.mxu0 0
    %1248 = vmatprep.subr.bf16.mxu0 0
    %1249 = vmatpush1.bf16.msra.mxu0 0
    %1250 = vmatprep.subr.bf16.mxu0 0
    %1251 = vmatpush1.bf16.msra.mxu0 0
    %1252 = vmatprep.subr.bf16.mxu0 0
    %1253 = vmatpush1.bf16.msra.mxu0 0
    %1254 = vmatprep.subr.bf16.mxu0 0
    %1255 = vmatpush1.bf16.msra.mxu0 0
    %1256 = vmatprep.subr.bf16.mxu0 0
    %1257 = vmatpush1.bf16.msra.mxu0 0
    %1258 = vmatprep.subr.bf16.mxu0 0
    %1259 = vmatpush1.bf16.msra.mxu0 0
    %1260 = vmatprep.mubr.bf16.mxu0 0
    %1261 = vmatmul.mubr.bf16.gmra.mrb[0].mxu0 %v1226
    %v1262 = vpop.f32.mrb[0].mxu0
    %v1263 = vadd.f32 0.0, %v1262
    %v1264 = vpop.f32.mrb[0].mxu0
    %v1265 = vpop.f32.mrb[0].mxu0
    %v1266 = vadd.f32 0.0, %v1265
    %v1267 = vpop.f32.mrb[0].mxu0
    %1268 = vdwg.mxu0
    %v1269 = vpack.c.bf16 %v1222, %v1219
    %v1270 = vpack.c.bf16 %v1266, %v1263
    %v1273 = vunpack.c.l.b16 %v183
    %v1274 = vunpack.c.l.b16 %v184
    %v1275 = vpack.c.b16 %v1274, %v1273
    %v1278 = vsel %vm557, %v1269, 0
    %v1281 = vsel %vm557, %v1270, 0
    %1283 = vmatprep.subr.bf16.mxu0 0
    %1284 = vmatpush1.bf16.msra.mxu0 %v1275
    %1285 = vmatprep.subr.bf16.mxu0 0
    %1286 = vmatpush1.bf16.msra.mxu0 0
    %1287 = vmatprep.subr.bf16.mxu0 0
    %1288 = vmatpush1.bf16.msra.mxu0 0
    %1289 = vmatprep.subr.bf16.mxu0 0
    %1290 = vmatpush1.bf16.msra.mxu0 0
    %1291 = vmatprep.subr.bf16.mxu0 0
    %1292 = vmatpush1.bf16.msra.mxu0 0
    %1293 = vmatprep.subr.bf16.mxu0 0
    %1294 = vmatpush1.bf16.msra.mxu0 0
    %1295 = vmatprep.subr.bf16.mxu0 0
    %1296 = vmatpush1.bf16.msra.mxu0 0
    %1297 = vmatprep.subr.bf16.mxu0 0
    %1298 = vmatpush1.bf16.msra.mxu0 0
    %1299 = vmatprep.subr.bf16.mxu0 0
    %1300 = vmatpush1.bf16.msra.mxu0 0
    %1301 = vmatprep.subr.bf16.mxu0 0
    %1302 = vmatpush1.bf16.msra.mxu0 0
    %1303 = vmatprep.subr.bf16.mxu0 0
    %1304 = vmatpush1.bf16.msra.mxu0 0
    %1305 = vmatprep.subr.bf16.mxu0 0
    %1306 = vmatpush1.bf16.msra.mxu0 0
    %1307 = vmatprep.subr.bf16.mxu0 0
    %1308 = vmatpush1.bf16.msra.mxu0 0
    %1309 = vmatprep.subr.bf16.mxu0 0
    %1310 = vmatpush1.bf16.msra.mxu0 0
    %1311 = vmatprep.subr.bf16.mxu0 0
    %1312 = vmatpush1.bf16.msra.mxu0 0
    %1313 = vmatprep.subr.bf16.mxu0 0
    %1314 = vmatpush1.bf16.msra.mxu0 0
    %1315 = vmatprep.mubr.bf16.mxu0 0
    %1316 = vmatmul.mubr.bf16.gmra.mrb[0].mxu0 %v1278
    %v1317 = vpop.f32.mrb[0].mxu0
    %v1318 = vadd.f32 0.0, %v1317
    %v1319 = vpop.f32.mrb[0].mxu0
    %v1320 = vpop.f32.mrb[0].mxu0
    %v1321 = vadd.f32 0.0, %v1320
    %v1322 = vpop.f32.mrb[0].mxu0
    %1323 = vmatprep.mubr.bf16.mxu0 0
    %1324 = vmatmul.mubr.bf16.gmra.mrb[0].mxu0 %v1281
    %v1325 = vpop.f32.mrb[0].mxu0
    %v1326 = vadd.f32 0.0, %v1325
    %v1327 = vpop.f32.mrb[0].mxu0
    %v1328 = vpop.f32.mrb[0].mxu0
    %v1329 = vadd.f32 0.0, %v1328
    %v1330 = vpop.f32.mrb[0].mxu0
    %1331 = vdwg.mxu0
    %v1334 = vunpack.c.l.b16 %v181
    %v1335 = vunpack.c.l.b16 %v182
    %v1336 = vpack.c.b16 %v1335, %v1334
    %v1339 = vsel %vm557, %v792, 0
    %v1342 = vsel %vm557, %v793, 0
    %1344 = vmatprep.subr.bf16.mxu0 0
    %1345 = vmatpush1.bf16.msra.mxu0 %v1336
    %1346 = vmatprep.subr.bf16.mxu0 0
    %1347 = vmatpush1.bf16.msra.mxu0 0
    %1348 = vmatprep.subr.bf16.mxu0 0
    %1349 = vmatpush1.bf16.msra.mxu0 0
    %1350 = vmatprep.subr.bf16.mxu0 0
    %1351 = vmatpush1.bf16.msra.mxu0 0
    %1352 = vmatprep.subr.bf16.mxu0 0
    %1353 = vmatpush1.bf16.msra.mxu0 0
    %1354 = vmatprep.subr.bf16.mxu0 0
    %1355 = vmatpush1.bf16.msra.mxu0 0
    %1356 = vmatprep.subr.bf16.mxu0 0
    %1357 = vmatpush1.bf16.msra.mxu0 0
    %1358 = vmatprep.subr.bf16.mxu0 0
    %1359 = vmatpush1.bf16.msra.mxu0 0
    %1360 = vmatprep.subr.bf16.mxu0 0
    %1361 = vmatpush1.bf16.msra.mxu0 0
    %1362 = vmatprep.subr.bf16.mxu0 0
    %1363 = vmatpush1.bf16.msra.mxu0 0
    %1364 = vmatprep.subr.bf16.mxu0 0
    %1365 = vmatpush1.bf16.msra.mxu0 0
    %1366 = vmatprep.subr.bf16.mxu0 0
    %1367 = vmatpush1.bf16.msra.mxu0 0
    %1368 = vmatprep.subr.bf16.mxu0 0
    %1369 = vmatpush1.bf16.msra.mxu0 0
    %1370 = vmatprep.subr.bf16.mxu0 0
    %1371 = vmatpush1.bf16.msra.mxu0 0
    %1372 = vmatprep.subr.bf16.mxu0 0
    %1373 = vmatpush1.bf16.msra.mxu0 0
    %1374 = vmatprep.subr.bf16.mxu0 0
    %1375 = vmatpush1.bf16.msra.mxu0 0
    %1376 = vmatprep.mubr.bf16.mxu0 0
    %1377 = vmatmul.mubr.bf16.gmra.mrb[0].mxu0 %v1339
    %v1378 = vpop.f32.mrb[0].mxu0
    %v1379 = vadd.f32 %v1318, %v1378
    %v1380 = vpop.f32.mrb[0].mxu0
    %v1381 = vpop.f32.mrb[0].mxu0
    %v1382 = vadd.f32 %v1321, %v1381
    %v1383 = vpop.f32.mrb[0].mxu0
    %1384 = vmatprep.mubr.bf16.mxu0 0
    %1385 = vmatmul.mubr.bf16.gmra.mrb[0].mxu0 %v1342
    %v1386 = vpop.f32.mrb[0].mxu0
    %v1387 = vadd.f32 %v1326, %v1386
    %v1388 = vpop.f32.mrb[0].mxu0
    %v1389 = vpop.f32.mrb[0].mxu0
    %v1390 = vadd.f32 %v1329, %v1389
    %v1391 = vpop.f32.mrb[0].mxu0
    %1392 = vdwg.mxu0
    %v1394 = vlaneseq
    %v1395 = vshrl.u32 %v1394, 7
    %v1396 = vsub.s32 0, %v1395
    %v1397 = vrot.slane %v171, %v1396
    %v1407 = vunpack.c.l.b16 %v89
    %v1408 = vunpack.c.l.b16 %v90
    %v1409 = vunpack.c.l.b16 %v91
    %v1410 = vunpack.c.l.b16 %v92
    %v1411 = vunpack.c.l.b16 %v93
    %v1412 = vunpack.c.l.b16 %v94
    %v1413 = vunpack.c.l.b16 %v95
    %v1414 = vunpack.c.l.b16 %v96
    %v1415 = vpack.c.b16 %v1408, %v1407
    %v1416 = vpack.c.b16 %v1410, %v1409
    %v1417 = vpack.c.b16 %v1412, %v1411
    %v1418 = vpack.c.b16 %v1414, %v1413
    %1423 = vmatprep.subr.bf16.mxu0 0
    %1424 = vmatpush1.bf16.msra.mxu0 %v1415
    %1425 = vmatprep.subr.bf16.mxu0 0
    %1426 = vmatpush1.bf16.msra.mxu0 %v1416
    %1427 = vmatprep.subr.bf16.mxu0 0
    %1428 = vmatpush1.bf16.msra.mxu0 %v1417
    %1429 = vmatprep.subr.bf16.mxu0 0
    %1430 = vmatpush1.bf16.msra.mxu0 %v1418
    %1431 = vmatprep.subr.bf16.mxu0 0
    %1432 = vmatpush1.bf16.msra.mxu0 0
    %1433 = vmatprep.subr.bf16.mxu0 0
    %1434 = vmatpush1.bf16.msra.mxu0 0
    %1435 = vmatprep.subr.bf16.mxu0 0
    %1436 = vmatpush1.bf16.msra.mxu0 0
    %1437 = vmatprep.subr.bf16.mxu0 0
    %1438 = vmatpush1.bf16.msra.mxu0 0
    %1439 = vmatprep.subr.bf16.mxu0 0
    %1440 = vmatpush1.bf16.msra.mxu0 0
    %1441 = vmatprep.subr.bf16.mxu0 0
    %1442 = vmatpush1.bf16.msra.mxu0 0
    %1443 = vmatprep.subr.bf16.mxu0 0
    %1444 = vmatpush1.bf16.msra.mxu0 0
    %1445 = vmatprep.subr.bf16.mxu0 0
    %1446 = vmatpush1.bf16.msra.mxu0 0
    %1447 = vmatprep.subr.bf16.mxu0 0
    %1448 = vmatpush1.bf16.msra.mxu0 0
    %1449 = vmatprep.subr.bf16.mxu0 0
    %1450 = vmatpush1.bf16.msra.mxu0 0
    %1451 = vmatprep.subr.bf16.mxu0 0
    %1452 = vmatpush1.bf16.msra.mxu0 0
    %1453 = vmatprep.subr.bf16.mxu0 0
    %1454 = vmatpush1.bf16.msra.mxu0 0
    %1455 = vmatprep.mubr.bf16.mxu0 0
    %1456 = vmatmul.mubr.bf16.gmra.mrb[0].mxu0 %v341
    %v1457 = vpop.f32.mrb[0].mxu0
    %v1458 = vadd.f32 %v1397, %v1457
    %v1459 = vpop.f32.mrb[0].mxu0
    %v1460 = vpop.f32.mrb[0].mxu0
    %v1461 = vadd.f32 %v1397, %v1460
    %v1462 = vpop.f32.mrb[0].mxu0
    %1463 = vmatprep.mubr.bf16.mxu0 0
    %1464 = vmatmul.mubr.bf16.gmra.mrb[0].mxu0 %v344
    %v1465 = vpop.f32.mrb[0].mxu0
    %v1466 = vadd.f32 %v1397, %v1465
    %v1467 = vpop.f32.mrb[0].mxu0
    %v1468 = vpop.f32.mrb[0].mxu0
    %v1469 = vadd.f32 %v1397, %v1468
    %v1470 = vpop.f32.mrb[0].mxu0
    %1471 = vdwg.mxu0
    %v1473 = vlaneseq
    %v1474 = vshrl.u32 %v1473, 7
    %v1475 = vsub.s32 0, %v1474
    %v1476 = vrot.slane %v175, %v1475
    %v1486 = vunpack.c.l.b16 %v121
    %v1487 = vunpack.c.l.b16 %v122
    %v1488 = vunpack.c.l.b16 %v123
    %v1489 = vunpack.c.l.b16 %v124
    %v1490 = vunpack.c.l.b16 %v125
    %v1491 = vunpack.c.l.b16 %v126
    %v1492 = vunpack.c.l.b16 %v127
    %v1493 = vunpack.c.l.b16 %v128
    %v1494 = vpack.c.b16 %v1487, %v1486
    %v1495 = vpack.c.b16 %v1489, %v1488
    %v1496 = vpack.c.b16 %v1491, %v1490
    %v1497 = vpack.c.b16 %v1493, %v1492
    %1502 = vmatprep.subr.bf16.mxu0 0
    %1503 = vmatpush1.bf16.msra.mxu0 %v1494
    %1504 = vmatprep.subr.bf16.mxu0 0
    %1505 = vmatpush1.bf16.msra.mxu0 %v1495
    %1506 = vmatprep.subr.bf16.mxu0 0
    %1507 = vmatpush1.bf16.msra.mxu0 %v1496
    %1508 = vmatprep.subr.bf16.mxu0 0
    %1509 = vmatpush1.bf16.msra.mxu0 %v1497
    %1510 = vmatprep.subr.bf16.mxu0 0
    %1511 = vmatpush1.bf16.msra.mxu0 0
    %1512 = vmatprep.subr.bf16.mxu0 0
    %1513 = vmatpush1.bf16.msra.mxu0 0
    %1514 = vmatprep.subr.bf16.mxu0 0
    %1515 = vmatpush1.bf16.msra.mxu0 0
    %1516 = vmatprep.subr.bf16.mxu0 0
    %1517 = vmatpush1.bf16.msra.mxu0 0
    %1518 = vmatprep.subr.bf16.mxu0 0
    %1519 = vmatpush1.bf16.msra.mxu0 0
    %1520 = vmatprep.subr.bf16.mxu0 0
    %1521 = vmatpush1.bf16.msra.mxu0 0
    %1522 = vmatprep.subr.bf16.mxu0 0
    %1523 = vmatpush1.bf16.msra.mxu0 0
    %1524 = vmatprep.subr.bf16.mxu0 0
    %1525 = vmatpush1.bf16.msra.mxu0 0
    %1526 = vmatprep.subr.bf16.mxu0 0
    %1527 = vmatpush1.bf16.msra.mxu0 0
    %1528 = vmatprep.subr.bf16.mxu0 0
    %1529 = vmatpush1.bf16.msra.mxu0 0
    %1530 = vmatprep.subr.bf16.mxu0 0
    %1531 = vmatpush1.bf16.msra.mxu0 0
    %1532 = vmatprep.subr.bf16.mxu0 0
    %1533 = vmatpush1.bf16.msra.mxu0 0
    %1534 = vmatprep.mubr.bf16.mxu0 0
    %1535 = vmatmul.mubr.bf16.gmra.mrb[0].mxu0 %v341
    %v1536 = vpop.f32.mrb[0].mxu0
    %v1537 = vadd.f32 %v1476, %v1536
    %v1538 = vpop.f32.mrb[0].mxu0
    %v1539 = vpop.f32.mrb[0].mxu0
    %v1540 = vadd.f32 %v1476, %v1539
    %v1541 = vpop.f32.mrb[0].mxu0
    %1542 = vmatprep.mubr.bf16.mxu0 0
    %1543 = vmatmul.mubr.bf16.gmra.mrb[0].mxu0 %v344
    %v1544 = vpop.f32.mrb[0].mxu0
    %v1545 = vadd.f32 %v1476, %v1544
    %v1546 = vpop.f32.mrb[0].mxu0
    %v1547 = vpop.f32.mrb[0].mxu0
    %v1548 = vadd.f32 %v1476, %v1547
    %v1549 = vpop.f32.mrb[0].mxu0
    %1550 = vdwg.mxu0
    %v1552 = vlaneseq
    %v1553 = vshrl.u32 %v1552, 7
    %v1554 = vsub.s32 0, %v1553
    %v1555 = vrot.slane %v179, %v1554
    %v1565 = vunpack.c.l.b16 %v153
    %v1566 = vunpack.c.l.b16 %v154
    %v1567 = vunpack.c.l.b16 %v155
    %v1568 = vunpack.c.l.b16 %v156
    %v1569 = vunpack.c.l.b16 %v157
    %v1570 = vunpack.c.l.b16 %v158
    %v1571 = vunpack.c.l.b16 %v159
    %v1572 = vunpack.c.l.b16 %v160
    %v1573 = vpack.c.b16 %v1566, %v1565
    %v1574 = vpack.c.b16 %v1568, %v1567
    %v1575 = vpack.c.b16 %v1570, %v1569
    %v1576 = vpack.c.b16 %v1572, %v1571
    %1581 = vmatprep.subr.bf16.mxu0 0
    %1582 = vmatpush1.bf16.msra.mxu0 %v1573
    %1583 = vmatprep.subr.bf16.mxu0 0
    %1584 = vmatpush1.bf16.msra.mxu0 %v1574
    %1585 = vmatprep.subr.bf16.mxu0 0
    %1586 = vmatpush1.bf16.msra.mxu0 %v1575
    %1587 = vmatprep.subr.bf16.mxu0 0
    %1588 = vmatpush1.bf16.msra.mxu0 %v1576
    %1589 = vmatprep.subr.bf16.mxu0 0
    %1590 = vmatpush1.bf16.msra.mxu0 0
    %1591 = vmatprep.subr.bf16.mxu0 0
    %1592 = vmatpush1.bf16.msra.mxu0 0
    %1593 = vmatprep.subr.bf16.mxu0 0
    %1594 = vmatpush1.bf16.msra.mxu0 0
    %1595 = vmatprep.subr.bf16.mxu0 0
    %1596 = vmatpush1.bf16.msra.mxu0 0
    %1597 = vmatprep.subr.bf16.mxu0 0
    %1598 = vmatpush1.bf16.msra.mxu0 0
    %1599 = vmatprep.subr.bf16.mxu0 0
    %1600 = vmatpush1.bf16.msra.mxu0 0
    %1601 = vmatprep.subr.bf16.mxu0 0
    %1602 = vmatpush1.bf16.msra.mxu0 0
    %1603 = vmatprep.subr.bf16.mxu0 0
    %1604 = vmatpush1.bf16.msra.mxu0 0
    %1605 = vmatprep.subr.bf16.mxu0 0
    %1606 = vmatpush1.bf16.msra.mxu0 0
    %1607 = vmatprep.subr.bf16.mxu0 0
    %1608 = vmatpush1.bf16.msra.mxu0 0
    %1609 = vmatprep.subr.bf16.mxu0 0
    %1610 = vmatpush1.bf16.msra.mxu0 0
    %1611 = vmatprep.subr.bf16.mxu0 0
    %1612 = vmatpush1.bf16.msra.mxu0 0
    %1613 = vmatprep.mubr.bf16.mxu0 0
    %1614 = vmatmul.mubr.bf16.gmra.mrb[0].mxu0 %v341
    %v1615 = vpop.f32.mrb[0].mxu0
    %v1616 = vadd.f32 %v1555, %v1615
    %v1617 = vpop.f32.mrb[0].mxu0
    %v1618 = vpop.f32.mrb[0].mxu0
    %v1619 = vadd.f32 %v1555, %v1618
    %v1620 = vpop.f32.mrb[0].mxu0
    %1621 = vmatprep.mubr.bf16.mxu0 0
    %1622 = vmatmul.mubr.bf16.gmra.mrb[0].mxu0 %v344
    %v1623 = vpop.f32.mrb[0].mxu0
    %v1624 = vadd.f32 %v1555, %v1623
    %v1625 = vpop.f32.mrb[0].mxu0
    %v1626 = vpop.f32.mrb[0].mxu0
    %v1627 = vadd.f32 %v1555, %v1626
    %v1628 = vpop.f32.mrb[0].mxu0
    %1629 = vdwg.mxu0
    %v1630 = vpack.c.bf16 %v1461, %v1458
    %v1631 = vpack.c.bf16 %v1469, %v1466
    %v1632 = vpack.c.bf16 %v1540, %v1537
    %v1633 = vpack.c.bf16 %v1548, %v1545
    %v1635 = vsel %vm557, %v1630, 0
    %v1638 = vsel %vm557, %v1632, 0
    %1640 = vmatprep.subr.bf16.mxu0 0
    %1641 = vmatpush1.bf16.xpose.msra.mxu0 %v1638
    %1642 = vmatprep.subr.bf16.mxu0 0
    %1643 = vmatpush1.bf16.xpose.msra.mxu0 0
    %1644 = vmatprep.subr.bf16.mxu0 0
    %1645 = vmatpush1.bf16.xpose.msra.mxu0 0
    %1646 = vmatprep.subr.bf16.mxu0 0
    %1647 = vmatpush1.bf16.xpose.msra.mxu0 0
    %1648 = vmatprep.subr.bf16.mxu0 0
    %1649 = vmatpush1.bf16.xpose.msra.mxu0 0
    %1650 = vmatprep.subr.bf16.mxu0 0
    %1651 = vmatpush1.bf16.xpose.msra.mxu0 0
    %1652 = vmatprep.subr.bf16.mxu0 0
    %1653 = vmatpush1.bf16.xpose.msra.mxu0 0
    %1654 = vmatprep.subr.bf16.mxu0 0
    %1655 = vmatpush1.bf16.xpose.msra.mxu0 0
    %1656 = vmatprep.subr.bf16.mxu0 0
    %1657 = vmatpush1.bf16.xpose.msra.mxu0 0
    %1658 = vmatprep.subr.bf16.mxu0 0
    %1659 = vmatpush1.bf16.xpose.msra.mxu0 0
    %1660 = vmatprep.subr.bf16.mxu0 0
    %1661 = vmatpush1.bf16.xpose.msra.mxu0 0
    %1662 = vmatprep.subr.bf16.mxu0 0
    %1663 = vmatpush1.bf16.xpose.msra.mxu0 0
    %1664 = vmatprep.subr.bf16.mxu0 0
    %1665 = vmatpush1.bf16.xpose.msra.mxu0 0
    %1666 = vmatprep.subr.bf16.mxu0 0
    %1667 = vmatpush1.bf16.xpose.msra.mxu0 0
    %1668 = vmatprep.subr.bf16.mxu0 0
    %1669 = vmatpush1.bf16.xpose.msra.mxu0 0
    %1670 = vmatprep.subr.bf16.mxu0 0
    %1671 = vmatpush1.bf16.xpose.msra.mxu0 0
    %1672 = vmatprep.mubr.bf16.mxu0 0
    %1673 = vmatmul.mubr.bf16.gmra.mrb[0].mxu0 %v1635
    %v1674 = vpop.f32.mrb[0].mxu0
    %v1675 = vadd.f32 0.0, %v1674
    %v1676 = vpop.f32.mrb[0].mxu0
    %v1677 = vpop.f32.mrb[0].mxu0
    %v1678 = vadd.f32 0.0, %v1677
    %v1679 = vpop.f32.mrb[0].mxu0
    %1680 = vdwg.mxu0
    %v1682 = vsel %vm557, %v1631, 0
    %v1685 = vsel %vm557, %v1633, 0
    %1687 = vmatprep.subr.bf16.mxu0 0
    %1688 = vmatpush1.bf16.xpose.msra.mxu0 %v1685
    %1689 = vmatprep.subr.bf16.mxu0 0
    %1690 = vmatpush1.bf16.xpose.msra.mxu0 0
    %1691 = vmatprep.subr.bf16.mxu0 0
    %1692 = vmatpush1.bf16.xpose.msra.mxu0 0
    %1693 = vmatprep.subr.bf16.mxu0 0
    %1694 = vmatpush1.bf16.xpose.msra.mxu0 0
    %1695 = vmatprep.subr.bf16.mxu0 0
    %1696 = vmatpush1.bf16.xpose.msra.mxu0 0
    %1697 = vmatprep.subr.bf16.mxu0 0
    %1698 = vmatpush1.bf16.xpose.msra.mxu0 0
    %1699 = vmatprep.subr.bf16.mxu0 0
    %1700 = vmatpush1.bf16.xpose.msra.mxu0 0
    %1701 = vmatprep.subr.bf16.mxu0 0
    %1702 = vmatpush1.bf16.xpose.msra.mxu0 0
    %1703 = vmatprep.subr.bf16.mxu0 0
    %1704 = vmatpush1.bf16.xpose.msra.mxu0 0
    %1705 = vmatprep.subr.bf16.mxu0 0
    %1706 = vmatpush1.bf16.xpose.msra.mxu0 0
    %1707 = vmatprep.subr.bf16.mxu0 0
    %1708 = vmatpush1.bf16.xpose.msra.mxu0 0
    %1709 = vmatprep.subr.bf16.mxu0 0
    %1710 = vmatpush1.bf16.xpose.msra.mxu0 0
    %1711 = vmatprep.subr.bf16.mxu0 0
    %1712 = vmatpush1.bf16.xpose.msra.mxu0 0
    %1713 = vmatprep.subr.bf16.mxu0 0
    %1714 = vmatpush1.bf16.xpose.msra.mxu0 0
    %1715 = vmatprep.subr.bf16.mxu0 0
    %1716 = vmatpush1.bf16.xpose.msra.mxu0 0
    %1717 = vmatprep.subr.bf16.mxu0 0
    %1718 = vmatpush1.bf16.xpose.msra.mxu0 0
    %1719 = vmatprep.mubr.bf16.mxu0 0
    %1720 = vmatmul.mubr.bf16.gmra.mrb[0].mxu0 %v1682
    %v1721 = vpop.f32.mrb[0].mxu0
    %v1722 = vadd.f32 0.0, %v1721
    %v1723 = vpop.f32.mrb[0].mxu0
    %v1724 = vpop.f32.mrb[0].mxu0
    %v1725 = vadd.f32 0.0, %v1724
    %v1726 = vpop.f32.mrb[0].mxu0
    %1727 = vdwg.mxu0
    %v1728 = vmul.f32 %v1675, 0.25
    %v1729 = vmul.f32 %v1678, 0.25
    %v1730 = vmul.f32 %v1722, 0.25
    %v1731 = vmul.f32 %v1725, 0.25
    %v1732 = vsel %vm557, %v1728, -inf
    %1733 = vmax.xlane.f32.xlu0 %v1732
    %v1734 = vpop.xlane.xlu0 %1733
    %v1735 = vsel %vm557, %v1729, -inf
    %1736 = vmax.xlane.f32.xlu0 %v1735
    %v1737 = vpop.xlane.xlu0 %1736
    %v1738 = vsel %vm557, %v1730, -inf
    %1739 = vmax.xlane.f32.xlu0 %v1738
    %v1740 = vpop.xlane.xlu0 %1739
    %v1741 = vsel %vm557, %v1731, -inf
    %1742 = vmax.xlane.f32.xlu0 %v1741
    %v1743 = vpop.xlane.xlu0 %1742
    %v1744 = vsub.f32 %v1728, %v1734
    %v1745 = vsub.f32 %v1729, %v1737
    %v1746 = vsub.f32 %v1730, %v1740
    %v1747 = vsub.f32 %v1731, %v1743
    %v1748 = vmul.f32 %v1744, 1.442695
    %v1749 = vpow.pop %v1748
    %v1750 = vmul.f32 %v1745, 1.442695
    %v1751 = vpow.pop %v1750
    %v1752 = vmul.f32 %v1746, 1.442695
    %v1753 = vpow.pop %v1752
    %v1754 = vmul.f32 %v1747, 1.442695
    %v1755 = vpow.pop %v1754
    %v1756 = vsel %vm557, %v1749, 0.0
    %1757 = vadd.xlane.f32.xlu0 %v1756
    %v1758 = vpop.xlane.xlu0 %1757
    %v1759 = vsel %vm557, %v1751, 0.0
    %1760 = vadd.xlane.f32.xlu0 %v1759
    %v1761 = vpop.xlane.xlu0 %1760
    %v1762 = vsel %vm557, %v1753, 0.0
    %1763 = vadd.xlane.f32.xlu0 %v1762
    %v1764 = vpop.xlane.xlu0 %1763
    %v1765 = vsel %vm557, %v1755, 0.0
    %1766 = vadd.xlane.f32.xlu0 %v1765
    %v1767 = vpop.xlane.xlu0 %1766
    %v1768 = vrcp.pop %v1758
    %v1769 = vrcp.pop %v1761
    %v1770 = vrcp.pop %v1764
    %v1771 = vrcp.pop %v1767
    %v1772 = vmul.f32 %v1749, %v1768
    %v1773 = vmul.f32 %v1751, %v1769
    %v1774 = vmul.f32 %v1753, %v1770
    %v1775 = vmul.f32 %v1755, %v1771
    %v1776 = vpack.c.bf16 %v1773, %v1772
    %v1777 = vpack.c.bf16 %v1775, %v1774
    %v1778 = vpack.c.bf16 %v1619, %v1616
    %v1779 = vpack.c.bf16 %v1627, %v1624
    %v1781 = vsel %vm557, %v1776, 0
    %1783 = vmatprep.subr.bf16.mxu0 0
    %1784 = vmatpush1.bf16.msra.mxu0 %v1778
    %1785 = vmatprep.subr.bf16.mxu0 0
    %1786 = vmatpush1.bf16.msra.mxu0 0
    %1787 = vmatprep.subr.bf16.mxu0 0
    %1788 = vmatpush1.bf16.msra.mxu0 0
    %1789 = vmatprep.subr.bf16.mxu0 0
    %1790 = vmatpush1.bf16.msra.mxu0 0
    %1791 = vmatprep.subr.bf16.mxu0 0
    %1792 = vmatpush1.bf16.msra.mxu0 0
    %1793 = vmatprep.subr.bf16.mxu0 0
    %1794 = vmatpush1.bf16.msra.mxu0 0
    %1795 = vmatprep.subr.bf16.mxu0 0
    %1796 = vmatpush1.bf16.msra.mxu0 0
    %1797 = vmatprep.subr.bf16.mxu0 0
    %1798 = vmatpush1.bf16.msra.mxu0 0
    %1799 = vmatprep.subr.bf16.mxu0 0
    %1800 = vmatpush1.bf16.msra.mxu0 0
    %1801 = vmatprep.subr.bf16.mxu0 0
    %1802 = vmatpush1.bf16.msra.mxu0 0
    %1803 = vmatprep.subr.bf16.mxu0 0
    %1804 = vmatpush1.bf16.msra.mxu0 0
    %1805 = vmatprep.subr.bf16.mxu0 0
    %1806 = vmatpush1.bf16.msra.mxu0 0
    %1807 = vmatprep.subr.bf16.mxu0 0
    %1808 = vmatpush1.bf16.msra.mxu0 0
    %1809 = vmatprep.subr.bf16.mxu0 0
    %1810 = vmatpush1.bf16.msra.mxu0 0
    %1811 = vmatprep.subr.bf16.mxu0 0
    %1812 = vmatpush1.bf16.msra.mxu0 0
    %1813 = vmatprep.subr.bf16.mxu0 0
    %1814 = vmatpush1.bf16.msra.mxu0 0
    %1815 = vmatprep.mubr.bf16.mxu0 0
    %1816 = vmatmul.mubr.bf16.gmra.mrb[0].mxu0 %v1781
    %v1817 = vpop.f32.mrb[0].mxu0
    %v1818 = vadd.f32 0.0, %v1817
    %v1819 = vpop.f32.mrb[0].mxu0
    %v1820 = vpop.f32.mrb[0].mxu0
    %v1821 = vadd.f32 0.0, %v1820
    %v1822 = vpop.f32.mrb[0].mxu0
    %1823 = vdwg.mxu0
    %v1825 = vsel %vm557, %v1777, 0
    %1827 = vmatprep.subr.bf16.mxu0 0
    %1828 = vmatpush1.bf16.msra.mxu0 %v1779
    %1829 = vmatprep.subr.bf16.mxu0 0
    %1830 = vmatpush1.bf16.msra.mxu0 0
    %1831 = vmatprep.subr.bf16.mxu0 0
    %1832 = vmatpush1.bf16.msra.mxu0 0
    %1833 = vmatprep.subr.bf16.mxu0 0
    %1834 = vmatpush1.bf16.msra.mxu0 0
    %1835 = vmatprep.subr.bf16.mxu0 0
    %1836 = vmatpush1.bf16.msra.mxu0 0
    %1837 = vmatprep.subr.bf16.mxu0 0
    %1838 = vmatpush1.bf16.msra.mxu0 0
    %1839 = vmatprep.subr.bf16.mxu0 0
    %1840 = vmatpush1.bf16.msra.mxu0 0
    %1841 = vmatprep.subr.bf16.mxu0 0
    %1842 = vmatpush1.bf16.msra.mxu0 0
    %1843 = vmatprep.subr.bf16.mxu0 0
    %1844 = vmatpush1.bf16.msra.mxu0 0
    %1845 = vmatprep.subr.bf16.mxu0 0
    %1846 = vmatpush1.bf16.msra.mxu0 0
    %1847 = vmatprep.subr.bf16.mxu0 0
    %1848 = vmatpush1.bf16.msra.mxu0 0
    %1849 = vmatprep.subr.bf16.mxu0 0
    %1850 = vmatpush1.bf16.msra.mxu0 0
    %1851 = vmatprep.subr.bf16.mxu0 0
    %1852 = vmatpush1.bf16.msra.mxu0 0
    %1853 = vmatprep.subr.bf16.mxu0 0
    %1854 = vmatpush1.bf16.msra.mxu0 0
    %1855 = vmatprep.subr.bf16.mxu0 0
    %1856 = vmatpush1.bf16.msra.mxu0 0
    %1857 = vmatprep.subr.bf16.mxu0 0
    %1858 = vmatpush1.bf16.msra.mxu0 0
    %1859 = vmatprep.mubr.bf16.mxu0 0
    %1860 = vmatmul.mubr.bf16.gmra.mrb[0].mxu0 %v1825
    %v1861 = vpop.f32.mrb[0].mxu0
    %v1862 = vadd.f32 0.0, %v1861
    %v1863 = vpop.f32.mrb[0].mxu0
    %v1864 = vpop.f32.mrb[0].mxu0
    %v1865 = vadd.f32 0.0, %v1864
    %v1866 = vpop.f32.mrb[0].mxu0
    %1867 = vdwg.mxu0
    %v1868 = vpack.c.bf16 %v1821, %v1818
    %v1869 = vpack.c.bf16 %v1865, %v1862
    %v1872 = vunpack.c.l.b16 %v185
    %v1873 = vunpack.c.l.b16 %v186
    %v1874 = vpack.c.b16 %v1873, %v1872
    %v1877 = vsel %vm557, %v1868, 0
    %v1880 = vsel %vm557, %v1869, 0
    %1882 = vmatprep.subr.bf16.mxu0 0
    %1883 = vmatpush1.bf16.msra.mxu0 %v1874
    %1884 = vmatprep.subr.bf16.mxu0 0
    %1885 = vmatpush1.bf16.msra.mxu0 0
    %1886 = vmatprep.subr.bf16.mxu0 0
    %1887 = vmatpush1.bf16.msra.mxu0 0
    %1888 = vmatprep.subr.bf16.mxu0 0
    %1889 = vmatpush1.bf16.msra.mxu0 0
    %1890 = vmatprep.subr.bf16.mxu0 0
    %1891 = vmatpush1.bf16.msra.mxu0 0
    %1892 = vmatprep.subr.bf16.mxu0 0
    %1893 = vmatpush1.bf16.msra.mxu0 0
    %1894 = vmatprep.subr.bf16.mxu0 0
    %1895 = vmatpush1.bf16.msra.mxu0 0
    %1896 = vmatprep.subr.bf16.mxu0 0
    %1897 = vmatpush1.bf16.msra.mxu0 0
    %1898 = vmatprep.subr.bf16.mxu0 0
    %1899 = vmatpush1.bf16.msra.mxu0 0
    %1900 = vmatprep.subr.bf16.mxu0 0
    %1901 = vmatpush1.bf16.msra.mxu0 0
    %1902 = vmatprep.subr.bf16.mxu0 0
    %1903 = vmatpush1.bf16.msra.mxu0 0
    %1904 = vmatprep.subr.bf16.mxu0 0
    %1905 = vmatpush1.bf16.msra.mxu0 0
    %1906 = vmatprep.subr.bf16.mxu0 0
    %1907 = vmatpush1.bf16.msra.mxu0 0
    %1908 = vmatprep.subr.bf16.mxu0 0
    %1909 = vmatpush1.bf16.msra.mxu0 0
    %1910 = vmatprep.subr.bf16.mxu0 0
    %1911 = vmatpush1.bf16.msra.mxu0 0
    %1912 = vmatprep.subr.bf16.mxu0 0
    %1913 = vmatpush1.bf16.msra.mxu0 0
    %1914 = vmatprep.mubr.bf16.mxu0 0
    %1915 = vmatmul.mubr.bf16.gmra.mrb[0].mxu0 %v1877
    %v1916 = vpop.f32.mrb[0].mxu0
    %v1917 = vadd.f32 0.0, %v1916
    %v1918 = vpop.f32.mrb[0].mxu0
    %v1919 = vpop.f32.mrb[0].mxu0
    %v1920 = vadd.f32 0.0, %v1919
    %v1921 = vpop.f32.mrb[0].mxu0
    %1922 = vmatprep.mubr.bf16.mxu0 0
    %1923 = vmatmul.mubr.bf16.gmra.mrb[0].mxu0 %v1880
    %v1924 = vpop.f32.mrb[0].mxu0
    %v1925 = vadd.f32 0.0, %v1924
    %v1926 = vpop.f32.mrb[0].mxu0
    %v1927 = vpop.f32.mrb[0].mxu0
    %v1928 = vadd.f32 0.0, %v1927
    %v1929 = vpop.f32.mrb[0].mxu0
    %1930 = vdwg.mxu0
    %v1931 = vadd.f32 %v1379, %v1917
    %v1932 = vadd.f32 %v1382, %v1920
    %v1933 = vadd.f32 %v1387, %v1925
    %v1934 = vadd.f32 %v1390, %v1928
    %v1936 = vlaneseq
    %v1937 = vshrl.u32 %v1936, 7
    %v1938 = vsub.s32 0, %v1937
    %v1939 = vrot.slane %v172, %v1938
    %v1949 = vunpack.c.l.b16 %v97
    %v1950 = vunpack.c.l.b16 %v98
    %v1951 = vunpack.c.l.b16 %v99
    %v1952 = vunpack.c.l.b16 %v100
    %v1953 = vunpack.c.l.b16 %v101
    %v1954 = vunpack.c.l.b16 %v102
    %v1955 = vunpack.c.l.b16 %v103
    %v1956 = vunpack.c.l.b16 %v104
    %v1957 = vpack.c.b16 %v1950, %v1949
    %v1958 = vpack.c.b16 %v1952, %v1951
    %v1959 = vpack.c.b16 %v1954, %v1953
    %v1960 = vpack.c.b16 %v1956, %v1955
    %1965 = vmatprep.subr.bf16.mxu0 0
    %1966 = vmatpush1.bf16.msra.mxu0 %v1957
    %1967 = vmatprep.subr.bf16.mxu0 0
    %1968 = vmatpush1.bf16.msra.mxu0 %v1958
    %1969 = vmatprep.subr.bf16.mxu0 0
    %1970 = vmatpush1.bf16.msra.mxu0 %v1959
    %1971 = vmatprep.subr.bf16.mxu0 0
    %1972 = vmatpush1.bf16.msra.mxu0 %v1960
    %1973 = vmatprep.subr.bf16.mxu0 0
    %1974 = vmatpush1.bf16.msra.mxu0 0
    %1975 = vmatprep.subr.bf16.mxu0 0
    %1976 = vmatpush1.bf16.msra.mxu0 0
    %1977 = vmatprep.subr.bf16.mxu0 0
    %1978 = vmatpush1.bf16.msra.mxu0 0
    %1979 = vmatprep.subr.bf16.mxu0 0
    %1980 = vmatpush1.bf16.msra.mxu0 0
    %1981 = vmatprep.subr.bf16.mxu0 0
    %1982 = vmatpush1.bf16.msra.mxu0 0
    %1983 = vmatprep.subr.bf16.mxu0 0
    %1984 = vmatpush1.bf16.msra.mxu0 0
    %1985 = vmatprep.subr.bf16.mxu0 0
    %1986 = vmatpush1.bf16.msra.mxu0 0
    %1987 = vmatprep.subr.bf16.mxu0 0
    %1988 = vmatpush1.bf16.msra.mxu0 0
    %1989 = vmatprep.subr.bf16.mxu0 0
    %1990 = vmatpush1.bf16.msra.mxu0 0
    %1991 = vmatprep.subr.bf16.mxu0 0
    %1992 = vmatpush1.bf16.msra.mxu0 0
    %1993 = vmatprep.subr.bf16.mxu0 0
    %1994 = vmatpush1.bf16.msra.mxu0 0
    %1995 = vmatprep.subr.bf16.mxu0 0
    %1996 = vmatpush1.bf16.msra.mxu0 0
    %1997 = vmatprep.mubr.bf16.mxu0 0
    %1998 = vmatmul.mubr.bf16.gmra.mrb[0].mxu0 %v341
    %v1999 = vpop.f32.mrb[0].mxu0
    %v2000 = vadd.f32 %v1939, %v1999
    %v2001 = vpop.f32.mrb[0].mxu0
    %v2002 = vpop.f32.mrb[0].mxu0
    %v2003 = vadd.f32 %v1939, %v2002
    %v2004 = vpop.f32.mrb[0].mxu0
    %2005 = vmatprep.mubr.bf16.mxu0 0
    %2006 = vmatmul.mubr.bf16.gmra.mrb[0].mxu0 %v344
    %v2007 = vpop.f32.mrb[0].mxu0
    %v2008 = vadd.f32 %v1939, %v2007
    %v2009 = vpop.f32.mrb[0].mxu0
    %v2010 = vpop.f32.mrb[0].mxu0
    %v2011 = vadd.f32 %v1939, %v2010
    %v2012 = vpop.f32.mrb[0].mxu0
    %2013 = vdwg.mxu0
    %v2015 = vlaneseq
    %v2016 = vshrl.u32 %v2015, 7
    %v2017 = vsub.s32 0, %v2016
    %v2018 = vrot.slane %v176, %v2017
    %v2028 = vunpack.c.l.b16 %v129
    %v2029 = vunpack.c.l.b16 %v130
    %v2030 = vunpack.c.l.b16 %v131
    %v2031 = vunpack.c.l.b16 %v132
    %v2032 = vunpack.c.l.b16 %v133
    %v2033 = vunpack.c.l.b16 %v134
    %v2034 = vunpack.c.l.b16 %v135
    %v2035 = vunpack.c.l.b16 %v136
    %v2036 = vpack.c.b16 %v2029, %v2028
    %v2037 = vpack.c.b16 %v2031, %v2030
    %v2038 = vpack.c.b16 %v2033, %v2032
    %v2039 = vpack.c.b16 %v2035, %v2034
    %2044 = vmatprep.subr.bf16.mxu0 0
    %2045 = vmatpush1.bf16.msra.mxu0 %v2036
    %2046 = vmatprep.subr.bf16.mxu0 0
    %2047 = vmatpush1.bf16.msra.mxu0 %v2037
    %2048 = vmatprep.subr.bf16.mxu0 0
    %2049 = vmatpush1.bf16.msra.mxu0 %v2038
    %2050 = vmatprep.subr.bf16.mxu0 0
    %2051 = vmatpush1.bf16.msra.mxu0 %v2039
    %2052 = vmatprep.subr.bf16.mxu0 0
    %2053 = vmatpush1.bf16.msra.mxu0 0
    %2054 = vmatprep.subr.bf16.mxu0 0
    %2055 = vmatpush1.bf16.msra.mxu0 0
    %2056 = vmatprep.subr.bf16.mxu0 0
    %2057 = vmatpush1.bf16.msra.mxu0 0
    %2058 = vmatprep.subr.bf16.mxu0 0
    %2059 = vmatpush1.bf16.msra.mxu0 0
    %2060 = vmatprep.subr.bf16.mxu0 0
    %2061 = vmatpush1.bf16.msra.mxu0 0
    %2062 = vmatprep.subr.bf16.mxu0 0
    %2063 = vmatpush1.bf16.msra.mxu0 0
    %2064 = vmatprep.subr.bf16.mxu0 0
    %2065 = vmatpush1.bf16.msra.mxu0 0
    %2066 = vmatprep.subr.bf16.mxu0 0
    %2067 = vmatpush1.bf16.msra.mxu0 0
    %2068 = vmatprep.subr.bf16.mxu0 0
    %2069 = vmatpush1.bf16.msra.mxu0 0
    %2070 = vmatprep.subr.bf16.mxu0 0
    %2071 = vmatpush1.bf16.msra.mxu0 0
    %2072 = vmatprep.subr.bf16.mxu0 0
    %2073 = vmatpush1.bf16.msra.mxu0 0
    %2074 = vmatprep.subr.bf16.mxu0 0
    %2075 = vmatpush1.bf16.msra.mxu0 0
    %2076 = vmatprep.mubr.bf16.mxu0 0
    %2077 = vmatmul.mubr.bf16.gmra.mrb[0].mxu0 %v341
    %v2078 = vpop.f32.mrb[0].mxu0
    %v2079 = vadd.f32 %v2018, %v2078
    %v2080 = vpop.f32.mrb[0].mxu0
    %v2081 = vpop.f32.mrb[0].mxu0
    %v2082 = vadd.f32 %v2018, %v2081
    %v2083 = vpop.f32.mrb[0].mxu0
    %2084 = vmatprep.mubr.bf16.mxu0 0
    %2085 = vmatmul.mubr.bf16.gmra.mrb[0].mxu0 %v344
    %v2086 = vpop.f32.mrb[0].mxu0
    %v2087 = vadd.f32 %v2018, %v2086
    %v2088 = vpop.f32.mrb[0].mxu0
    %v2089 = vpop.f32.mrb[0].mxu0
    %v2090 = vadd.f32 %v2018, %v2089
    %v2091 = vpop.f32.mrb[0].mxu0
    %2092 = vdwg.mxu0
    %v2094 = vlaneseq
    %v2095 = vshrl.u32 %v2094, 7
    %v2096 = vsub.s32 0, %v2095
    %v2097 = vrot.slane %v180, %v2096
    %v2107 = vunpack.c.l.b16 %v161
    %v2108 = vunpack.c.l.b16 %v162
    %v2109 = vunpack.c.l.b16 %v163
    %v2110 = vunpack.c.l.b16 %v164
    %v2111 = vunpack.c.l.b16 %v165
    %v2112 = vunpack.c.l.b16 %v166
    %v2113 = vunpack.c.l.b16 %v167
    %v2114 = vunpack.c.l.b16 %v168
    %v2115 = vpack.c.b16 %v2108, %v2107
    %v2116 = vpack.c.b16 %v2110, %v2109
    %v2117 = vpack.c.b16 %v2112, %v2111
    %v2118 = vpack.c.b16 %v2114, %v2113
    %2123 = vmatprep.subr.bf16.mxu0 0
    %2124 = vmatpush1.bf16.msra.mxu0 %v2115
    %2125 = vmatprep.subr.bf16.mxu0 0
    %2126 = vmatpush1.bf16.msra.mxu0 %v2116
    %2127 = vmatprep.subr.bf16.mxu0 0
    %2128 = vmatpush1.bf16.msra.mxu0 %v2117
    %2129 = vmatprep.subr.bf16.mxu0 0
    %2130 = vmatpush1.bf16.msra.mxu0 %v2118
    %2131 = vmatprep.subr.bf16.mxu0 0
    %2132 = vmatpush1.bf16.msra.mxu0 0
    %2133 = vmatprep.subr.bf16.mxu0 0
    %2134 = vmatpush1.bf16.msra.mxu0 0
    %2135 = vmatprep.subr.bf16.mxu0 0
    %2136 = vmatpush1.bf16.msra.mxu0 0
    %2137 = vmatprep.subr.bf16.mxu0 0
    %2138 = vmatpush1.bf16.msra.mxu0 0
    %2139 = vmatprep.subr.bf16.mxu0 0
    %2140 = vmatpush1.bf16.msra.mxu0 0
    %2141 = vmatprep.subr.bf16.mxu0 0
    %2142 = vmatpush1.bf16.msra.mxu0 0
    %2143 = vmatprep.subr.bf16.mxu0 0
    %2144 = vmatpush1.bf16.msra.mxu0 0
    %2145 = vmatprep.subr.bf16.mxu0 0
    %2146 = vmatpush1.bf16.msra.mxu0 0
    %2147 = vmatprep.subr.bf16.mxu0 0
    %2148 = vmatpush1.bf16.msra.mxu0 0
    %2149 = vmatprep.subr.bf16.mxu0 0
    %2150 = vmatpush1.bf16.msra.mxu0 0
    %2151 = vmatprep.subr.bf16.mxu0 0
    %2152 = vmatpush1.bf16.msra.mxu0 0
    %2153 = vmatprep.subr.bf16.mxu0 0
    %2154 = vmatpush1.bf16.msra.mxu0 0
    %2155 = vmatprep.mubr.bf16.mxu0 0
    %2156 = vmatmul.mubr.bf16.gmra.mrb[0].mxu0 %v341
    %v2157 = vpop.f32.mrb[0].mxu0
    %v2158 = vadd.f32 %v2097, %v2157
    %v2159 = vpop.f32.mrb[0].mxu0
    %v2160 = vpop.f32.mrb[0].mxu0
    %v2161 = vadd.f32 %v2097, %v2160
    %v2162 = vpop.f32.mrb[0].mxu0
    %2163 = vmatprep.mubr.bf16.mxu0 0
    %2164 = vmatmul.mubr.bf16.gmra.mrb[0].mxu0 %v344
    %v2165 = vpop.f32.mrb[0].mxu0
    %v2166 = vadd.f32 %v2097, %v2165
    %v2167 = vpop.f32.mrb[0].mxu0
    %v2168 = vpop.f32.mrb[0].mxu0
    %v2169 = vadd.f32 %v2097, %v2168
    %v2170 = vpop.f32.mrb[0].mxu0
    %2171 = vdwg.mxu0
    %v2172 = vpack.c.bf16 %v2003, %v2000
    %v2173 = vpack.c.bf16 %v2011, %v2008
    %v2174 = vpack.c.bf16 %v2082, %v2079
    %v2175 = vpack.c.bf16 %v2090, %v2087
    %v2177 = vsel %vm557, %v2172, 0
    %v2180 = vsel %vm557, %v2174, 0
    %2182 = vmatprep.subr.bf16.mxu0 0
    %2183 = vmatpush1.bf16.xpose.msra.mxu0 %v2180
    %2184 = vmatprep.subr.bf16.mxu0 0
    %2185 = vmatpush1.bf16.xpose.msra.mxu0 0
    %2186 = vmatprep.subr.bf16.mxu0 0
    %2187 = vmatpush1.bf16.xpose.msra.mxu0 0
    %2188 = vmatprep.subr.bf16.mxu0 0
    %2189 = vmatpush1.bf16.xpose.msra.mxu0 0
    %2190 = vmatprep.subr.bf16.mxu0 0
    %2191 = vmatpush1.bf16.xpose.msra.mxu0 0
    %2192 = vmatprep.subr.bf16.mxu0 0
    %2193 = vmatpush1.bf16.xpose.msra.mxu0 0
    %2194 = vmatprep.subr.bf16.mxu0 0
    %2195 = vmatpush1.bf16.xpose.msra.mxu0 0
    %2196 = vmatprep.subr.bf16.mxu0 0
    %2197 = vmatpush1.bf16.xpose.msra.mxu0 0
    %2198 = vmatprep.subr.bf16.mxu0 0
    %2199 = vmatpush1.bf16.xpose.msra.mxu0 0
    %2200 = vmatprep.subr.bf16.mxu0 0
    %2201 = vmatpush1.bf16.xpose.msra.mxu0 0
    %2202 = vmatprep.subr.bf16.mxu0 0
    %2203 = vmatpush1.bf16.xpose.msra.mxu0 0
    %2204 = vmatprep.subr.bf16.mxu0 0
    %2205 = vmatpush1.bf16.xpose.msra.mxu0 0
    %2206 = vmatprep.subr.bf16.mxu0 0
    %2207 = vmatpush1.bf16.xpose.msra.mxu0 0
    %2208 = vmatprep.subr.bf16.mxu0 0
    %2209 = vmatpush1.bf16.xpose.msra.mxu0 0
    %2210 = vmatprep.subr.bf16.mxu0 0
    %2211 = vmatpush1.bf16.xpose.msra.mxu0 0
    %2212 = vmatprep.subr.bf16.mxu0 0
    %2213 = vmatpush1.bf16.xpose.msra.mxu0 0
    %2214 = vmatprep.mubr.bf16.mxu0 0
    %2215 = vmatmul.mubr.bf16.gmra.mrb[0].mxu0 %v2177
    %v2216 = vpop.f32.mrb[0].mxu0
    %v2217 = vadd.f32 0.0, %v2216
    %v2218 = vpop.f32.mrb[0].mxu0
    %v2219 = vpop.f32.mrb[0].mxu0
    %v2220 = vadd.f32 0.0, %v2219
    %v2221 = vpop.f32.mrb[0].mxu0
    %2222 = vdwg.mxu0
    %v2224 = vsel %vm557, %v2173, 0
    %v2227 = vsel %vm557, %v2175, 0
    %2229 = vmatprep.subr.bf16.mxu0 0
    %2230 = vmatpush1.bf16.xpose.msra.mxu0 %v2227
    %2231 = vmatprep.subr.bf16.mxu0 0
    %2232 = vmatpush1.bf16.xpose.msra.mxu0 0
    %2233 = vmatprep.subr.bf16.mxu0 0
    %2234 = vmatpush1.bf16.xpose.msra.mxu0 0
    %2235 = vmatprep.subr.bf16.mxu0 0
    %2236 = vmatpush1.bf16.xpose.msra.mxu0 0
    %2237 = vmatprep.subr.bf16.mxu0 0
    %2238 = vmatpush1.bf16.xpose.msra.mxu0 0
    %2239 = vmatprep.subr.bf16.mxu0 0
    %2240 = vmatpush1.bf16.xpose.msra.mxu0 0
    %2241 = vmatprep.subr.bf16.mxu0 0
    %2242 = vmatpush1.bf16.xpose.msra.mxu0 0
    %2243 = vmatprep.subr.bf16.mxu0 0
    %2244 = vmatpush1.bf16.xpose.msra.mxu0 0
    %2245 = vmatprep.subr.bf16.mxu0 0
    %2246 = vmatpush1.bf16.xpose.msra.mxu0 0
    %2247 = vmatprep.subr.bf16.mxu0 0
    %2248 = vmatpush1.bf16.xpose.msra.mxu0 0
    %2249 = vmatprep.subr.bf16.mxu0 0
    %2250 = vmatpush1.bf16.xpose.msra.mxu0 0
    %2251 = vmatprep.subr.bf16.mxu0 0
    %2252 = vmatpush1.bf16.xpose.msra.mxu0 0
    %2253 = vmatprep.subr.bf16.mxu0 0
    %2254 = vmatpush1.bf16.xpose.msra.mxu0 0
    %2255 = vmatprep.subr.bf16.mxu0 0
    %2256 = vmatpush1.bf16.xpose.msra.mxu0 0
    %2257 = vmatprep.subr.bf16.mxu0 0
    %2258 = vmatpush1.bf16.xpose.msra.mxu0 0
    %2259 = vmatprep.subr.bf16.mxu0 0
    %2260 = vmatpush1.bf16.xpose.msra.mxu0 0
    %2261 = vmatprep.mubr.bf16.mxu0 0
    %2262 = vmatmul.mubr.bf16.gmra.mrb[0].mxu0 %v2224
    %v2263 = vpop.f32.mrb[0].mxu0
    %v2264 = vadd.f32 0.0, %v2263
    %v2265 = vpop.f32.mrb[0].mxu0
    %v2266 = vpop.f32.mrb[0].mxu0
    %v2267 = vadd.f32 0.0, %v2266
    %v2268 = vpop.f32.mrb[0].mxu0
    %2269 = vdwg.mxu0
    %v2270 = vmul.f32 %v2217, 0.25
    %v2271 = vmul.f32 %v2220, 0.25
    %v2272 = vmul.f32 %v2264, 0.25
    %v2273 = vmul.f32 %v2267, 0.25
    %v2274 = vsel %vm557, %v2270, -inf
    %2275 = vmax.xlane.f32.xlu0 %v2274
    %v2276 = vpop.xlane.xlu0 %2275
    %v2277 = vsel %vm557, %v2271, -inf
    %2278 = vmax.xlane.f32.xlu0 %v2277
    %v2279 = vpop.xlane.xlu0 %2278
    %v2280 = vsel %vm557, %v2272, -inf
    %2281 = vmax.xlane.f32.xlu0 %v2280
    %v2282 = vpop.xlane.xlu0 %2281
    %v2283 = vsel %vm557, %v2273, -inf
    %2284 = vmax.xlane.f32.xlu0 %v2283
    %v2285 = vpop.xlane.xlu0 %2284
    %v2286 = vsub.f32 %v2270, %v2276
    %v2287 = vsub.f32 %v2271, %v2279
    %v2288 = vsub.f32 %v2272, %v2282
    %v2289 = vsub.f32 %v2273, %v2285
    %v2290 = vmul.f32 %v2286, 1.442695
    %v2291 = vpow.pop %v2290
    %v2292 = vmul.f32 %v2287, 1.442695
    %v2293 = vpow.pop %v2292
    %v2294 = vmul.f32 %v2288, 1.442695
    %v2295 = vpow.pop %v2294
    %v2296 = vmul.f32 %v2289, 1.442695
    %v2297 = vpow.pop %v2296
    %v2298 = vsel %vm557, %v2291, 0.0
    %2299 = vadd.xlane.f32.xlu0 %v2298
    %v2300 = vpop.xlane.xlu0 %2299
    %v2301 = vsel %vm557, %v2293, 0.0
    %2302 = vadd.xlane.f32.xlu0 %v2301
    %v2303 = vpop.xlane.xlu0 %2302
    %v2304 = vsel %vm557, %v2295, 0.0
    %2305 = vadd.xlane.f32.xlu0 %v2304
    %v2306 = vpop.xlane.xlu0 %2305
    %v2307 = vsel %vm557, %v2297, 0.0
    %2308 = vadd.xlane.f32.xlu0 %v2307
    %v2309 = vpop.xlane.xlu0 %2308
    %v2310 = vrcp.pop %v2300
    %v2311 = vrcp.pop %v2303
    %v2312 = vrcp.pop %v2306
    %v2313 = vrcp.pop %v2309
    %v2314 = vmul.f32 %v2291, %v2310
    %v2315 = vmul.f32 %v2293, %v2311
    %v2316 = vmul.f32 %v2295, %v2312
    %v2317 = vmul.f32 %v2297, %v2313
    %v2318 = vpack.c.bf16 %v2315, %v2314
    %v2319 = vpack.c.bf16 %v2317, %v2316
    %v2320 = vpack.c.bf16 %v2161, %v2158
    %v2321 = vpack.c.bf16 %v2169, %v2166
    %v2323 = vsel %vm557, %v2318, 0
    %2325 = vmatprep.subr.bf16.mxu0 0
    %2326 = vmatpush1.bf16.msra.mxu0 %v2320
    %2327 = vmatprep.subr.bf16.mxu0 0
    %2328 = vmatpush1.bf16.msra.mxu0 0
    %2329 = vmatprep.subr.bf16.mxu0 0
    %2330 = vmatpush1.bf16.msra.mxu0 0
    %2331 = vmatprep.subr.bf16.mxu0 0
    %2332 = vmatpush1.bf16.msra.mxu0 0
    %2333 = vmatprep.subr.bf16.mxu0 0
    %2334 = vmatpush1.bf16.msra.mxu0 0
    %2335 = vmatprep.subr.bf16.mxu0 0
    %2336 = vmatpush1.bf16.msra.mxu0 0
    %2337 = vmatprep.subr.bf16.mxu0 0
    %2338 = vmatpush1.bf16.msra.mxu0 0
    %2339 = vmatprep.subr.bf16.mxu0 0
    %2340 = vmatpush1.bf16.msra.mxu0 0
    %2341 = vmatprep.subr.bf16.mxu0 0
    %2342 = vmatpush1.bf16.msra.mxu0 0
    %2343 = vmatprep.subr.bf16.mxu0 0
    %2344 = vmatpush1.bf16.msra.mxu0 0
    %2345 = vmatprep.subr.bf16.mxu0 0
    %2346 = vmatpush1.bf16.msra.mxu0 0
    %2347 = vmatprep.subr.bf16.mxu0 0
    %2348 = vmatpush1.bf16.msra.mxu0 0
    %2349 = vmatprep.subr.bf16.mxu0 0
    %2350 = vmatpush1.bf16.msra.mxu0 0
    %2351 = vmatprep.subr.bf16.mxu0 0
    %2352 = vmatpush1.bf16.msra.mxu0 0
    %2353 = vmatprep.subr.bf16.mxu0 0
    %2354 = vmatpush1.bf16.msra.mxu0 0
    %2355 = vmatprep.subr.bf16.mxu0 0
    %2356 = vmatpush1.bf16.msra.mxu0 0
    %2357 = vmatprep.mubr.bf16.mxu0 0
    %2358 = vmatmul.mubr.bf16.gmra.mrb[0].mxu0 %v2323
    %v2359 = vpop.f32.mrb[0].mxu0
    %v2360 = vadd.f32 0.0, %v2359
    %v2361 = vpop.f32.mrb[0].mxu0
    %v2362 = vpop.f32.mrb[0].mxu0
    %v2363 = vadd.f32 0.0, %v2362
    %v2364 = vpop.f32.mrb[0].mxu0
    %2365 = vdwg.mxu0
    %v2367 = vsel %vm557, %v2319, 0
    %2369 = vmatprep.subr.bf16.mxu0 0
    %2370 = vmatpush1.bf16.msra.mxu0 %v2321
    %2371 = vmatprep.subr.bf16.mxu0 0
    %2372 = vmatpush1.bf16.msra.mxu0 0
    %2373 = vmatprep.subr.bf16.mxu0 0
    %2374 = vmatpush1.bf16.msra.mxu0 0
    %2375 = vmatprep.subr.bf16.mxu0 0
    %2376 = vmatpush1.bf16.msra.mxu0 0
    %2377 = vmatprep.subr.bf16.mxu0 0
    %2378 = vmatpush1.bf16.msra.mxu0 0
    %2379 = vmatprep.subr.bf16.mxu0 0
    %2380 = vmatpush1.bf16.msra.mxu0 0
    %2381 = vmatprep.subr.bf16.mxu0 0
    %2382 = vmatpush1.bf16.msra.mxu0 0
    %2383 = vmatprep.subr.bf16.mxu0 0
    %2384 = vmatpush1.bf16.msra.mxu0 0
    %2385 = vmatprep.subr.bf16.mxu0 0
    %2386 = vmatpush1.bf16.msra.mxu0 0
    %2387 = vmatprep.subr.bf16.mxu0 0
    %2388 = vmatpush1.bf16.msra.mxu0 0
    %2389 = vmatprep.subr.bf16.mxu0 0
    %2390 = vmatpush1.bf16.msra.mxu0 0
    %2391 = vmatprep.subr.bf16.mxu0 0
    %2392 = vmatpush1.bf16.msra.mxu0 0
    %2393 = vmatprep.subr.bf16.mxu0 0
    %2394 = vmatpush1.bf16.msra.mxu0 0
    %2395 = vmatprep.subr.bf16.mxu0 0
    %2396 = vmatpush1.bf16.msra.mxu0 0
    %2397 = vmatprep.subr.bf16.mxu0 0
    %2398 = vmatpush1.bf16.msra.mxu0 0
    %2399 = vmatprep.subr.bf16.mxu0 0
    %2400 = vmatpush1.bf16.msra.mxu0 0
    %2401 = vmatprep.mubr.bf16.mxu0 0
    %2402 = vmatmul.mubr.bf16.gmra.mrb[0].mxu0 %v2367
    %v2403 = vpop.f32.mrb[0].mxu0
    %v2404 = vadd.f32 0.0, %v2403
    %v2405 = vpop.f32.mrb[0].mxu0
    %v2406 = vpop.f32.mrb[0].mxu0
    %v2407 = vadd.f32 0.0, %v2406
    %v2408 = vpop.f32.mrb[0].mxu0
    %2409 = vdwg.mxu0
    %v2410 = vpack.c.bf16 %v2363, %v2360
    %v2411 = vpack.c.bf16 %v2407, %v2404
    %v2414 = vunpack.c.l.b16 %v187
    %v2415 = vunpack.c.l.b16 %v188
    %v2416 = vpack.c.b16 %v2415, %v2414
    %v2419 = vsel %vm557, %v2410, 0
    %v2422 = vsel %vm557, %v2411, 0
    %2424 = vmatprep.subr.bf16.mxu0 0
    %2425 = vmatpush1.bf16.msra.mxu0 %v2416
    %2426 = vmatprep.subr.bf16.mxu0 0
    %2427 = vmatpush1.bf16.msra.mxu0 0
    %2428 = vmatprep.subr.bf16.mxu0 0
    %2429 = vmatpush1.bf16.msra.mxu0 0
    %2430 = vmatprep.subr.bf16.mxu0 0
    %2431 = vmatpush1.bf16.msra.mxu0 0
    %2432 = vmatprep.subr.bf16.mxu0 0
    %2433 = vmatpush1.bf16.msra.mxu0 0
    %2434 = vmatprep.subr.bf16.mxu0 0
    %2435 = vmatpush1.bf16.msra.mxu0 0
    %2436 = vmatprep.subr.bf16.mxu0 0
    %2437 = vmatpush1.bf16.msra.mxu0 0
    %2438 = vmatprep.subr.bf16.mxu0 0
    %2439 = vmatpush1.bf16.msra.mxu0 0
    %2440 = vmatprep.subr.bf16.mxu0 0
    %2441 = vmatpush1.bf16.msra.mxu0 0
    %2442 = vmatprep.subr.bf16.mxu0 0
    %2443 = vmatpush1.bf16.msra.mxu0 0
    %2444 = vmatprep.subr.bf16.mxu0 0
    %2445 = vmatpush1.bf16.msra.mxu0 0
    %2446 = vmatprep.subr.bf16.mxu0 0
    %2447 = vmatpush1.bf16.msra.mxu0 0
    %2448 = vmatprep.subr.bf16.mxu0 0
    %2449 = vmatpush1.bf16.msra.mxu0 0
    %2450 = vmatprep.subr.bf16.mxu0 0
    %2451 = vmatpush1.bf16.msra.mxu0 0
    %2452 = vmatprep.subr.bf16.mxu0 0
    %2453 = vmatpush1.bf16.msra.mxu0 0
    %2454 = vmatprep.subr.bf16.mxu0 0
    %2455 = vmatpush1.bf16.msra.mxu0 0
    %2456 = vmatprep.mubr.bf16.mxu0 0
    %2457 = vmatmul.mubr.bf16.gmra.mrb[0].mxu0 %v2419
    %v2458 = vpop.f32.mrb[0].mxu0
    %v2459 = vadd.f32 0.0, %v2458
    %v2460 = vpop.f32.mrb[0].mxu0
    %v2461 = vpop.f32.mrb[0].mxu0
    %v2462 = vadd.f32 0.0, %v2461
    %v2463 = vpop.f32.mrb[0].mxu0
    %2464 = vmatprep.mubr.bf16.mxu0 0
    %2465 = vmatmul.mubr.bf16.gmra.mrb[0].mxu0 %v2422
    %v2466 = vpop.f32.mrb[0].mxu0
    %v2467 = vadd.f32 0.0, %v2466
    %v2468 = vpop.f32.mrb[0].mxu0
    %v2469 = vpop.f32.mrb[0].mxu0
    %v2470 = vadd.f32 0.0, %v2469
    %v2471 = vpop.f32.mrb[0].mxu0
    %2472 = vdwg.mxu0
    %v2473 = vadd.f32 %v1931, %v2459
    %v2474 = vadd.f32 %v1932, %v2462
    %v2475 = vadd.f32 %v1933, %v2467
    %v2476 = vadd.f32 %v1934, %v2470
    %v2477 = vadd.f32 %v67, %v2473
    %v2478 = vadd.f32 %v68, %v2474
    %v2479 = vadd.f32 %v69, %v2475
    %v2480 = vadd.f32 %v70, %v2476
    %v2482 = vlaneseq
    %v2483 = vshrl.u32 %v2482, 7
    %v2484 = vsub.s32 0, %v2483
    %v2485 = vrot.slane %v189, %v2484
    %v2487 = vadd.f32 %v2477, %v2485
    %v2488 = vadd.f32 %v2478, %v2485
    %v2489 = vadd.f32 %v2479, %v2485
    %v2490 = vadd.f32 %v2480, %v2485
    %v2491 = vsel %vm234, %v2487, 0.0
    %2492 = vadd.xlane.f32.xlu0 %v2491
    %v2493 = vpop.xlane.xlu0 %2492
    %v2494 = vsel %vm234, %v2488, 0.0
    %2495 = vadd.xlane.f32.xlu0 %v2494
    %v2496 = vpop.xlane.xlu0 %2495
    %v2497 = vsel %vm234, %v2489, 0.0
    %2498 = vadd.xlane.f32.xlu0 %v2497
    %v2499 = vpop.xlane.xlu0 %2498
    %v2500 = vsel %vm234, %v2490, 0.0
    %2501 = vadd.xlane.f32.xlu0 %v2500
    %v2502 = vpop.xlane.xlu0 %2501
    %v2503 = vmul.f32 %v2493, %v247
    %v2504 = vmul.f32 %v2496, %v247
    %v2505 = vmul.f32 %v2499, %v247
    %v2506 = vmul.f32 %v2502, %v247
    %v2507 = vsub.f32 %v2487, %v2503
    %v2508 = vsub.f32 %v2488, %v2504
    %v2509 = vsub.f32 %v2489, %v2505
    %v2510 = vsub.f32 %v2490, %v2506
    %v2511 = vmul.f32 %v2507, %v2507
    %v2512 = vmul.f32 %v2508, %v2508
    %v2513 = vmul.f32 %v2509, %v2509
    %v2514 = vmul.f32 %v2510, %v2510
    %v2515 = vsel %vm234, %v2511, 0.0
    %2516 = vadd.xlane.f32.xlu0 %v2515
    %v2517 = vpop.xlane.xlu0 %2516
    %v2518 = vsel %vm234, %v2512, 0.0
    %2519 = vadd.xlane.f32.xlu0 %v2518
    %v2520 = vpop.xlane.xlu0 %2519
    %v2521 = vsel %vm234, %v2513, 0.0
    %2522 = vadd.xlane.f32.xlu0 %v2521
    %v2523 = vpop.xlane.xlu0 %2522
    %v2524 = vsel %vm234, %v2514, 0.0
    %2525 = vadd.xlane.f32.xlu0 %v2524
    %v2526 = vpop.xlane.xlu0 %2525
    %v2527 = vmul.f32 %v2517, %v247
    %v2528 = vmul.f32 %v2520, %v247
    %v2529 = vmul.f32 %v2523, %v247
    %v2530 = vmul.f32 %v2526, %v247
    %v2531 = vadd.f32 %v2527, 1e-06
    %v2532 = vadd.f32 %v2528, 1e-06
    %v2533 = vadd.f32 %v2529, 1e-06
    %v2534 = vadd.f32 %v2530, 1e-06
    %v2535 = vrsqrt.pop %v2531
    %v2536 = vrsqrt.pop %v2532
    %v2537 = vrsqrt.pop %v2533
    %v2538 = vrsqrt.pop %v2534
    %v2539 = vmul.f32 %v2507, %v2535
    %v2540 = vmul.f32 %v2508, %v2536
    %v2541 = vmul.f32 %v2509, %v2537
    %v2542 = vmul.f32 %v2510, %v2538
    %v2544 = vlaneseq
    %v2545 = vshrl.u32 %v2544, 7
    %v2546 = vsub.s32 0, %v2545
    %v2547 = vrot.slane %v190, %v2546
    %v2549 = vmul.f32 %v2539, %v2547
    %v2550 = vmul.f32 %v2540, %v2547
    %v2551 = vmul.f32 %v2541, %v2547
    %v2552 = vmul.f32 %v2542, %v2547
    %v2554 = vlaneseq
    %v2555 = vshrl.u32 %v2554, 7
    %v2556 = vsub.s32 0, %v2555
    %v2557 = vrot.slane %v191, %v2556
    %v2559 = vadd.f32 %v2549, %v2557
    %v2560 = vadd.f32 %v2550, %v2557
    %v2561 = vadd.f32 %v2551, %v2557
    %v2562 = vadd.f32 %v2552, %v2557
    %v2563 = vpack.c.bf16 %v2560, %v2559
    %v2564 = vpack.c.bf16 %v2562, %v2561
    %v2566 = vlaneseq
    %v2567 = vshrl.u32 %v2566, 7
    %v2568 = vsub.s32 0, %v2567
    %v2569 = vrot.slane %v200, %v2568
    %v2570 = vlaneseq
    %v2571 = vshrl.u32 %v2570, 7
    %v2572 = vsub.s32 1, %v2571
    %v2573 = vrot.slane %v200, %v2572
    %v2584 = vunpack.c.l.b16 %v192
    %v2585 = vunpack.c.h.b16 %v192
    %v2586 = vunpack.c.l.b16 %v193
    %v2587 = vunpack.c.h.b16 %v193
    %v2588 = vunpack.c.l.b16 %v194
    %v2589 = vunpack.c.h.b16 %v194
    %v2590 = vunpack.c.l.b16 %v195
    %v2591 = vunpack.c.h.b16 %v195
    %v2592 = vunpack.c.l.b16 %v196
    %v2593 = vunpack.c.h.b16 %v196
    %v2594 = vunpack.c.l.b16 %v197
    %v2595 = vunpack.c.h.b16 %v197
    %v2596 = vunpack.c.l.b16 %v198
    %v2597 = vunpack.c.h.b16 %v198
    %v2598 = vunpack.c.l.b16 %v199
    %v2599 = vunpack.c.h.b16 %v199
    %v2600 = vpack.c.b16 %v2586, %v2584
    %v2601 = vpack.c.b16 %v2587, %v2585
    %v2602 = vpack.c.b16 %v2590, %v2588
    %v2603 = vpack.c.b16 %v2591, %v2589
    %v2604 = vpack.c.b16 %v2594, %v2592
    %v2605 = vpack.c.b16 %v2595, %v2593
    %v2606 = vpack.c.b16 %v2598, %v2596
    %v2607 = vpack.c.b16 %v2599, %v2597
    %v2617 = vsel %vm234, %v2563, 0
    %v2620 = vsel %vm234, %v2564, 0
    %2622 = vmatprep.subr.bf16.mxu0 %v2601
    %2623 = vmatpush1.bf16.msra.mxu0 %v2600
    %2624 = vmatprep.subr.bf16.mxu0 %v2603
    %2625 = vmatpush1.bf16.msra.mxu0 %v2602
    %2626 = vmatprep.subr.bf16.mxu0 %v2605
    %2627 = vmatpush1.bf16.msra.mxu0 %v2604
    %2628 = vmatprep.subr.bf16.mxu0 %v2607
    %2629 = vmatpush1.bf16.msra.mxu0 %v2606
    %2630 = vmatprep.subr.bf16.mxu0 0
    %2631 = vmatpush1.bf16.msra.mxu0 0
    %2632 = vmatprep.subr.bf16.mxu0 0
    %2633 = vmatpush1.bf16.msra.mxu0 0
    %2634 = vmatprep.subr.bf16.mxu0 0
    %2635 = vmatpush1.bf16.msra.mxu0 0
    %2636 = vmatprep.subr.bf16.mxu0 0
    %2637 = vmatpush1.bf16.msra.mxu0 0
    %2638 = vmatprep.subr.bf16.mxu0 0
    %2639 = vmatpush1.bf16.msra.mxu0 0
    %2640 = vmatprep.subr.bf16.mxu0 0
    %2641 = vmatpush1.bf16.msra.mxu0 0
    %2642 = vmatprep.subr.bf16.mxu0 0
    %2643 = vmatpush1.bf16.msra.mxu0 0
    %2644 = vmatprep.subr.bf16.mxu0 0
    %2645 = vmatpush1.bf16.msra.mxu0 0
    %2646 = vmatprep.subr.bf16.mxu0 0
    %2647 = vmatpush1.bf16.msra.mxu0 0
    %2648 = vmatprep.subr.bf16.mxu0 0
    %2649 = vmatpush1.bf16.msra.mxu0 0
    %2650 = vmatprep.subr.bf16.mxu0 0
    %2651 = vmatpush1.bf16.msra.mxu0 0
    %2652 = vmatprep.subr.bf16.mxu0 0
    %2653 = vmatpush1.bf16.msra.mxu0 0
    %2654 = vmatprep.mubr.bf16.mxu0 0
    %2655 = vmatmul.mubr.bf16.gmra.mrb[0].mxu0 %v2617
    %v2656 = vpop.f32.mrb[0].mxu0
    %v2657 = vadd.f32 %v2569, %v2656
    %v2658 = vpop.f32.mrb[0].mxu0
    %v2659 = vadd.f32 %v2573, %v2658
    %v2660 = vpop.f32.mrb[0].mxu0
    %v2661 = vadd.f32 %v2569, %v2660
    %v2662 = vpop.f32.mrb[0].mxu0
    %v2663 = vadd.f32 %v2573, %v2662
    %2664 = vmatprep.mubr.bf16.mxu0 0
    %2665 = vmatmul.mubr.bf16.gmra.mrb[0].mxu0 %v2620
    %v2666 = vpop.f32.mrb[0].mxu0
    %v2667 = vadd.f32 %v2569, %v2666
    %v2668 = vpop.f32.mrb[0].mxu0
    %v2669 = vadd.f32 %v2573, %v2668
    %v2670 = vpop.f32.mrb[0].mxu0
    %v2671 = vadd.f32 %v2569, %v2670
    %v2672 = vpop.f32.mrb[0].mxu0
    %v2673 = vadd.f32 %v2573, %v2672
    %2674 = vdwg.mxu0
    %v2675 = vmul.f32 %v2657, 0.5
    %v2676 = vmul.f32 %v2659, 0.5
    %v2677 = vmul.f32 %v2661, 0.5
    %v2678 = vmul.f32 %v2663, 0.5
    %v2679 = vmul.f32 %v2667, 0.5
    %v2680 = vmul.f32 %v2669, 0.5
    %v2681 = vmul.f32 %v2671, 0.5
    %v2682 = vmul.f32 %v2673, 0.5
    %v2683 = vmul.f32 %v2657, 0.044715
    %v2684 = vmul.f32 %v2659, 0.044715
    %v2685 = vmul.f32 %v2661, 0.044715
    %v2686 = vmul.f32 %v2663, 0.044715
    %v2687 = vmul.f32 %v2667, 0.044715
    %v2688 = vmul.f32 %v2669, 0.044715
    %v2689 = vmul.f32 %v2671, 0.044715
    %v2690 = vmul.f32 %v2673, 0.044715
    %v2691 = vmul.f32 %v2683, %v2657
    %v2692 = vmul.f32 %v2684, %v2659
    %v2693 = vmul.f32 %v2685, %v2661
    %v2694 = vmul.f32 %v2686, %v2663
    %v2695 = vmul.f32 %v2687, %v2667
    %v2696 = vmul.f32 %v2688, %v2669
    %v2697 = vmul.f32 %v2689, %v2671
    %v2698 = vmul.f32 %v2690, %v2673
    %v2699 = vmul.f32 %v2691, %v2657
    %v2700 = vmul.f32 %v2692, %v2659
    %v2701 = vmul.f32 %v2693, %v2661
    %v2702 = vmul.f32 %v2694, %v2663
    %v2703 = vmul.f32 %v2695, %v2667
    %v2704 = vmul.f32 %v2696, %v2669
    %v2705 = vmul.f32 %v2697, %v2671
    %v2706 = vmul.f32 %v2698, %v2673
    %v2707 = vadd.f32 %v2657, %v2699
    %v2708 = vadd.f32 %v2659, %v2700
    %v2709 = vadd.f32 %v2661, %v2701
    %v2710 = vadd.f32 %v2663, %v2702
    %v2711 = vadd.f32 %v2667, %v2703
    %v2712 = vadd.f32 %v2669, %v2704
    %v2713 = vadd.f32 %v2671, %v2705
    %v2714 = vadd.f32 %v2673, %v2706
    %v2715 = vmul.f32 %v2707, 0.7978846
    %v2716 = vmul.f32 %v2708, 0.7978846
    %v2717 = vmul.f32 %v2709, 0.7978846
    %v2718 = vmul.f32 %v2710, 0.7978846
    %v2719 = vmul.f32 %v2711, 0.7978846
    %v2720 = vmul.f32 %v2712, 0.7978846
    %v2721 = vmul.f32 %v2713, 0.7978846
    %v2722 = vmul.f32 %v2714, 0.7978846
    %v2723 = vtanh.pop %v2715
    %v2724 = vtanh.pop %v2716
    %v2725 = vtanh.pop %v2717
    %v2726 = vtanh.pop %v2718
    %v2727 = vtanh.pop %v2719
    %v2728 = vtanh.pop %v2720
    %v2729 = vtanh.pop %v2721
    %v2730 = vtanh.pop %v2722
    %v2731 = vadd.f32 %v2723, 1.0
    %v2732 = vadd.f32 %v2724, 1.0
    %v2733 = vadd.f32 %v2725, 1.0
    %v2734 = vadd.f32 %v2726, 1.0
    %v2735 = vadd.f32 %v2727, 1.0
    %v2736 = vadd.f32 %v2728, 1.0
    %v2737 = vadd.f32 %v2729, 1.0
    %v2738 = vadd.f32 %v2730, 1.0
    %v2739 = vmul.f32 %v2675, %v2731
    %v2740 = vmul.f32 %v2676, %v2732
    %v2741 = vmul.f32 %v2677, %v2733
    %v2742 = vmul.f32 %v2678, %v2734
    %v2743 = vmul.f32 %v2679, %v2735
    %v2744 = vmul.f32 %v2680, %v2736
    %v2745 = vmul.f32 %v2681, %v2737
    %v2746 = vmul.f32 %v2682, %v2738
    %v2747 = vpack.c.bf16 %v2741, %v2739
    %v2748 = vpack.c.bf16 %v2742, %v2740
    %v2749 = vpack.c.bf16 %v2745, %v2743
    %v2750 = vpack.c.bf16 %v2746, %v2744
    %v2783 = vunpack.c.l.b16 %v201
    %v2784 = vunpack.c.l.b16 %v202
    %v2785 = vunpack.c.l.b16 %v203
    %v2786 = vunpack.c.l.b16 %v204
    %v2787 = vunpack.c.l.b16 %v205
    %v2788 = vunpack.c.l.b16 %v206
    %v2789 = vunpack.c.l.b16 %v207
    %v2790 = vunpack.c.l.b16 %v208
    %v2791 = vunpack.c.l.b16 %v209
    %v2792 = vunpack.c.l.b16 %v210
    %v2793 = vunpack.c.l.b16 %v211
    %v2794 = vunpack.c.l.b16 %v212
    %v2795 = vunpack.c.l.b16 %v213
    %v2796 = vunpack.c.l.b16 %v214
    %v2797 = vunpack.c.l.b16 %v215
    %v2798 = vunpack.c.l.b16 %v216
    %v2799 = vunpack.c.l.b16 %v217
    %v2800 = vunpack.c.l.b16 %v218
    %v2801 = vunpack.c.l.b16 %v219
    %v2802 = vunpack.c.l.b16 %v220
    %v2803 = vunpack.c.l.b16 %v221
    %v2804 = vunpack.c.l.b16 %v222
    %v2805 = vunpack.c.l.b16 %v223
    %v2806 = vunpack.c.l.b16 %v224
    %v2807 = vunpack.c.l.b16 %v225
    %v2808 = vunpack.c.l.b16 %v226
    %v2809 = vunpack.c.l.b16 %v227
    %v2810 = vunpack.c.l.b16 %v228
    %v2811 = vunpack.c.l.b16 %v229
    %v2812 = vunpack.c.l.b16 %v230
    %v2813 = vunpack.c.l.b16 %v231
    %v2814 = vunpack.c.l.b16 %v232
    %v2815 = vpack.c.b16 %v2784, %v2783
    %v2816 = vpack.c.b16 %v2786, %v2785
    %v2817 = vpack.c.b16 %v2788, %v2787
    %v2818 = vpack.c.b16 %v2790, %v2789
    %v2819 = vpack.c.b16 %v2792, %v2791
    %v2820 = vpack.c.b16 %v2794, %v2793
    %v2821 = vpack.c.b16 %v2796, %v2795
    %v2822 = vpack.c.b16 %v2798, %v2797
    %v2823 = vpack.c.b16 %v2800, %v2799
    %v2824 = vpack.c.b16 %v2802, %v2801
    %v2825 = vpack.c.b16 %v2804, %v2803
    %v2826 = vpack.c.b16 %v2806, %v2805
    %v2827 = vpack.c.b16 %v2808, %v2807
    %v2828 = vpack.c.b16 %v2810, %v2809
    %v2829 = vpack.c.b16 %v2812, %v2811
    %v2830 = vpack.c.b16 %v2814, %v2813
    %2847 = vmatprep.subr.bf16.mxu0 0
    %2848 = vmatpush1.bf16.msra.mxu0 %v2815
    %2849 = vmatprep.subr.bf16.mxu0 0
    %2850 = vmatpush1.bf16.msra.mxu0 %v2816
    %2851 = vmatprep.subr.bf16.mxu0 0
    %2852 = vmatpush1.bf16.msra.mxu0 %v2817
    %2853 = vmatprep.subr.bf16.mxu0 0
    %2854 = vmatpush1.bf16.msra.mxu0 %v2818
    %2855 = vmatprep.subr.bf16.mxu0 0
    %2856 = vmatpush1.bf16.msra.mxu0 %v2819
    %2857 = vmatprep.subr.bf16.mxu0 0
    %2858 = vmatpush1.bf16.msra.mxu0 %v2820
    %2859 = vmatprep.subr.bf16.mxu0 0
    %2860 = vmatpush1.bf16.msra.mxu0 %v2821
    %2861 = vmatprep.subr.bf16.mxu0 0
    %2862 = vmatpush1.bf16.msra.mxu0 %v2822
    %2863 = vmatprep.subr.bf16.mxu0 0
    %2864 = vmatpush1.bf16.msra.mxu0 %v2823
    %2865 = vmatprep.subr.bf16.mxu0 0
    %2866 = vmatpush1.bf16.msra.mxu0 %v2824
    %2867 = vmatprep.subr.bf16.mxu0 0
    %2868 = vmatpush1.bf16.msra.mxu0 %v2825
    %2869 = vmatprep.subr.bf16.mxu0 0
    %2870 = vmatpush1.bf16.msra.mxu0 %v2826
    %2871 = vmatprep.subr.bf16.mxu0 0
    %2872 = vmatpush1.bf16.msra.mxu0 %v2827
    %2873 = vmatprep.subr.bf16.mxu0 0
    %2874 = vmatpush1.bf16.msra.mxu0 %v2828
    %2875 = vmatprep.subr.bf16.mxu0 0
    %2876 = vmatpush1.bf16.msra.mxu0 %v2829
    %2877 = vmatprep.subr.bf16.mxu0 0
    %2878 = vmatpush1.bf16.msra.mxu0 %v2830
    %2879 = vmatprep.mubr.bf16.mxu0 %v2748
    %2880 = vmatmul.mubr.bf16.gmra.mrb[0].mxu0 %v2747
    %v2881 = vpop.f32.mrb[0].mxu0
    %v2882 = vadd.f32 0.0, %v2881
    %v2883 = vpop.f32.mrb[0].mxu0
    %v2884 = vpop.f32.mrb[0].mxu0
    %v2885 = vadd.f32 0.0, %v2884
    %v2886 = vpop.f32.mrb[0].mxu0
    %2887 = vmatprep.mubr.bf16.mxu0 %v2750
    %2888 = vmatmul.mubr.bf16.gmra.mrb[0].mxu0 %v2749
    %v2889 = vpop.f32.mrb[0].mxu0
    %v2890 = vadd.f32 0.0, %v2889
    %v2891 = vpop.f32.mrb[0].mxu0
    %v2892 = vpop.f32.mrb[0].mxu0
    %v2893 = vadd.f32 0.0, %v2892
    %v2894 = vpop.f32.mrb[0].mxu0
    %2895 = vdwg.mxu0
    %v2896 = vadd.f32 %v2487, %v2882
    %v2897 = vadd.f32 %v2488, %v2885
    %v2898 = vadd.f32 %v2489, %v2890
    %v2899 = vadd.f32 %v2490, %v2893
    %v2901 = vlaneseq
    %v2902 = vshrl.u32 %v2901, 7
    %v2903 = vsub.s32 0, %v2902
    %v2904 = vrot.slane %v233, %v2903
    %v2906 = vadd.f32 %v2896, %v2904
    %v2907 = vadd.f32 %v2897, %v2904
    %v2908 = vadd.f32 %v2898, %v2904
    %v2909 = vadd.f32 %v2899, %v2904
    %s2910 = scalar_lea.vmem %s2, 1
    %v2911 = vld [vmem:[%s2910] sm:$0x1]
    %s2912 = scalar_lea.vmem %s3, 1
    %v2913 = vld [vmem:[%s2912] sm:$0x1]
    %s2914 = scalar_lea.vmem %s4, 128
    %v2915 = vld [vmem:[%s2914] sm:$0xf]
    %v2916 = vld [vmem:[%s2914 + $0x4] sm:$0xf]
    %v2917 = vld [vmem:[%s2914 + $0x8] sm:$0xf]
    %v2918 = vld [vmem:[%s2914 + $0xc] sm:$0xf]
    %v2919 = vld [vmem:[%s2914 + $0x10] sm:$0xf]
    %v2920 = vld [vmem:[%s2914 + $0x14] sm:$0xf]
    %v2921 = vld [vmem:[%s2914 + $0x18] sm:$0xf]
    %v2922 = vld [vmem:[%s2914 + $0x1c] sm:$0xf]
    %v2923 = vld [vmem:[%s2914 + $0x20] sm:$0xf]
    %v2924 = vld [vmem:[%s2914 + $0x24] sm:$0xf]
    %v2925 = vld [vmem:[%s2914 + $0x28] sm:$0xf]
    %v2926 = vld [vmem:[%s2914 + $0x2c] sm:$0xf]
    %v2927 = vld [vmem:[%s2914 + $0x30] sm:$0xf]
    %v2928 = vld [vmem:[%s2914 + $0x34] sm:$0xf]
    %v2929 = vld [vmem:[%s2914 + $0x38] sm:$0xf]
    %v2930 = vld [vmem:[%s2914 + $0x3c] sm:$0xf]
    %v2931 = vld [vmem:[%s2914 + $0x40] sm:$0xf]
    %v2932 = vld [vmem:[%s2914 + $0x44] sm:$0xf]
    %v2933 = vld [vmem:[%s2914 + $0x48] sm:$0xf]
    %v2934 = vld [vmem:[%s2914 + $0x4c] sm:$0xf]
    %v2935 = vld [vmem:[%s2914 + $0x50] sm:$0xf]
    %v2936 = vld [vmem:[%s2914 + $0x54] sm:$0xf]
    %v2937 = vld [vmem:[%s2914 + $0x58] sm:$0xf]
    %v2938 = vld [vmem:[%s2914 + $0x5c] sm:$0xf]
    %v2939 = vld [vmem:[%s2914 + $0x60] sm:$0xf]
    %v2940 = vld [vmem:[%s2914 + $0x64] sm:$0xf]
    %v2941 = vld [vmem:[%s2914 + $0x68] sm:$0xf]
    %v2942 = vld [vmem:[%s2914 + $0x6c] sm:$0xf]
    %v2943 = vld [vmem:[%s2914 + $0x70] sm:$0xf]
    %v2944 = vld [vmem:[%s2914 + $0x74] sm:$0xf]
    %v2945 = vld [vmem:[%s2914 + $0x78] sm:$0xf]
    %v2946 = vld [vmem:[%s2914 + $0x7c] sm:$0xf]
    %s2947 = scalar_lea.vmem %s5, 128
    %v2948 = vld [vmem:[%s2947] sm:$0xf]
    %v2949 = vld [vmem:[%s2947 + $0x4] sm:$0xf]
    %v2950 = vld [vmem:[%s2947 + $0x8] sm:$0xf]
    %v2951 = vld [vmem:[%s2947 + $0xc] sm:$0xf]
    %v2952 = vld [vmem:[%s2947 + $0x10] sm:$0xf]
    %v2953 = vld [vmem:[%s2947 + $0x14] sm:$0xf]
    %v2954 = vld [vmem:[%s2947 + $0x18] sm:$0xf]
    %v2955 = vld [vmem:[%s2947 + $0x1c] sm:$0xf]
    %v2956 = vld [vmem:[%s2947 + $0x20] sm:$0xf]
    %v2957 = vld [vmem:[%s2947 + $0x24] sm:$0xf]
    %v2958 = vld [vmem:[%s2947 + $0x28] sm:$0xf]
    %v2959 = vld [vmem:[%s2947 + $0x2c] sm:$0xf]
    %v2960 = vld [vmem:[%s2947 + $0x30] sm:$0xf]
    %v2961 = vld [vmem:[%s2947 + $0x34] sm:$0xf]
    %v2962 = vld [vmem:[%s2947 + $0x38] sm:$0xf]
    %v2963 = vld [vmem:[%s2947 + $0x3c] sm:$0xf]
    %v2964 = vld [vmem:[%s2947 + $0x40] sm:$0xf]
    %v2965 = vld [vmem:[%s2947 + $0x44] sm:$0xf]
    %v2966 = vld [vmem:[%s2947 + $0x48] sm:$0xf]
    %v2967 = vld [vmem:[%s2947 + $0x4c] sm:$0xf]
    %v2968 = vld [vmem:[%s2947 + $0x50] sm:$0xf]
    %v2969 = vld [vmem:[%s2947 + $0x54] sm:$0xf]
    %v2970 = vld [vmem:[%s2947 + $0x58] sm:$0xf]
    %v2971 = vld [vmem:[%s2947 + $0x5c] sm:$0xf]
    %v2972 = vld [vmem:[%s2947 + $0x60] sm:$0xf]
    %v2973 = vld [vmem:[%s2947 + $0x64] sm:$0xf]
    %v2974 = vld [vmem:[%s2947 + $0x68] sm:$0xf]
    %v2975 = vld [vmem:[%s2947 + $0x6c] sm:$0xf]
    %v2976 = vld [vmem:[%s2947 + $0x70] sm:$0xf]
    %v2977 = vld [vmem:[%s2947 + $0x74] sm:$0xf]
    %v2978 = vld [vmem:[%s2947 + $0x78] sm:$0xf]
    %v2979 = vld [vmem:[%s2947 + $0x7c] sm:$0xf]
    %s2980 = scalar_lea.vmem %s6, 128
    %v2981 = vld [vmem:[%s2980] sm:$0xf]
    %v2982 = vld [vmem:[%s2980 + $0x4] sm:$0xf]
    %v2983 = vld [vmem:[%s2980 + $0x8] sm:$0xf]
    %v2984 = vld [vmem:[%s2980 + $0xc] sm:$0xf]
    %v2985 = vld [vmem:[%s2980 + $0x10] sm:$0xf]
    %v2986 = vld [vmem:[%s2980 + $0x14] sm:$0xf]
    %v2987 = vld [vmem:[%s2980 + $0x18] sm:$0xf]
    %v2988 = vld [vmem:[%s2980 + $0x1c] sm:$0xf]
    %v2989 = vld [vmem:[%s2980 + $0x20] sm:$0xf]
    %v2990 = vld [vmem:[%s2980 + $0x24] sm:$0xf]
    %v2991 = vld [vmem:[%s2980 + $0x28] sm:$0xf]
    %v2992 = vld [vmem:[%s2980 + $0x2c] sm:$0xf]
    %v2993 = vld [vmem:[%s2980 + $0x30] sm:$0xf]
    %v2994 = vld [vmem:[%s2980 + $0x34] sm:$0xf]
    %v2995 = vld [vmem:[%s2980 + $0x38] sm:$0xf]
    %v2996 = vld [vmem:[%s2980 + $0x3c] sm:$0xf]
    %v2997 = vld [vmem:[%s2980 + $0x40] sm:$0xf]
    %v2998 = vld [vmem:[%s2980 + $0x44] sm:$0xf]
    %v2999 = vld [vmem:[%s2980 + $0x48] sm:$0xf]
    %v3000 = vld [vmem:[%s2980 + $0x4c] sm:$0xf]
    %v3001 = vld [vmem:[%s2980 + $0x50] sm:$0xf]
    %v3002 = vld [vmem:[%s2980 + $0x54] sm:$0xf]
    %v3003 = vld [vmem:[%s2980 + $0x58] sm:$0xf]
    %v3004 = vld [vmem:[%s2980 + $0x5c] sm:$0xf]
    %v3005 = vld [vmem:[%s2980 + $0x60] sm:$0xf]
    %v3006 = vld [vmem:[%s2980 + $0x64] sm:$0xf]
    %v3007 = vld [vmem:[%s2980 + $0x68] sm:$0xf]
    %v3008 = vld [vmem:[%s2980 + $0x6c] sm:$0xf]
    %v3009 = vld [vmem:[%s2980 + $0x70] sm:$0xf]
    %v3010 = vld [vmem:[%s2980 + $0x74] sm:$0xf]
    %v3011 = vld [vmem:[%s2980 + $0x78] sm:$0xf]
    %v3012 = vld [vmem:[%s2980 + $0x7c] sm:$0xf]
    %s3013 = scalar_lea.vmem %s7, 4
    %v3014 = vld [vmem:[%s3013] sm:$0x1]
    %v3015 = vld [vmem:[%s3013 + $0x1] sm:$0x1]
    %v3016 = vld [vmem:[%s3013 + $0x2] sm:$0x1]
    %v3017 = vld [vmem:[%s3013 + $0x3] sm:$0x1]
    %s3018 = scalar_lea.vmem %s8, 4
    %v3019 = vld [vmem:[%s3018] sm:$0x1]
    %v3020 = vld [vmem:[%s3018 + $0x1] sm:$0x1]
    %v3021 = vld [vmem:[%s3018 + $0x2] sm:$0x1]
    %v3022 = vld [vmem:[%s3018 + $0x3] sm:$0x1]
    %s3023 = scalar_lea.vmem %s9, 4
    %v3024 = vld [vmem:[%s3023] sm:$0x1]
    %v3025 = vld [vmem:[%s3023 + $0x1] sm:$0x1]
    %v3026 = vld [vmem:[%s3023 + $0x2] sm:$0x1]
    %v3027 = vld [vmem:[%s3023 + $0x3] sm:$0x1]
    %s3028 = scalar_lea.vmem %s10, 32
    %v3029 = vld [vmem:[%s3028] sm:$0xf]
    %v3030 = vld [vmem:[%s3028 + $0x4] sm:$0xf]
    %v3031 = vld [vmem:[%s3028 + $0x8] sm:$0xf]
    %v3032 = vld [vmem:[%s3028 + $0xc] sm:$0xf]
    %v3033 = vld [vmem:[%s3028 + $0x10] sm:$0xf]
    %v3034 = vld [vmem:[%s3028 + $0x14] sm:$0xf]
    %v3035 = vld [vmem:[%s3028 + $0x18] sm:$0xf]
    %v3036 = vld [vmem:[%s3028 + $0x1c] sm:$0xf]
    %s3037 = scalar_lea.vmem %s11, 1
    %v3038 = vld [vmem:[%s3037] sm:$0x1]
    %s3039 = scalar_lea.vmem %s12, 1
    %v3040 = vld [vmem:[%s3039] sm:$0x1]
    %s3041 = scalar_lea.vmem %s13, 1
    %v3042 = vld [vmem:[%s3041] sm:$0x1]
    %s3043 = scalar_lea.vmem %s14, 64
    %v3044 = vld [vmem:[%s3043] sm:$0xff]
    %v3045 = vld [vmem:[%s3043 + $0x8] sm:$0xff]
    %v3046 = vld [vmem:[%s3043 + $0x10] sm:$0xff]
    %v3047 = vld [vmem:[%s3043 + $0x18] sm:$0xff]
    %v3048 = vld [vmem:[%s3043 + $0x20] sm:$0xff]
    %v3049 = vld [vmem:[%s3043 + $0x28] sm:$0xff]
    %v3050 = vld [vmem:[%s3043 + $0x30] sm:$0xff]
    %v3051 = vld [vmem:[%s3043 + $0x38] sm:$0xff]
    %s3052 = scalar_lea.vmem %s15, 2
    %v3053 = vld [vmem:[%s3052] sm:$0x3]
    %s3054 = scalar_lea.vmem %s16, 128
    %v3055 = vld [vmem:[%s3054] sm:$0xf]
    %v3056 = vld [vmem:[%s3054 + $0x4] sm:$0xf]
    %v3057 = vld [vmem:[%s3054 + $0x8] sm:$0xf]
    %v3058 = vld [vmem:[%s3054 + $0xc] sm:$0xf]
    %v3059 = vld [vmem:[%s3054 + $0x10] sm:$0xf]
    %v3060 = vld [vmem:[%s3054 + $0x14] sm:$0xf]
    %v3061 = vld [vmem:[%s3054 + $0x18] sm:$0xf]
    %v3062 = vld [vmem:[%s3054 + $0x1c] sm:$0xf]
    %v3063 = vld [vmem:[%s3054 + $0x20] sm:$0xf]
    %v3064 = vld [vmem:[%s3054 + $0x24] sm:$0xf]
    %v3065 = vld [vmem:[%s3054 + $0x28] sm:$0xf]
    %v3066 = vld [vmem:[%s3054 + $0x2c] sm:$0xf]
    %v3067 = vld [vmem:[%s3054 + $0x30] sm:$0xf]
    %v3068 = vld [vmem:[%s3054 + $0x34] sm:$0xf]
    %v3069 = vld [vmem:[%s3054 + $0x38] sm:$0xf]
    %v3070 = vld [vmem:[%s3054 + $0x3c] sm:$0xf]
    %v3071 = vld [vmem:[%s3054 + $0x40] sm:$0xf]
    %v3072 = vld [vmem:[%s3054 + $0x44] sm:$0xf]
    %v3073 = vld [vmem:[%s3054 + $0x48] sm:$0xf]
    %v3074 = vld [vmem:[%s3054 + $0x4c] sm:$0xf]
    %v3075 = vld [vmem:[%s3054 + $0x50] sm:$0xf]
    %v3076 = vld [vmem:[%s3054 + $0x54] sm:$0xf]
    %v3077 = vld [vmem:[%s3054 + $0x58] sm:$0xf]
    %v3078 = vld [vmem:[%s3054 + $0x5c] sm:$0xf]
    %v3079 = vld [vmem:[%s3054 + $0x60] sm:$0xf]
    %v3080 = vld [vmem:[%s3054 + $0x64] sm:$0xf]
    %v3081 = vld [vmem:[%s3054 + $0x68] sm:$0xf]
    %v3082 = vld [vmem:[%s3054 + $0x6c] sm:$0xf]
    %v3083 = vld [vmem:[%s3054 + $0x70] sm:$0xf]
    %v3084 = vld [vmem:[%s3054 + $0x74] sm:$0xf]
    %v3085 = vld [vmem:[%s3054 + $0x78] sm:$0xf]
    %v3086 = vld [vmem:[%s3054 + $0x7c] sm:$0xf]
    %s3087 = scalar_lea.vmem %s17, 1
    %v3088 = vld [vmem:[%s3087] sm:$0x1]
    %v3089 = vsel %vm234, %v2906, 0.0
    %3090 = vadd.xlane.f32.xlu0 %v3089
    %v3091 = vpop.xlane.xlu0 %3090
    %v3092 = vsel %vm234, %v2907, 0.0
    %3093 = vadd.xlane.f32.xlu0 %v3092
    %v3094 = vpop.xlane.xlu0 %3093
    %v3095 = vsel %vm234, %v2908, 0.0
    %3096 = vadd.xlane.f32.xlu0 %v3095
    %v3097 = vpop.xlane.xlu0 %3096
    %v3098 = vsel %vm234, %v2909, 0.0
    %3099 = vadd.xlane.f32.xlu0 %v3098
    %v3100 = vpop.xlane.xlu0 %3099
    %v3101 = vmul.f32 %v3091, %v247
    %v3102 = vmul.f32 %v3094, %v247
    %v3103 = vmul.f32 %v3097, %v247
    %v3104 = vmul.f32 %v3100, %v247
    %v3105 = vsub.f32 %v2906, %v3101
    %v3106 = vsub.f32 %v2907, %v3102
    %v3107 = vsub.f32 %v2908, %v3103
    %v3108 = vsub.f32 %v2909, %v3104
    %v3109 = vmul.f32 %v3105, %v3105
    %v3110 = vmul.f32 %v3106, %v3106
    %v3111 = vmul.f32 %v3107, %v3107
    %v3112 = vmul.f32 %v3108, %v3108
    %v3113 = vsel %vm234, %v3109, 0.0
    %3114 = vadd.xlane.f32.xlu0 %v3113
    %v3115 = vpop.xlane.xlu0 %3114
    %v3116 = vsel %vm234, %v3110, 0.0
    %3117 = vadd.xlane.f32.xlu0 %v3116
    %v3118 = vpop.xlane.xlu0 %3117
    %v3119 = vsel %vm234, %v3111, 0.0
    %3120 = vadd.xlane.f32.xlu0 %v3119
    %v3121 = vpop.xlane.xlu0 %3120
    %v3122 = vsel %vm234, %v3112, 0.0
    %3123 = vadd.xlane.f32.xlu0 %v3122
    %v3124 = vpop.xlane.xlu0 %3123
    %v3125 = vmul.f32 %v3115, %v247
    %v3126 = vmul.f32 %v3118, %v247
    %v3127 = vmul.f32 %v3121, %v247
    %v3128 = vmul.f32 %v3124, %v247
    %v3129 = vadd.f32 %v3125, 1e-06
    %v3130 = vadd.f32 %v3126, 1e-06
    %v3131 = vadd.f32 %v3127, 1e-06
    %v3132 = vadd.f32 %v3128, 1e-06
    %v3133 = vrsqrt.pop %v3129
    %v3134 = vrsqrt.pop %v3130
    %v3135 = vrsqrt.pop %v3131
    %v3136 = vrsqrt.pop %v3132
    %v3137 = vmul.f32 %v3105, %v3133
    %v3138 = vmul.f32 %v3106, %v3134
    %v3139 = vmul.f32 %v3107, %v3135
    %v3140 = vmul.f32 %v3108, %v3136
    %v3142 = vlaneseq
    %v3143 = vshrl.u32 %v3142, 7
    %v3144 = vsub.s32 0, %v3143
    %v3145 = vrot.slane %v2911, %v3144
    %v3147 = vmul.f32 %v3137, %v3145
    %v3148 = vmul.f32 %v3138, %v3145
    %v3149 = vmul.f32 %v3139, %v3145
    %v3150 = vmul.f32 %v3140, %v3145
    %v3152 = vlaneseq
    %v3153 = vshrl.u32 %v3152, 7
    %v3154 = vsub.s32 0, %v3153
    %v3155 = vrot.slane %v2913, %v3154
    %v3157 = vadd.f32 %v3147, %v3155
    %v3158 = vadd.f32 %v3148, %v3155
    %v3159 = vadd.f32 %v3149, %v3155
    %v3160 = vadd.f32 %v3150, %v3155
    %v3161 = vpack.c.bf16 %v3158, %v3157
    %v3162 = vpack.c.bf16 %v3160, %v3159
    %v3164 = vlaneseq
    %v3165 = vshrl.u32 %v3164, 7
    %v3166 = vsub.s32 0, %v3165
    %v3167 = vrot.slane %v3014, %v3166
    %v3177 = vunpack.c.l.b16 %v2915
    %v3178 = vunpack.c.l.b16 %v2916
    %v3179 = vunpack.c.l.b16 %v2917
    %v3180 = vunpack.c.l.b16 %v2918
    %v3181 = vunpack.c.l.b16 %v2919
    %v3182 = vunpack.c.l.b16 %v2920
    %v3183 = vunpack.c.l.b16 %v2921
    %v3184 = vunpack.c.l.b16 %v2922
    %v3185 = vpack.c.b16 %v3178, %v3177
    %v3186 = vpack.c.b16 %v3180, %v3179
    %v3187 = vpack.c.b16 %v3182, %v3181
    %v3188 = vpack.c.b16 %v3184, %v3183
    %v3194 = vsel %vm234, %v3161, 0
    %v3197 = vsel %vm234, %v3162, 0
    %3199 = vmatprep.subr.bf16.mxu0 0
    %3200 = vmatpush1.bf16.msra.mxu0 %v3185
    %3201 = vmatprep.subr.bf16.mxu0 0
    %3202 = vmatpush1.bf16.msra.mxu0 %v3186
    %3203 = vmatprep.subr.bf16.mxu0 0
    %3204 = vmatpush1.bf16.msra.mxu0 %v3187
    %3205 = vmatprep.subr.bf16.mxu0 0
    %3206 = vmatpush1.bf16.msra.mxu0 %v3188
    %3207 = vmatprep.subr.bf16.mxu0 0
    %3208 = vmatpush1.bf16.msra.mxu0 0
    %3209 = vmatprep.subr.bf16.mxu0 0
    %3210 = vmatpush1.bf16.msra.mxu0 0
    %3211 = vmatprep.subr.bf16.mxu0 0
    %3212 = vmatpush1.bf16.msra.mxu0 0
    %3213 = vmatprep.subr.bf16.mxu0 0
    %3214 = vmatpush1.bf16.msra.mxu0 0
    %3215 = vmatprep.subr.bf16.mxu0 0
    %3216 = vmatpush1.bf16.msra.mxu0 0
    %3217 = vmatprep.subr.bf16.mxu0 0
    %3218 = vmatpush1.bf16.msra.mxu0 0
    %3219 = vmatprep.subr.bf16.mxu0 0
    %3220 = vmatpush1.bf16.msra.mxu0 0
    %3221 = vmatprep.subr.bf16.mxu0 0
    %3222 = vmatpush1.bf16.msra.mxu0 0
    %3223 = vmatprep.subr.bf16.mxu0 0
    %3224 = vmatpush1.bf16.msra.mxu0 0
    %3225 = vmatprep.subr.bf16.mxu0 0
    %3226 = vmatpush1.bf16.msra.mxu0 0
    %3227 = vmatprep.subr.bf16.mxu0 0
    %3228 = vmatpush1.bf16.msra.mxu0 0
    %3229 = vmatprep.subr.bf16.mxu0 0
    %3230 = vmatpush1.bf16.msra.mxu0 0
    %3231 = vmatprep.mubr.bf16.mxu0 0
    %3232 = vmatmul.mubr.bf16.gmra.mrb[0].mxu0 %v3194
    %v3233 = vpop.f32.mrb[0].mxu0
    %v3234 = vadd.f32 %v3167, %v3233
    %v3235 = vpop.f32.mrb[0].mxu0
    %v3236 = vpop.f32.mrb[0].mxu0
    %v3237 = vadd.f32 %v3167, %v3236
    %v3238 = vpop.f32.mrb[0].mxu0
    %3239 = vmatprep.mubr.bf16.mxu0 0
    %3240 = vmatmul.mubr.bf16.gmra.mrb[0].mxu0 %v3197
    %v3241 = vpop.f32.mrb[0].mxu0
    %v3242 = vadd.f32 %v3167, %v3241
    %v3243 = vpop.f32.mrb[0].mxu0
    %v3244 = vpop.f32.mrb[0].mxu0
    %v3245 = vadd.f32 %v3167, %v3244
    %v3246 = vpop.f32.mrb[0].mxu0
    %3247 = vdwg.mxu0
    %v3249 = vlaneseq
    %v3250 = vshrl.u32 %v3249, 7
    %v3251 = vsub.s32 0, %v3250
    %v3252 = vrot.slane %v3019, %v3251
    %v3262 = vunpack.c.l.b16 %v2948
    %v3263 = vunpack.c.l.b16 %v2949
    %v3264 = vunpack.c.l.b16 %v2950
    %v3265 = vunpack.c.l.b16 %v2951
    %v3266 = vunpack.c.l.b16 %v2952
    %v3267 = vunpack.c.l.b16 %v2953
    %v3268 = vunpack.c.l.b16 %v2954
    %v3269 = vunpack.c.l.b16 %v2955
    %v3270 = vpack.c.b16 %v3263, %v3262
    %v3271 = vpack.c.b16 %v3265, %v3264
    %v3272 = vpack.c.b16 %v3267, %v3266
    %v3273 = vpack.c.b16 %v3269, %v3268
    %3278 = vmatprep.subr.bf16.mxu0 0
    %3279 = vmatpush1.bf16.msra.mxu0 %v3270
    %3280 = vmatprep.subr.bf16.mxu0 0
    %3281 = vmatpush1.bf16.msra.mxu0 %v3271
    %3282 = vmatprep.subr.bf16.mxu0 0
    %3283 = vmatpush1.bf16.msra.mxu0 %v3272
    %3284 = vmatprep.subr.bf16.mxu0 0
    %3285 = vmatpush1.bf16.msra.mxu0 %v3273
    %3286 = vmatprep.subr.bf16.mxu0 0
    %3287 = vmatpush1.bf16.msra.mxu0 0
    %3288 = vmatprep.subr.bf16.mxu0 0
    %3289 = vmatpush1.bf16.msra.mxu0 0
    %3290 = vmatprep.subr.bf16.mxu0 0
    %3291 = vmatpush1.bf16.msra.mxu0 0
    %3292 = vmatprep.subr.bf16.mxu0 0
    %3293 = vmatpush1.bf16.msra.mxu0 0
    %3294 = vmatprep.subr.bf16.mxu0 0
    %3295 = vmatpush1.bf16.msra.mxu0 0
    %3296 = vmatprep.subr.bf16.mxu0 0
    %3297 = vmatpush1.bf16.msra.mxu0 0
    %3298 = vmatprep.subr.bf16.mxu0 0
    %3299 = vmatpush1.bf16.msra.mxu0 0
    %3300 = vmatprep.subr.bf16.mxu0 0
    %3301 = vmatpush1.bf16.msra.mxu0 0
    %3302 = vmatprep.subr.bf16.mxu0 0
    %3303 = vmatpush1.bf16.msra.mxu0 0
    %3304 = vmatprep.subr.bf16.mxu0 0
    %3305 = vmatpush1.bf16.msra.mxu0 0
    %3306 = vmatprep.subr.bf16.mxu0 0
    %3307 = vmatpush1.bf16.msra.mxu0 0
    %3308 = vmatprep.subr.bf16.mxu0 0
    %3309 = vmatpush1.bf16.msra.mxu0 0
    %3310 = vmatprep.mubr.bf16.mxu0 0
    %3311 = vmatmul.mubr.bf16.gmra.mrb[0].mxu0 %v3194
    %v3312 = vpop.f32.mrb[0].mxu0
    %v3313 = vadd.f32 %v3252, %v3312
    %v3314 = vpop.f32.mrb[0].mxu0
    %v3315 = vpop.f32.mrb[0].mxu0
    %v3316 = vadd.f32 %v3252, %v3315
    %v3317 = vpop.f32.mrb[0].mxu0
    %3318 = vmatprep.mubr.bf16.mxu0 0
    %3319 = vmatmul.mubr.bf16.gmra.mrb[0].mxu0 %v3197
    %v3320 = vpop.f32.mrb[0].mxu0
    %v3321 = vadd.f32 %v3252, %v3320
    %v3322 = vpop.f32.mrb[0].mxu0
    %v3323 = vpop.f32.mrb[0].mxu0
    %v3324 = vadd.f32 %v3252, %v3323
    %v3325 = vpop.f32.mrb[0].mxu0
    %3326 = vdwg.mxu0
    %v3328 = vlaneseq
    %v3329 = vshrl.u32 %v3328, 7
    %v3330 = vsub.s32 0, %v3329
    %v3331 = vrot.slane %v3024, %v3330
    %v3341 = vunpack.c.l.b16 %v2981
    %v3342 = vunpack.c.l.b16 %v2982
    %v3343 = vunpack.c.l.b16 %v2983
    %v3344 = vunpack.c.l.b16 %v2984
    %v3345 = vunpack.c.l.b16 %v2985
    %v3346 = vunpack.c.l.b16 %v2986
    %v3347 = vunpack.c.l.b16 %v2987
    %v3348 = vunpack.c.l.b16 %v2988
    %v3349 = vpack.c.b16 %v3342, %v3341
    %v3350 = vpack.c.b16 %v3344, %v3343
    %v3351 = vpack.c.b16 %v3346, %v3345
    %v3352 = vpack.c.b16 %v3348, %v3347
    %3357 = vmatprep.subr.bf16.mxu0 0
    %3358 = vmatpush1.bf16.msra.mxu0 %v3349
    %3359 = vmatprep.subr.bf16.mxu0 0
    %3360 = vmatpush1.bf16.msra.mxu0 %v3350
    %3361 = vmatprep.subr.bf16.mxu0 0
    %3362 = vmatpush1.bf16.msra.mxu0 %v3351
    %3363 = vmatprep.subr.bf16.mxu0 0
    %3364 = vmatpush1.bf16.msra.mxu0 %v3352
    %3365 = vmatprep.subr.bf16.mxu0 0
    %3366 = vmatpush1.bf16.msra.mxu0 0
    %3367 = vmatprep.subr.bf16.mxu0 0
    %3368 = vmatpush1.bf16.msra.mxu0 0
    %3369 = vmatprep.subr.bf16.mxu0 0
    %3370 = vmatpush1.bf16.msra.mxu0 0
    %3371 = vmatprep.subr.bf16.mxu0 0
    %3372 = vmatpush1.bf16.msra.mxu0 0
    %3373 = vmatprep.subr.bf16.mxu0 0
    %3374 = vmatpush1.bf16.msra.mxu0 0
    %3375 = vmatprep.subr.bf16.mxu0 0
    %3376 = vmatpush1.bf16.msra.mxu0 0
    %3377 = vmatprep.subr.bf16.mxu0 0
    %3378 = vmatpush1.bf16.msra.mxu0 0
    %3379 = vmatprep.subr.bf16.mxu0 0
    %3380 = vmatpush1.bf16.msra.mxu0 0
    %3381 = vmatprep.subr.bf16.mxu0 0
    %3382 = vmatpush1.bf16.msra.mxu0 0
    %3383 = vmatprep.subr.bf16.mxu0 0
    %3384 = vmatpush1.bf16.msra.mxu0 0
    %3385 = vmatprep.subr.bf16.mxu0 0
    %3386 = vmatpush1.bf16.msra.mxu0 0
    %3387 = vmatprep.subr.bf16.mxu0 0
    %3388 = vmatpush1.bf16.msra.mxu0 0
    %3389 = vmatprep.mubr.bf16.mxu0 0
    %3390 = vmatmul.mubr.bf16.gmra.mrb[0].mxu0 %v3194
    %v3391 = vpop.f32.mrb[0].mxu0
    %v3392 = vadd.f32 %v3331, %v3391
    %v3393 = vpop.f32.mrb[0].mxu0
    %v3394 = vpop.f32.mrb[0].mxu0
    %v3395 = vadd.f32 %v3331, %v3394
    %v3396 = vpop.f32.mrb[0].mxu0
    %3397 = vmatprep.mubr.bf16.mxu0 0
    %3398 = vmatmul.mubr.bf16.gmra.mrb[0].mxu0 %v3197
    %v3399 = vpop.f32.mrb[0].mxu0
    %v3400 = vadd.f32 %v3331, %v3399
    %v3401 = vpop.f32.mrb[0].mxu0
    %v3402 = vpop.f32.mrb[0].mxu0
    %v3403 = vadd.f32 %v3331, %v3402
    %v3404 = vpop.f32.mrb[0].mxu0
    %3405 = vdwg.mxu0
    %v3406 = vpack.c.bf16 %v3237, %v3234
    %v3407 = vpack.c.bf16 %v3245, %v3242
    %v3408 = vpack.c.bf16 %v3316, %v3313
    %v3409 = vpack.c.bf16 %v3324, %v3321
    %v3411 = vsel %vm557, %v3406, 0
    %v3414 = vsel %vm557, %v3408, 0
    %3416 = vmatprep.subr.bf16.mxu0 0
    %3417 = vmatpush1.bf16.xpose.msra.mxu0 %v3414
    %3418 = vmatprep.subr.bf16.mxu0 0
    %3419 = vmatpush1.bf16.xpose.msra.mxu0 0
    %3420 = vmatprep.subr.bf16.mxu0 0
    %3421 = vmatpush1.bf16.xpose.msra.mxu0 0
    %3422 = vmatprep.subr.bf16.mxu0 0
    %3423 = vmatpush1.bf16.xpose.msra.mxu0 0
    %3424 = vmatprep.subr.bf16.mxu0 0
    %3425 = vmatpush1.bf16.xpose.msra.mxu0 0
    %3426 = vmatprep.subr.bf16.mxu0 0
    %3427 = vmatpush1.bf16.xpose.msra.mxu0 0
    %3428 = vmatprep.subr.bf16.mxu0 0
    %3429 = vmatpush1.bf16.xpose.msra.mxu0 0
    %3430 = vmatprep.subr.bf16.mxu0 0
    %3431 = vmatpush1.bf16.xpose.msra.mxu0 0
    %3432 = vmatprep.subr.bf16.mxu0 0
    %3433 = vmatpush1.bf16.xpose.msra.mxu0 0
    %3434 = vmatprep.subr.bf16.mxu0 0
    %3435 = vmatpush1.bf16.xpose.msra.mxu0 0
    %3436 = vmatprep.subr.bf16.mxu0 0
    %3437 = vmatpush1.bf16.xpose.msra.mxu0 0
    %3438 = vmatprep.subr.bf16.mxu0 0
    %3439 = vmatpush1.bf16.xpose.msra.mxu0 0
    %3440 = vmatprep.subr.bf16.mxu0 0
    %3441 = vmatpush1.bf16.xpose.msra.mxu0 0
    %3442 = vmatprep.subr.bf16.mxu0 0
    %3443 = vmatpush1.bf16.xpose.msra.mxu0 0
    %3444 = vmatprep.subr.bf16.mxu0 0
    %3445 = vmatpush1.bf16.xpose.msra.mxu0 0
    %3446 = vmatprep.subr.bf16.mxu0 0
    %3447 = vmatpush1.bf16.xpose.msra.mxu0 0
    %3448 = vmatprep.mubr.bf16.mxu0 0
    %3449 = vmatmul.mubr.bf16.gmra.mrb[0].mxu0 %v3411
    %v3450 = vpop.f32.mrb[0].mxu0
    %v3451 = vadd.f32 0.0, %v3450
    %v3452 = vpop.f32.mrb[0].mxu0
    %v3453 = vpop.f32.mrb[0].mxu0
    %v3454 = vadd.f32 0.0, %v3453
    %v3455 = vpop.f32.mrb[0].mxu0
    %3456 = vdwg.mxu0
    %v3458 = vsel %vm557, %v3407, 0
    %v3461 = vsel %vm557, %v3409, 0
    %3463 = vmatprep.subr.bf16.mxu0 0
    %3464 = vmatpush1.bf16.xpose.msra.mxu0 %v3461
    %3465 = vmatprep.subr.bf16.mxu0 0
    %3466 = vmatpush1.bf16.xpose.msra.mxu0 0
    %3467 = vmatprep.subr.bf16.mxu0 0
    %3468 = vmatpush1.bf16.xpose.msra.mxu0 0
    %3469 = vmatprep.subr.bf16.mxu0 0
    %3470 = vmatpush1.bf16.xpose.msra.mxu0 0
    %3471 = vmatprep.subr.bf16.mxu0 0
    %3472 = vmatpush1.bf16.xpose.msra.mxu0 0
    %3473 = vmatprep.subr.bf16.mxu0 0
    %3474 = vmatpush1.bf16.xpose.msra.mxu0 0
    %3475 = vmatprep.subr.bf16.mxu0 0
    %3476 = vmatpush1.bf16.xpose.msra.mxu0 0
    %3477 = vmatprep.subr.bf16.mxu0 0
    %3478 = vmatpush1.bf16.xpose.msra.mxu0 0
    %3479 = vmatprep.subr.bf16.mxu0 0
    %3480 = vmatpush1.bf16.xpose.msra.mxu0 0
    %3481 = vmatprep.subr.bf16.mxu0 0
    %3482 = vmatpush1.bf16.xpose.msra.mxu0 0
    %3483 = vmatprep.subr.bf16.mxu0 0
    %3484 = vmatpush1.bf16.xpose.msra.mxu0 0
    %3485 = vmatprep.subr.bf16.mxu0 0
    %3486 = vmatpush1.bf16.xpose.msra.mxu0 0
    %3487 = vmatprep.subr.bf16.mxu0 0
    %3488 = vmatpush1.bf16.xpose.msra.mxu0 0
    %3489 = vmatprep.subr.bf16.mxu0 0
    %3490 = vmatpush1.bf16.xpose.msra.mxu0 0
    %3491 = vmatprep.subr.bf16.mxu0 0
    %3492 = vmatpush1.bf16.xpose.msra.mxu0 0
    %3493 = vmatprep.subr.bf16.mxu0 0
    %3494 = vmatpush1.bf16.xpose.msra.mxu0 0
    %3495 = vmatprep.mubr.bf16.mxu0 0
    %3496 = vmatmul.mubr.bf16.gmra.mrb[0].mxu0 %v3458
    %v3497 = vpop.f32.mrb[0].mxu0
    %v3498 = vadd.f32 0.0, %v3497
    %v3499 = vpop.f32.mrb[0].mxu0
    %v3500 = vpop.f32.mrb[0].mxu0
    %v3501 = vadd.f32 0.0, %v3500
    %v3502 = vpop.f32.mrb[0].mxu0
    %3503 = vdwg.mxu0
    %v3504 = vmul.f32 %v3451, 0.25
    %v3505 = vmul.f32 %v3454, 0.25
    %v3506 = vmul.f32 %v3498, 0.25
    %v3507 = vmul.f32 %v3501, 0.25
    %v3508 = vsel %vm557, %v3504, -inf
    %3509 = vmax.xlane.f32.xlu0 %v3508
    %v3510 = vpop.xlane.xlu0 %3509
    %v3511 = vsel %vm557, %v3505, -inf
    %3512 = vmax.xlane.f32.xlu0 %v3511
    %v3513 = vpop.xlane.xlu0 %3512
    %v3514 = vsel %vm557, %v3506, -inf
    %3515 = vmax.xlane.f32.xlu0 %v3514
    %v3516 = vpop.xlane.xlu0 %3515
    %v3517 = vsel %vm557, %v3507, -inf
    %3518 = vmax.xlane.f32.xlu0 %v3517
    %v3519 = vpop.xlane.xlu0 %3518
    %v3520 = vsub.f32 %v3504, %v3510
    %v3521 = vsub.f32 %v3505, %v3513
    %v3522 = vsub.f32 %v3506, %v3516
    %v3523 = vsub.f32 %v3507, %v3519
    %v3524 = vmul.f32 %v3520, 1.442695
    %v3525 = vpow.pop %v3524
    %v3526 = vmul.f32 %v3521, 1.442695
    %v3527 = vpow.pop %v3526
    %v3528 = vmul.f32 %v3522, 1.442695
    %v3529 = vpow.pop %v3528
    %v3530 = vmul.f32 %v3523, 1.442695
    %v3531 = vpow.pop %v3530
    %v3532 = vsel %vm557, %v3525, 0.0
    %3533 = vadd.xlane.f32.xlu0 %v3532
    %v3534 = vpop.xlane.xlu0 %3533
    %v3535 = vsel %vm557, %v3527, 0.0
    %3536 = vadd.xlane.f32.xlu0 %v3535
    %v3537 = vpop.xlane.xlu0 %3536
    %v3538 = vsel %vm557, %v3529, 0.0
    %3539 = vadd.xlane.f32.xlu0 %v3538
    %v3540 = vpop.xlane.xlu0 %3539
    %v3541 = vsel %vm557, %v3531, 0.0
    %3542 = vadd.xlane.f32.xlu0 %v3541
    %v3543 = vpop.xlane.xlu0 %3542
    %v3544 = vrcp.pop %v3534
    %v3545 = vrcp.pop %v3537
    %v3546 = vrcp.pop %v3540
    %v3547 = vrcp.pop %v3543
    %v3548 = vmul.f32 %v3525, %v3544
    %v3549 = vmul.f32 %v3527, %v3545
    %v3550 = vmul.f32 %v3529, %v3546
    %v3551 = vmul.f32 %v3531, %v3547
    %v3552 = vpack.c.bf16 %v3549, %v3548
    %v3553 = vpack.c.bf16 %v3551, %v3550
    %v3554 = vpack.c.bf16 %v3395, %v3392
    %v3555 = vpack.c.bf16 %v3403, %v3400
    %v3557 = vsel %vm557, %v3552, 0
    %3559 = vmatprep.subr.bf16.mxu0 0
    %3560 = vmatpush1.bf16.msra.mxu0 %v3554
    %3561 = vmatprep.subr.bf16.mxu0 0
    %3562 = vmatpush1.bf16.msra.mxu0 0
    %3563 = vmatprep.subr.bf16.mxu0 0
    %3564 = vmatpush1.bf16.msra.mxu0 0
    %3565 = vmatprep.subr.bf16.mxu0 0
    %3566 = vmatpush1.bf16.msra.mxu0 0
    %3567 = vmatprep.subr.bf16.mxu0 0
    %3568 = vmatpush1.bf16.msra.mxu0 0
    %3569 = vmatprep.subr.bf16.mxu0 0
    %3570 = vmatpush1.bf16.msra.mxu0 0
    %3571 = vmatprep.subr.bf16.mxu0 0
    %3572 = vmatpush1.bf16.msra.mxu0 0
    %3573 = vmatprep.subr.bf16.mxu0 0
    %3574 = vmatpush1.bf16.msra.mxu0 0
    %3575 = vmatprep.subr.bf16.mxu0 0
    %3576 = vmatpush1.bf16.msra.mxu0 0
    %3577 = vmatprep.subr.bf16.mxu0 0
    %3578 = vmatpush1.bf16.msra.mxu0 0
    %3579 = vmatprep.subr.bf16.mxu0 0
    %3580 = vmatpush1.bf16.msra.mxu0 0
    %3581 = vmatprep.subr.bf16.mxu0 0
    %3582 = vmatpush1.bf16.msra.mxu0 0
    %3583 = vmatprep.subr.bf16.mxu0 0
    %3584 = vmatpush1.bf16.msra.mxu0 0
    %3585 = vmatprep.subr.bf16.mxu0 0
    %3586 = vmatpush1.bf16.msra.mxu0 0
    %3587 = vmatprep.subr.bf16.mxu0 0
    %3588 = vmatpush1.bf16.msra.mxu0 0
    %3589 = vmatprep.subr.bf16.mxu0 0
    %3590 = vmatpush1.bf16.msra.mxu0 0
    %3591 = vmatprep.mubr.bf16.mxu0 0
    %3592 = vmatmul.mubr.bf16.gmra.mrb[0].mxu0 %v3557
    %v3593 = vpop.f32.mrb[0].mxu0
    %v3594 = vadd.f32 0.0, %v3593
    %v3595 = vpop.f32.mrb[0].mxu0
    %v3596 = vpop.f32.mrb[0].mxu0
    %v3597 = vadd.f32 0.0, %v3596
    %v3598 = vpop.f32.mrb[0].mxu0
    %3599 = vdwg.mxu0
    %v3601 = vsel %vm557, %v3553, 0
    %3603 = vmatprep.subr.bf16.mxu0 0
    %3604 = vmatpush1.bf16.msra.mxu0 %v3555
    %3605 = vmatprep.subr.bf16.mxu0 0
    %3606 = vmatpush1.bf16.msra.mxu0 0
    %3607 = vmatprep.subr.bf16.mxu0 0
    %3608 = vmatpush1.bf16.msra.mxu0 0
    %3609 = vmatprep.subr.bf16.mxu0 0
    %3610 = vmatpush1.bf16.msra.mxu0 0
    %3611 = vmatprep.subr.bf16.mxu0 0
    %3612 = vmatpush1.bf16.msra.mxu0 0
    %3613 = vmatprep.subr.bf16.mxu0 0
    %3614 = vmatpush1.bf16.msra.mxu0 0
    %3615 = vmatprep.subr.bf16.mxu0 0
    %3616 = vmatpush1.bf16.msra.mxu0 0
    %3617 = vmatprep.subr.bf16.mxu0 0
    %3618 = vmatpush1.bf16.msra.mxu0 0
    %3619 = vmatprep.subr.bf16.mxu0 0
    %3620 = vmatpush1.bf16.msra.mxu0 0
    %3621 = vmatprep.subr.bf16.mxu0 0
    %3622 = vmatpush1.bf16.msra.mxu0 0
    %3623 = vmatprep.subr.bf16.mxu0 0
    %3624 = vmatpush1.bf16.msra.mxu0 0
    %3625 = vmatprep.subr.bf16.mxu0 0
    %3626 = vmatpush1.bf16.msra.mxu0 0
    %3627 = vmatprep.subr.bf16.mxu0 0
    %3628 = vmatpush1.bf16.msra.mxu0 0
    %3629 = vmatprep.subr.bf16.mxu0 0
    %3630 = vmatpush1.bf16.msra.mxu0 0
    %3631 = vmatprep.subr.bf16.mxu0 0
    %3632 = vmatpush1.bf16.msra.mxu0 0
    %3633 = vmatprep.subr.bf16.mxu0 0
    %3634 = vmatpush1.bf16.msra.mxu0 0
    %3635 = vmatprep.mubr.bf16.mxu0 0
    %3636 = vmatmul.mubr.bf16.gmra.mrb[0].mxu0 %v3601
    %v3637 = vpop.f32.mrb[0].mxu0
    %v3638 = vadd.f32 0.0, %v3637
    %v3639 = vpop.f32.mrb[0].mxu0
    %v3640 = vpop.f32.mrb[0].mxu0
    %v3641 = vadd.f32 0.0, %v3640
    %v3642 = vpop.f32.mrb[0].mxu0
    %3643 = vdwg.mxu0
    %v3644 = vpack.c.bf16 %v3597, %v3594
    %v3645 = vpack.c.bf16 %v3641, %v3638
    %v3647 = vlaneseq
    %v3648 = vshrl.u32 %v3647, 7
    %v3649 = vsub.s32 0, %v3648
    %v3650 = vrot.slane %v3015, %v3649
    %v3660 = vunpack.c.l.b16 %v2923
    %v3661 = vunpack.c.l.b16 %v2924
    %v3662 = vunpack.c.l.b16 %v2925
    %v3663 = vunpack.c.l.b16 %v2926
    %v3664 = vunpack.c.l.b16 %v2927
    %v3665 = vunpack.c.l.b16 %v2928
    %v3666 = vunpack.c.l.b16 %v2929
    %v3667 = vunpack.c.l.b16 %v2930
    %v3668 = vpack.c.b16 %v3661, %v3660
    %v3669 = vpack.c.b16 %v3663, %v3662
    %v3670 = vpack.c.b16 %v3665, %v3664
    %v3671 = vpack.c.b16 %v3667, %v3666
    %3676 = vmatprep.subr.bf16.mxu0 0
    %3677 = vmatpush1.bf16.msra.mxu0 %v3668
    %3678 = vmatprep.subr.bf16.mxu0 0
    %3679 = vmatpush1.bf16.msra.mxu0 %v3669
    %3680 = vmatprep.subr.bf16.mxu0 0
    %3681 = vmatpush1.bf16.msra.mxu0 %v3670
    %3682 = vmatprep.subr.bf16.mxu0 0
    %3683 = vmatpush1.bf16.msra.mxu0 %v3671
    %3684 = vmatprep.subr.bf16.mxu0 0
    %3685 = vmatpush1.bf16.msra.mxu0 0
    %3686 = vmatprep.subr.bf16.mxu0 0
    %3687 = vmatpush1.bf16.msra.mxu0 0
    %3688 = vmatprep.subr.bf16.mxu0 0
    %3689 = vmatpush1.bf16.msra.mxu0 0
    %3690 = vmatprep.subr.bf16.mxu0 0
    %3691 = vmatpush1.bf16.msra.mxu0 0
    %3692 = vmatprep.subr.bf16.mxu0 0
    %3693 = vmatpush1.bf16.msra.mxu0 0
    %3694 = vmatprep.subr.bf16.mxu0 0
    %3695 = vmatpush1.bf16.msra.mxu0 0
    %3696 = vmatprep.subr.bf16.mxu0 0
    %3697 = vmatpush1.bf16.msra.mxu0 0
    %3698 = vmatprep.subr.bf16.mxu0 0
    %3699 = vmatpush1.bf16.msra.mxu0 0
    %3700 = vmatprep.subr.bf16.mxu0 0
    %3701 = vmatpush1.bf16.msra.mxu0 0
    %3702 = vmatprep.subr.bf16.mxu0 0
    %3703 = vmatpush1.bf16.msra.mxu0 0
    %3704 = vmatprep.subr.bf16.mxu0 0
    %3705 = vmatpush1.bf16.msra.mxu0 0
    %3706 = vmatprep.subr.bf16.mxu0 0
    %3707 = vmatpush1.bf16.msra.mxu0 0
    %3708 = vmatprep.mubr.bf16.mxu0 0
    %3709 = vmatmul.mubr.bf16.gmra.mrb[0].mxu0 %v3194
    %v3710 = vpop.f32.mrb[0].mxu0
    %v3711 = vadd.f32 %v3650, %v3710
    %v3712 = vpop.f32.mrb[0].mxu0
    %v3713 = vpop.f32.mrb[0].mxu0
    %v3714 = vadd.f32 %v3650, %v3713
    %v3715 = vpop.f32.mrb[0].mxu0
    %3716 = vmatprep.mubr.bf16.mxu0 0
    %3717 = vmatmul.mubr.bf16.gmra.mrb[0].mxu0 %v3197
    %v3718 = vpop.f32.mrb[0].mxu0
    %v3719 = vadd.f32 %v3650, %v3718
    %v3720 = vpop.f32.mrb[0].mxu0
    %v3721 = vpop.f32.mrb[0].mxu0
    %v3722 = vadd.f32 %v3650, %v3721
    %v3723 = vpop.f32.mrb[0].mxu0
    %3724 = vdwg.mxu0
    %v3726 = vlaneseq
    %v3727 = vshrl.u32 %v3726, 7
    %v3728 = vsub.s32 0, %v3727
    %v3729 = vrot.slane %v3020, %v3728
    %v3739 = vunpack.c.l.b16 %v2956
    %v3740 = vunpack.c.l.b16 %v2957
    %v3741 = vunpack.c.l.b16 %v2958
    %v3742 = vunpack.c.l.b16 %v2959
    %v3743 = vunpack.c.l.b16 %v2960
    %v3744 = vunpack.c.l.b16 %v2961
    %v3745 = vunpack.c.l.b16 %v2962
    %v3746 = vunpack.c.l.b16 %v2963
    %v3747 = vpack.c.b16 %v3740, %v3739
    %v3748 = vpack.c.b16 %v3742, %v3741
    %v3749 = vpack.c.b16 %v3744, %v3743
    %v3750 = vpack.c.b16 %v3746, %v3745
    %3755 = vmatprep.subr.bf16.mxu0 0
    %3756 = vmatpush1.bf16.msra.mxu0 %v3747
    %3757 = vmatprep.subr.bf16.mxu0 0
    %3758 = vmatpush1.bf16.msra.mxu0 %v3748
    %3759 = vmatprep.subr.bf16.mxu0 0
    %3760 = vmatpush1.bf16.msra.mxu0 %v3749
    %3761 = vmatprep.subr.bf16.mxu0 0
    %3762 = vmatpush1.bf16.msra.mxu0 %v3750
    %3763 = vmatprep.subr.bf16.mxu0 0
    %3764 = vmatpush1.bf16.msra.mxu0 0
    %3765 = vmatprep.subr.bf16.mxu0 0
    %3766 = vmatpush1.bf16.msra.mxu0 0
    %3767 = vmatprep.subr.bf16.mxu0 0
    %3768 = vmatpush1.bf16.msra.mxu0 0
    %3769 = vmatprep.subr.bf16.mxu0 0
    %3770 = vmatpush1.bf16.msra.mxu0 0
    %3771 = vmatprep.subr.bf16.mxu0 0
    %3772 = vmatpush1.bf16.msra.mxu0 0
    %3773 = vmatprep.subr.bf16.mxu0 0
    %3774 = vmatpush1.bf16.msra.mxu0 0
    %3775 = vmatprep.subr.bf16.mxu0 0
    %3776 = vmatpush1.bf16.msra.mxu0 0
    %3777 = vmatprep.subr.bf16.mxu0 0
    %3778 = vmatpush1.bf16.msra.mxu0 0
    %3779 = vmatprep.subr.bf16.mxu0 0
    %3780 = vmatpush1.bf16.msra.mxu0 0
    %3781 = vmatprep.subr.bf16.mxu0 0
    %3782 = vmatpush1.bf16.msra.mxu0 0
    %3783 = vmatprep.subr.bf16.mxu0 0
    %3784 = vmatpush1.bf16.msra.mxu0 0
    %3785 = vmatprep.subr.bf16.mxu0 0
    %3786 = vmatpush1.bf16.msra.mxu0 0
    %3787 = vmatprep.mubr.bf16.mxu0 0
    %3788 = vmatmul.mubr.bf16.gmra.mrb[0].mxu0 %v3194
    %v3789 = vpop.f32.mrb[0].mxu0
    %v3790 = vadd.f32 %v3729, %v3789
    %v3791 = vpop.f32.mrb[0].mxu0
    %v3792 = vpop.f32.mrb[0].mxu0
    %v3793 = vadd.f32 %v3729, %v3792
    %v3794 = vpop.f32.mrb[0].mxu0
    %3795 = vmatprep.mubr.bf16.mxu0 0
    %3796 = vmatmul.mubr.bf16.gmra.mrb[0].mxu0 %v3197
    %v3797 = vpop.f32.mrb[0].mxu0
    %v3798 = vadd.f32 %v3729, %v3797
    %v3799 = vpop.f32.mrb[0].mxu0
    %v3800 = vpop.f32.mrb[0].mxu0
    %v3801 = vadd.f32 %v3729, %v3800
    %v3802 = vpop.f32.mrb[0].mxu0
    %3803 = vdwg.mxu0
    %v3805 = vlaneseq
    %v3806 = vshrl.u32 %v3805, 7
    %v3807 = vsub.s32 0, %v3806
    %v3808 = vrot.slane %v3025, %v3807
    %v3818 = vunpack.c.l.b16 %v2989
    %v3819 = vunpack.c.l.b16 %v2990
    %v3820 = vunpack.c.l.b16 %v2991
    %v3821 = vunpack.c.l.b16 %v2992
    %v3822 = vunpack.c.l.b16 %v2993
    %v3823 = vunpack.c.l.b16 %v2994
    %v3824 = vunpack.c.l.b16 %v2995
    %v3825 = vunpack.c.l.b16 %v2996
    %v3826 = vpack.c.b16 %v3819, %v3818
    %v3827 = vpack.c.b16 %v3821, %v3820
    %v3828 = vpack.c.b16 %v3823, %v3822
    %v3829 = vpack.c.b16 %v3825, %v3824
    %3834 = vmatprep.subr.bf16.mxu0 0
    %3835 = vmatpush1.bf16.msra.mxu0 %v3826
    %3836 = vmatprep.subr.bf16.mxu0 0
    %3837 = vmatpush1.bf16.msra.mxu0 %v3827
    %3838 = vmatprep.subr.bf16.mxu0 0
    %3839 = vmatpush1.bf16.msra.mxu0 %v3828
    %3840 = vmatprep.subr.bf16.mxu0 0
    %3841 = vmatpush1.bf16.msra.mxu0 %v3829
    %3842 = vmatprep.subr.bf16.mxu0 0
    %3843 = vmatpush1.bf16.msra.mxu0 0
    %3844 = vmatprep.subr.bf16.mxu0 0
    %3845 = vmatpush1.bf16.msra.mxu0 0
    %3846 = vmatprep.subr.bf16.mxu0 0
    %3847 = vmatpush1.bf16.msra.mxu0 0
    %3848 = vmatprep.subr.bf16.mxu0 0
    %3849 = vmatpush1.bf16.msra.mxu0 0
    %3850 = vmatprep.subr.bf16.mxu0 0
    %3851 = vmatpush1.bf16.msra.mxu0 0
    %3852 = vmatprep.subr.bf16.mxu0 0
    %3853 = vmatpush1.bf16.msra.mxu0 0
    %3854 = vmatprep.subr.bf16.mxu0 0
    %3855 = vmatpush1.bf16.msra.mxu0 0
    %3856 = vmatprep.subr.bf16.mxu0 0
    %3857 = vmatpush1.bf16.msra.mxu0 0
    %3858 = vmatprep.subr.bf16.mxu0 0
    %3859 = vmatpush1.bf16.msra.mxu0 0
    %3860 = vmatprep.subr.bf16.mxu0 0
    %3861 = vmatpush1.bf16.msra.mxu0 0
    %3862 = vmatprep.subr.bf16.mxu0 0
    %3863 = vmatpush1.bf16.msra.mxu0 0
    %3864 = vmatprep.subr.bf16.mxu0 0
    %3865 = vmatpush1.bf16.msra.mxu0 0
    %3866 = vmatprep.mubr.bf16.mxu0 0
    %3867 = vmatmul.mubr.bf16.gmra.mrb[0].mxu0 %v3194
    %v3868 = vpop.f32.mrb[0].mxu0
    %v3869 = vadd.f32 %v3808, %v3868
    %v3870 = vpop.f32.mrb[0].mxu0
    %v3871 = vpop.f32.mrb[0].mxu0
    %v3872 = vadd.f32 %v3808, %v3871
    %v3873 = vpop.f32.mrb[0].mxu0
    %3874 = vmatprep.mubr.bf16.mxu0 0
    %3875 = vmatmul.mubr.bf16.gmra.mrb[0].mxu0 %v3197
    %v3876 = vpop.f32.mrb[0].mxu0
    %v3877 = vadd.f32 %v3808, %v3876
    %v3878 = vpop.f32.mrb[0].mxu0
    %v3879 = vpop.f32.mrb[0].mxu0
    %v3880 = vadd.f32 %v3808, %v3879
    %v3881 = vpop.f32.mrb[0].mxu0
    %3882 = vdwg.mxu0
    %v3883 = vpack.c.bf16 %v3714, %v3711
    %v3884 = vpack.c.bf16 %v3722, %v3719
    %v3885 = vpack.c.bf16 %v3793, %v3790
    %v3886 = vpack.c.bf16 %v3801, %v3798
    %v3888 = vsel %vm557, %v3883, 0
    %v3891 = vsel %vm557, %v3885, 0
    %3893 = vmatprep.subr.bf16.mxu0 0
    %3894 = vmatpush1.bf16.xpose.msra.mxu0 %v3891
    %3895 = vmatprep.subr.bf16.mxu0 0
    %3896 = vmatpush1.bf16.xpose.msra.mxu0 0
    %3897 = vmatprep.subr.bf16.mxu0 0
    %3898 = vmatpush1.bf16.xpose.msra.mxu0 0
    %3899 = vmatprep.subr.bf16.mxu0 0
    %3900 = vmatpush1.bf16.xpose.msra.mxu0 0
    %3901 = vmatprep.subr.bf16.mxu0 0
    %3902 = vmatpush1.bf16.xpose.msra.mxu0 0
    %3903 = vmatprep.subr.bf16.mxu0 0
    %3904 = vmatpush1.bf16.xpose.msra.mxu0 0
    %3905 = vmatprep.subr.bf16.mxu0 0
    %3906 = vmatpush1.bf16.xpose.msra.mxu0 0
    %3907 = vmatprep.subr.bf16.mxu0 0
    %3908 = vmatpush1.bf16.xpose.msra.mxu0 0
    %3909 = vmatprep.subr.bf16.mxu0 0
    %3910 = vmatpush1.bf16.xpose.msra.mxu0 0
    %3911 = vmatprep.subr.bf16.mxu0 0
    %3912 = vmatpush1.bf16.xpose.msra.mxu0 0
    %3913 = vmatprep.subr.bf16.mxu0 0
    %3914 = vmatpush1.bf16.xpose.msra.mxu0 0
    %3915 = vmatprep.subr.bf16.mxu0 0
    %3916 = vmatpush1.bf16.xpose.msra.mxu0 0
    %3917 = vmatprep.subr.bf16.mxu0 0
    %3918 = vmatpush1.bf16.xpose.msra.mxu0 0
    %3919 = vmatprep.subr.bf16.mxu0 0
    %3920 = vmatpush1.bf16.xpose.msra.mxu0 0
    %3921 = vmatprep.subr.bf16.mxu0 0
    %3922 = vmatpush1.bf16.xpose.msra.mxu0 0
    %3923 = vmatprep.subr.bf16.mxu0 0
    %3924 = vmatpush1.bf16.xpose.msra.mxu0 0
    %3925 = vmatprep.mubr.bf16.mxu0 0
    %3926 = vmatmul.mubr.bf16.gmra.mrb[0].mxu0 %v3888
    %v3927 = vpop.f32.mrb[0].mxu0
    %v3928 = vadd.f32 0.0, %v3927
    %v3929 = vpop.f32.mrb[0].mxu0
    %v3930 = vpop.f32.mrb[0].mxu0
    %v3931 = vadd.f32 0.0, %v3930
    %v3932 = vpop.f32.mrb[0].mxu0
    %3933 = vdwg.mxu0
    %v3935 = vsel %vm557, %v3884, 0
    %v3938 = vsel %vm557, %v3886, 0
    %3940 = vmatprep.subr.bf16.mxu0 0
    %3941 = vmatpush1.bf16.xpose.msra.mxu0 %v3938
    %3942 = vmatprep.subr.bf16.mxu0 0
    %3943 = vmatpush1.bf16.xpose.msra.mxu0 0
    %3944 = vmatprep.subr.bf16.mxu0 0
    %3945 = vmatpush1.bf16.xpose.msra.mxu0 0
    %3946 = vmatprep.subr.bf16.mxu0 0
    %3947 = vmatpush1.bf16.xpose.msra.mxu0 0
    %3948 = vmatprep.subr.bf16.mxu0 0
    %3949 = vmatpush1.bf16.xpose.msra.mxu0 0
    %3950 = vmatprep.subr.bf16.mxu0 0
    %3951 = vmatpush1.bf16.xpose.msra.mxu0 0
    %3952 = vmatprep.subr.bf16.mxu0 0
    %3953 = vmatpush1.bf16.xpose.msra.mxu0 0
    %3954 = vmatprep.subr.bf16.mxu0 0
    %3955 = vmatpush1.bf16.xpose.msra.mxu0 0
    %3956 = vmatprep.subr.bf16.mxu0 0
    %3957 = vmatpush1.bf16.xpose.msra.mxu0 0
    %3958 = vmatprep.subr.bf16.mxu0 0
    %3959 = vmatpush1.bf16.xpose.msra.mxu0 0
    %3960 = vmatprep.subr.bf16.mxu0 0
    %3961 = vmatpush1.bf16.xpose.msra.mxu0 0
    %3962 = vmatprep.subr.bf16.mxu0 0
    %3963 = vmatpush1.bf16.xpose.msra.mxu0 0
    %3964 = vmatprep.subr.bf16.mxu0 0
    %3965 = vmatpush1.bf16.xpose.msra.mxu0 0
    %3966 = vmatprep.subr.bf16.mxu0 0
    %3967 = vmatpush1.bf16.xpose.msra.mxu0 0
    %3968 = vmatprep.subr.bf16.mxu0 0
    %3969 = vmatpush1.bf16.xpose.msra.mxu0 0
    %3970 = vmatprep.subr.bf16.mxu0 0
    %3971 = vmatpush1.bf16.xpose.msra.mxu0 0
    %3972 = vmatprep.mubr.bf16.mxu0 0
    %3973 = vmatmul.mubr.bf16.gmra.mrb[0].mxu0 %v3935
    %v3974 = vpop.f32.mrb[0].mxu0
    %v3975 = vadd.f32 0.0, %v3974
    %v3976 = vpop.f32.mrb[0].mxu0
    %v3977 = vpop.f32.mrb[0].mxu0
    %v3978 = vadd.f32 0.0, %v3977
    %v3979 = vpop.f32.mrb[0].mxu0
    %3980 = vdwg.mxu0
    %v3981 = vmul.f32 %v3928, 0.25
    %v3982 = vmul.f32 %v3931, 0.25
    %v3983 = vmul.f32 %v3975, 0.25
    %v3984 = vmul.f32 %v3978, 0.25
    %v3985 = vsel %vm557, %v3981, -inf
    %3986 = vmax.xlane.f32.xlu0 %v3985
    %v3987 = vpop.xlane.xlu0 %3986
    %v3988 = vsel %vm557, %v3982, -inf
    %3989 = vmax.xlane.f32.xlu0 %v3988
    %v3990 = vpop.xlane.xlu0 %3989
    %v3991 = vsel %vm557, %v3983, -inf
    %3992 = vmax.xlane.f32.xlu0 %v3991
    %v3993 = vpop.xlane.xlu0 %3992
    %v3994 = vsel %vm557, %v3984, -inf
    %3995 = vmax.xlane.f32.xlu0 %v3994
    %v3996 = vpop.xlane.xlu0 %3995
    %v3997 = vsub.f32 %v3981, %v3987
    %v3998 = vsub.f32 %v3982, %v3990
    %v3999 = vsub.f32 %v3983, %v3993
    %v4000 = vsub.f32 %v3984, %v3996
    %v4001 = vmul.f32 %v3997, 1.442695
    %v4002 = vpow.pop %v4001
    %v4003 = vmul.f32 %v3998, 1.442695
    %v4004 = vpow.pop %v4003
    %v4005 = vmul.f32 %v3999, 1.442695
    %v4006 = vpow.pop %v4005
    %v4007 = vmul.f32 %v4000, 1.442695
    %v4008 = vpow.pop %v4007
    %v4009 = vsel %vm557, %v4002, 0.0
    %4010 = vadd.xlane.f32.xlu0 %v4009
    %v4011 = vpop.xlane.xlu0 %4010
    %v4012 = vsel %vm557, %v4004, 0.0
    %4013 = vadd.xlane.f32.xlu0 %v4012
    %v4014 = vpop.xlane.xlu0 %4013
    %v4015 = vsel %vm557, %v4006, 0.0
    %4016 = vadd.xlane.f32.xlu0 %v4015
    %v4017 = vpop.xlane.xlu0 %4016
    %v4018 = vsel %vm557, %v4008, 0.0
    %4019 = vadd.xlane.f32.xlu0 %v4018
    %v4020 = vpop.xlane.xlu0 %4019
    %v4021 = vrcp.pop %v4011
    %v4022 = vrcp.pop %v4014
    %v4023 = vrcp.pop %v4017
    %v4024 = vrcp.pop %v4020
    %v4025 = vmul.f32 %v4002, %v4021
    %v4026 = vmul.f32 %v4004, %v4022
    %v4027 = vmul.f32 %v4006, %v4023
    %v4028 = vmul.f32 %v4008, %v4024
    %v4029 = vpack.c.bf16 %v4026, %v4025
    %v4030 = vpack.c.bf16 %v4028, %v4027
    %v4031 = vpack.c.bf16 %v3872, %v3869
    %v4032 = vpack.c.bf16 %v3880, %v3877
    %v4034 = vsel %vm557, %v4029, 0
    %4036 = vmatprep.subr.bf16.mxu0 0
    %4037 = vmatpush1.bf16.msra.mxu0 %v4031
    %4038 = vmatprep.subr.bf16.mxu0 0
    %4039 = vmatpush1.bf16.msra.mxu0 0
    %4040 = vmatprep.subr.bf16.mxu0 0
    %4041 = vmatpush1.bf16.msra.mxu0 0
    %4042 = vmatprep.subr.bf16.mxu0 0
    %4043 = vmatpush1.bf16.msra.mxu0 0
    %4044 = vmatprep.subr.bf16.mxu0 0
    %4045 = vmatpush1.bf16.msra.mxu0 0
    %4046 = vmatprep.subr.bf16.mxu0 0
    %4047 = vmatpush1.bf16.msra.mxu0 0
    %4048 = vmatprep.subr.bf16.mxu0 0
    %4049 = vmatpush1.bf16.msra.mxu0 0
    %4050 = vmatprep.subr.bf16.mxu0 0
    %4051 = vmatpush1.bf16.msra.mxu0 0
    %4052 = vmatprep.subr.bf16.mxu0 0
    %4053 = vmatpush1.bf16.msra.mxu0 0
    %4054 = vmatprep.subr.bf16.mxu0 0
    %4055 = vmatpush1.bf16.msra.mxu0 0
    %4056 = vmatprep.subr.bf16.mxu0 0
    %4057 = vmatpush1.bf16.msra.mxu0 0
    %4058 = vmatprep.subr.bf16.mxu0 0
    %4059 = vmatpush1.bf16.msra.mxu0 0
    %4060 = vmatprep.subr.bf16.mxu0 0
    %4061 = vmatpush1.bf16.msra.mxu0 0
    %4062 = vmatprep.subr.bf16.mxu0 0
    %4063 = vmatpush1.bf16.msra.mxu0 0
    %4064 = vmatprep.subr.bf16.mxu0 0
    %4065 = vmatpush1.bf16.msra.mxu0 0
    %4066 = vmatprep.subr.bf16.mxu0 0
    %4067 = vmatpush1.bf16.msra.mxu0 0
    %4068 = vmatprep.mubr.bf16.mxu0 0
    %4069 = vmatmul.mubr.bf16.gmra.mrb[0].mxu0 %v4034
    %v4070 = vpop.f32.mrb[0].mxu0
    %v4071 = vadd.f32 0.0, %v4070
    %v4072 = vpop.f32.mrb[0].mxu0
    %v4073 = vpop.f32.mrb[0].mxu0
    %v4074 = vadd.f32 0.0, %v4073
    %v4075 = vpop.f32.mrb[0].mxu0
    %4076 = vdwg.mxu0
    %v4078 = vsel %vm557, %v4030, 0
    %4080 = vmatprep.subr.bf16.mxu0 0
    %4081 = vmatpush1.bf16.msra.mxu0 %v4032
    %4082 = vmatprep.subr.bf16.mxu0 0
    %4083 = vmatpush1.bf16.msra.mxu0 0
    %4084 = vmatprep.subr.bf16.mxu0 0
    %4085 = vmatpush1.bf16.msra.mxu0 0
    %4086 = vmatprep.subr.bf16.mxu0 0
    %4087 = vmatpush1.bf16.msra.mxu0 0
    %4088 = vmatprep.subr.bf16.mxu0 0
    %4089 = vmatpush1.bf16.msra.mxu0 0
    %4090 = vmatprep.subr.bf16.mxu0 0
    %4091 = vmatpush1.bf16.msra.mxu0 0
    %4092 = vmatprep.subr.bf16.mxu0 0
    %4093 = vmatpush1.bf16.msra.mxu0 0
    %4094 = vmatprep.subr.bf16.mxu0 0
    %4095 = vmatpush1.bf16.msra.mxu0 0
    %4096 = vmatprep.subr.bf16.mxu0 0
    %4097 = vmatpush1.bf16.msra.mxu0 0
    %4098 = vmatprep.subr.bf16.mxu0 0
    %4099 = vmatpush1.bf16.msra.mxu0 0
    %4100 = vmatprep.subr.bf16.mxu0 0
    %4101 = vmatpush1.bf16.msra.mxu0 0
    %4102 = vmatprep.subr.bf16.mxu0 0
    %4103 = vmatpush1.bf16.msra.mxu0 0
    %4104 = vmatprep.subr.bf16.mxu0 0
    %4105 = vmatpush1.bf16.msra.mxu0 0
    %4106 = vmatprep.subr.bf16.mxu0 0
    %4107 = vmatpush1.bf16.msra.mxu0 0
    %4108 = vmatprep.subr.bf16.mxu0 0
    %4109 = vmatpush1.bf16.msra.mxu0 0
    %4110 = vmatprep.subr.bf16.mxu0 0
    %4111 = vmatpush1.bf16.msra.mxu0 0
    %4112 = vmatprep.mubr.bf16.mxu0 0
    %4113 = vmatmul.mubr.bf16.gmra.mrb[0].mxu0 %v4078
    %v4114 = vpop.f32.mrb[0].mxu0
    %v4115 = vadd.f32 0.0, %v4114
    %v4116 = vpop.f32.mrb[0].mxu0
    %v4117 = vpop.f32.mrb[0].mxu0
    %v4118 = vadd.f32 0.0, %v4117
    %v4119 = vpop.f32.mrb[0].mxu0
    %4120 = vdwg.mxu0
    %v4121 = vpack.c.bf16 %v4074, %v4071
    %v4122 = vpack.c.bf16 %v4118, %v4115
    %v4125 = vunpack.c.l.b16 %v3031
    %v4126 = vunpack.c.l.b16 %v3032
    %v4127 = vpack.c.b16 %v4126, %v4125
    %v4130 = vsel %vm557, %v4121, 0
    %v4133 = vsel %vm557, %v4122, 0
    %4135 = vmatprep.subr.bf16.mxu0 0
    %4136 = vmatpush1.bf16.msra.mxu0 %v4127
    %4137 = vmatprep.subr.bf16.mxu0 0
    %4138 = vmatpush1.bf16.msra.mxu0 0
    %4139 = vmatprep.subr.bf16.mxu0 0
    %4140 = vmatpush1.bf16.msra.mxu0 0
    %4141 = vmatprep.subr.bf16.mxu0 0
    %4142 = vmatpush1.bf16.msra.mxu0 0
    %4143 = vmatprep.subr.bf16.mxu0 0
    %4144 = vmatpush1.bf16.msra.mxu0 0
    %4145 = vmatprep.subr.bf16.mxu0 0
    %4146 = vmatpush1.bf16.msra.mxu0 0
    %4147 = vmatprep.subr.bf16.mxu0 0
    %4148 = vmatpush1.bf16.msra.mxu0 0
    %4149 = vmatprep.subr.bf16.mxu0 0
    %4150 = vmatpush1.bf16.msra.mxu0 0
    %4151 = vmatprep.subr.bf16.mxu0 0
    %4152 = vmatpush1.bf16.msra.mxu0 0
    %4153 = vmatprep.subr.bf16.mxu0 0
    %4154 = vmatpush1.bf16.msra.mxu0 0
    %4155 = vmatprep.subr.bf16.mxu0 0
    %4156 = vmatpush1.bf16.msra.mxu0 0
    %4157 = vmatprep.subr.bf16.mxu0 0
    %4158 = vmatpush1.bf16.msra.mxu0 0
    %4159 = vmatprep.subr.bf16.mxu0 0
    %4160 = vmatpush1.bf16.msra.mxu0 0
    %4161 = vmatprep.subr.bf16.mxu0 0
    %4162 = vmatpush1.bf16.msra.mxu0 0
    %4163 = vmatprep.subr.bf16.mxu0 0
    %4164 = vmatpush1.bf16.msra.mxu0 0
    %4165 = vmatprep.subr.bf16.mxu0 0
    %4166 = vmatpush1.bf16.msra.mxu0 0
    %4167 = vmatprep.mubr.bf16.mxu0 0
    %4168 = vmatmul.mubr.bf16.gmra.mrb[0].mxu0 %v4130
    %v4169 = vpop.f32.mrb[0].mxu0
    %v4170 = vadd.f32 0.0, %v4169
    %v4171 = vpop.f32.mrb[0].mxu0
    %v4172 = vpop.f32.mrb[0].mxu0
    %v4173 = vadd.f32 0.0, %v4172
    %v4174 = vpop.f32.mrb[0].mxu0
    %4175 = vmatprep.mubr.bf16.mxu0 0
    %4176 = vmatmul.mubr.bf16.gmra.mrb[0].mxu0 %v4133
    %v4177 = vpop.f32.mrb[0].mxu0
    %v4178 = vadd.f32 0.0, %v4177
    %v4179 = vpop.f32.mrb[0].mxu0
    %v4180 = vpop.f32.mrb[0].mxu0
    %v4181 = vadd.f32 0.0, %v4180
    %v4182 = vpop.f32.mrb[0].mxu0
    %4183 = vdwg.mxu0
    %v4186 = vunpack.c.l.b16 %v3029
    %v4187 = vunpack.c.l.b16 %v3030
    %v4188 = vpack.c.b16 %v4187, %v4186
    %v4191 = vsel %vm557, %v3644, 0
    %v4194 = vsel %vm557, %v3645, 0
    %4196 = vmatprep.subr.bf16.mxu0 0
    %4197 = vmatpush1.bf16.msra.mxu0 %v4188
    %4198 = vmatprep.subr.bf16.mxu0 0
    %4199 = vmatpush1.bf16.msra.mxu0 0
    %4200 = vmatprep.subr.bf16.mxu0 0
    %4201 = vmatpush1.bf16.msra.mxu0 0
    %4202 = vmatprep.subr.bf16.mxu0 0
    %4203 = vmatpush1.bf16.msra.mxu0 0
    %4204 = vmatprep.subr.bf16.mxu0 0
    %4205 = vmatpush1.bf16.msra.mxu0 0
    %4206 = vmatprep.subr.bf16.mxu0 0
    %4207 = vmatpush1.bf16.msra.mxu0 0
    %4208 = vmatprep.subr.bf16.mxu0 0
    %4209 = vmatpush1.bf16.msra.mxu0 0
    %4210 = vmatprep.subr.bf16.mxu0 0
    %4211 = vmatpush1.bf16.msra.mxu0 0
    %4212 = vmatprep.subr.bf16.mxu0 0
    %4213 = vmatpush1.bf16.msra.mxu0 0
    %4214 = vmatprep.subr.bf16.mxu0 0
    %4215 = vmatpush1.bf16.msra.mxu0 0
    %4216 = vmatprep.subr.bf16.mxu0 0
    %4217 = vmatpush1.bf16.msra.mxu0 0
    %4218 = vmatprep.subr.bf16.mxu0 0
    %4219 = vmatpush1.bf16.msra.mxu0 0
    %4220 = vmatprep.subr.bf16.mxu0 0
    %4221 = vmatpush1.bf16.msra.mxu0 0
    %4222 = vmatprep.subr.bf16.mxu0 0
    %4223 = vmatpush1.bf16.msra.mxu0 0
    %4224 = vmatprep.subr.bf16.mxu0 0
    %4225 = vmatpush1.bf16.msra.mxu0 0
    %4226 = vmatprep.subr.bf16.mxu0 0
    %4227 = vmatpush1.bf16.msra.mxu0 0
    %4228 = vmatprep.mubr.bf16.mxu0 0
    %4229 = vmatmul.mubr.bf16.gmra.mrb[0].mxu0 %v4191
    %v4230 = vpop.f32.mrb[0].mxu0
    %v4231 = vadd.f32 %v4170, %v4230
    %v4232 = vpop.f32.mrb[0].mxu0
    %v4233 = vpop.f32.mrb[0].mxu0
    %v4234 = vadd.f32 %v4173, %v4233
    %v4235 = vpop.f32.mrb[0].mxu0
    %4236 = vmatprep.mubr.bf16.mxu0 0
    %4237 = vmatmul.mubr.bf16.gmra.mrb[0].mxu0 %v4194
    %v4238 = vpop.f32.mrb[0].mxu0
    %v4239 = vadd.f32 %v4178, %v4238
    %v4240 = vpop.f32.mrb[0].mxu0
    %v4241 = vpop.f32.mrb[0].mxu0
    %v4242 = vadd.f32 %v4181, %v4241
    %v4243 = vpop.f32.mrb[0].mxu0
    %4244 = vdwg.mxu0
    %v4246 = vlaneseq
    %v4247 = vshrl.u32 %v4246, 7
    %v4248 = vsub.s32 0, %v4247
    %v4249 = vrot.slane %v3016, %v4248
    %v4259 = vunpack.c.l.b16 %v2931
    %v4260 = vunpack.c.l.b16 %v2932
    %v4261 = vunpack.c.l.b16 %v2933
    %v4262 = vunpack.c.l.b16 %v2934
    %v4263 = vunpack.c.l.b16 %v2935
    %v4264 = vunpack.c.l.b16 %v2936
    %v4265 = vunpack.c.l.b16 %v2937
    %v4266 = vunpack.c.l.b16 %v2938
    %v4267 = vpack.c.b16 %v4260, %v4259
    %v4268 = vpack.c.b16 %v4262, %v4261
    %v4269 = vpack.c.b16 %v4264, %v4263
    %v4270 = vpack.c.b16 %v4266, %v4265
    %4275 = vmatprep.subr.bf16.mxu0 0
    %4276 = vmatpush1.bf16.msra.mxu0 %v4267
    %4277 = vmatprep.subr.bf16.mxu0 0
    %4278 = vmatpush1.bf16.msra.mxu0 %v4268
    %4279 = vmatprep.subr.bf16.mxu0 0
    %4280 = vmatpush1.bf16.msra.mxu0 %v4269
    %4281 = vmatprep.subr.bf16.mxu0 0
    %4282 = vmatpush1.bf16.msra.mxu0 %v4270
    %4283 = vmatprep.subr.bf16.mxu0 0
    %4284 = vmatpush1.bf16.msra.mxu0 0
    %4285 = vmatprep.subr.bf16.mxu0 0
    %4286 = vmatpush1.bf16.msra.mxu0 0
    %4287 = vmatprep.subr.bf16.mxu0 0
    %4288 = vmatpush1.bf16.msra.mxu0 0
    %4289 = vmatprep.subr.bf16.mxu0 0
    %4290 = vmatpush1.bf16.msra.mxu0 0
    %4291 = vmatprep.subr.bf16.mxu0 0
    %4292 = vmatpush1.bf16.msra.mxu0 0
    %4293 = vmatprep.subr.bf16.mxu0 0
    %4294 = vmatpush1.bf16.msra.mxu0 0
    %4295 = vmatprep.subr.bf16.mxu0 0
    %4296 = vmatpush1.bf16.msra.mxu0 0
    %4297 = vmatprep.subr.bf16.mxu0 0
    %4298 = vmatpush1.bf16.msra.mxu0 0
    %4299 = vmatprep.subr.bf16.mxu0 0
    %4300 = vmatpush1.bf16.msra.mxu0 0
    %4301 = vmatprep.subr.bf16.mxu0 0
    %4302 = vmatpush1.bf16.msra.mxu0 0
    %4303 = vmatprep.subr.bf16.mxu0 0
    %4304 = vmatpush1.bf16.msra.mxu0 0
    %4305 = vmatprep.subr.bf16.mxu0 0
    %4306 = vmatpush1.bf16.msra.mxu0 0
    %4307 = vmatprep.mubr.bf16.mxu0 0
    %4308 = vmatmul.mubr.bf16.gmra.mrb[0].mxu0 %v3194
    %v4309 = vpop.f32.mrb[0].mxu0
    %v4310 = vadd.f32 %v4249, %v4309
    %v4311 = vpop.f32.mrb[0].mxu0
    %v4312 = vpop.f32.mrb[0].mxu0
    %v4313 = vadd.f32 %v4249, %v4312
    %v4314 = vpop.f32.mrb[0].mxu0
    %4315 = vmatprep.mubr.bf16.mxu0 0
    %4316 = vmatmul.mubr.bf16.gmra.mrb[0].mxu0 %v3197
    %v4317 = vpop.f32.mrb[0].mxu0
    %v4318 = vadd.f32 %v4249, %v4317
    %v4319 = vpop.f32.mrb[0].mxu0
    %v4320 = vpop.f32.mrb[0].mxu0
    %v4321 = vadd.f32 %v4249, %v4320
    %v4322 = vpop.f32.mrb[0].mxu0
    %4323 = vdwg.mxu0
    %v4325 = vlaneseq
    %v4326 = vshrl.u32 %v4325, 7
    %v4327 = vsub.s32 0, %v4326
    %v4328 = vrot.slane %v3021, %v4327
    %v4338 = vunpack.c.l.b16 %v2964
    %v4339 = vunpack.c.l.b16 %v2965
    %v4340 = vunpack.c.l.b16 %v2966
    %v4341 = vunpack.c.l.b16 %v2967
    %v4342 = vunpack.c.l.b16 %v2968
    %v4343 = vunpack.c.l.b16 %v2969
    %v4344 = vunpack.c.l.b16 %v2970
    %v4345 = vunpack.c.l.b16 %v2971
    %v4346 = vpack.c.b16 %v4339, %v4338
    %v4347 = vpack.c.b16 %v4341, %v4340
    %v4348 = vpack.c.b16 %v4343, %v4342
    %v4349 = vpack.c.b16 %v4345, %v4344
    %4354 = vmatprep.subr.bf16.mxu0 0
    %4355 = vmatpush1.bf16.msra.mxu0 %v4346
    %4356 = vmatprep.subr.bf16.mxu0 0
    %4357 = vmatpush1.bf16.msra.mxu0 %v4347
    %4358 = vmatprep.subr.bf16.mxu0 0
    %4359 = vmatpush1.bf16.msra.mxu0 %v4348
    %4360 = vmatprep.subr.bf16.mxu0 0
    %4361 = vmatpush1.bf16.msra.mxu0 %v4349
    %4362 = vmatprep.subr.bf16.mxu0 0
    %4363 = vmatpush1.bf16.msra.mxu0 0
    %4364 = vmatprep.subr.bf16.mxu0 0
    %4365 = vmatpush1.bf16.msra.mxu0 0
    %4366 = vmatprep.subr.bf16.mxu0 0
    %4367 = vmatpush1.bf16.msra.mxu0 0
    %4368 = vmatprep.subr.bf16.mxu0 0
    %4369 = vmatpush1.bf16.msra.mxu0 0
    %4370 = vmatprep.subr.bf16.mxu0 0
    %4371 = vmatpush1.bf16.msra.mxu0 0
    %4372 = vmatprep.subr.bf16.mxu0 0
    %4373 = vmatpush1.bf16.msra.mxu0 0
    %4374 = vmatprep.subr.bf16.mxu0 0
    %4375 = vmatpush1.bf16.msra.mxu0 0
    %4376 = vmatprep.subr.bf16.mxu0 0
    %4377 = vmatpush1.bf16.msra.mxu0 0
    %4378 = vmatprep.subr.bf16.mxu0 0
    %4379 = vmatpush1.bf16.msra.mxu0 0
    %4380 = vmatprep.subr.bf16.mxu0 0
    %4381 = vmatpush1.bf16.msra.mxu0 0
    %4382 = vmatprep.subr.bf16.mxu0 0
    %4383 = vmatpush1.bf16.msra.mxu0 0
    %4384 = vmatprep.subr.bf16.mxu0 0
    %4385 = vmatpush1.bf16.msra.mxu0 0
    %4386 = vmatprep.mubr.bf16.mxu0 0
    %4387 = vmatmul.mubr.bf16.gmra.mrb[0].mxu0 %v3194
    %v4388 = vpop.f32.mrb[0].mxu0
    %v4389 = vadd.f32 %v4328, %v4388
    %v4390 = vpop.f32.mrb[0].mxu0
    %v4391 = vpop.f32.mrb[0].mxu0
    %v4392 = vadd.f32 %v4328, %v4391
    %v4393 = vpop.f32.mrb[0].mxu0
    %4394 = vmatprep.mubr.bf16.mxu0 0
    %4395 = vmatmul.mubr.bf16.gmra.mrb[0].mxu0 %v3197
    %v4396 = vpop.f32.mrb[0].mxu0
    %v4397 = vadd.f32 %v4328, %v4396
    %v4398 = vpop.f32.mrb[0].mxu0
    %v4399 = vpop.f32.mrb[0].mxu0
    %v4400 = vadd.f32 %v4328, %v4399
    %v4401 = vpop.f32.mrb[0].mxu0
    %4402 = vdwg.mxu0
    %v4404 = vlaneseq
    %v4405 = vshrl.u32 %v4404, 7
    %v4406 = vsub.s32 0, %v4405
    %v4407 = vrot.slane %v3026, %v4406
    %v4417 = vunpack.c.l.b16 %v2997
    %v4418 = vunpack.c.l.b16 %v2998
    %v4419 = vunpack.c.l.b16 %v2999
    %v4420 = vunpack.c.l.b16 %v3000
    %v4421 = vunpack.c.l.b16 %v3001
    %v4422 = vunpack.c.l.b16 %v3002
    %v4423 = vunpack.c.l.b16 %v3003
    %v4424 = vunpack.c.l.b16 %v3004
    %v4425 = vpack.c.b16 %v4418, %v4417
    %v4426 = vpack.c.b16 %v4420, %v4419
    %v4427 = vpack.c.b16 %v4422, %v4421
    %v4428 = vpack.c.b16 %v4424, %v4423
    %4433 = vmatprep.subr.bf16.mxu0 0
    %4434 = vmatpush1.bf16.msra.mxu0 %v4425
    %4435 = vmatprep.subr.bf16.mxu0 0
    %4436 = vmatpush1.bf16.msra.mxu0 %v4426
    %4437 = vmatprep.subr.bf16.mxu0 0
    %4438 = vmatpush1.bf16.msra.mxu0 %v4427
    %4439 = vmatprep.subr.bf16.mxu0 0
    %4440 = vmatpush1.bf16.msra.mxu0 %v4428
    %4441 = vmatprep.subr.bf16.mxu0 0
    %4442 = vmatpush1.bf16.msra.mxu0 0
    %4443 = vmatprep.subr.bf16.mxu0 0
    %4444 = vmatpush1.bf16.msra.mxu0 0
    %4445 = vmatprep.subr.bf16.mxu0 0
    %4446 = vmatpush1.bf16.msra.mxu0 0
    %4447 = vmatprep.subr.bf16.mxu0 0
    %4448 = vmatpush1.bf16.msra.mxu0 0
    %4449 = vmatprep.subr.bf16.mxu0 0
    %4450 = vmatpush1.bf16.msra.mxu0 0
    %4451 = vmatprep.subr.bf16.mxu0 0
    %4452 = vmatpush1.bf16.msra.mxu0 0
    %4453 = vmatprep.subr.bf16.mxu0 0
    %4454 = vmatpush1.bf16.msra.mxu0 0
    %4455 = vmatprep.subr.bf16.mxu0 0
    %4456 = vmatpush1.bf16.msra.mxu0 0
    %4457 = vmatprep.subr.bf16.mxu0 0
    %4458 = vmatpush1.bf16.msra.mxu0 0
    %4459 = vmatprep.subr.bf16.mxu0 0
    %4460 = vmatpush1.bf16.msra.mxu0 0
    %4461 = vmatprep.subr.bf16.mxu0 0
    %4462 = vmatpush1.bf16.msra.mxu0 0
    %4463 = vmatprep.subr.bf16.mxu0 0
    %4464 = vmatpush1.bf16.msra.mxu0 0
    %4465 = vmatprep.mubr.bf16.mxu0 0
    %4466 = vmatmul.mubr.bf16.gmra.mrb[0].mxu0 %v3194
    %v4467 = vpop.f32.mrb[0].mxu0
    %v4468 = vadd.f32 %v4407, %v4467
    %v4469 = vpop.f32.mrb[0].mxu0
    %v4470 = vpop.f32.mrb[0].mxu0
    %v4471 = vadd.f32 %v4407, %v4470
    %v4472 = vpop.f32.mrb[0].mxu0
    %4473 = vmatprep.mubr.bf16.mxu0 0
    %4474 = vmatmul.mubr.bf16.gmra.mrb[0].mxu0 %v3197
    %v4475 = vpop.f32.mrb[0].mxu0
    %v4476 = vadd.f32 %v4407, %v4475
    %v4477 = vpop.f32.mrb[0].mxu0
    %v4478 = vpop.f32.mrb[0].mxu0
    %v4479 = vadd.f32 %v4407, %v4478
    %v4480 = vpop.f32.mrb[0].mxu0
    %4481 = vdwg.mxu0
    %v4482 = vpack.c.bf16 %v4313, %v4310
    %v4483 = vpack.c.bf16 %v4321, %v4318
    %v4484 = vpack.c.bf16 %v4392, %v4389
    %v4485 = vpack.c.bf16 %v4400, %v4397
    %v4487 = vsel %vm557, %v4482, 0
    %v4490 = vsel %vm557, %v4484, 0
    %4492 = vmatprep.subr.bf16.mxu0 0
    %4493 = vmatpush1.bf16.xpose.msra.mxu0 %v4490
    %4494 = vmatprep.subr.bf16.mxu0 0
    %4495 = vmatpush1.bf16.xpose.msra.mxu0 0
    %4496 = vmatprep.subr.bf16.mxu0 0
    %4497 = vmatpush1.bf16.xpose.msra.mxu0 0
    %4498 = vmatprep.subr.bf16.mxu0 0
    %4499 = vmatpush1.bf16.xpose.msra.mxu0 0
    %4500 = vmatprep.subr.bf16.mxu0 0
    %4501 = vmatpush1.bf16.xpose.msra.mxu0 0
    %4502 = vmatprep.subr.bf16.mxu0 0
    %4503 = vmatpush1.bf16.xpose.msra.mxu0 0
    %4504 = vmatprep.subr.bf16.mxu0 0
    %4505 = vmatpush1.bf16.xpose.msra.mxu0 0
    %4506 = vmatprep.subr.bf16.mxu0 0
    %4507 = vmatpush1.bf16.xpose.msra.mxu0 0
    %4508 = vmatprep.subr.bf16.mxu0 0
    %4509 = vmatpush1.bf16.xpose.msra.mxu0 0
    %4510 = vmatprep.subr.bf16.mxu0 0
    %4511 = vmatpush1.bf16.xpose.msra.mxu0 0
    %4512 = vmatprep.subr.bf16.mxu0 0
    %4513 = vmatpush1.bf16.xpose.msra.mxu0 0
    %4514 = vmatprep.subr.bf16.mxu0 0
    %4515 = vmatpush1.bf16.xpose.msra.mxu0 0
    %4516 = vmatprep.subr.bf16.mxu0 0
    %4517 = vmatpush1.bf16.xpose.msra.mxu0 0
    %4518 = vmatprep.subr.bf16.mxu0 0
    %4519 = vmatpush1.bf16.xpose.msra.mxu0 0
    %4520 = vmatprep.subr.bf16.mxu0 0
    %4521 = vmatpush1.bf16.xpose.msra.mxu0 0
    %4522 = vmatprep.subr.bf16.mxu0 0
    %4523 = vmatpush1.bf16.xpose.msra.mxu0 0
    %4524 = vmatprep.mubr.bf16.mxu0 0
    %4525 = vmatmul.mubr.bf16.gmra.mrb[0].mxu0 %v4487
    %v4526 = vpop.f32.mrb[0].mxu0
    %v4527 = vadd.f32 0.0, %v4526
    %v4528 = vpop.f32.mrb[0].mxu0
    %v4529 = vpop.f32.mrb[0].mxu0
    %v4530 = vadd.f32 0.0, %v4529
    %v4531 = vpop.f32.mrb[0].mxu0
    %4532 = vdwg.mxu0
    %v4534 = vsel %vm557, %v4483, 0
    %v4537 = vsel %vm557, %v4485, 0
    %4539 = vmatprep.subr.bf16.mxu0 0
    %4540 = vmatpush1.bf16.xpose.msra.mxu0 %v4537
    %4541 = vmatprep.subr.bf16.mxu0 0
    %4542 = vmatpush1.bf16.xpose.msra.mxu0 0
    %4543 = vmatprep.subr.bf16.mxu0 0
    %4544 = vmatpush1.bf16.xpose.msra.mxu0 0
    %4545 = vmatprep.subr.bf16.mxu0 0
    %4546 = vmatpush1.bf16.xpose.msra.mxu0 0
    %4547 = vmatprep.subr.bf16.mxu0 0
    %4548 = vmatpush1.bf16.xpose.msra.mxu0 0
    %4549 = vmatprep.subr.bf16.mxu0 0
    %4550 = vmatpush1.bf16.xpose.msra.mxu0 0
    %4551 = vmatprep.subr.bf16.mxu0 0
    %4552 = vmatpush1.bf16.xpose.msra.mxu0 0
    %4553 = vmatprep.subr.bf16.mxu0 0
    %4554 = vmatpush1.bf16.xpose.msra.mxu0 0
    %4555 = vmatprep.subr.bf16.mxu0 0
    %4556 = vmatpush1.bf16.xpose.msra.mxu0 0
    %4557 = vmatprep.subr.bf16.mxu0 0
    %4558 = vmatpush1.bf16.xpose.msra.mxu0 0
    %4559 = vmatprep.subr.bf16.mxu0 0
    %4560 = vmatpush1.bf16.xpose.msra.mxu0 0
    %4561 = vmatprep.subr.bf16.mxu0 0
    %4562 = vmatpush1.bf16.xpose.msra.mxu0 0
    %4563 = vmatprep.subr.bf16.mxu0 0
    %4564 = vmatpush1.bf16.xpose.msra.mxu0 0
    %4565 = vmatprep.subr.bf16.mxu0 0
    %4566 = vmatpush1.bf16.xpose.msra.mxu0 0
    %4567 = vmatprep.subr.bf16.mxu0 0
    %4568 = vmatpush1.bf16.xpose.msra.mxu0 0
    %4569 = vmatprep.subr.bf16.mxu0 0
    %4570 = vmatpush1.bf16.xpose.msra.mxu0 0
    %4571 = vmatprep.mubr.bf16.mxu0 0
    %4572 = vmatmul.mubr.bf16.gmra.mrb[0].mxu0 %v4534
    %v4573 = vpop.f32.mrb[0].mxu0
    %v4574 = vadd.f32 0.0, %v4573
    %v4575 = vpop.f32.mrb[0].mxu0
    %v4576 = vpop.f32.mrb[0].mxu0
    %v4577 = vadd.f32 0.0, %v4576
    %v4578 = vpop.f32.mrb[0].mxu0
    %4579 = vdwg.mxu0
    %v4580 = vmul.f32 %v4527, 0.25
    %v4581 = vmul.f32 %v4530, 0.25
    %v4582 = vmul.f32 %v4574, 0.25
    %v4583 = vmul.f32 %v4577, 0.25
    %v4584 = vsel %vm557, %v4580, -inf
    %4585 = vmax.xlane.f32.xlu0 %v4584
    %v4586 = vpop.xlane.xlu0 %4585
    %v4587 = vsel %vm557, %v4581, -inf
    %4588 = vmax.xlane.f32.xlu0 %v4587
    %v4589 = vpop.xlane.xlu0 %4588
    %v4590 = vsel %vm557, %v4582, -inf
    %4591 = vmax.xlane.f32.xlu0 %v4590
    %v4592 = vpop.xlane.xlu0 %4591
    %v4593 = vsel %vm557, %v4583, -inf
    %4594 = vmax.xlane.f32.xlu0 %v4593
    %v4595 = vpop.xlane.xlu0 %4594
    %v4596 = vsub.f32 %v4580, %v4586
    %v4597 = vsub.f32 %v4581, %v4589
    %v4598 = vsub.f32 %v4582, %v4592
    %v4599 = vsub.f32 %v4583, %v4595
    %v4600 = vmul.f32 %v4596, 1.442695
    %v4601 = vpow.pop %v4600
    %v4602 = vmul.f32 %v4597, 1.442695
    %v4603 = vpow.pop %v4602
    %v4604 = vmul.f32 %v4598, 1.442695
    %v4605 = vpow.pop %v4604
    %v4606 = vmul.f32 %v4599, 1.442695
    %v4607 = vpow.pop %v4606
    %v4608 = vsel %vm557, %v4601, 0.0
    %4609 = vadd.xlane.f32.xlu0 %v4608
    %v4610 = vpop.xlane.xlu0 %4609
    %v4611 = vsel %vm557, %v4603, 0.0
    %4612 = vadd.xlane.f32.xlu0 %v4611
    %v4613 = vpop.xlane.xlu0 %4612
    %v4614 = vsel %vm557, %v4605, 0.0
    %4615 = vadd.xlane.f32.xlu0 %v4614
    %v4616 = vpop.xlane.xlu0 %4615
    %v4617 = vsel %vm557, %v4607, 0.0
    %4618 = vadd.xlane.f32.xlu0 %v4617
    %v4619 = vpop.xlane.xlu0 %4618
    %v4620 = vrcp.pop %v4610
    %v4621 = vrcp.pop %v4613
    %v4622 = vrcp.pop %v4616
    %v4623 = vrcp.pop %v4619
    %v4624 = vmul.f32 %v4601, %v4620
    %v4625 = vmul.f32 %v4603, %v4621
    %v4626 = vmul.f32 %v4605, %v4622
    %v4627 = vmul.f32 %v4607, %v4623
    %v4628 = vpack.c.bf16 %v4625, %v4624
    %v4629 = vpack.c.bf16 %v4627, %v4626
    %v4630 = vpack.c.bf16 %v4471, %v4468
    %v4631 = vpack.c.bf16 %v4479, %v4476
    %v4633 = vsel %vm557, %v4628, 0
    %4635 = vmatprep.subr.bf16.mxu0 0
    %4636 = vmatpush1.bf16.msra.mxu0 %v4630
    %4637 = vmatprep.subr.bf16.mxu0 0
    %4638 = vmatpush1.bf16.msra.mxu0 0
    %4639 = vmatprep.subr.bf16.mxu0 0
    %4640 = vmatpush1.bf16.msra.mxu0 0
    %4641 = vmatprep.subr.bf16.mxu0 0
    %4642 = vmatpush1.bf16.msra.mxu0 0
    %4643 = vmatprep.subr.bf16.mxu0 0
    %4644 = vmatpush1.bf16.msra.mxu0 0
    %4645 = vmatprep.subr.bf16.mxu0 0
    %4646 = vmatpush1.bf16.msra.mxu0 0
    %4647 = vmatprep.subr.bf16.mxu0 0
    %4648 = vmatpush1.bf16.msra.mxu0 0
    %4649 = vmatprep.subr.bf16.mxu0 0
    %4650 = vmatpush1.bf16.msra.mxu0 0
    %4651 = vmatprep.subr.bf16.mxu0 0
    %4652 = vmatpush1.bf16.msra.mxu0 0
    %4653 = vmatprep.subr.bf16.mxu0 0
    %4654 = vmatpush1.bf16.msra.mxu0 0
    %4655 = vmatprep.subr.bf16.mxu0 0
    %4656 = vmatpush1.bf16.msra.mxu0 0
    %4657 = vmatprep.subr.bf16.mxu0 0
    %4658 = vmatpush1.bf16.msra.mxu0 0
    %4659 = vmatprep.subr.bf16.mxu0 0
    %4660 = vmatpush1.bf16.msra.mxu0 0
    %4661 = vmatprep.subr.bf16.mxu0 0
    %4662 = vmatpush1.bf16.msra.mxu0 0
    %4663 = vmatprep.subr.bf16.mxu0 0
    %4664 = vmatpush1.bf16.msra.mxu0 0
    %4665 = vmatprep.subr.bf16.mxu0 0
    %4666 = vmatpush1.bf16.msra.mxu0 0
    %4667 = vmatprep.mubr.bf16.mxu0 0
    %4668 = vmatmul.mubr.bf16.gmra.mrb[0].mxu0 %v4633
    %v4669 = vpop.f32.mrb[0].mxu0
    %v4670 = vadd.f32 0.0, %v4669
    %v4671 = vpop.f32.mrb[0].mxu0
    %v4672 = vpop.f32.mrb[0].mxu0
    %v4673 = vadd.f32 0.0, %v4672
    %v4674 = vpop.f32.mrb[0].mxu0
    %4675 = vdwg.mxu0
    %v4677 = vsel %vm557, %v4629, 0
    %4679 = vmatprep.subr.bf16.mxu0 0
    %4680 = vmatpush1.bf16.msra.mxu0 %v4631
    %4681 = vmatprep.subr.bf16.mxu0 0
    %4682 = vmatpush1.bf16.msra.mxu0 0
    %4683 = vmatprep.subr.bf16.mxu0 0
    %4684 = vmatpush1.bf16.msra.mxu0 0
    %4685 = vmatprep.subr.bf16.mxu0 0
    %4686 = vmatpush1.bf16.msra.mxu0 0
    %4687 = vmatprep.subr.bf16.mxu0 0
    %4688 = vmatpush1.bf16.msra.mxu0 0
    %4689 = vmatprep.subr.bf16.mxu0 0
    %4690 = vmatpush1.bf16.msra.mxu0 0
    %4691 = vmatprep.subr.bf16.mxu0 0
    %4692 = vmatpush1.bf16.msra.mxu0 0
    %4693 = vmatprep.subr.bf16.mxu0 0
    %4694 = vmatpush1.bf16.msra.mxu0 0
    %4695 = vmatprep.subr.bf16.mxu0 0
    %4696 = vmatpush1.bf16.msra.mxu0 0
    %4697 = vmatprep.subr.bf16.mxu0 0
    %4698 = vmatpush1.bf16.msra.mxu0 0
    %4699 = vmatprep.subr.bf16.mxu0 0
    %4700 = vmatpush1.bf16.msra.mxu0 0
    %4701 = vmatprep.subr.bf16.mxu0 0
    %4702 = vmatpush1.bf16.msra.mxu0 0
    %4703 = vmatprep.subr.bf16.mxu0 0
    %4704 = vmatpush1.bf16.msra.mxu0 0
    %4705 = vmatprep.subr.bf16.mxu0 0
    %4706 = vmatpush1.bf16.msra.mxu0 0
    %4707 = vmatprep.subr.bf16.mxu0 0
    %4708 = vmatpush1.bf16.msra.mxu0 0
    %4709 = vmatprep.subr.bf16.mxu0 0
    %4710 = vmatpush1.bf16.msra.mxu0 0
    %4711 = vmatprep.mubr.bf16.mxu0 0
    %4712 = vmatmul.mubr.bf16.gmra.mrb[0].mxu0 %v4677
    %v4713 = vpop.f32.mrb[0].mxu0
    %v4714 = vadd.f32 0.0, %v4713
    %v4715 = vpop.f32.mrb[0].mxu0
    %v4716 = vpop.f32.mrb[0].mxu0
    %v4717 = vadd.f32 0.0, %v4716
    %v4718 = vpop.f32.mrb[0].mxu0
    %4719 = vdwg.mxu0
    %v4720 = vpack.c.bf16 %v4673, %v4670
    %v4721 = vpack.c.bf16 %v4717, %v4714
    %v4724 = vunpack.c.l.b16 %v3033
    %v4725 = vunpack.c.l.b16 %v3034
    %v4726 = vpack.c.b16 %v4725, %v4724
    %v4729 = vsel %vm557, %v4720, 0
    %v4732 = vsel %vm557, %v4721, 0
    %4734 = vmatprep.subr.bf16.mxu0 0
    %4735 = vmatpush1.bf16.msra.mxu0 %v4726
    %4736 = vmatprep.subr.bf16.mxu0 0
    %4737 = vmatpush1.bf16.msra.mxu0 0
    %4738 = vmatprep.subr.bf16.mxu0 0
    %4739 = vmatpush1.bf16.msra.mxu0 0
    %4740 = vmatprep.subr.bf16.mxu0 0
    %4741 = vmatpush1.bf16.msra.mxu0 0
    %4742 = vmatprep.subr.bf16.mxu0 0
    %4743 = vmatpush1.bf16.msra.mxu0 0
    %4744 = vmatprep.subr.bf16.mxu0 0
    %4745 = vmatpush1.bf16.msra.mxu0 0
    %4746 = vmatprep.subr.bf16.mxu0 0
    %4747 = vmatpush1.bf16.msra.mxu0 0
    %4748 = vmatprep.subr.bf16.mxu0 0
    %4749 = vmatpush1.bf16.msra.mxu0 0
    %4750 = vmatprep.subr.bf16.mxu0 0
    %4751 = vmatpush1.bf16.msra.mxu0 0
    %4752 = vmatprep.subr.bf16.mxu0 0
    %4753 = vmatpush1.bf16.msra.mxu0 0
    %4754 = vmatprep.subr.bf16.mxu0 0
    %4755 = vmatpush1.bf16.msra.mxu0 0
    %4756 = vmatprep.subr.bf16.mxu0 0
    %4757 = vmatpush1.bf16.msra.mxu0 0
    %4758 = vmatprep.subr.bf16.mxu0 0
    %4759 = vmatpush1.bf16.msra.mxu0 0
    %4760 = vmatprep.subr.bf16.mxu0 0
    %4761 = vmatpush1.bf16.msra.mxu0 0
    %4762 = vmatprep.subr.bf16.mxu0 0
    %4763 = vmatpush1.bf16.msra.mxu0 0
    %4764 = vmatprep.subr.bf16.mxu0 0
    %4765 = vmatpush1.bf16.msra.mxu0 0
    %4766 = vmatprep.mubr.bf16.mxu0 0
    %4767 = vmatmul.mubr.bf16.gmra.mrb[0].mxu0 %v4729
    %v4768 = vpop.f32.mrb[0].mxu0
    %v4769 = vadd.f32 0.0, %v4768
    %v4770 = vpop.f32.mrb[0].mxu0
    %v4771 = vpop.f32.mrb[0].mxu0
    %v4772 = vadd.f32 0.0, %v4771
    %v4773 = vpop.f32.mrb[0].mxu0
    %4774 = vmatprep.mubr.bf16.mxu0 0
    %4775 = vmatmul.mubr.bf16.gmra.mrb[0].mxu0 %v4732
    %v4776 = vpop.f32.mrb[0].mxu0
    %v4777 = vadd.f32 0.0, %v4776
    %v4778 = vpop.f32.mrb[0].mxu0
    %v4779 = vpop.f32.mrb[0].mxu0
    %v4780 = vadd.f32 0.0, %v4779
    %v4781 = vpop.f32.mrb[0].mxu0
    %4782 = vdwg.mxu0
    %v4783 = vadd.f32 %v4231, %v4769
    %v4784 = vadd.f32 %v4234, %v4772
    %v4785 = vadd.f32 %v4239, %v4777
    %v4786 = vadd.f32 %v4242, %v4780
    %v4788 = vlaneseq
    %v4789 = vshrl.u32 %v4788, 7
    %v4790 = vsub.s32 0, %v4789
    %v4791 = vrot.slane %v3017, %v4790
    %v4801 = vunpack.c.l.b16 %v2939
    %v4802 = vunpack.c.l.b16 %v2940
    %v4803 = vunpack.c.l.b16 %v2941
    %v4804 = vunpack.c.l.b16 %v2942
    %v4805 = vunpack.c.l.b16 %v2943
    %v4806 = vunpack.c.l.b16 %v2944
    %v4807 = vunpack.c.l.b16 %v2945
    %v4808 = vunpack.c.l.b16 %v2946
    %v4809 = vpack.c.b16 %v4802, %v4801
    %v4810 = vpack.c.b16 %v4804, %v4803
    %v4811 = vpack.c.b16 %v4806, %v4805
    %v4812 = vpack.c.b16 %v4808, %v4807
    %4817 = vmatprep.subr.bf16.mxu0 0
    %4818 = vmatpush1.bf16.msra.mxu0 %v4809
    %4819 = vmatprep.subr.bf16.mxu0 0
    %4820 = vmatpush1.bf16.msra.mxu0 %v4810
    %4821 = vmatprep.subr.bf16.mxu0 0
    %4822 = vmatpush1.bf16.msra.mxu0 %v4811
    %4823 = vmatprep.subr.bf16.mxu0 0
    %4824 = vmatpush1.bf16.msra.mxu0 %v4812
    %4825 = vmatprep.subr.bf16.mxu0 0
    %4826 = vmatpush1.bf16.msra.mxu0 0
    %4827 = vmatprep.subr.bf16.mxu0 0
    %4828 = vmatpush1.bf16.msra.mxu0 0
    %4829 = vmatprep.subr.bf16.mxu0 0
    %4830 = vmatpush1.bf16.msra.mxu0 0
    %4831 = vmatprep.subr.bf16.mxu0 0
    %4832 = vmatpush1.bf16.msra.mxu0 0
    %4833 = vmatprep.subr.bf16.mxu0 0
    %4834 = vmatpush1.bf16.msra.mxu0 0
    %4835 = vmatprep.subr.bf16.mxu0 0
    %4836 = vmatpush1.bf16.msra.mxu0 0
    %4837 = vmatprep.subr.bf16.mxu0 0
    %4838 = vmatpush1.bf16.msra.mxu0 0
    %4839 = vmatprep.subr.bf16.mxu0 0
    %4840 = vmatpush1.bf16.msra.mxu0 0
    %4841 = vmatprep.subr.bf16.mxu0 0
    %4842 = vmatpush1.bf16.msra.mxu0 0
    %4843 = vmatprep.subr.bf16.mxu0 0
    %4844 = vmatpush1.bf16.msra.mxu0 0
    %4845 = vmatprep.subr.bf16.mxu0 0
    %4846 = vmatpush1.bf16.msra.mxu0 0
    %4847 = vmatprep.subr.bf16.mxu0 0
    %4848 = vmatpush1.bf16.msra.mxu0 0
    %4849 = vmatprep.mubr.bf16.mxu0 0
    %4850 = vmatmul.mubr.bf16.gmra.mrb[0].mxu0 %v3194
    %v4851 = vpop.f32.mrb[0].mxu0
    %v4852 = vadd.f32 %v4791, %v4851
    %v4853 = vpop.f32.mrb[0].mxu0
    %v4854 = vpop.f32.mrb[0].mxu0
    %v4855 = vadd.f32 %v4791, %v4854
    %v4856 = vpop.f32.mrb[0].mxu0
    %4857 = vmatprep.mubr.bf16.mxu0 0
    %4858 = vmatmul.mubr.bf16.gmra.mrb[0].mxu0 %v3197
    %v4859 = vpop.f32.mrb[0].mxu0
    %v4860 = vadd.f32 %v4791, %v4859
    %v4861 = vpop.f32.mrb[0].mxu0
    %v4862 = vpop.f32.mrb[0].mxu0
    %v4863 = vadd.f32 %v4791, %v4862
    %v4864 = vpop.f32.mrb[0].mxu0
    %4865 = vdwg.mxu0
    %v4867 = vlaneseq
    %v4868 = vshrl.u32 %v4867, 7
    %v4869 = vsub.s32 0, %v4868
    %v4870 = vrot.slane %v3022, %v4869
    %v4880 = vunpack.c.l.b16 %v2972
    %v4881 = vunpack.c.l.b16 %v2973
    %v4882 = vunpack.c.l.b16 %v2974
    %v4883 = vunpack.c.l.b16 %v2975
    %v4884 = vunpack.c.l.b16 %v2976
    %v4885 = vunpack.c.l.b16 %v2977
    %v4886 = vunpack.c.l.b16 %v2978
    %v4887 = vunpack.c.l.b16 %v2979
    %v4888 = vpack.c.b16 %v4881, %v4880
    %v4889 = vpack.c.b16 %v4883, %v4882
    %v4890 = vpack.c.b16 %v4885, %v4884
    %v4891 = vpack.c.b16 %v4887, %v4886
    %4896 = vmatprep.subr.bf16.mxu0 0
    %4897 = vmatpush1.bf16.msra.mxu0 %v4888
    %4898 = vmatprep.subr.bf16.mxu0 0
    %4899 = vmatpush1.bf16.msra.mxu0 %v4889
    %4900 = vmatprep.subr.bf16.mxu0 0
    %4901 = vmatpush1.bf16.msra.mxu0 %v4890
    %4902 = vmatprep.subr.bf16.mxu0 0
    %4903 = vmatpush1.bf16.msra.mxu0 %v4891
    %4904 = vmatprep.subr.bf16.mxu0 0
    %4905 = vmatpush1.bf16.msra.mxu0 0
    %4906 = vmatprep.subr.bf16.mxu0 0
    %4907 = vmatpush1.bf16.msra.mxu0 0
    %4908 = vmatprep.subr.bf16.mxu0 0
    %4909 = vmatpush1.bf16.msra.mxu0 0
    %4910 = vmatprep.subr.bf16.mxu0 0
    %4911 = vmatpush1.bf16.msra.mxu0 0
    %4912 = vmatprep.subr.bf16.mxu0 0
    %4913 = vmatpush1.bf16.msra.mxu0 0
    %4914 = vmatprep.subr.bf16.mxu0 0
    %4915 = vmatpush1.bf16.msra.mxu0 0
    %4916 = vmatprep.subr.bf16.mxu0 0
    %4917 = vmatpush1.bf16.msra.mxu0 0
    %4918 = vmatprep.subr.bf16.mxu0 0
    %4919 = vmatpush1.bf16.msra.mxu0 0
    %4920 = vmatprep.subr.bf16.mxu0 0
    %4921 = vmatpush1.bf16.msra.mxu0 0
    %4922 = vmatprep.subr.bf16.mxu0 0
    %4923 = vmatpush1.bf16.msra.mxu0 0
    %4924 = vmatprep.subr.bf16.mxu0 0
    %4925 = vmatpush1.bf16.msra.mxu0 0
    %4926 = vmatprep.subr.bf16.mxu0 0
    %4927 = vmatpush1.bf16.msra.mxu0 0
    %4928 = vmatprep.mubr.bf16.mxu0 0
    %4929 = vmatmul.mubr.bf16.gmra.mrb[0].mxu0 %v3194
    %v4930 = vpop.f32.mrb[0].mxu0
    %v4931 = vadd.f32 %v4870, %v4930
    %v4932 = vpop.f32.mrb[0].mxu0
    %v4933 = vpop.f32.mrb[0].mxu0
    %v4934 = vadd.f32 %v4870, %v4933
    %v4935 = vpop.f32.mrb[0].mxu0
    %4936 = vmatprep.mubr.bf16.mxu0 0
    %4937 = vmatmul.mubr.bf16.gmra.mrb[0].mxu0 %v3197
    %v4938 = vpop.f32.mrb[0].mxu0
    %v4939 = vadd.f32 %v4870, %v4938
    %v4940 = vpop.f32.mrb[0].mxu0
    %v4941 = vpop.f32.mrb[0].mxu0
    %v4942 = vadd.f32 %v4870, %v4941
    %v4943 = vpop.f32.mrb[0].mxu0
    %4944 = vdwg.mxu0
    %v4946 = vlaneseq
    %v4947 = vshrl.u32 %v4946, 7
    %v4948 = vsub.s32 0, %v4947
    %v4949 = vrot.slane %v3027, %v4948
    %v4959 = vunpack.c.l.b16 %v3005
    %v4960 = vunpack.c.l.b16 %v3006
    %v4961 = vunpack.c.l.b16 %v3007
    %v4962 = vunpack.c.l.b16 %v3008
    %v4963 = vunpack.c.l.b16 %v3009
    %v4964 = vunpack.c.l.b16 %v3010
    %v4965 = vunpack.c.l.b16 %v3011
    %v4966 = vunpack.c.l.b16 %v3012
    %v4967 = vpack.c.b16 %v4960, %v4959
    %v4968 = vpack.c.b16 %v4962, %v4961
    %v4969 = vpack.c.b16 %v4964, %v4963
    %v4970 = vpack.c.b16 %v4966, %v4965
    %4975 = vmatprep.subr.bf16.mxu0 0
    %4976 = vmatpush1.bf16.msra.mxu0 %v4967
    %4977 = vmatprep.subr.bf16.mxu0 0
    %4978 = vmatpush1.bf16.msra.mxu0 %v4968
    %4979 = vmatprep.subr.bf16.mxu0 0
    %4980 = vmatpush1.bf16.msra.mxu0 %v4969
    %4981 = vmatprep.subr.bf16.mxu0 0
    %4982 = vmatpush1.bf16.msra.mxu0 %v4970
    %4983 = vmatprep.subr.bf16.mxu0 0
    %4984 = vmatpush1.bf16.msra.mxu0 0
    %4985 = vmatprep.subr.bf16.mxu0 0
    %4986 = vmatpush1.bf16.msra.mxu0 0
    %4987 = vmatprep.subr.bf16.mxu0 0
    %4988 = vmatpush1.bf16.msra.mxu0 0
    %4989 = vmatprep.subr.bf16.mxu0 0
    %4990 = vmatpush1.bf16.msra.mxu0 0
    %4991 = vmatprep.subr.bf16.mxu0 0
    %4992 = vmatpush1.bf16.msra.mxu0 0
    %4993 = vmatprep.subr.bf16.mxu0 0
    %4994 = vmatpush1.bf16.msra.mxu0 0
    %4995 = vmatprep.subr.bf16.mxu0 0
    %4996 = vmatpush1.bf16.msra.mxu0 0
    %4997 = vmatprep.subr.bf16.mxu0 0
    %4998 = vmatpush1.bf16.msra.mxu0 0
    %4999 = vmatprep.subr.bf16.mxu0 0
    %5000 = vmatpush1.bf16.msra.mxu0 0
    %5001 = vmatprep.subr.bf16.mxu0 0
    %5002 = vmatpush1.bf16.msra.mxu0 0
    %5003 = vmatprep.subr.bf16.mxu0 0
    %5004 = vmatpush1.bf16.msra.mxu0 0
    %5005 = vmatprep.subr.bf16.mxu0 0
    %5006 = vmatpush1.bf16.msra.mxu0 0
    %5007 = vmatprep.mubr.bf16.mxu0 0
    %5008 = vmatmul.mubr.bf16.gmra.mrb[0].mxu0 %v3194
    %v5009 = vpop.f32.mrb[0].mxu0
    %v5010 = vadd.f32 %v4949, %v5009
    %v5011 = vpop.f32.mrb[0].mxu0
    %v5012 = vpop.f32.mrb[0].mxu0
    %v5013 = vadd.f32 %v4949, %v5012
    %v5014 = vpop.f32.mrb[0].mxu0
    %5015 = vmatprep.mubr.bf16.mxu0 0
    %5016 = vmatmul.mubr.bf16.gmra.mrb[0].mxu0 %v3197
    %v5017 = vpop.f32.mrb[0].mxu0
    %v5018 = vadd.f32 %v4949, %v5017
    %v5019 = vpop.f32.mrb[0].mxu0
    %v5020 = vpop.f32.mrb[0].mxu0
    %v5021 = vadd.f32 %v4949, %v5020
    %v5022 = vpop.f32.mrb[0].mxu0
    %5023 = vdwg.mxu0
    %v5024 = vpack.c.bf16 %v4855, %v4852
    %v5025 = vpack.c.bf16 %v4863, %v4860
    %v5026 = vpack.c.bf16 %v4934, %v4931
    %v5027 = vpack.c.bf16 %v4942, %v4939
    %v5029 = vsel %vm557, %v5024, 0
    %v5032 = vsel %vm557, %v5026, 0
    %5034 = vmatprep.subr.bf16.mxu0 0
    %5035 = vmatpush1.bf16.xpose.msra.mxu0 %v5032
    %5036 = vmatprep.subr.bf16.mxu0 0
    %5037 = vmatpush1.bf16.xpose.msra.mxu0 0
    %5038 = vmatprep.subr.bf16.mxu0 0
    %5039 = vmatpush1.bf16.xpose.msra.mxu0 0
    %5040 = vmatprep.subr.bf16.mxu0 0
    %5041 = vmatpush1.bf16.xpose.msra.mxu0 0
    %5042 = vmatprep.subr.bf16.mxu0 0
    %5043 = vmatpush1.bf16.xpose.msra.mxu0 0
    %5044 = vmatprep.subr.bf16.mxu0 0
    %5045 = vmatpush1.bf16.xpose.msra.mxu0 0
    %5046 = vmatprep.subr.bf16.mxu0 0
    %5047 = vmatpush1.bf16.xpose.msra.mxu0 0
    %5048 = vmatprep.subr.bf16.mxu0 0
    %5049 = vmatpush1.bf16.xpose.msra.mxu0 0
    %5050 = vmatprep.subr.bf16.mxu0 0
    %5051 = vmatpush1.bf16.xpose.msra.mxu0 0
    %5052 = vmatprep.subr.bf16.mxu0 0
    %5053 = vmatpush1.bf16.xpose.msra.mxu0 0
    %5054 = vmatprep.subr.bf16.mxu0 0
    %5055 = vmatpush1.bf16.xpose.msra.mxu0 0
    %5056 = vmatprep.subr.bf16.mxu0 0
    %5057 = vmatpush1.bf16.xpose.msra.mxu0 0
    %5058 = vmatprep.subr.bf16.mxu0 0
    %5059 = vmatpush1.bf16.xpose.msra.mxu0 0
    %5060 = vmatprep.subr.bf16.mxu0 0
    %5061 = vmatpush1.bf16.xpose.msra.mxu0 0
    %5062 = vmatprep.subr.bf16.mxu0 0
    %5063 = vmatpush1.bf16.xpose.msra.mxu0 0
    %5064 = vmatprep.subr.bf16.mxu0 0
    %5065 = vmatpush1.bf16.xpose.msra.mxu0 0
    %5066 = vmatprep.mubr.bf16.mxu0 0
    %5067 = vmatmul.mubr.bf16.gmra.mrb[0].mxu0 %v5029
    %v5068 = vpop.f32.mrb[0].mxu0
    %v5069 = vadd.f32 0.0, %v5068
    %v5070 = vpop.f32.mrb[0].mxu0
    %v5071 = vpop.f32.mrb[0].mxu0
    %v5072 = vadd.f32 0.0, %v5071
    %v5073 = vpop.f32.mrb[0].mxu0
    %5074 = vdwg.mxu0
    %v5076 = vsel %vm557, %v5025, 0
    %v5079 = vsel %vm557, %v5027, 0
    %5081 = vmatprep.subr.bf16.mxu0 0
    %5082 = vmatpush1.bf16.xpose.msra.mxu0 %v5079
    %5083 = vmatprep.subr.bf16.mxu0 0
    %5084 = vmatpush1.bf16.xpose.msra.mxu0 0
    %5085 = vmatprep.subr.bf16.mxu0 0
    %5086 = vmatpush1.bf16.xpose.msra.mxu0 0
    %5087 = vmatprep.subr.bf16.mxu0 0
    %5088 = vmatpush1.bf16.xpose.msra.mxu0 0
    %5089 = vmatprep.subr.bf16.mxu0 0
    %5090 = vmatpush1.bf16.xpose.msra.mxu0 0
    %5091 = vmatprep.subr.bf16.mxu0 0
    %5092 = vmatpush1.bf16.xpose.msra.mxu0 0
    %5093 = vmatprep.subr.bf16.mxu0 0
    %5094 = vmatpush1.bf16.xpose.msra.mxu0 0
    %5095 = vmatprep.subr.bf16.mxu0 0
    %5096 = vmatpush1.bf16.xpose.msra.mxu0 0
    %5097 = vmatprep.subr.bf16.mxu0 0
    %5098 = vmatpush1.bf16.xpose.msra.mxu0 0
    %5099 = vmatprep.subr.bf16.mxu0 0
    %5100 = vmatpush1.bf16.xpose.msra.mxu0 0
    %5101 = vmatprep.subr.bf16.mxu0 0
    %5102 = vmatpush1.bf16.xpose.msra.mxu0 0
    %5103 = vmatprep.subr.bf16.mxu0 0
    %5104 = vmatpush1.bf16.xpose.msra.mxu0 0
    %5105 = vmatprep.subr.bf16.mxu0 0
    %5106 = vmatpush1.bf16.xpose.msra.mxu0 0
    %5107 = vmatprep.subr.bf16.mxu0 0
    %5108 = vmatpush1.bf16.xpose.msra.mxu0 0
    %5109 = vmatprep.subr.bf16.mxu0 0
    %5110 = vmatpush1.bf16.xpose.msra.mxu0 0
    %5111 = vmatprep.subr.bf16.mxu0 0
    %5112 = vmatpush1.bf16.xpose.msra.mxu0 0
    %5113 = vmatprep.mubr.bf16.mxu0 0
    %5114 = vmatmul.mubr.bf16.gmra.mrb[0].mxu0 %v5076
    %v5115 = vpop.f32.mrb[0].mxu0
    %v5116 = vadd.f32 0.0, %v5115
    %v5117 = vpop.f32.mrb[0].mxu0
    %v5118 = vpop.f32.mrb[0].mxu0
    %v5119 = vadd.f32 0.0, %v5118
    %v5120 = vpop.f32.mrb[0].mxu0
    %5121 = vdwg.mxu0
    %v5122 = vmul.f32 %v5069, 0.25
    %v5123 = vmul.f32 %v5072, 0.25
    %v5124 = vmul.f32 %v5116, 0.25
    %v5125 = vmul.f32 %v5119, 0.25
    %v5126 = vsel %vm557, %v5122, -inf
    %5127 = vmax.xlane.f32.xlu0 %v5126
    %v5128 = vpop.xlane.xlu0 %5127
    %v5129 = vsel %vm557, %v5123, -inf
    %5130 = vmax.xlane.f32.xlu0 %v5129
    %v5131 = vpop.xlane.xlu0 %5130
    %v5132 = vsel %vm557, %v5124, -inf
    %5133 = vmax.xlane.f32.xlu0 %v5132
    %v5134 = vpop.xlane.xlu0 %5133
    %v5135 = vsel %vm557, %v5125, -inf
    %5136 = vmax.xlane.f32.xlu0 %v5135
    %v5137 = vpop.xlane.xlu0 %5136
    %v5138 = vsub.f32 %v5122, %v5128
    %v5139 = vsub.f32 %v5123, %v5131
    %v5140 = vsub.f32 %v5124, %v5134
    %v5141 = vsub.f32 %v5125, %v5137
    %v5142 = vmul.f32 %v5138, 1.442695
    %v5143 = vpow.pop %v5142
    %v5144 = vmul.f32 %v5139, 1.442695
    %v5145 = vpow.pop %v5144
    %v5146 = vmul.f32 %v5140, 1.442695
    %v5147 = vpow.pop %v5146
    %v5148 = vmul.f32 %v5141, 1.442695
    %v5149 = vpow.pop %v5148
    %v5150 = vsel %vm557, %v5143, 0.0
    %5151 = vadd.xlane.f32.xlu0 %v5150
    %v5152 = vpop.xlane.xlu0 %5151
    %v5153 = vsel %vm557, %v5145, 0.0
    %5154 = vadd.xlane.f32.xlu0 %v5153
    %v5155 = vpop.xlane.xlu0 %5154
    %v5156 = vsel %vm557, %v5147, 0.0
    %5157 = vadd.xlane.f32.xlu0 %v5156
    %v5158 = vpop.xlane.xlu0 %5157
    %v5159 = vsel %vm557, %v5149, 0.0
    %5160 = vadd.xlane.f32.xlu0 %v5159
    %v5161 = vpop.xlane.xlu0 %5160
    %v5162 = vrcp.pop %v5152
    %v5163 = vrcp.pop %v5155
    %v5164 = vrcp.pop %v5158
    %v5165 = vrcp.pop %v5161
    %v5166 = vmul.f32 %v5143, %v5162
    %v5167 = vmul.f32 %v5145, %v5163
    %v5168 = vmul.f32 %v5147, %v5164
    %v5169 = vmul.f32 %v5149, %v5165
    %v5170 = vpack.c.bf16 %v5167, %v5166
    %v5171 = vpack.c.bf16 %v5169, %v5168
    %v5172 = vpack.c.bf16 %v5013, %v5010
    %v5173 = vpack.c.bf16 %v5021, %v5018
    %v5175 = vsel %vm557, %v5170, 0
    %5177 = vmatprep.subr.bf16.mxu0 0
    %5178 = vmatpush1.bf16.msra.mxu0 %v5172
    %5179 = vmatprep.subr.bf16.mxu0 0
    %5180 = vmatpush1.bf16.msra.mxu0 0
    %5181 = vmatprep.subr.bf16.mxu0 0
    %5182 = vmatpush1.bf16.msra.mxu0 0
    %5183 = vmatprep.subr.bf16.mxu0 0
    %5184 = vmatpush1.bf16.msra.mxu0 0
    %5185 = vmatprep.subr.bf16.mxu0 0
    %5186 = vmatpush1.bf16.msra.mxu0 0
    %5187 = vmatprep.subr.bf16.mxu0 0
    %5188 = vmatpush1.bf16.msra.mxu0 0
    %5189 = vmatprep.subr.bf16.mxu0 0
    %5190 = vmatpush1.bf16.msra.mxu0 0
    %5191 = vmatprep.subr.bf16.mxu0 0
    %5192 = vmatpush1.bf16.msra.mxu0 0
    %5193 = vmatprep.subr.bf16.mxu0 0
    %5194 = vmatpush1.bf16.msra.mxu0 0
    %5195 = vmatprep.subr.bf16.mxu0 0
    %5196 = vmatpush1.bf16.msra.mxu0 0
    %5197 = vmatprep.subr.bf16.mxu0 0
    %5198 = vmatpush1.bf16.msra.mxu0 0
    %5199 = vmatprep.subr.bf16.mxu0 0
    %5200 = vmatpush1.bf16.msra.mxu0 0
    %5201 = vmatprep.subr.bf16.mxu0 0
    %5202 = vmatpush1.bf16.msra.mxu0 0
    %5203 = vmatprep.subr.bf16.mxu0 0
    %5204 = vmatpush1.bf16.msra.mxu0 0
    %5205 = vmatprep.subr.bf16.mxu0 0
    %5206 = vmatpush1.bf16.msra.mxu0 0
    %5207 = vmatprep.subr.bf16.mxu0 0
    %5208 = vmatpush1.bf16.msra.mxu0 0
    %5209 = vmatprep.mubr.bf16.mxu0 0
    %5210 = vmatmul.mubr.bf16.gmra.mrb[0].mxu0 %v5175
    %v5211 = vpop.f32.mrb[0].mxu0
    %v5212 = vadd.f32 0.0, %v5211
    %v5213 = vpop.f32.mrb[0].mxu0
    %v5214 = vpop.f32.mrb[0].mxu0
    %v5215 = vadd.f32 0.0, %v5214
    %v5216 = vpop.f32.mrb[0].mxu0
    %5217 = vdwg.mxu0
    %v5219 = vsel %vm557, %v5171, 0
    %5221 = vmatprep.subr.bf16.mxu0 0
    %5222 = vmatpush1.bf16.msra.mxu0 %v5173
    %5223 = vmatprep.subr.bf16.mxu0 0
    %5224 = vmatpush1.bf16.msra.mxu0 0
    %5225 = vmatprep.subr.bf16.mxu0 0
    %5226 = vmatpush1.bf16.msra.mxu0 0
    %5227 = vmatprep.subr.bf16.mxu0 0
    %5228 = vmatpush1.bf16.msra.mxu0 0
    %5229 = vmatprep.subr.bf16.mxu0 0
    %5230 = vmatpush1.bf16.msra.mxu0 0
    %5231 = vmatprep.subr.bf16.mxu0 0
    %5232 = vmatpush1.bf16.msra.mxu0 0
    %5233 = vmatprep.subr.bf16.mxu0 0
    %5234 = vmatpush1.bf16.msra.mxu0 0
    %5235 = vmatprep.subr.bf16.mxu0 0
    %5236 = vmatpush1.bf16.msra.mxu0 0
    %5237 = vmatprep.subr.bf16.mxu0 0
    %5238 = vmatpush1.bf16.msra.mxu0 0
    %5239 = vmatprep.subr.bf16.mxu0 0
    %5240 = vmatpush1.bf16.msra.mxu0 0
    %5241 = vmatprep.subr.bf16.mxu0 0
    %5242 = vmatpush1.bf16.msra.mxu0 0
    %5243 = vmatprep.subr.bf16.mxu0 0
    %5244 = vmatpush1.bf16.msra.mxu0 0
    %5245 = vmatprep.subr.bf16.mxu0 0
    %5246 = vmatpush1.bf16.msra.mxu0 0
    %5247 = vmatprep.subr.bf16.mxu0 0
    %5248 = vmatpush1.bf16.msra.mxu0 0
    %5249 = vmatprep.subr.bf16.mxu0 0
    %5250 = vmatpush1.bf16.msra.mxu0 0
    %5251 = vmatprep.subr.bf16.mxu0 0
    %5252 = vmatpush1.bf16.msra.mxu0 0
    %5253 = vmatprep.mubr.bf16.mxu0 0
    %5254 = vmatmul.mubr.bf16.gmra.mrb[0].mxu0 %v5219
    %v5255 = vpop.f32.mrb[0].mxu0
    %v5256 = vadd.f32 0.0, %v5255
    %v5257 = vpop.f32.mrb[0].mxu0
    %v5258 = vpop.f32.mrb[0].mxu0
    %v5259 = vadd.f32 0.0, %v5258
    %v5260 = vpop.f32.mrb[0].mxu0
    %5261 = vdwg.mxu0
    %v5262 = vpack.c.bf16 %v5215, %v5212
    %v5263 = vpack.c.bf16 %v5259, %v5256
    %v5266 = vunpack.c.l.b16 %v3035
    %v5267 = vunpack.c.l.b16 %v3036
    %v5268 = vpack.c.b16 %v5267, %v5266
    %v5271 = vsel %vm557, %v5262, 0
    %v5274 = vsel %vm557, %v5263, 0
    %5276 = vmatprep.subr.bf16.mxu0 0
    %5277 = vmatpush1.bf16.msra.mxu0 %v5268
    %5278 = vmatprep.subr.bf16.mxu0 0
    %5279 = vmatpush1.bf16.msra.mxu0 0
    %5280 = vmatprep.subr.bf16.mxu0 0
    %5281 = vmatpush1.bf16.msra.mxu0 0
    %5282 = vmatprep.subr.bf16.mxu0 0
    %5283 = vmatpush1.bf16.msra.mxu0 0
    %5284 = vmatprep.subr.bf16.mxu0 0
    %5285 = vmatpush1.bf16.msra.mxu0 0
    %5286 = vmatprep.subr.bf16.mxu0 0
    %5287 = vmatpush1.bf16.msra.mxu0 0
    %5288 = vmatprep.subr.bf16.mxu0 0
    %5289 = vmatpush1.bf16.msra.mxu0 0
    %5290 = vmatprep.subr.bf16.mxu0 0
    %5291 = vmatpush1.bf16.msra.mxu0 0
    %5292 = vmatprep.subr.bf16.mxu0 0
    %5293 = vmatpush1.bf16.msra.mxu0 0
    %5294 = vmatprep.subr.bf16.mxu0 0
    %5295 = vmatpush1.bf16.msra.mxu0 0
    %5296 = vmatprep.subr.bf16.mxu0 0
    %5297 = vmatpush1.bf16.msra.mxu0 0
    %5298 = vmatprep.subr.bf16.mxu0 0
    %5299 = vmatpush1.bf16.msra.mxu0 0
    %5300 = vmatprep.subr.bf16.mxu0 0
    %5301 = vmatpush1.bf16.msra.mxu0 0
    %5302 = vmatprep.subr.bf16.mxu0 0
    %5303 = vmatpush1.bf16.msra.mxu0 0
    %5304 = vmatprep.subr.bf16.mxu0 0
    %5305 = vmatpush1.bf16.msra.mxu0 0
    %5306 = vmatprep.subr.bf16.mxu0 0
    %5307 = vmatpush1.bf16.msra.mxu0 0
    %5308 = vmatprep.mubr.bf16.mxu0 0
    %5309 = vmatmul.mubr.bf16.gmra.mrb[0].mxu0 %v5271
    %v5310 = vpop.f32.mrb[0].mxu0
    %v5311 = vadd.f32 0.0, %v5310
    %v5312 = vpop.f32.mrb[0].mxu0
    %v5313 = vpop.f32.mrb[0].mxu0
    %v5314 = vadd.f32 0.0, %v5313
    %v5315 = vpop.f32.mrb[0].mxu0
    %5316 = vmatprep.mubr.bf16.mxu0 0
    %5317 = vmatmul.mubr.bf16.gmra.mrb[0].mxu0 %v5274
    %v5318 = vpop.f32.mrb[0].mxu0
    %v5319 = vadd.f32 0.0, %v5318
    %v5320 = vpop.f32.mrb[0].mxu0
    %v5321 = vpop.f32.mrb[0].mxu0
    %v5322 = vadd.f32 0.0, %v5321
    %v5323 = vpop.f32.mrb[0].mxu0
    %5324 = vdwg.mxu0
    %v5325 = vadd.f32 %v4783, %v5311
    %v5326 = vadd.f32 %v4784, %v5314
    %v5327 = vadd.f32 %v4785, %v5319
    %v5328 = vadd.f32 %v4786, %v5322
    %v5329 = vadd.f32 %v2906, %v5325
    %v5330 = vadd.f32 %v2907, %v5326
    %v5331 = vadd.f32 %v2908, %v5327
    %v5332 = vadd.f32 %v2909, %v5328
    %v5334 = vlaneseq
    %v5335 = vshrl.u32 %v5334, 7
    %v5336 = vsub.s32 0, %v5335
    %v5337 = vrot.slane %v3038, %v5336
    %v5339 = vadd.f32 %v5329, %v5337
    %v5340 = vadd.f32 %v5330, %v5337
    %v5341 = vadd.f32 %v5331, %v5337
    %v5342 = vadd.f32 %v5332, %v5337
    %v5343 = vsel %vm234, %v5339, 0.0
    %5344 = vadd.xlane.f32.xlu0 %v5343
    %v5345 = vpop.xlane.xlu0 %5344
    %v5346 = vsel %vm234, %v5340, 0.0
    %5347 = vadd.xlane.f32.xlu0 %v5346
    %v5348 = vpop.xlane.xlu0 %5347
    %v5349 = vsel %vm234, %v5341, 0.0
    %5350 = vadd.xlane.f32.xlu0 %v5349
    %v5351 = vpop.xlane.xlu0 %5350
    %v5352 = vsel %vm234, %v5342, 0.0
    %5353 = vadd.xlane.f32.xlu0 %v5352
    %v5354 = vpop.xlane.xlu0 %5353
    %v5355 = vmul.f32 %v5345, %v247
    %v5356 = vmul.f32 %v5348, %v247
    %v5357 = vmul.f32 %v5351, %v247
    %v5358 = vmul.f32 %v5354, %v247
    %v5359 = vsub.f32 %v5339, %v5355
    %v5360 = vsub.f32 %v5340, %v5356
    %v5361 = vsub.f32 %v5341, %v5357
    %v5362 = vsub.f32 %v5342, %v5358
    %v5363 = vmul.f32 %v5359, %v5359
    %v5364 = vmul.f32 %v5360, %v5360
    %v5365 = vmul.f32 %v5361, %v5361
    %v5366 = vmul.f32 %v5362, %v5362
    %v5367 = vsel %vm234, %v5363, 0.0
    %5368 = vadd.xlane.f32.xlu0 %v5367
    %v5369 = vpop.xlane.xlu0 %5368
    %v5370 = vsel %vm234, %v5364, 0.0
    %5371 = vadd.xlane.f32.xlu0 %v5370
    %v5372 = vpop.xlane.xlu0 %5371
    %v5373 = vsel %vm234, %v5365, 0.0
    %5374 = vadd.xlane.f32.xlu0 %v5373
    %v5375 = vpop.xlane.xlu0 %5374
    %v5376 = vsel %vm234, %v5366, 0.0
    %5377 = vadd.xlane.f32.xlu0 %v5376
    %v5378 = vpop.xlane.xlu0 %5377
    %v5379 = vmul.f32 %v5369, %v247
    %v5380 = vmul.f32 %v5372, %v247
    %v5381 = vmul.f32 %v5375, %v247
    %v5382 = vmul.f32 %v5378, %v247
    %v5383 = vadd.f32 %v5379, 1e-06
    %v5384 = vadd.f32 %v5380, 1e-06
    %v5385 = vadd.f32 %v5381, 1e-06
    %v5386 = vadd.f32 %v5382, 1e-06
    %v5387 = vrsqrt.pop %v5383
    %v5388 = vrsqrt.pop %v5384
    %v5389 = vrsqrt.pop %v5385
    %v5390 = vrsqrt.pop %v5386
    %v5391 = vmul.f32 %v5359, %v5387
    %v5392 = vmul.f32 %v5360, %v5388
    %v5393 = vmul.f32 %v5361, %v5389
    %v5394 = vmul.f32 %v5362, %v5390
    %v5396 = vlaneseq
    %v5397 = vshrl.u32 %v5396, 7
    %v5398 = vsub.s32 0, %v5397
    %v5399 = vrot.slane %v3040, %v5398
    %v5401 = vmul.f32 %v5391, %v5399
    %v5402 = vmul.f32 %v5392, %v5399
    %v5403 = vmul.f32 %v5393, %v5399
    %v5404 = vmul.f32 %v5394, %v5399
    %v5406 = vlaneseq
    %v5407 = vshrl.u32 %v5406, 7
    %v5408 = vsub.s32 0, %v5407
    %v5409 = vrot.slane %v3042, %v5408
    %v5411 = vadd.f32 %v5401, %v5409
    %v5412 = vadd.f32 %v5402, %v5409
    %v5413 = vadd.f32 %v5403, %v5409
    %v5414 = vadd.f32 %v5404, %v5409
    %v5415 = vpack.c.bf16 %v5412, %v5411
    %v5416 = vpack.c.bf16 %v5414, %v5413
    %v5418 = vlaneseq
    %v5419 = vshrl.u32 %v5418, 7
    %v5420 = vsub.s32 0, %v5419
    %v5421 = vrot.slane %v3053, %v5420
    %v5422 = vlaneseq
    %v5423 = vshrl.u32 %v5422, 7
    %v5424 = vsub.s32 1, %v5423
    %v5425 = vrot.slane %v3053, %v5424
    %v5436 = vunpack.c.l.b16 %v3044
    %v5437 = vunpack.c.h.b16 %v3044
    %v5438 = vunpack.c.l.b16 %v3045
    %v5439 = vunpack.c.h.b16 %v3045
    %v5440 = vunpack.c.l.b16 %v3046
    %v5441 = vunpack.c.h.b16 %v3046
    %v5442 = vunpack.c.l.b16 %v3047
    %v5443 = vunpack.c.h.b16 %v3047
    %v5444 = vunpack.c.l.b16 %v3048
    %v5445 = vunpack.c.h.b16 %v3048
    %v5446 = vunpack.c.l.b16 %v3049
    %v5447 = vunpack.c.h.b16 %v3049
    %v5448 = vunpack.c.l.b16 %v3050
    %v5449 = vunpack.c.h.b16 %v3050
    %v5450 = vunpack.c.l.b16 %v3051
    %v5451 = vunpack.c.h.b16 %v3051
    %v5452 = vpack.c.b16 %v5438, %v5436
    %v5453 = vpack.c.b16 %v5439, %v5437
    %v5454 = vpack.c.b16 %v5442, %v5440
    %v5455 = vpack.c.b16 %v5443, %v5441
    %v5456 = vpack.c.b16 %v5446, %v5444
    %v5457 = vpack.c.b16 %v5447, %v5445
    %v5458 = vpack.c.b16 %v5450, %v5448
    %v5459 = vpack.c.b16 %v5451, %v5449
    %v5469 = vsel %vm234, %v5415, 0
    %v5472 = vsel %vm234, %v5416, 0
    %5474 = vmatprep.subr.bf16.mxu0 %v5453
    %5475 = vmatpush1.bf16.msra.mxu0 %v5452
    %5476 = vmatprep.subr.bf16.mxu0 %v5455
    %5477 = vmatpush1.bf16.msra.mxu0 %v5454
    %5478 = vmatprep.subr.bf16.mxu0 %v5457
    %5479 = vmatpush1.bf16.msra.mxu0 %v5456
    %5480 = vmatprep.subr.bf16.mxu0 %v5459
    %5481 = vmatpush1.bf16.msra.mxu0 %v5458
    %5482 = vmatprep.subr.bf16.mxu0 0
    %5483 = vmatpush1.bf16.msra.mxu0 0
    %5484 = vmatprep.subr.bf16.mxu0 0
    %5485 = vmatpush1.bf16.msra.mxu0 0
    %5486 = vmatprep.subr.bf16.mxu0 0
    %5487 = vmatpush1.bf16.msra.mxu0 0
    %5488 = vmatprep.subr.bf16.mxu0 0
    %5489 = vmatpush1.bf16.msra.mxu0 0
    %5490 = vmatprep.subr.bf16.mxu0 0
    %5491 = vmatpush1.bf16.msra.mxu0 0
    %5492 = vmatprep.subr.bf16.mxu0 0
    %5493 = vmatpush1.bf16.msra.mxu0 0
    %5494 = vmatprep.subr.bf16.mxu0 0
    %5495 = vmatpush1.bf16.msra.mxu0 0
    %5496 = vmatprep.subr.bf16.mxu0 0
    %5497 = vmatpush1.bf16.msra.mxu0 0
    %5498 = vmatprep.subr.bf16.mxu0 0
    %5499 = vmatpush1.bf16.msra.mxu0 0
    %5500 = vmatprep.subr.bf16.mxu0 0
    %5501 = vmatpush1.bf16.msra.mxu0 0
    %5502 = vmatprep.subr.bf16.mxu0 0
    %5503 = vmatpush1.bf16.msra.mxu0 0
    %5504 = vmatprep.subr.bf16.mxu0 0
    %5505 = vmatpush1.bf16.msra.mxu0 0
    %5506 = vmatprep.mubr.bf16.mxu0 0
    %5507 = vmatmul.mubr.bf16.gmra.mrb[0].mxu0 %v5469
    %v5508 = vpop.f32.mrb[0].mxu0
    %v5509 = vadd.f32 %v5421, %v5508
    %v5510 = vpop.f32.mrb[0].mxu0
    %v5511 = vadd.f32 %v5425, %v5510
    %v5512 = vpop.f32.mrb[0].mxu0
    %v5513 = vadd.f32 %v5421, %v5512
    %v5514 = vpop.f32.mrb[0].mxu0
    %v5515 = vadd.f32 %v5425, %v5514
    %5516 = vmatprep.mubr.bf16.mxu0 0
    %5517 = vmatmul.mubr.bf16.gmra.mrb[0].mxu0 %v5472
    %v5518 = vpop.f32.mrb[0].mxu0
    %v5519 = vadd.f32 %v5421, %v5518
    %v5520 = vpop.f32.mrb[0].mxu0
    %v5521 = vadd.f32 %v5425, %v5520
    %v5522 = vpop.f32.mrb[0].mxu0
    %v5523 = vadd.f32 %v5421, %v5522
    %v5524 = vpop.f32.mrb[0].mxu0
    %v5525 = vadd.f32 %v5425, %v5524
    %5526 = vdwg.mxu0
    %v5527 = vmul.f32 %v5509, 0.5
    %v5528 = vmul.f32 %v5511, 0.5
    %v5529 = vmul.f32 %v5513, 0.5
    %v5530 = vmul.f32 %v5515, 0.5
    %v5531 = vmul.f32 %v5519, 0.5
    %v5532 = vmul.f32 %v5521, 0.5
    %v5533 = vmul.f32 %v5523, 0.5
    %v5534 = vmul.f32 %v5525, 0.5
    %v5535 = vmul.f32 %v5509, 0.044715
    %v5536 = vmul.f32 %v5511, 0.044715
    %v5537 = vmul.f32 %v5513, 0.044715
    %v5538 = vmul.f32 %v5515, 0.044715
    %v5539 = vmul.f32 %v5519, 0.044715
    %v5540 = vmul.f32 %v5521, 0.044715
    %v5541 = vmul.f32 %v5523, 0.044715
    %v5542 = vmul.f32 %v5525, 0.044715
    %v5543 = vmul.f32 %v5535, %v5509
    %v5544 = vmul.f32 %v5536, %v5511
    %v5545 = vmul.f32 %v5537, %v5513
    %v5546 = vmul.f32 %v5538, %v5515
    %v5547 = vmul.f32 %v5539, %v5519
    %v5548 = vmul.f32 %v5540, %v5521
    %v5549 = vmul.f32 %v5541, %v5523
    %v5550 = vmul.f32 %v5542, %v5525
    %v5551 = vmul.f32 %v5543, %v5509
    %v5552 = vmul.f32 %v5544, %v5511
    %v5553 = vmul.f32 %v5545, %v5513
    %v5554 = vmul.f32 %v5546, %v5515
    %v5555 = vmul.f32 %v5547, %v5519
    %v5556 = vmul.f32 %v5548, %v5521
    %v5557 = vmul.f32 %v5549, %v5523
    %v5558 = vmul.f32 %v5550, %v5525
    %v5559 = vadd.f32 %v5509, %v5551
    %v5560 = vadd.f32 %v5511, %v5552
    %v5561 = vadd.f32 %v5513, %v5553
    %v5562 = vadd.f32 %v5515, %v5554
    %v5563 = vadd.f32 %v5519, %v5555
    %v5564 = vadd.f32 %v5521, %v5556
    %v5565 = vadd.f32 %v5523, %v5557
    %v5566 = vadd.f32 %v5525, %v5558
    %v5567 = vmul.f32 %v5559, 0.7978846
    %v5568 = vmul.f32 %v5560, 0.7978846
    %v5569 = vmul.f32 %v5561, 0.7978846
    %v5570 = vmul.f32 %v5562, 0.7978846
    %v5571 = vmul.f32 %v5563, 0.7978846
    %v5572 = vmul.f32 %v5564, 0.7978846
    %v5573 = vmul.f32 %v5565, 0.7978846
    %v5574 = vmul.f32 %v5566, 0.7978846
    %v5575 = vtanh.pop %v5567
    %v5576 = vtanh.pop %v5568
    %v5577 = vtanh.pop %v5569
    %v5578 = vtanh.pop %v5570
    %v5579 = vtanh.pop %v5571
    %v5580 = vtanh.pop %v5572
    %v5581 = vtanh.pop %v5573
    %v5582 = vtanh.pop %v5574
    %v5583 = vadd.f32 %v5575, 1.0
    %v5584 = vadd.f32 %v5576, 1.0
    %v5585 = vadd.f32 %v5577, 1.0
    %v5586 = vadd.f32 %v5578, 1.0
    %v5587 = vadd.f32 %v5579, 1.0
    %v5588 = vadd.f32 %v5580, 1.0
    %v5589 = vadd.f32 %v5581, 1.0
    %v5590 = vadd.f32 %v5582, 1.0
    %v5591 = vmul.f32 %v5527, %v5583
    %v5592 = vmul.f32 %v5528, %v5584
    %v5593 = vmul.f32 %v5529, %v5585
    %v5594 = vmul.f32 %v5530, %v5586
    %v5595 = vmul.f32 %v5531, %v5587
    %v5596 = vmul.f32 %v5532, %v5588
    %v5597 = vmul.f32 %v5533, %v5589
    %v5598 = vmul.f32 %v5534, %v5590
    %v5599 = vpack.c.bf16 %v5593, %v5591
    %v5600 = vpack.c.bf16 %v5594, %v5592
    %v5601 = vpack.c.bf16 %v5597, %v5595
    %v5602 = vpack.c.bf16 %v5598, %v5596
    %v5635 = vunpack.c.l.b16 %v3055
    %v5636 = vunpack.c.l.b16 %v3056
    %v5637 = vunpack.c.l.b16 %v3057
    %v5638 = vunpack.c.l.b16 %v3058
    %v5639 = vunpack.c.l.b16 %v3059
    %v5640 = vunpack.c.l.b16 %v3060
    %v5641 = vunpack.c.l.b16 %v3061
    %v5642 = vunpack.c.l.b16 %v3062
    %v5643 = vunpack.c.l.b16 %v3063
    %v5644 = vunpack.c.l.b16 %v3064
    %v5645 = vunpack.c.l.b16 %v3065
    %v5646 = vunpack.c.l.b16 %v3066
    %v5647 = vunpack.c.l.b16 %v3067
    %v5648 = vunpack.c.l.b16 %v3068
    %v5649 = vunpack.c.l.b16 %v3069
    %v5650 = vunpack.c.l.b16 %v3070
    %v5651 = vunpack.c.l.b16 %v3071
    %v5652 = vunpack.c.l.b16 %v3072
    %v5653 = vunpack.c.l.b16 %v3073
    %v5654 = vunpack.c.l.b16 %v3074
    %v5655 = vunpack.c.l.b16 %v3075
    %v5656 = vunpack.c.l.b16 %v3076
    %v5657 = vunpack.c.l.b16 %v3077
    %v5658 = vunpack.c.l.b16 %v3078
    %v5659 = vunpack.c.l.b16 %v3079
    %v5660 = vunpack.c.l.b16 %v3080
    %v5661 = vunpack.c.l.b16 %v3081
    %v5662 = vunpack.c.l.b16 %v3082
    %v5663 = vunpack.c.l.b16 %v3083
    %v5664 = vunpack.c.l.b16 %v3084
    %v5665 = vunpack.c.l.b16 %v3085
    %v5666 = vunpack.c.l.b16 %v3086
    %v5667 = vpack.c.b16 %v5636, %v5635
    %v5668 = vpack.c.b16 %v5638, %v5637
    %v5669 = vpack.c.b16 %v5640, %v5639
    %v5670 = vpack.c.b16 %v5642, %v5641
    %v5671 = vpack.c.b16 %v5644, %v5643
    %v5672 = vpack.c.b16 %v5646, %v5645
    %v5673 = vpack.c.b16 %v5648, %v5647
    %v5674 = vpack.c.b16 %v5650, %v5649
    %v5675 = vpack.c.b16 %v5652, %v5651
    %v5676 = vpack.c.b16 %v5654, %v5653
    %v5677 = vpack.c.b16 %v5656, %v5655
    %v5678 = vpack.c.b16 %v5658, %v5657
    %v5679 = vpack.c.b16 %v5660, %v5659
    %v5680 = vpack.c.b16 %v5662, %v5661
    %v5681 = vpack.c.b16 %v5664, %v5663
    %v5682 = vpack.c.b16 %v5666, %v5665
    %5699 = vmatprep.subr.bf16.mxu0 0
    %5700 = vmatpush1.bf16.msra.mxu0 %v5667
    %5701 = vmatprep.subr.bf16.mxu0 0
    %5702 = vmatpush1.bf16.msra.mxu0 %v5668
    %5703 = vmatprep.subr.bf16.mxu0 0
    %5704 = vmatpush1.bf16.msra.mxu0 %v5669
    %5705 = vmatprep.subr.bf16.mxu0 0
    %5706 = vmatpush1.bf16.msra.mxu0 %v5670
    %5707 = vmatprep.subr.bf16.mxu0 0
    %5708 = vmatpush1.bf16.msra.mxu0 %v5671
    %5709 = vmatprep.subr.bf16.mxu0 0
    %5710 = vmatpush1.bf16.msra.mxu0 %v5672
    %5711 = vmatprep.subr.bf16.mxu0 0
    %5712 = vmatpush1.bf16.msra.mxu0 %v5673
    %5713 = vmatprep.subr.bf16.mxu0 0
    %5714 = vmatpush1.bf16.msra.mxu0 %v5674
    %5715 = vmatprep.subr.bf16.mxu0 0
    %5716 = vmatpush1.bf16.msra.mxu0 %v5675
    %5717 = vmatprep.subr.bf16.mxu0 0
    %5718 = vmatpush1.bf16.msra.mxu0 %v5676
    %5719 = vmatprep.subr.bf16.mxu0 0
    %5720 = vmatpush1.bf16.msra.mxu0 %v5677
    %5721 = vmatprep.subr.bf16.mxu0 0
    %5722 = vmatpush1.bf16.msra.mxu0 %v5678
    %5723 = vmatprep.subr.bf16.mxu0 0
    %5724 = vmatpush1.bf16.msra.mxu0 %v5679
    %5725 = vmatprep.subr.bf16.mxu0 0
    %5726 = vmatpush1.bf16.msra.mxu0 %v5680
    %5727 = vmatprep.subr.bf16.mxu0 0
    %5728 = vmatpush1.bf16.msra.mxu0 %v5681
    %5729 = vmatprep.subr.bf16.mxu0 0
    %5730 = vmatpush1.bf16.msra.mxu0 %v5682
    %5731 = vmatprep.mubr.bf16.mxu0 %v5600
    %5732 = vmatmul.mubr.bf16.gmra.mrb[0].mxu0 %v5599
    %v5733 = vpop.f32.mrb[0].mxu0
    %v5734 = vadd.f32 0.0, %v5733
    %v5735 = vpop.f32.mrb[0].mxu0
    %v5736 = vpop.f32.mrb[0].mxu0
    %v5737 = vadd.f32 0.0, %v5736
    %v5738 = vpop.f32.mrb[0].mxu0
    %5739 = vmatprep.mubr.bf16.mxu0 %v5602
    %5740 = vmatmul.mubr.bf16.gmra.mrb[0].mxu0 %v5601
    %v5741 = vpop.f32.mrb[0].mxu0
    %v5742 = vadd.f32 0.0, %v5741
    %v5743 = vpop.f32.mrb[0].mxu0
    %v5744 = vpop.f32.mrb[0].mxu0
    %v5745 = vadd.f32 0.0, %v5744
    %v5746 = vpop.f32.mrb[0].mxu0
    %5747 = vdwg.mxu0
    %v5748 = vadd.f32 %v5339, %v5734
    %v5749 = vadd.f32 %v5340, %v5737
    %v5750 = vadd.f32 %v5341, %v5742
    %v5751 = vadd.f32 %v5342, %v5745
    %v5753 = vlaneseq
    %v5754 = vshrl.u32 %v5753, 7
    %v5755 = vsub.s32 0, %v5754
    %v5756 = vrot.slane %v3088, %v5755
    %v5758 = vadd.f32 %v5748, %v5756
    %v5759 = vadd.f32 %v5749, %v5756
    %v5760 = vadd.f32 %v5750, %v5756
    %v5761 = vadd.f32 %v5751, %v5756
    %5762 = vst.msk [vmem:[#allocation2] sm:$0xff] %vm234, %v5758
    %5763 = vst.msk [vmem:[#allocation2 + $0x8] sm:$0xff] %vm234, %v5759
    %5764 = vst.msk [vmem:[#allocation2 + $0x10] sm:$0xff] %vm234, %v5760
    %5765 = vst.msk [vmem:[#allocation2 + $0x18] sm:$0xff] %vm234, %v5761
    // Predicated region
    $region74: #{tpu_custom_call.1} parent=1 // pred_check
      _
    $region75: #{tpu_custom_call.1} parent=1 // pred_check_branch
      %5767 = sbr.rel (0) target = $region77
    $region76: #{tpu_custom_call.1} parent=1 // pred_region
      %s5769 = ssub.s32 512, 512
      %5770 = vsyncadd [#allocation3], %s5769
      %s5771 = sshll.u32 [#allocation2], 4
      %s5772 = int_to_ptr.vmem [resolvable:$true] %s5771
      %5777 = dma.vmem_to_hbm [thread:$0]  %s5772, 512, %s18, [#allocation3], 128, 128, 8
    $region77: #{tpu_custom_call.1} parent=1 // pred_fallthru
      _
    // Predicated region
    $region78: #{tpu_custom_call.1} parent=1 // pred_check
      _
    $region79: #{tpu_custom_call.1} parent=1 // pred_check_branch
      %5779 = sbr.rel (0) target = $region81
    $region80: #{tpu_custom_call.1} parent=1 // pred_region
      %5780 = dma.done [#allocation3], 512
    $region81: #{tpu_custom_call.1} parent=1 // pred_fallthru
      _
    %5781 = vsyncpa [#allocation3], 1

</llo_original>
